<compile_context>
chip_gen: v7x
topology: tpu7x:2x2x1
jax: 0.10.0
libtpu: 0.0.40
codegen_flags: <defaults>
</compile_context>

<pallas_src>
import functools
import math

import jax
import jax.numpy as jnp
import numpy as np
from jax.experimental import pallas as pl
from jax.experimental.pallas import tpu as pltpu


# ----------------------------------------------------------------------------
# In-kernel helpers (operate on values; all data stays in VMEM/vregs)
# ----------------------------------------------------------------------------
def _conv_taps(x):
    """(B, H, W, C) bf16 -> (B*H*W, 9*C) tap matrix (1-px zero halo built in regs)."""
    B, H, W, C = x.shape
    zr = jnp.zeros((B, 1, W, C), x.dtype)
    xp = jnp.concatenate([zr, x, zr], axis=1)            # (B, H+2, W, C)
    zc = jnp.zeros((B, H + 2, 1, C), x.dtype)
    xp = jnp.concatenate([zc, xp, zc], axis=2)           # (B, H+2, W+2, C)
    taps = jnp.concatenate(
        [xp[:, dy:dy + H, dx:dx + W, :] for dy in range(3) for dx in range(3)],
        axis=-1)                                         # (B, H, W, 9*C)
    return taps.reshape(B * H * W, 9 * C)


def _down_block(x, w_ref, shift_ref):
    """conv3x3 (BN scale pre-folded) + shift + ReLU + 2x2/2 maxpool."""
    B, H, W, _ = x.shape
    Cout = w_ref.shape[1]
    taps = _conv_taps(x)
    y = jnp.dot(taps, w_ref[...], preferred_element_type=jnp.float32)
    y = jnp.maximum(y + shift_ref[...], 0.0)             # (B*H*W, Cout) f32
    y = y.reshape(B, H // 2, 2, W // 2, 2, Cout)
    y = jnp.max(jnp.max(y, axis=4), axis=2)              # (B, H//2, W//2, Cout)
    return y.astype(jnp.bfloat16)


def _up_block(x, w_ref, shift_ref, aw_ref, ah_ref):
    """conv3x3 (BN scale pre-folded) + shift + ReLU + separable bilinear x2."""
    B, H, W, _ = x.shape
    Cout = w_ref.shape[1]
    taps = _conv_taps(x)
    y = jnp.dot(taps, w_ref[...], preferred_element_type=jnp.float32)
    y = jnp.maximum(y + shift_ref[...], 0.0).astype(jnp.bfloat16)
    # W-axis upsample: batched matmul over rows (r = B*H).
    y = y.reshape(B * H, W, Cout)
    aw = jnp.broadcast_to(aw_ref[...], (B * H, 2 * W, W))            # bf16
    t = jnp.einsum("rOw,rwc->rOc", aw, y, preferred_element_type=jnp.float32)
    # H-axis upsample: flat lane-dense matmul (N = 2W*Cout).
    t = t.astype(jnp.bfloat16).reshape(B, H, 2 * W * Cout)
    ah = jnp.broadcast_to(ah_ref[...], (B, 2 * H, H))                # bf16
    u = jnp.einsum("bOh,bhn->bOn", ah, t, preferred_element_type=jnp.float32)
    return u.reshape(B, 2 * H, 2 * W, Cout).astype(jnp.bfloat16)


# ----------------------------------------------------------------------------
# Fused whole-network kernel
# ----------------------------------------------------------------------------
def _autoencoder_kernel(*args, Bblk, H, W, channels):
    channels = list(channels)
    use_channels = channels + channels[::-1][1:]
    n_down = len(channels) - 1
    n_blocks = len(use_channels) - 1

    it = iter(args)
    taps_in_ref = next(it)
    w_in_ref, b_in_ref = next(it), next(it)
    blocks = []
    for i in range(n_blocks):
        if i < n_down:
            blocks.append((next(it), next(it)))                      # w, shift
        else:
            blocks.append((next(it), next(it), next(it), next(it)))  # w, shift, Aw, Ah
    w_out_ref, b_out_ref = next(it), next(it)
    o_ref = next(it)

    # conv_in (Cin=3 im2col precomputed in the XLA wrapper): K = 9*Cin matmul.
    k_in = taps_in_ref.shape[-1]
    taps = taps_in_ref[...].reshape(Bblk * H * W, k_in)
    y = jnp.dot(taps, w_in_ref[...], preferred_element_type=jnp.float32)
    y = y + b_in_ref[...]
    x = y.reshape(Bblk, H, W, channels[0]).astype(jnp.bfloat16)

    # down / up blocks, all intermediates kept in VMEM as values.
    for i in range(n_blocks):
        if i < n_down:
            x = _down_block(x, *blocks[i])
        else:
            x = _up_block(x, *blocks[i])

    # conv_out (bias only), emitted lane-dense as (B, Cout, H*W).
    taps = _conv_taps(x)
    y = jnp.dot(taps, w_out_ref[...], preferred_element_type=jnp.float32)
    y = y + b_out_ref[...]
    out_ch = o_ref.shape[1]
    y = y.reshape(Bblk, H * W, out_ch)
    o_ref[...] = jnp.transpose(y, (0, 2, 1)).astype(o_ref.dtype)


# ----------------------------------------------------------------------------
# Host-side parameter preparation (done ONCE, outside the jitted forward)
# ----------------------------------------------------------------------------
def _pack_w(w_oihw):
    """(Cout, Cin, 3, 3) -> (9*Cin, Cout) bf16, tap-major rows (t = 3*dy + dx)."""
    cout, cin = w_oihw.shape[0], w_oihw.shape[1]
    return jnp.transpose(w_oihw, (2, 3, 1, 0)).reshape(9 * cin, cout).astype(jnp.bfloat16)


def prepare_params(params, channels, eps=1e-5):
    """Pack weights, fold BN scale into conv weights, fold bias/mean into shift."""
    channels = list(channels)
    use_channels = channels + channels[::-1][1:]
    prep = {}

    p = params["conv_in"]
    prep["w_in"] = _pack_w(p["w"])
    prep["b_in"] = p["b"].reshape(1, -1).astype(jnp.float32)

    for i in range(len(use_channels) - 1):
        p = params[f"block_{i}"]
        scale = p["gamma"] / jnp.sqrt(p["var"] + eps)
        shift = p["beta"] + (p["b"] - p["mean"]) * scale
        prep[f"w_{i}"] = _pack_w(p["w"] * scale[:, None, None, None])   # BN scale folded
        prep[f"shift_{i}"] = shift.reshape(1, -1).astype(jnp.float32)

    p = params["conv_out"]
    prep["w_out"] = _pack_w(p["w"])
    prep["b_out"] = p["b"].reshape(1, -1).astype(jnp.float32)
    return prep


@functools.lru_cache(maxsize=None)
def _axis_matrix(n):
    """(2n, n) bilinear x2 interpolation matrix along one axis (align_corners=True)."""
    m = np.zeros((2 * n, n), np.float32)
    for o in range(2 * n):
        src = o * (n - 1) / (2 * n - 1) if 2 * n > 1 else 0.0
        i0 = min(int(math.floor(src)), n - 1)
        i1 = min(i0 + 1, n - 1)
        f = src - i0
        m[o, i0] += 1.0 - f
        m[o, i1] += f
    return m


def _im2col_nchw(x_nchw):
    """(B, Cin, H, W) -> (B, H*W, 9*Cin) bf16 im2col for the tiny input conv."""
    B, C, H, W = x_nchw.shape
    x = jnp.transpose(x_nchw, (0, 2, 3, 1))
    xp = jnp.pad(x, ((0, 0), (1, 1), (1, 1), (0, 0)))
    taps = jnp.concatenate(
        [xp[:, dy:dy + H, dx:dx + W, :] for dy in range(3) for dx in range(3)],
        axis=-1)
    return taps.reshape(B, H * W, 9 * C).astype(jnp.bfloat16)


def _const_spec(shape):
    n = len(shape)
    return pl.BlockSpec(shape, lambda *_: (0,) * n)


# ----------------------------------------------------------------------------
# Forward: ONE pallas_call for the whole network
# ----------------------------------------------------------------------------
def autoencoder_forward(x_nchw, prep, *, channels, block_b=1):
    channels = list(channels)
    use_channels = channels + channels[::-1][1:]
    n_down = len(channels) - 1
    n_blocks = len(use_channels) - 1
    B, Cin, H, W = x_nchw.shape
    out_ch = prep["w_out"].shape[1]
    assert B % block_b == 0 and H % (1 << n_down) == 0 and W % (1 << n_down) == 0

    taps_in = _im2col_nchw(x_nchw)                          # (B, H*W, 9*Cin) bf16

    operands = [taps_in, prep["w_in"], prep["b_in"]]
    in_specs = [
        pl.BlockSpec((block_b, H * W, 9 * Cin), lambda i: (i, 0, 0)),
        _const_spec(prep["w_in"].shape),
        _const_spec(prep["b_in"].shape),
    ]

    h, w = H, W
    for i in range(n_blocks):
        operands += [prep[f"w_{i}"], prep[f"shift_{i}"]]
        in_specs += [_const_spec(prep[f"w_{i}"].shape),
                     _const_spec(prep[f"shift_{i}"].shape)]
        if i < n_down:
            h, w = h // 2, w // 2
        else:
            aw = jnp.asarray(_axis_matrix(w), jnp.bfloat16)   # (2w, w)
            ah = jnp.asarray(_axis_matrix(h), jnp.bfloat16)   # (2h, h)
            operands += [aw, ah]
            in_specs += [_const_spec(aw.shape), _const_spec(ah.shape)]
            h, w = 2 * h, 2 * w

    operands += [prep["w_out"], prep["b_out"]]
    in_specs += [_const_spec(prep["w_out"].shape), _const_spec(prep["b_out"].shape)]

    kernel = functools.partial(
        _autoencoder_kernel, Bblk=block_b, H=H, W=W, channels=tuple(channels))

    y = pl.pallas_call(
        kernel,
        out_shape=jax.ShapeDtypeStruct((B, out_ch, H * W), jnp.float32),
        grid=(B // block_b,),
        in_specs=in_specs,
        out_specs=pl.BlockSpec((block_b, out_ch, H * W), lambda i: (i, 0, 0)),
        compiler_params=pltpu.CompilerParams(
            dimension_semantics=("parallel",),
            vmem_limit_bytes=32 * 1024 * 1024),
    )(*operands)

    return y.reshape(B, out_ch, H, W)                       # lane-dense store absorbed the NCHW transpose


# ----------------------------------------------------------------------------
# Deterministic parameter init (synthetic — no checkpoint load)
# ----------------------------------------------------------------------------
def _conv_init(key, cin, cout):
    k1, k2 = jax.random.split(key)
    bound = 1.0 / math.sqrt(cin * 9)
    w = jax.random.uniform(k1, (cout, cin, 3, 3), jnp.float32, -bound, bound)
    b = jax.random.uniform(k2, (cout,), jnp.float32, -bound, bound)
    return w, b


def init_params(key, channels, in_ch, out_ch):
    channels = list(channels)
    use_channels = channels + channels[::-1][1:]
    params = {}

    key, k = jax.random.split(key)
    w, b = _conv_init(k, in_ch, channels[0])
    params["conv_in"] = {"w": w, "b": b}

    for i in range(len(use_channels) - 1):
        c1, c2 = use_channels[i], use_channels[i + 1]
        key, kc, kb = jax.random.split(key, 3)
        w, b = _conv_init(kc, c1, c2)
        kbs = jax.random.split(kb, 4)
        params[f"block_{i}"] = {
            "w": w,
            "b": b,
            "gamma": 1.0 + 0.1 * jax.random.normal(kbs[0], (c2,), jnp.float32),
            "beta": 0.1 * jax.random.normal(kbs[1], (c2,), jnp.float32),
            "mean": 0.1 * jax.random.normal(kbs[2], (c2,), jnp.float32),
            "var": jax.random.uniform(kbs[3], (c2,), jnp.float32, 0.5, 1.5),
        }

    key, k = jax.random.split(key)
    w, b = _conv_init(k, channels[0], out_ch)
    params["conv_out"] = {"w": w, "b": b}
    return params


if __name__ == "__main__":
    channels = (64, 128, 256)          # module defaults
    B, C_in, S = 2, 3, 16              # small NCHW input: (2, 3, 16, 16)

    key = jax.random.PRNGKey(0)
    k_x, k_p = jax.random.split(key)
    x = jax.random.normal(k_x, (B, C_in, S, S), jnp.float32)
    params = init_params(k_p, channels, in_ch=C_in, out_ch=3)
    prep = prepare_params(params, channels)   # one-time: pack weights, fold BN

    fwd = jax.jit(functools.partial(autoencoder_forward, channels=channels))
    y = jax.block_until_ready(fwd(x, prep))

    assert y.shape == (B, 3, S, S), y.shape
    assert bool(jnp.all(jnp.isfinite(y)))
    print("KERNEL_OK")
</pallas_src>

<mosaic_0001>
module attributes {stable_mosaic.version = 11 : i64} {
  func.func @_autoencoder_kernel(%arg0: i32, %arg1: memref<1x256x27xbf16, #tpu.memory_space<vmem>>, %arg2: memref<27x64xbf16, #tpu.memory_space<vmem>>, %arg3: memref<1x64xf32, #tpu.memory_space<vmem>>, %arg4: memref<576x128xbf16, #tpu.memory_space<vmem>>, %arg5: memref<1x128xf32, #tpu.memory_space<vmem>>, %arg6: memref<1152x256xbf16, #tpu.memory_space<vmem>>, %arg7: memref<1x256xf32, #tpu.memory_space<vmem>>, %arg8: memref<2304x128xbf16, #tpu.memory_space<vmem>>, %arg9: memref<1x128xf32, #tpu.memory_space<vmem>>, %arg10: memref<8x4xbf16, #tpu.memory_space<vmem>>, %arg11: memref<8x4xbf16, #tpu.memory_space<vmem>>, %arg12: memref<1152x64xbf16, #tpu.memory_space<vmem>>, %arg13: memref<1x64xf32, #tpu.memory_space<vmem>>, %arg14: memref<16x8xbf16, #tpu.memory_space<vmem>>, %arg15: memref<16x8xbf16, #tpu.memory_space<vmem>>, %arg16: memref<576x3xbf16, #tpu.memory_space<vmem>>, %arg17: memref<1x3xf32, #tpu.memory_space<vmem>>, %arg18: memref<1x3x256xf32, #tpu.memory_space<vmem>>) attributes {dimension_semantics = [#tpu.dimension_semantics<parallel>], iteration_bounds = array<i64: 2>, scalar_prefetch = 0 : i64, scratch_operands = 0 : i64, tpu.core_type = #tpu.core_type<tc>, window_params = [{transform_indices = @transform_0, window_bounds = array<i64: 1, 256, 27>}, {pipeline_mode = #tpu.pipeline_mode<synchronous>, transform_indices = @transform_1, window_bounds = array<i64: 27, 64>}, {pipeline_mode = #tpu.pipeline_mode<synchronous>, transform_indices = @transform_2, window_bounds = array<i64: 1, 64>}, {pipeline_mode = #tpu.pipeline_mode<synchronous>, transform_indices = @transform_3, window_bounds = array<i64: 576, 128>}, {pipeline_mode = #tpu.pipeline_mode<synchronous>, transform_indices = @transform_4, window_bounds = array<i64: 1, 128>}, {pipeline_mode = #tpu.pipeline_mode<synchronous>, transform_indices = @transform_5, window_bounds = array<i64: 1152, 256>}, {pipeline_mode = #tpu.pipeline_mode<synchronous>, transform_indices = @transform_6, window_bounds = array<i64: 1, 256>}, {pipeline_mode = #tpu.pipeline_mode<synchronous>, transform_indices = @transform_7, window_bounds = array<i64: 2304, 128>}, {pipeline_mode = #tpu.pipeline_mode<synchronous>, transform_indices = @transform_8, window_bounds = array<i64: 1, 128>}, {pipeline_mode = #tpu.pipeline_mode<synchronous>, transform_indices = @transform_9, window_bounds = array<i64: 8, 4>}, {pipeline_mode = #tpu.pipeline_mode<synchronous>, transform_indices = @transform_10, window_bounds = array<i64: 8, 4>}, {pipeline_mode = #tpu.pipeline_mode<synchronous>, transform_indices = @transform_11, window_bounds = array<i64: 1152, 64>}, {pipeline_mode = #tpu.pipeline_mode<synchronous>, transform_indices = @transform_12, window_bounds = array<i64: 1, 64>}, {pipeline_mode = #tpu.pipeline_mode<synchronous>, transform_indices = @transform_13, window_bounds = array<i64: 16, 8>}, {pipeline_mode = #tpu.pipeline_mode<synchronous>, transform_indices = @transform_14, window_bounds = array<i64: 16, 8>}, {pipeline_mode = #tpu.pipeline_mode<synchronous>, transform_indices = @transform_15, window_bounds = array<i64: 576, 3>}, {pipeline_mode = #tpu.pipeline_mode<synchronous>, transform_indices = @transform_16, window_bounds = array<i64: 1, 3>}, {transform_indices = @transform_17, window_bounds = array<i64: 1, 3, 256>}]} {
    %c0 = arith.constant 0 : index
    %c0_0 = arith.constant 0 : index
    %c0_1 = arith.constant 0 : index
    %0 = vector.load %arg1[%c0, %c0_0, %c0_1] : memref<1x256x27xbf16, #tpu.memory_space<vmem>>, vector<1x256x27xbf16>
    %1 = vector.shape_cast %0 : vector<1x256x27xbf16> to vector<256x27xbf16>
    %c0_2 = arith.constant 0 : index
    %c0_3 = arith.constant 0 : index
    %2 = vector.load %arg2[%c0_2, %c0_3] : memref<27x64xbf16, #tpu.memory_space<vmem>>, vector<27x64xbf16>
    %cst = arith.constant dense<0.000000e+00> : vector<256x64xf32>
    %3 = tpu.matmul %1, %2, %cst {dimension_numbers = #tpu.dot_dimension_numbers<[1], [0], [0], [1], [0, 0, 1, 1], [], []>} : vector<256x27xbf16>, vector<27x64xbf16>, vector<256x64xf32> -> vector<256x64xf32>
    %c0_4 = arith.constant 0 : index
    %c0_5 = arith.constant 0 : index
    %4 = vector.load %arg3[%c0_4, %c0_5] : memref<1x64xf32, #tpu.memory_space<vmem>>, vector<1x64xf32>
    %5 = vector.broadcast %4 : vector<1x64xf32> to vector<256x64xf32>
    %6 = arith.addf %3, %5 : vector<256x64xf32>
    %7 = vector.shape_cast %6 : vector<256x64xf32> to vector<1x16x16x64xf32>
    %8 = arith.truncf %7 : vector<1x16x16x64xf32> to vector<1x16x16x64xbf16>
    %cst_6 = arith.constant 0.000000e+00 : bf16
    %9 = vector.broadcast %cst_6 : bf16 to vector<1x1x16x64xbf16>
    %10 = tpu.concatenate %9, %8, %9 in 1 : vector<1x1x16x64xbf16>, vector<1x16x16x64xbf16>, vector<1x1x16x64xbf16> -> vector<1x18x16x64xbf16>
    %cst_7 = arith.constant 0.000000e+00 : bf16
    %11 = vector.broadcast %cst_7 : bf16 to vector<1x18x1x64xbf16>
    %12 = tpu.concatenate %11, %10, %11 in 2 : vector<1x18x1x64xbf16>, vector<1x18x16x64xbf16>, vector<1x18x1x64xbf16> -> vector<1x18x18x64xbf16>
    %13 = vector.extract_strided_slice %12 {offsets = [0, 0, 0, 0], sizes = [1, 16, 16, 64], strides = [1, 1, 1, 1]} : vector<1x18x18x64xbf16> to vector<1x16x16x64xbf16>
    %14 = vector.extract_strided_slice %12 {offsets = [0, 0, 1, 0], sizes = [1, 16, 16, 64], strides = [1, 1, 1, 1]} : vector<1x18x18x64xbf16> to vector<1x16x16x64xbf16>
    %15 = vector.extract_strided_slice %12 {offsets = [0, 0, 2, 0], sizes = [1, 16, 16, 64], strides = [1, 1, 1, 1]} : vector<1x18x18x64xbf16> to vector<1x16x16x64xbf16>
    %16 = vector.extract_strided_slice %12 {offsets = [0, 1, 0, 0], sizes = [1, 16, 16, 64], strides = [1, 1, 1, 1]} : vector<1x18x18x64xbf16> to vector<1x16x16x64xbf16>
    %17 = vector.extract_strided_slice %12 {offsets = [0, 1, 1, 0], sizes = [1, 16, 16, 64], strides = [1, 1, 1, 1]} : vector<1x18x18x64xbf16> to vector<1x16x16x64xbf16>
    %18 = vector.extract_strided_slice %12 {offsets = [0, 1, 2, 0], sizes = [1, 16, 16, 64], strides = [1, 1, 1, 1]} : vector<1x18x18x64xbf16> to vector<1x16x16x64xbf16>
    %19 = vector.extract_strided_slice %12 {offsets = [0, 2, 0, 0], sizes = [1, 16, 16, 64], strides = [1, 1, 1, 1]} : vector<1x18x18x64xbf16> to vector<1x16x16x64xbf16>
    %20 = vector.extract_strided_slice %12 {offsets = [0, 2, 1, 0], sizes = [1, 16, 16, 64], strides = [1, 1, 1, 1]} : vector<1x18x18x64xbf16> to vector<1x16x16x64xbf16>
    %21 = vector.extract_strided_slice %12 {offsets = [0, 2, 2, 0], sizes = [1, 16, 16, 64], strides = [1, 1, 1, 1]} : vector<1x18x18x64xbf16> to vector<1x16x16x64xbf16>
    %22 = tpu.concatenate %13, %14, %15, %16, %17, %18, %19, %20, %21 in 3 : vector<1x16x16x64xbf16>, vector<1x16x16x64xbf16>, vector<1x16x16x64xbf16>, vector<1x16x16x64xbf16>, vector<1x16x16x64xbf16>, vector<1x16x16x64xbf16>, vector<1x16x16x64xbf16>, vector<1x16x16x64xbf16>, vector<1x16x16x64xbf16> -> vector<1x16x16x576xbf16>
    %23 = vector.shape_cast %22 : vector<1x16x16x576xbf16> to vector<256x576xbf16>
    %c0_8 = arith.constant 0 : index
    %c0_9 = arith.constant 0 : index
    %24 = vector.load %arg4[%c0_8, %c0_9] : memref<576x128xbf16, #tpu.memory_space<vmem>>, vector<576x128xbf16>
    %cst_10 = arith.constant dense<0.000000e+00> : vector<256x128xf32>
    %25 = tpu.matmul %23, %24, %cst_10 {dimension_numbers = #tpu.dot_dimension_numbers<[1], [0], [0], [1], [0, 0, 1, 1], [], []>} : vector<256x576xbf16>, vector<576x128xbf16>, vector<256x128xf32> -> vector<256x128xf32>
    %c0_11 = arith.constant 0 : index
    %c0_12 = arith.constant 0 : index
    %26 = vector.load %arg5[%c0_11, %c0_12] : memref<1x128xf32, #tpu.memory_space<vmem>>, vector<1x128xf32>
    %27 = vector.broadcast %26 : vector<1x128xf32> to vector<256x128xf32>
    %28 = arith.addf %25, %27 : vector<256x128xf32>
    %cst_13 = arith.constant 0.000000e+00 : f32
    %29 = vector.broadcast %cst_13 : f32 to vector<256x128xf32>
    %30 = arith.maximumf %28, %29 : vector<256x128xf32>
    %31 = vector.shape_cast %30 : vector<256x128xf32> to vector<1x8x2x8x2x128xf32>
    %cst_14 = arith.constant dense<0xFF800000> : vector<1x8x2x8x128xf32>
    %32 = vector.multi_reduction <maximumf>, %31, %cst_14 [4] : vector<1x8x2x8x2x128xf32> to vector<1x8x2x8x128xf32>
    %cst_15 = arith.constant dense<0xFF800000> : vector<1x8x8x128xf32>
    %33 = vector.multi_reduction <maximumf>, %32, %cst_15 [2] : vector<1x8x2x8x128xf32> to vector<1x8x8x128xf32>
    %34 = arith.truncf %33 : vector<1x8x8x128xf32> to vector<1x8x8x128xbf16>
    %cst_16 = arith.constant 0.000000e+00 : bf16
    %35 = vector.broadcast %cst_16 : bf16 to vector<1x1x8x128xbf16>
    %36 = tpu.concatenate %35, %34, %35 in 1 : vector<1x1x8x128xbf16>, vector<1x8x8x128xbf16>, vector<1x1x8x128xbf16> -> vector<1x10x8x128xbf16>
    %cst_17 = arith.constant 0.000000e+00 : bf16
    %37 = vector.broadcast %cst_17 : bf16 to vector<1x10x1x128xbf16>
    %38 = tpu.concatenate %37, %36, %37 in 2 : vector<1x10x1x128xbf16>, vector<1x10x8x128xbf16>, vector<1x10x1x128xbf16> -> vector<1x10x10x128xbf16>
    %39 = vector.extract_strided_slice %38 {offsets = [0, 0, 0, 0], sizes = [1, 8, 8, 128], strides = [1, 1, 1, 1]} : vector<1x10x10x128xbf16> to vector<1x8x8x128xbf16>
    %40 = vector.extract_strided_slice %38 {offsets = [0, 0, 1, 0], sizes = [1, 8, 8, 128], strides = [1, 1, 1, 1]} : vector<1x10x10x128xbf16> to vector<1x8x8x128xbf16>
    %41 = vector.extract_strided_slice %38 {offsets = [0, 0, 2, 0], sizes = [1, 8, 8, 128], strides = [1, 1, 1, 1]} : vector<1x10x10x128xbf16> to vector<1x8x8x128xbf16>
    %42 = vector.extract_strided_slice %38 {offsets = [0, 1, 0, 0], sizes = [1, 8, 8, 128], strides = [1, 1, 1, 1]} : vector<1x10x10x128xbf16> to vector<1x8x8x128xbf16>
    %43 = vector.extract_strided_slice %38 {offsets = [0, 1, 1, 0], sizes = [1, 8, 8, 128], strides = [1, 1, 1, 1]} : vector<1x10x10x128xbf16> to vector<1x8x8x128xbf16>
    %44 = vector.extract_strided_slice %38 {offsets = [0, 1, 2, 0], sizes = [1, 8, 8, 128], strides = [1, 1, 1, 1]} : vector<1x10x10x128xbf16> to vector<1x8x8x128xbf16>
    %45 = vector.extract_strided_slice %38 {offsets = [0, 2, 0, 0], sizes = [1, 8, 8, 128], strides = [1, 1, 1, 1]} : vector<1x10x10x128xbf16> to vector<1x8x8x128xbf16>
    %46 = vector.extract_strided_slice %38 {offsets = [0, 2, 1, 0], sizes = [1, 8, 8, 128], strides = [1, 1, 1, 1]} : vector<1x10x10x128xbf16> to vector<1x8x8x128xbf16>
    %47 = vector.extract_strided_slice %38 {offsets = [0, 2, 2, 0], sizes = [1, 8, 8, 128], strides = [1, 1, 1, 1]} : vector<1x10x10x128xbf16> to vector<1x8x8x128xbf16>
    %48 = tpu.concatenate %39, %40, %41, %42, %43, %44, %45, %46, %47 in 3 : vector<1x8x8x128xbf16>, vector<1x8x8x128xbf16>, vector<1x8x8x128xbf16>, vector<1x8x8x128xbf16>, vector<1x8x8x128xbf16>, vector<1x8x8x128xbf16>, vector<1x8x8x128xbf16>, vector<1x8x8x128xbf16>, vector<1x8x8x128xbf16> -> vector<1x8x8x1152xbf16>
    %49 = vector.shape_cast %48 : vector<1x8x8x1152xbf16> to vector<64x1152xbf16>
    %c0_18 = arith.constant 0 : index
    %c0_19 = arith.constant 0 : index
    %50 = vector.load %arg6[%c0_18, %c0_19] : memref<1152x256xbf16, #tpu.memory_space<vmem>>, vector<1152x256xbf16>
    %cst_20 = arith.constant dense<0.000000e+00> : vector<64x256xf32>
    %51 = tpu.matmul %49, %50, %cst_20 {dimension_numbers = #tpu.dot_dimension_numbers<[1], [0], [0], [1], [0, 0, 1, 1], [], []>} : vector<64x1152xbf16>, vector<1152x256xbf16>, vector<64x256xf32> -> vector<64x256xf32>
    %c0_21 = arith.constant 0 : index
    %c0_22 = arith.constant 0 : index
    %52 = vector.load %arg7[%c0_21, %c0_22] : memref<1x256xf32, #tpu.memory_space<vmem>>, vector<1x256xf32>
    %53 = vector.broadcast %52 : vector<1x256xf32> to vector<64x256xf32>
    %54 = arith.addf %51, %53 : vector<64x256xf32>
    %cst_23 = arith.constant 0.000000e+00 : f32
    %55 = vector.broadcast %cst_23 : f32 to vector<64x256xf32>
    %56 = arith.maximumf %54, %55 : vector<64x256xf32>
    %57 = vector.shape_cast %56 : vector<64x256xf32> to vector<1x4x2x4x2x256xf32>
    %cst_24 = arith.constant dense<0xFF800000> : vector<1x4x2x4x256xf32>
    %58 = vector.multi_reduction <maximumf>, %57, %cst_24 [4] : vector<1x4x2x4x2x256xf32> to vector<1x4x2x4x256xf32>
    %cst_25 = arith.constant dense<0xFF800000> : vector<1x4x4x256xf32>
    %59 = vector.multi_reduction <maximumf>, %58, %cst_25 [2] : vector<1x4x2x4x256xf32> to vector<1x4x4x256xf32>
    %60 = arith.truncf %59 : vector<1x4x4x256xf32> to vector<1x4x4x256xbf16>
    %cst_26 = arith.constant 0.000000e+00 : bf16
    %61 = vector.broadcast %cst_26 : bf16 to vector<1x1x4x256xbf16>
    %62 = tpu.concatenate %61, %60, %61 in 1 : vector<1x1x4x256xbf16>, vector<1x4x4x256xbf16>, vector<1x1x4x256xbf16> -> vector<1x6x4x256xbf16>
    %cst_27 = arith.constant 0.000000e+00 : bf16
    %63 = vector.broadcast %cst_27 : bf16 to vector<1x6x1x256xbf16>
    %64 = tpu.concatenate %63, %62, %63 in 2 : vector<1x6x1x256xbf16>, vector<1x6x4x256xbf16>, vector<1x6x1x256xbf16> -> vector<1x6x6x256xbf16>
    %65 = vector.extract_strided_slice %64 {offsets = [0, 0, 0, 0], sizes = [1, 4, 4, 256], strides = [1, 1, 1, 1]} : vector<1x6x6x256xbf16> to vector<1x4x4x256xbf16>
    %66 = vector.extract_strided_slice %64 {offsets = [0, 0, 1, 0], sizes = [1, 4, 4, 256], strides = [1, 1, 1, 1]} : vector<1x6x6x256xbf16> to vector<1x4x4x256xbf16>
    %67 = vector.extract_strided_slice %64 {offsets = [0, 0, 2, 0], sizes = [1, 4, 4, 256], strides = [1, 1, 1, 1]} : vector<1x6x6x256xbf16> to vector<1x4x4x256xbf16>
    %68 = vector.extract_strided_slice %64 {offsets = [0, 1, 0, 0], sizes = [1, 4, 4, 256], strides = [1, 1, 1, 1]} : vector<1x6x6x256xbf16> to vector<1x4x4x256xbf16>
    %69 = vector.extract_strided_slice %64 {offsets = [0, 1, 1, 0], sizes = [1, 4, 4, 256], strides = [1, 1, 1, 1]} : vector<1x6x6x256xbf16> to vector<1x4x4x256xbf16>
    %70 = vector.extract_strided_slice %64 {offsets = [0, 1, 2, 0], sizes = [1, 4, 4, 256], strides = [1, 1, 1, 1]} : vector<1x6x6x256xbf16> to vector<1x4x4x256xbf16>
    %71 = vector.extract_strided_slice %64 {offsets = [0, 2, 0, 0], sizes = [1, 4, 4, 256], strides = [1, 1, 1, 1]} : vector<1x6x6x256xbf16> to vector<1x4x4x256xbf16>
    %72 = vector.extract_strided_slice %64 {offsets = [0, 2, 1, 0], sizes = [1, 4, 4, 256], strides = [1, 1, 1, 1]} : vector<1x6x6x256xbf16> to vector<1x4x4x256xbf16>
    %73 = vector.extract_strided_slice %64 {offsets = [0, 2, 2, 0], sizes = [1, 4, 4, 256], strides = [1, 1, 1, 1]} : vector<1x6x6x256xbf16> to vector<1x4x4x256xbf16>
    %74 = tpu.concatenate %65, %66, %67, %68, %69, %70, %71, %72, %73 in 3 : vector<1x4x4x256xbf16>, vector<1x4x4x256xbf16>, vector<1x4x4x256xbf16>, vector<1x4x4x256xbf16>, vector<1x4x4x256xbf16>, vector<1x4x4x256xbf16>, vector<1x4x4x256xbf16>, vector<1x4x4x256xbf16>, vector<1x4x4x256xbf16> -> vector<1x4x4x2304xbf16>
    %75 = vector.shape_cast %74 : vector<1x4x4x2304xbf16> to vector<16x2304xbf16>
    %c0_28 = arith.constant 0 : index
    %c0_29 = arith.constant 0 : index
    %76 = vector.load %arg8[%c0_28, %c0_29] : memref<2304x128xbf16, #tpu.memory_space<vmem>>, vector<2304x128xbf16>
    %cst_30 = arith.constant dense<0.000000e+00> : vector<16x128xf32>
    %77 = tpu.matmul %75, %76, %cst_30 {dimension_numbers = #tpu.dot_dimension_numbers<[1], [0], [0], [1], [0, 0, 1, 1], [], []>} : vector<16x2304xbf16>, vector<2304x128xbf16>, vector<16x128xf32> -> vector<16x128xf32>
    %c0_31 = arith.constant 0 : index
    %c0_32 = arith.constant 0 : index
    %78 = vector.load %arg9[%c0_31, %c0_32] : memref<1x128xf32, #tpu.memory_space<vmem>>, vector<1x128xf32>
    %79 = vector.broadcast %78 : vector<1x128xf32> to vector<16x128xf32>
    %80 = arith.addf %77, %79 : vector<16x128xf32>
    %cst_33 = arith.constant 0.000000e+00 : f32
    %81 = vector.broadcast %cst_33 : f32 to vector<16x128xf32>
    %82 = arith.maximumf %80, %81 : vector<16x128xf32>
    %83 = arith.truncf %82 : vector<16x128xf32> to vector<16x128xbf16>
    %84 = vector.shape_cast %83 : vector<16x128xbf16> to vector<4x4x128xbf16>
    %c0_34 = arith.constant 0 : index
    %c0_35 = arith.constant 0 : index
    %85 = vector.load %arg10[%c0_34, %c0_35] : memref<8x4xbf16, #tpu.memory_space<vmem>>, vector<8x4xbf16>
    %86 = vector.shape_cast %85 : vector<8x4xbf16> to vector<1x8x4xbf16>
    %87 = vector.broadcast %86 : vector<1x8x4xbf16> to vector<4x8x4xbf16>
    "tpu.trace_start"() <{level = 10 : i32, message = "rOw,rwc->rOc"}> : () -> ()
    %cst_36 = arith.constant dense<0.000000e+00> : vector<4x8x128xf32>
    %88 = tpu.matmul %87, %84, %cst_36 {dimension_numbers = #tpu.dot_dimension_numbers<[2], [1], [1], [2], [0, 0, 0, 1, 1, 2], [0], [0]>} : vector<4x8x4xbf16>, vector<4x4x128xbf16>, vector<4x8x128xf32> -> vector<4x8x128xf32>
    "tpu.trace_stop"() : () -> ()
    %89 = arith.truncf %88 : vector<4x8x128xf32> to vector<4x8x128xbf16>
    %90 = vector.shape_cast %89 : vector<4x8x128xbf16> to vector<1x4x1024xbf16>
    %c0_37 = arith.constant 0 : index
    %c0_38 = arith.constant 0 : index
    %91 = vector.load %arg11[%c0_37, %c0_38] : memref<8x4xbf16, #tpu.memory_space<vmem>>, vector<8x4xbf16>
    %92 = vector.shape_cast %91 : vector<8x4xbf16> to vector<1x8x4xbf16>
    "tpu.trace_start"() <{level = 10 : i32, message = "bOh,bhn->bOn"}> : () -> ()
    %cst_39 = arith.constant dense<0.000000e+00> : vector<1x8x1024xf32>
    %93 = tpu.matmul %92, %90, %cst_39 {dimension_numbers = #tpu.dot_dimension_numbers<[2], [1], [1], [2], [0, 0, 0, 1, 1, 2], [0], [0]>} : vector<1x8x4xbf16>, vector<1x4x1024xbf16>, vector<1x8x1024xf32> -> vector<1x8x1024xf32>
    "tpu.trace_stop"() : () -> ()
    %94 = vector.shape_cast %93 : vector<1x8x1024xf32> to vector<1x8x8x128xf32>
    %95 = arith.truncf %94 : vector<1x8x8x128xf32> to vector<1x8x8x128xbf16>
    %cst_40 = arith.constant 0.000000e+00 : bf16
    %96 = vector.broadcast %cst_40 : bf16 to vector<1x1x8x128xbf16>
    %97 = tpu.concatenate %96, %95, %96 in 1 : vector<1x1x8x128xbf16>, vector<1x8x8x128xbf16>, vector<1x1x8x128xbf16> -> vector<1x10x8x128xbf16>
    %cst_41 = arith.constant 0.000000e+00 : bf16
    %98 = vector.broadcast %cst_41 : bf16 to vector<1x10x1x128xbf16>
    %99 = tpu.concatenate %98, %97, %98 in 2 : vector<1x10x1x128xbf16>, vector<1x10x8x128xbf16>, vector<1x10x1x128xbf16> -> vector<1x10x10x128xbf16>
    %100 = vector.extract_strided_slice %99 {offsets = [0, 0, 0, 0], sizes = [1, 8, 8, 128], strides = [1, 1, 1, 1]} : vector<1x10x10x128xbf16> to vector<1x8x8x128xbf16>
    %101 = vector.extract_strided_slice %99 {offsets = [0, 0, 1, 0], sizes = [1, 8, 8, 128], strides = [1, 1, 1, 1]} : vector<1x10x10x128xbf16> to vector<1x8x8x128xbf16>
    %102 = vector.extract_strided_slice %99 {offsets = [0, 0, 2, 0], sizes = [1, 8, 8, 128], strides = [1, 1, 1, 1]} : vector<1x10x10x128xbf16> to vector<1x8x8x128xbf16>
    %103 = vector.extract_strided_slice %99 {offsets = [0, 1, 0, 0], sizes = [1, 8, 8, 128], strides = [1, 1, 1, 1]} : vector<1x10x10x128xbf16> to vector<1x8x8x128xbf16>
    %104 = vector.extract_strided_slice %99 {offsets = [0, 1, 1, 0], sizes = [1, 8, 8, 128], strides = [1, 1, 1, 1]} : vector<1x10x10x128xbf16> to vector<1x8x8x128xbf16>
    %105 = vector.extract_strided_slice %99 {offsets = [0, 1, 2, 0], sizes = [1, 8, 8, 128], strides = [1, 1, 1, 1]} : vector<1x10x10x128xbf16> to vector<1x8x8x128xbf16>
    %106 = vector.extract_strided_slice %99 {offsets = [0, 2, 0, 0], sizes = [1, 8, 8, 128], strides = [1, 1, 1, 1]} : vector<1x10x10x128xbf16> to vector<1x8x8x128xbf16>
    %107 = vector.extract_strided_slice %99 {offsets = [0, 2, 1, 0], sizes = [1, 8, 8, 128], strides = [1, 1, 1, 1]} : vector<1x10x10x128xbf16> to vector<1x8x8x128xbf16>
    %108 = vector.extract_strided_slice %99 {offsets = [0, 2, 2, 0], sizes = [1, 8, 8, 128], strides = [1, 1, 1, 1]} : vector<1x10x10x128xbf16> to vector<1x8x8x128xbf16>
    %109 = tpu.concatenate %100, %101, %102, %103, %104, %105, %106, %107, %108 in 3 : vector<1x8x8x128xbf16>, vector<1x8x8x128xbf16>, vector<1x8x8x128xbf16>, vector<1x8x8x128xbf16>, vector<1x8x8x128xbf16>, vector<1x8x8x128xbf16>, vector<1x8x8x128xbf16>, vector<1x8x8x128xbf16>, vector<1x8x8x128xbf16> -> vector<1x8x8x1152xbf16>
    %110 = vector.shape_cast %109 : vector<1x8x8x1152xbf16> to vector<64x1152xbf16>
    %c0_42 = arith.constant 0 : index
    %c0_43 = arith.constant 0 : index
    %111 = vector.load %arg12[%c0_42, %c0_43] : memref<1152x64xbf16, #tpu.memory_space<vmem>>, vector<1152x64xbf16>
    %cst_44 = arith.constant dense<0.000000e+00> : vector<64x64xf32>
    %112 = tpu.matmul %110, %111, %cst_44 {dimension_numbers = #tpu.dot_dimension_numbers<[1], [0], [0], [1], [0, 0, 1, 1], [], []>} : vector<64x1152xbf16>, vector<1152x64xbf16>, vector<64x64xf32> -> vector<64x64xf32>
    %c0_45 = arith.constant 0 : index
    %c0_46 = arith.constant 0 : index
    %113 = vector.load %arg13[%c0_45, %c0_46] : memref<1x64xf32, #tpu.memory_space<vmem>>, vector<1x64xf32>
    %114 = vector.broadcast %113 : vector<1x64xf32> to vector<64x64xf32>
    %115 = arith.addf %112, %114 : vector<64x64xf32>
    %cst_47 = arith.constant 0.000000e+00 : f32
    %116 = vector.broadcast %cst_47 : f32 to vector<64x64xf32>
    %117 = arith.maximumf %115, %116 : vector<64x64xf32>
    %118 = arith.truncf %117 : vector<64x64xf32> to vector<64x64xbf16>
    %119 = vector.shape_cast %118 : vector<64x64xbf16> to vector<8x8x64xbf16>
    %c0_48 = arith.constant 0 : index
    %c0_49 = arith.constant 0 : index
    %120 = vector.load %arg14[%c0_48, %c0_49] : memref<16x8xbf16, #tpu.memory_space<vmem>>, vector<16x8xbf16>
    %121 = vector.shape_cast %120 : vector<16x8xbf16> to vector<1x16x8xbf16>
    %122 = vector.broadcast %121 : vector<1x16x8xbf16> to vector<8x16x8xbf16>
    "tpu.trace_start"() <{level = 10 : i32, message = "rOw,rwc->rOc"}> : () -> ()
    %cst_50 = arith.constant dense<0.000000e+00> : vector<8x16x64xf32>
    %123 = tpu.matmul %122, %119, %cst_50 {dimension_numbers = #tpu.dot_dimension_numbers<[2], [1], [1], [2], [0, 0, 0, 1, 1, 2], [0], [0]>} : vector<8x16x8xbf16>, vector<8x8x64xbf16>, vector<8x16x64xf32> -> vector<8x16x64xf32>
    "tpu.trace_stop"() : () -> ()
    %124 = arith.truncf %123 : vector<8x16x64xf32> to vector<8x16x64xbf16>
    %125 = vector.shape_cast %124 : vector<8x16x64xbf16> to vector<1x8x1024xbf16>
    %c0_51 = arith.constant 0 : index
    %c0_52 = arith.constant 0 : index
    %126 = vector.load %arg15[%c0_51, %c0_52] : memref<16x8xbf16, #tpu.memory_space<vmem>>, vector<16x8xbf16>
    %127 = vector.shape_cast %126 : vector<16x8xbf16> to vector<1x16x8xbf16>
    "tpu.trace_start"() <{level = 10 : i32, message = "bOh,bhn->bOn"}> : () -> ()
    %cst_53 = arith.constant dense<0.000000e+00> : vector<1x16x1024xf32>
    %128 = tpu.matmul %127, %125, %cst_53 {dimension_numbers = #tpu.dot_dimension_numbers<[2], [1], [1], [2], [0, 0, 0, 1, 1, 2], [0], [0]>} : vector<1x16x8xbf16>, vector<1x8x1024xbf16>, vector<1x16x1024xf32> -> vector<1x16x1024xf32>
    "tpu.trace_stop"() : () -> ()
    %129 = vector.shape_cast %128 : vector<1x16x1024xf32> to vector<1x16x16x64xf32>
    %130 = arith.truncf %129 : vector<1x16x16x64xf32> to vector<1x16x16x64xbf16>
    %cst_54 = arith.constant 0.000000e+00 : bf16
    %131 = vector.broadcast %cst_54 : bf16 to vector<1x1x16x64xbf16>
    %132 = tpu.concatenate %131, %130, %131 in 1 : vector<1x1x16x64xbf16>, vector<1x16x16x64xbf16>, vector<1x1x16x64xbf16> -> vector<1x18x16x64xbf16>
    %cst_55 = arith.constant 0.000000e+00 : bf16
    %133 = vector.broadcast %cst_55 : bf16 to vector<1x18x1x64xbf16>
    %134 = tpu.concatenate %133, %132, %133 in 2 : vector<1x18x1x64xbf16>, vector<1x18x16x64xbf16>, vector<1x18x1x64xbf16> -> vector<1x18x18x64xbf16>
    %135 = vector.extract_strided_slice %134 {offsets = [0, 0, 0, 0], sizes = [1, 16, 16, 64], strides = [1, 1, 1, 1]} : vector<1x18x18x64xbf16> to vector<1x16x16x64xbf16>
    %136 = vector.extract_strided_slice %134 {offsets = [0, 0, 1, 0], sizes = [1, 16, 16, 64], strides = [1, 1, 1, 1]} : vector<1x18x18x64xbf16> to vector<1x16x16x64xbf16>
    %137 = vector.extract_strided_slice %134 {offsets = [0, 0, 2, 0], sizes = [1, 16, 16, 64], strides = [1, 1, 1, 1]} : vector<1x18x18x64xbf16> to vector<1x16x16x64xbf16>
    %138 = vector.extract_strided_slice %134 {offsets = [0, 1, 0, 0], sizes = [1, 16, 16, 64], strides = [1, 1, 1, 1]} : vector<1x18x18x64xbf16> to vector<1x16x16x64xbf16>
    %139 = vector.extract_strided_slice %134 {offsets = [0, 1, 1, 0], sizes = [1, 16, 16, 64], strides = [1, 1, 1, 1]} : vector<1x18x18x64xbf16> to vector<1x16x16x64xbf16>
    %140 = vector.extract_strided_slice %134 {offsets = [0, 1, 2, 0], sizes = [1, 16, 16, 64], strides = [1, 1, 1, 1]} : vector<1x18x18x64xbf16> to vector<1x16x16x64xbf16>
    %141 = vector.extract_strided_slice %134 {offsets = [0, 2, 0, 0], sizes = [1, 16, 16, 64], strides = [1, 1, 1, 1]} : vector<1x18x18x64xbf16> to vector<1x16x16x64xbf16>
    %142 = vector.extract_strided_slice %134 {offsets = [0, 2, 1, 0], sizes = [1, 16, 16, 64], strides = [1, 1, 1, 1]} : vector<1x18x18x64xbf16> to vector<1x16x16x64xbf16>
    %143 = vector.extract_strided_slice %134 {offsets = [0, 2, 2, 0], sizes = [1, 16, 16, 64], strides = [1, 1, 1, 1]} : vector<1x18x18x64xbf16> to vector<1x16x16x64xbf16>
    %144 = tpu.concatenate %135, %136, %137, %138, %139, %140, %141, %142, %143 in 3 : vector<1x16x16x64xbf16>, vector<1x16x16x64xbf16>, vector<1x16x16x64xbf16>, vector<1x16x16x64xbf16>, vector<1x16x16x64xbf16>, vector<1x16x16x64xbf16>, vector<1x16x16x64xbf16>, vector<1x16x16x64xbf16>, vector<1x16x16x64xbf16> -> vector<1x16x16x576xbf16>
    %145 = vector.shape_cast %144 : vector<1x16x16x576xbf16> to vector<256x576xbf16>
    %c0_56 = arith.constant 0 : index
    %c0_57 = arith.constant 0 : index
    %146 = vector.load %arg16[%c0_56, %c0_57] : memref<576x3xbf16, #tpu.memory_space<vmem>>, vector<576x3xbf16>
    %cst_58 = arith.constant dense<0.000000e+00> : vector<256x3xf32>
    %147 = tpu.matmul %145, %146, %cst_58 {dimension_numbers = #tpu.dot_dimension_numbers<[1], [0], [0], [1], [0, 0, 1, 1], [], []>} : vector<256x576xbf16>, vector<576x3xbf16>, vector<256x3xf32> -> vector<256x3xf32>
    %c0_59 = arith.constant 0 : index
    %c0_60 = arith.constant 0 : index
    %148 = vector.load %arg17[%c0_59, %c0_60] : memref<1x3xf32, #tpu.memory_space<vmem>>, vector<1x3xf32>
    %149 = vector.broadcast %148 : vector<1x3xf32> to vector<256x3xf32>
    %150 = arith.addf %147, %149 : vector<256x3xf32>
    %151 = vector.shape_cast %150 : vector<256x3xf32> to vector<1x256x3xf32>
    %152 = tpu.transpose %151, [0, 2, 1] : vector<1x256x3xf32> -> vector<1x3x256xf32>
    %c0_61 = arith.constant 0 : index
    %c0_62 = arith.constant 0 : index
    %c0_63 = arith.constant 0 : index
    %153 = vector.load %arg18[%c0_61, %c0_62, %c0_63] : memref<1x3x256xf32, #tpu.memory_space<vmem>>, vector<1x3x256xf32>
    tpu.vector_store %arg18[%c0_61, %c0_62, %c0_63], %152 {strides = array<i32>} : memref<1x3x256xf32, #tpu.memory_space<vmem>>, vector<1x3x256xf32>,
    return
  }
  func.func @transform_0(%arg0: i32) -> (i32, i32, i32) {
    %c0_i32 = arith.constant 0 : i32
    %c0_i32_0 = arith.constant 0 : i32
    %c0_i32_1 = arith.constant 0 : i32
    return %arg0, %c0_i32, %c0_i32_0 : i32, i32, i32
  }
  func.func @transform_1(%arg0: i32) -> (i32, i32) {
    %c0_i32 = arith.constant 0 : i32
    %c0_i32_0 = arith.constant 0 : i32
    %c0_i32_1 = arith.constant 0 : i32
    return %c0_i32, %c0_i32_0 : i32, i32
  }
  func.func @transform_2(%arg0: i32) -> (i32, i32) {
    %c0_i32 = arith.constant 0 : i32
    %c0_i32_0 = arith.constant 0 : i32
    %c0_i32_1 = arith.constant 0 : i32
    return %c0_i32, %c0_i32_0 : i32, i32
  }
  func.func @transform_3(%arg0: i32) -> (i32, i32) {
    %c0_i32 = arith.constant 0 : i32
    %c0_i32_0 = arith.constant 0 : i32
    %c0_i32_1 = arith.constant 0 : i32
    return %c0_i32, %c0_i32_0 : i32, i32
  }
  func.func @transform_4(%arg0: i32) -> (i32, i32) {
    %c0_i32 = arith.constant 0 : i32
    %c0_i32_0 = arith.constant 0 : i32
    %c0_i32_1 = arith.constant 0 : i32
    return %c0_i32, %c0_i32_0 : i32, i32
  }
  func.func @transform_5(%arg0: i32) -> (i32, i32) {
    %c0_i32 = arith.constant 0 : i32
    %c0_i32_0 = arith.constant 0 : i32
    %c0_i32_1 = arith.constant 0 : i32
    return %c0_i32, %c0_i32_0 : i32, i32
  }
  func.func @transform_6(%arg0: i32) -> (i32, i32) {
    %c0_i32 = arith.constant 0 : i32
    %c0_i32_0 = arith.constant 0 : i32
    %c0_i32_1 = arith.constant 0 : i32
    return %c0_i32, %c0_i32_0 : i32, i32
  }
  func.func @transform_7(%arg0: i32) -> (i32, i32) {
    %c0_i32 = arith.constant 0 : i32
    %c0_i32_0 = arith.constant 0 : i32
    %c0_i32_1 = arith.constant 0 : i32
    return %c0_i32, %c0_i32_0 : i32, i32
  }
  func.func @transform_8(%arg0: i32) -> (i32, i32) {
    %c0_i32 = arith.constant 0 : i32
    %c0_i32_0 = arith.constant 0 : i32
    %c0_i32_1 = arith.constant 0 : i32
    return %c0_i32, %c0_i32_0 : i32, i32
  }
  func.func @transform_9(%arg0: i32) -> (i32, i32) {
    %c0_i32 = arith.constant 0 : i32
    %c0_i32_0 = arith.constant 0 : i32
    %c0_i32_1 = arith.constant 0 : i32
    return %c0_i32, %c0_i32_0 : i32, i32
  }
  func.func @transform_10(%arg0: i32) -> (i32, i32) {
    %c0_i32 = arith.constant 0 : i32
    %c0_i32_0 = arith.constant 0 : i32
    %c0_i32_1 = arith.constant 0 : i32
    return %c0_i32, %c0_i32_0 : i32, i32
  }
  func.func @transform_11(%arg0: i32) -> (i32, i32) {
    %c0_i32 = arith.constant 0 : i32
    %c0_i32_0 = arith.constant 0 : i32
    %c0_i32_1 = arith.constant 0 : i32
    return %c0_i32, %c0_i32_0 : i32, i32
  }
  func.func @transform_12(%arg0: i32) -> (i32, i32) {
    %c0_i32 = arith.constant 0 : i32
    %c0_i32_0 = arith.constant 0 : i32
    %c0_i32_1 = arith.constant 0 : i32
    return %c0_i32, %c0_i32_0 : i32, i32
  }
  func.func @transform_13(%arg0: i32) -> (i32, i32) {
    %c0_i32 = arith.constant 0 : i32
    %c0_i32_0 = arith.constant 0 : i32
    %c0_i32_1 = arith.constant 0 : i32
    return %c0_i32, %c0_i32_0 : i32, i32
  }
  func.func @transform_14(%arg0: i32) -> (i32, i32) {
    %c0_i32 = arith.constant 0 : i32
    %c0_i32_0 = arith.constant 0 : i32
    %c0_i32_1 = arith.constant 0 : i32
    return %c0_i32, %c0_i32_0 : i32, i32
  }
  func.func @transform_15(%arg0: i32) -> (i32, i32) {
    %c0_i32 = arith.constant 0 : i32
    %c0_i32_0 = arith.constant 0 : i32
    %c0_i32_1 = arith.constant 0 : i32
    return %c0_i32, %c0_i32_0 : i32, i32
  }
  func.func @transform_16(%arg0: i32) -> (i32, i32) {
    %c0_i32 = arith.constant 0 : i32
    %c0_i32_0 = arith.constant 0 : i32
    %c0_i32_1 = arith.constant 0 : i32
    return %c0_i32, %c0_i32_0 : i32, i32
  }
  func.func @transform_17(%arg0: i32) -> (i32, i32, i32) {
    %c0_i32 = arith.constant 0 : i32
    %c0_i32_0 = arith.constant 0 : i32
    %c0_i32_1 = arith.constant 0 : i32
    return %arg0, %c0_i32, %c0_i32_0 : i32, i32, i32
  }
}

</mosaic_0001>

<llo_original>
// kernel: autoencoder_forward.1
$region0: #{autoencoder_forward.1}
  #allocation0 [shape = 'u32[]', space=smem, size = 0x4, offset = 0x4, fixed_abs, tag = 'smem constant byte address 0x4 - core index']
  #allocation1 [shape = 'u32[144,128]{1,0:T(1,128)}', space=vmem, size = 0x12000, scoped, tag = 'internal scratch']
  %s0 = inlined_call_operand.vmem [shape: bf16[2,256,27], index: 0, kind: input, shape index: {}]
  %s1 = inlined_call_operand.vmem [shape: bf16[27,64], index: 1, kind: input, shape index: {}]
  %s2 = inlined_call_operand.vmem [shape: f32[1,64], index: 2, kind: input, shape index: {}]
  %s3 = inlined_call_operand.vmem [shape: bf16[576,128], index: 3, kind: input, shape index: {}]
  %s4 = inlined_call_operand.vmem [shape: f32[1,128], index: 4, kind: input, shape index: {}]
  %s5 = inlined_call_operand.vmem [shape: bf16[1152,256], index: 5, kind: input, shape index: {}]
  %s6 = inlined_call_operand.vmem [shape: f32[1,256], index: 6, kind: input, shape index: {}]
  %s7 = inlined_call_operand.vmem [shape: bf16[2304,128], index: 7, kind: input, shape index: {}]
  %s8 = inlined_call_operand.vmem [shape: f32[1,128], index: 8, kind: input, shape index: {}]
  %s9 = inlined_call_operand.vmem [shape: bf16[8,4], index: 9, kind: input, shape index: {}, may-alias: {9,10}]
  %s10 = inlined_call_operand.vmem [shape: bf16[8,4], index: 10, kind: input, shape index: {}, may-alias: {9,10}]
  %s11 = inlined_call_operand.vmem [shape: bf16[1152,64], index: 11, kind: input, shape index: {}]
  %s12 = inlined_call_operand.vmem [shape: f32[1,64], index: 12, kind: input, shape index: {}]
  %s13 = inlined_call_operand.vmem [shape: bf16[16,8], index: 13, kind: input, shape index: {}, may-alias: {13,14}]
  %s14 = inlined_call_operand.vmem [shape: bf16[16,8], index: 14, kind: input, shape index: {}, may-alias: {13,14}]
  %s15 = inlined_call_operand.vmem [shape: bf16[576,3], index: 15, kind: input, shape index: {}]
  %s16 = inlined_call_operand.vmem [shape: f32[1,3], index: 16, kind: input, shape index: {}]
  %s17 = inlined_call_operand.vmem [shape: f32[2,3,256], index: 17, kind: output, shape index: {}]
  %s18 = sld [smem:[#allocation0]]
  $region101: #{autoencoder_forward.1} parent=0
    _
  %s20 = ssub.s32 1, %s18
  %s21 = scalar_select 0, %s20, %s18
  loop: start=0, step=1, limit=4
  $region2: #{autoencoder_forward.1} parent=0 // loop_pre_header
    _
  $region3: #{autoencoder_forward.1} parent=0 // loop_header
    %s23 = sphi 0, %s27
    %p24 = scmp.ge.s32.totalorder %s23, 4
    %s33 = sphi 0, %s35
    %s36 = sphi 0, %s33
    %s37 = sphi 0, %s36
    %s53 = sphi 0, %s37
    %s57 = sphi 0, %s57
    %s59 = sphi 0, %s57
    %s60 = sphi 0, %s59
    %s74 = sphi 0, %s60
    %s78 = sphi 0, %s78
    %s80 = sphi 0, %s78
    %s81 = sphi 0, %s80
    %s95 = sphi 0, %s81
    %s99 = sphi 0, %s99
    %s101 = sphi 0, %s99
    %s102 = sphi 0, %s101
    %s116 = sphi 0, %s102
    %s120 = sphi 0, %s120
    %s122 = sphi 0, %s120
    %s123 = sphi 0, %s122
    %s137 = sphi 0, %s123
    %s141 = sphi 0, %s141
    %s143 = sphi 0, %s141
    %s144 = sphi 0, %s143
    %s158 = sphi 0, %s144
    %s162 = sphi 0, %s162
    %s164 = sphi 0, %s162
    %s165 = sphi 0, %s164
    %s179 = sphi 0, %s165
    %s183 = sphi 0, %s183
    %s185 = sphi 0, %s183
    %s186 = sphi 0, %s185
    %s200 = sphi 0, %s186
    %s204 = sphi 0, %s204
    %s206 = sphi 0, %s204
    %s207 = sphi 0, %s206
    %s221 = sphi 0, %s207
    %s225 = sphi 0, %s225
    %s227 = sphi 0, %s225
    %s228 = sphi 0, %s227
    %s242 = sphi 0, %s228
    %s246 = sphi 0, %s246
    %s248 = sphi 0, %s246
    %s249 = sphi 0, %s248
    %s263 = sphi 0, %s249
    %s267 = sphi 0, %s267
    %s269 = sphi 0, %s267
    %s270 = sphi 0, %s269
    %s284 = sphi 0, %s270
    %s288 = sphi 0, %s288
    %s290 = sphi 0, %s288
    %s291 = sphi 0, %s290
    %s305 = sphi 0, %s291
    %s309 = sphi 0, %s309
    %s311 = sphi 0, %s309
    %s312 = sphi 0, %s311
    %s326 = sphi 0, %s312
    %s330 = sphi 0, %s330
    %s332 = sphi 0, %s330
    %s333 = sphi 0, %s332
    %s347 = sphi 0, %s333
    %s351 = sphi 0, %s351
    %s353 = sphi 0, %s351
    %s354 = sphi 0, %s353
    %s368 = sphi 0, %s354
    %s372 = sphi 0, %s372
    %s374 = sphi 0, %s372
    %s375 = sphi 0, %s374
    %s389 = sphi 0, %s375
    %s395 = sphi 0, %s397
    %s398 = sphi 0, %s395
    %s399 = sphi 0, %s398
    %s415 = sphi 0, %s399
  $region4: #{autoencoder_forward.1} parent=0 // loop_header_branch
    %26 = sbr.rel (%p24) target = $region8
  $region5: #{autoencoder_forward.1} parent=0 // loop_body
    %s28 = ssub.s32 %s23, 1
    %s29 = ssub.s32 %s23, 2
    %s30 = sadd.s32 %s23, 1
    %s31 = ssub.s32 %s23, %s30
    %p32 = scmp.eq.s32.totalorder %s31, 0
    %s34 = sadd.s32 %s33, 1
    %s35 = scalar_select %p32, %s33, %s34
    %p38 = pneg %p32
    %p39 = scmp.eq.s32.totalorder %s23, 1
    %p40 = por %p38, %p39
    %p41 = scmp.ne.s32.totalorder %s33, %s36
    %p42 = scmp.eq.s32.totalorder %s23, 0
    %p43 = por %p41, %p42
    %p44 = scmp.ne.s32.totalorder %s33, %s36
    %p45 = scmp.eq.s32.totalorder %s28, 1
    %p46 = por %p44, %p45
    %p47 = scmp.ne.s32.totalorder %s36, %s37
    %p48 = scmp.eq.s32.totalorder %s28, 0
    %p49 = por %p47, %p48
    %p50 = scmp.ne.s32.totalorder %s36, %s37
    %p51 = scmp.eq.s32.totalorder %s29, 1
    %p52 = por %p50, %p51
    %p54 = scmp.ne.s32.totalorder %s37, %s53
    %p55 = scmp.eq.s32.totalorder %s29, 0
    %p56 = por %p54, %p55
    %s58 = sadd.s32 %s57, 1
    %p61 = scmp.eq.s32.totalorder %s23, 1
    %p62 = scmp.ne.s32.totalorder %s57, %s59
    %p63 = scmp.eq.s32.totalorder %s23, 0
    %p64 = por %p62, %p63
    %p65 = scmp.ne.s32.totalorder %s57, %s59
    %p66 = scmp.eq.s32.totalorder %s28, 1
    %p67 = por %p65, %p66
    %p68 = scmp.ne.s32.totalorder %s59, %s60
    %p69 = scmp.eq.s32.totalorder %s28, 0
    %p70 = por %p68, %p69
    %p71 = scmp.ne.s32.totalorder %s59, %s60
    %p72 = scmp.eq.s32.totalorder %s29, 1
    %p73 = por %p71, %p72
    %p75 = scmp.ne.s32.totalorder %s60, %s74
    %p76 = scmp.eq.s32.totalorder %s29, 0
    %p77 = por %p75, %p76
    %s79 = sadd.s32 %s78, 1
    %p82 = scmp.eq.s32.totalorder %s23, 1
    %p83 = scmp.ne.s32.totalorder %s78, %s80
    %p84 = scmp.eq.s32.totalorder %s23, 0
    %p85 = por %p83, %p84
    %p86 = scmp.ne.s32.totalorder %s78, %s80
    %p87 = scmp.eq.s32.totalorder %s28, 1
    %p88 = por %p86, %p87
    %p89 = scmp.ne.s32.totalorder %s80, %s81
    %p90 = scmp.eq.s32.totalorder %s28, 0
    %p91 = por %p89, %p90
    %p92 = scmp.ne.s32.totalorder %s80, %s81
    %p93 = scmp.eq.s32.totalorder %s29, 1
    %p94 = por %p92, %p93
    %p96 = scmp.ne.s32.totalorder %s81, %s95
    %p97 = scmp.eq.s32.totalorder %s29, 0
    %p98 = por %p96, %p97
    %s100 = sadd.s32 %s99, 1
    %p103 = scmp.eq.s32.totalorder %s23, 1
    %p104 = scmp.ne.s32.totalorder %s99, %s101
    %p105 = scmp.eq.s32.totalorder %s23, 0
    %p106 = por %p104, %p105
    %p107 = scmp.ne.s32.totalorder %s99, %s101
    %p108 = scmp.eq.s32.totalorder %s28, 1
    %p109 = por %p107, %p108
    %p110 = scmp.ne.s32.totalorder %s101, %s102
    %p111 = scmp.eq.s32.totalorder %s28, 0
    %p112 = por %p110, %p111
    %p113 = scmp.ne.s32.totalorder %s101, %s102
    %p114 = scmp.eq.s32.totalorder %s29, 1
    %p115 = por %p113, %p114
    %p117 = scmp.ne.s32.totalorder %s102, %s116
    %p118 = scmp.eq.s32.totalorder %s29, 0
    %p119 = por %p117, %p118
    %s121 = sadd.s32 %s120, 1
    %p124 = scmp.eq.s32.totalorder %s23, 1
    %p125 = scmp.ne.s32.totalorder %s120, %s122
    %p126 = scmp.eq.s32.totalorder %s23, 0
    %p127 = por %p125, %p126
    %p128 = scmp.ne.s32.totalorder %s120, %s122
    %p129 = scmp.eq.s32.totalorder %s28, 1
    %p130 = por %p128, %p129
    %p131 = scmp.ne.s32.totalorder %s122, %s123
    %p132 = scmp.eq.s32.totalorder %s28, 0
    %p133 = por %p131, %p132
    %p134 = scmp.ne.s32.totalorder %s122, %s123
    %p135 = scmp.eq.s32.totalorder %s29, 1
    %p136 = por %p134, %p135
    %p138 = scmp.ne.s32.totalorder %s123, %s137
    %p139 = scmp.eq.s32.totalorder %s29, 0
    %p140 = por %p138, %p139
    %s142 = sadd.s32 %s141, 1
    %p145 = scmp.eq.s32.totalorder %s23, 1
    %p146 = scmp.ne.s32.totalorder %s141, %s143
    %p147 = scmp.eq.s32.totalorder %s23, 0
    %p148 = por %p146, %p147
    %p149 = scmp.ne.s32.totalorder %s141, %s143
    %p150 = scmp.eq.s32.totalorder %s28, 1
    %p151 = por %p149, %p150
    %p152 = scmp.ne.s32.totalorder %s143, %s144
    %p153 = scmp.eq.s32.totalorder %s28, 0
    %p154 = por %p152, %p153
    %p155 = scmp.ne.s32.totalorder %s143, %s144
    %p156 = scmp.eq.s32.totalorder %s29, 1
    %p157 = por %p155, %p156
    %p159 = scmp.ne.s32.totalorder %s144, %s158
    %p160 = scmp.eq.s32.totalorder %s29, 0
    %p161 = por %p159, %p160
    %s163 = sadd.s32 %s162, 1
    %p166 = scmp.eq.s32.totalorder %s23, 1
    %p167 = scmp.ne.s32.totalorder %s162, %s164
    %p168 = scmp.eq.s32.totalorder %s23, 0
    %p169 = por %p167, %p168
    %p170 = scmp.ne.s32.totalorder %s162, %s164
    %p171 = scmp.eq.s32.totalorder %s28, 1
    %p172 = por %p170, %p171
    %p173 = scmp.ne.s32.totalorder %s164, %s165
    %p174 = scmp.eq.s32.totalorder %s28, 0
    %p175 = por %p173, %p174
    %p176 = scmp.ne.s32.totalorder %s164, %s165
    %p177 = scmp.eq.s32.totalorder %s29, 1
    %p178 = por %p176, %p177
    %p180 = scmp.ne.s32.totalorder %s165, %s179
    %p181 = scmp.eq.s32.totalorder %s29, 0
    %p182 = por %p180, %p181
    %s184 = sadd.s32 %s183, 1
    %p187 = scmp.eq.s32.totalorder %s23, 1
    %p188 = scmp.ne.s32.totalorder %s183, %s185
    %p189 = scmp.eq.s32.totalorder %s23, 0
    %p190 = por %p188, %p189
    %p191 = scmp.ne.s32.totalorder %s183, %s185
    %p192 = scmp.eq.s32.totalorder %s28, 1
    %p193 = por %p191, %p192
    %p194 = scmp.ne.s32.totalorder %s185, %s186
    %p195 = scmp.eq.s32.totalorder %s28, 0
    %p196 = por %p194, %p195
    %p197 = scmp.ne.s32.totalorder %s185, %s186
    %p198 = scmp.eq.s32.totalorder %s29, 1
    %p199 = por %p197, %p198
    %p201 = scmp.ne.s32.totalorder %s186, %s200
    %p202 = scmp.eq.s32.totalorder %s29, 0
    %p203 = por %p201, %p202
    %s205 = sadd.s32 %s204, 1
    %p208 = scmp.eq.s32.totalorder %s23, 1
    %p209 = scmp.ne.s32.totalorder %s204, %s206
    %p210 = scmp.eq.s32.totalorder %s23, 0
    %p211 = por %p209, %p210
    %p212 = scmp.ne.s32.totalorder %s204, %s206
    %p213 = scmp.eq.s32.totalorder %s28, 1
    %p214 = por %p212, %p213
    %p215 = scmp.ne.s32.totalorder %s206, %s207
    %p216 = scmp.eq.s32.totalorder %s28, 0
    %p217 = por %p215, %p216
    %p218 = scmp.ne.s32.totalorder %s206, %s207
    %p219 = scmp.eq.s32.totalorder %s29, 1
    %p220 = por %p218, %p219
    %p222 = scmp.ne.s32.totalorder %s207, %s221
    %p223 = scmp.eq.s32.totalorder %s29, 0
    %p224 = por %p222, %p223
    %s226 = sadd.s32 %s225, 1
    %p229 = scmp.eq.s32.totalorder %s23, 1
    %p230 = scmp.ne.s32.totalorder %s225, %s227
    %p231 = scmp.eq.s32.totalorder %s23, 0
    %p232 = por %p230, %p231
    %p233 = scmp.ne.s32.totalorder %s225, %s227
    %p234 = scmp.eq.s32.totalorder %s28, 1
    %p235 = por %p233, %p234
    %p236 = scmp.ne.s32.totalorder %s227, %s228
    %p237 = scmp.eq.s32.totalorder %s28, 0
    %p238 = por %p236, %p237
    %p239 = scmp.ne.s32.totalorder %s227, %s228
    %p240 = scmp.eq.s32.totalorder %s29, 1
    %p241 = por %p239, %p240
    %p243 = scmp.ne.s32.totalorder %s228, %s242
    %p244 = scmp.eq.s32.totalorder %s29, 0
    %p245 = por %p243, %p244
    %s247 = sadd.s32 %s246, 1
    %p250 = scmp.eq.s32.totalorder %s23, 1
    %p251 = scmp.ne.s32.totalorder %s246, %s248
    %p252 = scmp.eq.s32.totalorder %s23, 0
    %p253 = por %p251, %p252
    %p254 = scmp.ne.s32.totalorder %s246, %s248
    %p255 = scmp.eq.s32.totalorder %s28, 1
    %p256 = por %p254, %p255
    %p257 = scmp.ne.s32.totalorder %s248, %s249
    %p258 = scmp.eq.s32.totalorder %s28, 0
    %p259 = por %p257, %p258
    %p260 = scmp.ne.s32.totalorder %s248, %s249
    %p261 = scmp.eq.s32.totalorder %s29, 1
    %p262 = por %p260, %p261
    %p264 = scmp.ne.s32.totalorder %s249, %s263
    %p265 = scmp.eq.s32.totalorder %s29, 0
    %p266 = por %p264, %p265
    %s268 = sadd.s32 %s267, 1
    %p271 = scmp.eq.s32.totalorder %s23, 1
    %p272 = scmp.ne.s32.totalorder %s267, %s269
    %p273 = scmp.eq.s32.totalorder %s23, 0
    %p274 = por %p272, %p273
    %p275 = scmp.ne.s32.totalorder %s267, %s269
    %p276 = scmp.eq.s32.totalorder %s28, 1
    %p277 = por %p275, %p276
    %p278 = scmp.ne.s32.totalorder %s269, %s270
    %p279 = scmp.eq.s32.totalorder %s28, 0
    %p280 = por %p278, %p279
    %p281 = scmp.ne.s32.totalorder %s269, %s270
    %p282 = scmp.eq.s32.totalorder %s29, 1
    %p283 = por %p281, %p282
    %p285 = scmp.ne.s32.totalorder %s270, %s284
    %p286 = scmp.eq.s32.totalorder %s29, 0
    %p287 = por %p285, %p286
    %s289 = sadd.s32 %s288, 1
    %p292 = scmp.eq.s32.totalorder %s23, 1
    %p293 = scmp.ne.s32.totalorder %s288, %s290
    %p294 = scmp.eq.s32.totalorder %s23, 0
    %p295 = por %p293, %p294
    %p296 = scmp.ne.s32.totalorder %s288, %s290
    %p297 = scmp.eq.s32.totalorder %s28, 1
    %p298 = por %p296, %p297
    %p299 = scmp.ne.s32.totalorder %s290, %s291
    %p300 = scmp.eq.s32.totalorder %s28, 0
    %p301 = por %p299, %p300
    %p302 = scmp.ne.s32.totalorder %s290, %s291
    %p303 = scmp.eq.s32.totalorder %s29, 1
    %p304 = por %p302, %p303
    %p306 = scmp.ne.s32.totalorder %s291, %s305
    %p307 = scmp.eq.s32.totalorder %s29, 0
    %p308 = por %p306, %p307
    %s310 = sadd.s32 %s309, 1
    %p313 = scmp.eq.s32.totalorder %s23, 1
    %p314 = scmp.ne.s32.totalorder %s309, %s311
    %p315 = scmp.eq.s32.totalorder %s23, 0
    %p316 = por %p314, %p315
    %p317 = scmp.ne.s32.totalorder %s309, %s311
    %p318 = scmp.eq.s32.totalorder %s28, 1
    %p319 = por %p317, %p318
    %p320 = scmp.ne.s32.totalorder %s311, %s312
    %p321 = scmp.eq.s32.totalorder %s28, 0
    %p322 = por %p320, %p321
    %p323 = scmp.ne.s32.totalorder %s311, %s312
    %p324 = scmp.eq.s32.totalorder %s29, 1
    %p325 = por %p323, %p324
    %p327 = scmp.ne.s32.totalorder %s312, %s326
    %p328 = scmp.eq.s32.totalorder %s29, 0
    %p329 = por %p327, %p328
    %s331 = sadd.s32 %s330, 1
    %p334 = scmp.eq.s32.totalorder %s23, 1
    %p335 = scmp.ne.s32.totalorder %s330, %s332
    %p336 = scmp.eq.s32.totalorder %s23, 0
    %p337 = por %p335, %p336
    %p338 = scmp.ne.s32.totalorder %s330, %s332
    %p339 = scmp.eq.s32.totalorder %s28, 1
    %p340 = por %p338, %p339
    %p341 = scmp.ne.s32.totalorder %s332, %s333
    %p342 = scmp.eq.s32.totalorder %s28, 0
    %p343 = por %p341, %p342
    %p344 = scmp.ne.s32.totalorder %s332, %s333
    %p345 = scmp.eq.s32.totalorder %s29, 1
    %p346 = por %p344, %p345
    %p348 = scmp.ne.s32.totalorder %s333, %s347
    %p349 = scmp.eq.s32.totalorder %s29, 0
    %p350 = por %p348, %p349
    %s352 = sadd.s32 %s351, 1
    %p355 = scmp.eq.s32.totalorder %s23, 1
    %p356 = scmp.ne.s32.totalorder %s351, %s353
    %p357 = scmp.eq.s32.totalorder %s23, 0
    %p358 = por %p356, %p357
    %p359 = scmp.ne.s32.totalorder %s351, %s353
    %p360 = scmp.eq.s32.totalorder %s28, 1
    %p361 = por %p359, %p360
    %p362 = scmp.ne.s32.totalorder %s353, %s354
    %p363 = scmp.eq.s32.totalorder %s28, 0
    %p364 = por %p362, %p363
    %p365 = scmp.ne.s32.totalorder %s353, %s354
    %p366 = scmp.eq.s32.totalorder %s29, 1
    %p367 = por %p365, %p366
    %p369 = scmp.ne.s32.totalorder %s354, %s368
    %p370 = scmp.eq.s32.totalorder %s29, 0
    %p371 = por %p369, %p370
    %s373 = sadd.s32 %s372, 1
    %p376 = scmp.eq.s32.totalorder %s23, 1
    %p377 = scmp.ne.s32.totalorder %s372, %s374
    %p378 = scmp.eq.s32.totalorder %s23, 0
    %p379 = por %p377, %p378
    %p380 = scmp.ne.s32.totalorder %s372, %s374
    %p381 = scmp.eq.s32.totalorder %s28, 1
    %p382 = por %p380, %p381
    %p383 = scmp.ne.s32.totalorder %s374, %s375
    %p384 = scmp.eq.s32.totalorder %s28, 0
    %p385 = por %p383, %p384
    %p386 = scmp.ne.s32.totalorder %s374, %s375
    %p387 = scmp.eq.s32.totalorder %s29, 1
    %p388 = por %p386, %p387
    %p390 = scmp.ne.s32.totalorder %s375, %s389
    %p391 = scmp.eq.s32.totalorder %s29, 0
    %p392 = por %p390, %p391
    %s393 = ssub.s32 %s23, %s30
    %p394 = scmp.eq.s32.totalorder %s393, 0
    %s396 = sadd.s32 %s395, 1
    %s397 = scalar_select %p394, %s395, %s396
    %p400 = pneg %p394
    %p401 = scmp.eq.s32.totalorder %s23, 1
    %p402 = por %p400, %p401
    %p403 = scmp.ne.s32.totalorder %s395, %s398
    %p404 = scmp.eq.s32.totalorder %s23, 0
    %p405 = por %p403, %p404
    %p406 = scmp.ne.s32.totalorder %s395, %s398
    %p407 = scmp.eq.s32.totalorder %s28, 1
    %p408 = por %p406, %p407
    %p409 = scmp.ne.s32.totalorder %s398, %s399
    %p410 = scmp.eq.s32.totalorder %s28, 0
    %p411 = por %p409, %p410
    %p412 = scmp.ne.s32.totalorder %s398, %s399
    %p413 = scmp.eq.s32.totalorder %s29, 1
    %p414 = por %p412, %p413
    %p416 = scmp.ne.s32.totalorder %s399, %s415
    %p417 = scmp.eq.s32.totalorder %s29, 0
    %p418 = por %p416, %p417
    %p419 = scmp.le.s32.totalorder 1, %s23
    %p420 = scmp.lt.s32.totalorder %s23, 3
    %p421 = pnand %p419, %p420
    %p422 = pneg %p421
    // Predicated region
    $region9: #{autoencoder_forward.1} parent=5 // pred_check
      _
    $region10: #{autoencoder_forward.1} parent=5 // pred_check_branch
      %424 = sbr.rel (%p421) target = $region12
    $region11: #{autoencoder_forward.1} parent=5 // pred_region
      %s425 = ssub.s32 %s23, 1
      // Predicated region
      $region13: #{autoencoder_forward.1} parent=11 // pred_check
        %p426 = pneg %p70
      $region14: #{autoencoder_forward.1} parent=11 // pred_check_branch
        %428 = sbr.rel (%p426) target = $region16
      $region15: #{autoencoder_forward.1} parent=11 // pred_region
        _
      $region16: #{autoencoder_forward.1} parent=11 // pred_fallthru
        _
      // Predicated region
      $region17: #{autoencoder_forward.1} parent=11 // pred_check
        %p429 = pneg %p91
      $region18: #{autoencoder_forward.1} parent=11 // pred_check_branch
        %431 = sbr.rel (%p429) target = $region20
      $region19: #{autoencoder_forward.1} parent=11 // pred_region
        _
      $region20: #{autoencoder_forward.1} parent=11 // pred_fallthru
        _
      // Predicated region
      $region21: #{autoencoder_forward.1} parent=11 // pred_check
        %p432 = pneg %p112
      $region22: #{autoencoder_forward.1} parent=11 // pred_check_branch
        %434 = sbr.rel (%p432) target = $region24
      $region23: #{autoencoder_forward.1} parent=11 // pred_region
        _
      $region24: #{autoencoder_forward.1} parent=11 // pred_fallthru
        _
      // Predicated region
      $region25: #{autoencoder_forward.1} parent=11 // pred_check
        %p435 = pneg %p133
      $region26: #{autoencoder_forward.1} parent=11 // pred_check_branch
        %437 = sbr.rel (%p435) target = $region28
      $region27: #{autoencoder_forward.1} parent=11 // pred_region
        _
      $region28: #{autoencoder_forward.1} parent=11 // pred_fallthru
        _
      // Predicated region
      $region29: #{autoencoder_forward.1} parent=11 // pred_check
        %p438 = pneg %p154
      $region30: #{autoencoder_forward.1} parent=11 // pred_check_branch
        %440 = sbr.rel (%p438) target = $region32
      $region31: #{autoencoder_forward.1} parent=11 // pred_region
        _
      $region32: #{autoencoder_forward.1} parent=11 // pred_fallthru
        _
      // Predicated region
      $region33: #{autoencoder_forward.1} parent=11 // pred_check
        %p441 = pneg %p175
      $region34: #{autoencoder_forward.1} parent=11 // pred_check_branch
        %443 = sbr.rel (%p441) target = $region36
      $region35: #{autoencoder_forward.1} parent=11 // pred_region
        _
      $region36: #{autoencoder_forward.1} parent=11 // pred_fallthru
        _
      // Predicated region
      $region37: #{autoencoder_forward.1} parent=11 // pred_check
        %p444 = pneg %p196
      $region38: #{autoencoder_forward.1} parent=11 // pred_check_branch
        %446 = sbr.rel (%p444) target = $region40
      $region39: #{autoencoder_forward.1} parent=11 // pred_region
        _
      $region40: #{autoencoder_forward.1} parent=11 // pred_fallthru
        _
      // Predicated region
      $region41: #{autoencoder_forward.1} parent=11 // pred_check
        %p447 = pneg %p217
      $region42: #{autoencoder_forward.1} parent=11 // pred_check_branch
        %449 = sbr.rel (%p447) target = $region44
      $region43: #{autoencoder_forward.1} parent=11 // pred_region
        _
      $region44: #{autoencoder_forward.1} parent=11 // pred_fallthru
        _
      // Predicated region
      $region45: #{autoencoder_forward.1} parent=11 // pred_check
        %p450 = pneg %p238
      $region46: #{autoencoder_forward.1} parent=11 // pred_check_branch
        %452 = sbr.rel (%p450) target = $region48
      $region47: #{autoencoder_forward.1} parent=11 // pred_region
        _
      $region48: #{autoencoder_forward.1} parent=11 // pred_fallthru
        _
      // Predicated region
      $region49: #{autoencoder_forward.1} parent=11 // pred_check
        %p453 = pneg %p259
      $region50: #{autoencoder_forward.1} parent=11 // pred_check_branch
        %455 = sbr.rel (%p453) target = $region52
      $region51: #{autoencoder_forward.1} parent=11 // pred_region
        _
      $region52: #{autoencoder_forward.1} parent=11 // pred_fallthru
        _
      // Predicated region
      $region53: #{autoencoder_forward.1} parent=11 // pred_check
        %p456 = pneg %p280
      $region54: #{autoencoder_forward.1} parent=11 // pred_check_branch
        %458 = sbr.rel (%p456) target = $region56
      $region55: #{autoencoder_forward.1} parent=11 // pred_region
        _
      $region56: #{autoencoder_forward.1} parent=11 // pred_fallthru
        _
      // Predicated region
      $region57: #{autoencoder_forward.1} parent=11 // pred_check
        %p459 = pneg %p301
      $region58: #{autoencoder_forward.1} parent=11 // pred_check_branch
        %461 = sbr.rel (%p459) target = $region60
      $region59: #{autoencoder_forward.1} parent=11 // pred_region
        _
      $region60: #{autoencoder_forward.1} parent=11 // pred_fallthru
        _
      // Predicated region
      $region61: #{autoencoder_forward.1} parent=11 // pred_check
        %p462 = pneg %p322
      $region62: #{autoencoder_forward.1} parent=11 // pred_check_branch
        %464 = sbr.rel (%p462) target = $region64
      $region63: #{autoencoder_forward.1} parent=11 // pred_region
        _
      $region64: #{autoencoder_forward.1} parent=11 // pred_fallthru
        _
      // Predicated region
      $region65: #{autoencoder_forward.1} parent=11 // pred_check
        %p465 = pneg %p343
      $region66: #{autoencoder_forward.1} parent=11 // pred_check_branch
        %467 = sbr.rel (%p465) target = $region68
      $region67: #{autoencoder_forward.1} parent=11 // pred_region
        _
      $region68: #{autoencoder_forward.1} parent=11 // pred_fallthru
        _
      // Predicated region
      $region69: #{autoencoder_forward.1} parent=11 // pred_check
        %p468 = pneg %p364
      $region70: #{autoencoder_forward.1} parent=11 // pred_check_branch
        %470 = sbr.rel (%p468) target = $region72
      $region71: #{autoencoder_forward.1} parent=11 // pred_region
        _
      $region72: #{autoencoder_forward.1} parent=11 // pred_fallthru
        _
      // Predicated region
      $region73: #{autoencoder_forward.1} parent=11 // pred_check
        %p471 = pneg %p385
      $region74: #{autoencoder_forward.1} parent=11 // pred_check_branch
        %473 = sbr.rel (%p471) target = $region76
      $region75: #{autoencoder_forward.1} parent=11 // pred_region
        _
      $region76: #{autoencoder_forward.1} parent=11 // pred_fallthru
        _
    $region12: #{autoencoder_forward.1} parent=5 // pred_fallthru
      _
    %p474 = scmp.lt.s32.totalorder %s23, 2
    // Predicated region
    $region77: #{autoencoder_forward.1} parent=5 // pred_check
      %p475 = pneg %p474
    $region78: #{autoencoder_forward.1} parent=5 // pred_check_branch
      %477 = sbr.rel (%p475) target = $region80
    $region79: #{autoencoder_forward.1} parent=5 // pred_region
      // Predicated region
      $region81: #{autoencoder_forward.1} parent=79 // pred_check
        %p478 = pneg %p43
      $region82: #{autoencoder_forward.1} parent=79 // pred_check_branch
        %480 = sbr.rel (%p478) target = $region84
      $region83: #{autoencoder_forward.1} parent=79 // pred_region
        %p481 = scmp.lt.s32.totalorder %s23, 1
        %s482 = scalar_select %p481, %s23, 1
        %s483 = smul.addr %s482, 32
        %s484 = smul.addr %s483, 4
        %s485 = scalar_lea.vmem %s0, %s484
      $region84: #{autoencoder_forward.1} parent=79 // pred_fallthru
        _
    $region80: #{autoencoder_forward.1} parent=5 // pred_fallthru
      _
    %p486 = scmp.le.s32.totalorder 1, %s23
    %p487 = scmp.lt.s32.totalorder %s23, 3
    %p488 = pnand %p486, %p487
    %p489 = pneg %p488
    // Predicated region
    $region85: #{autoencoder_forward.1} parent=5 // pred_check
      _
    $region86: #{autoencoder_forward.1} parent=5 // pred_check_branch
      %491 = sbr.rel (%p488) target = $region88
    $region87: #{autoencoder_forward.1} parent=5 // pred_region
      %s492 = ssub.s32 %s23, 1
      %p493 = scmp.lt.s32.totalorder %s28, 1
      %s494 = scalar_select %p493, %s28, 1
      %s495 = smul.addr %s494, 32
      %s496 = smul.addr %s495, 4
      %s497 = scalar_lea.vmem %s0, %s496
      %p498 = pneg %p49
      %p499 = pneg %p46
      %p500 = pneg %p70
      %p501 = pneg %p67
      %p502 = pneg %p91
      %p503 = pneg %p88
      %p504 = pneg %p112
      %p505 = pneg %p109
      %p506 = pneg %p133
      %p507 = pneg %p130
      %p508 = pneg %p154
      %p509 = pneg %p151
      %p510 = pneg %p175
      %p511 = pneg %p172
      %p512 = pneg %p196
      %p513 = pneg %p193
      %p514 = pneg %p217
      %p515 = pneg %p214
      %p516 = pneg %p238
      %p517 = pneg %p235
      %p518 = pneg %p259
      %p519 = pneg %p256
      %p520 = pneg %p280
      %p521 = pneg %p277
      %p522 = pneg %p301
      %p523 = pneg %p298
      %p524 = pneg %p322
      %p525 = pneg %p319
      %p526 = pneg %p343
      %p527 = pneg %p340
      %p528 = pneg %p364
      %p529 = pneg %p361
      %p530 = pneg %p385
      %p531 = pneg %p382
      %p532 = pneg %p411
      %p533 = pneg %p408
      %p534 = scmp.lt.s32.totalorder %s28, 1
      %s535 = scalar_select %p534, %s28, 1
      %s536 = smul.addr %s535, 2
      %s537 = smul.addr %s536, 4
      %s538 = scalar_lea.vmem %s17, %s537
      %p539 = scmp.lt.s32.totalorder %s28, 1
      %s540 = scalar_select %p539, %s28, 1
      %s541 = smul.addr %s540, 32
      %s542 = smul.addr %s541, 4
      %s543 = scalar_lea.vmem %s0, %s542
      %p544 = scmp.lt.s32.totalorder %s28, 1
      %s545 = scalar_select %p544, %s28, 1
      %s546 = smul.addr %s545, 2
      %s547 = smul.addr %s546, 4
      %s548 = scalar_lea.vmem %s17, %s547
      %v550 = vld [vmem:[%s543] sm:$0xf]
      %v551 = vld [vmem:[%s543 + $0x4] sm:$0xf]
      %v552 = vld [vmem:[%s543 + $0x8] sm:$0xf]
      %v553 = vld [vmem:[%s543 + $0xc] sm:$0xf]
      %v554 = vld [vmem:[%s543 + $0x10] sm:$0xf]
      %v555 = vld [vmem:[%s543 + $0x14] sm:$0xf]
      %v556 = vld [vmem:[%s543 + $0x18] sm:$0xf]
      %v557 = vld [vmem:[%s543 + $0x1c] sm:$0xf]
      %v558 = vld [vmem:[%s543 + $0x20] sm:$0xf]
      %v559 = vld [vmem:[%s543 + $0x24] sm:$0xf]
      %v560 = vld [vmem:[%s543 + $0x28] sm:$0xf]
      %v561 = vld [vmem:[%s543 + $0x2c] sm:$0xf]
      %v562 = vld [vmem:[%s543 + $0x30] sm:$0xf]
      %v563 = vld [vmem:[%s543 + $0x34] sm:$0xf]
      %v564 = vld [vmem:[%s543 + $0x38] sm:$0xf]
      %v565 = vld [vmem:[%s543 + $0x3c] sm:$0xf]
      %v566 = vld [vmem:[%s543 + $0x40] sm:$0xf]
      %v567 = vld [vmem:[%s543 + $0x44] sm:$0xf]
      %v568 = vld [vmem:[%s543 + $0x48] sm:$0xf]
      %v569 = vld [vmem:[%s543 + $0x4c] sm:$0xf]
      %v570 = vld [vmem:[%s543 + $0x50] sm:$0xf]
      %v571 = vld [vmem:[%s543 + $0x54] sm:$0xf]
      %v572 = vld [vmem:[%s543 + $0x58] sm:$0xf]
      %v573 = vld [vmem:[%s543 + $0x5c] sm:$0xf]
      %v574 = vld [vmem:[%s543 + $0x60] sm:$0xf]
      %v575 = vld [vmem:[%s543 + $0x64] sm:$0xf]
      %v576 = vld [vmem:[%s543 + $0x68] sm:$0xf]
      %v577 = vld [vmem:[%s543 + $0x6c] sm:$0xf]
      %v578 = vld [vmem:[%s543 + $0x70] sm:$0xf]
      %v579 = vld [vmem:[%s543 + $0x74] sm:$0xf]
      %v580 = vld [vmem:[%s543 + $0x78] sm:$0xf]
      %v581 = vld [vmem:[%s543 + $0x7c] sm:$0xf]
      %v582 = vld [vmem:[%s1] sm:$0xf]
      %v583 = vld [vmem:[%s1 + $0x4] sm:$0xf]
      %v584 = vld [vmem:[%s1 + $0x8] sm:$0xf]
      %v585 = vld [vmem:[%s1 + $0xc] sm:$0x3]
      %v586 = vld [vmem:[%s2] sm:$0x1]
      %v588 = vlaneseq
      %v589 = vshrl.u32 %v588, 7
      %v590 = vsub.s32 0, %v589
      %v591 = vrot.slane %v586, %v590
      %v625 = vunpack.c.l.b16 %v550
      %v626 = vunpack.c.l.b16 %v551
      %v627 = vunpack.c.l.b16 %v552
      %v628 = vunpack.c.l.b16 %v553
      %v629 = vunpack.c.l.b16 %v554
      %v630 = vunpack.c.l.b16 %v555
      %v631 = vunpack.c.l.b16 %v556
      %v632 = vunpack.c.l.b16 %v557
      %v633 = vunpack.c.l.b16 %v558
      %v634 = vunpack.c.l.b16 %v559
      %v635 = vunpack.c.l.b16 %v560
      %v636 = vunpack.c.l.b16 %v561
      %v637 = vunpack.c.l.b16 %v562
      %v638 = vunpack.c.l.b16 %v563
      %v639 = vunpack.c.l.b16 %v564
      %v640 = vunpack.c.l.b16 %v565
      %v641 = vunpack.c.l.b16 %v566
      %v642 = vunpack.c.l.b16 %v567
      %v643 = vunpack.c.l.b16 %v568
      %v644 = vunpack.c.l.b16 %v569
      %v645 = vunpack.c.l.b16 %v570
      %v646 = vunpack.c.l.b16 %v571
      %v647 = vunpack.c.l.b16 %v572
      %v648 = vunpack.c.l.b16 %v573
      %v649 = vunpack.c.l.b16 %v574
      %v650 = vunpack.c.l.b16 %v575
      %v651 = vunpack.c.l.b16 %v576
      %v652 = vunpack.c.l.b16 %v577
      %v653 = vunpack.c.l.b16 %v578
      %v654 = vunpack.c.l.b16 %v579
      %v655 = vunpack.c.l.b16 %v580
      %v656 = vunpack.c.l.b16 %v581
      %v657 = vpack.c.b16 %v626, %v625
      %v658 = vpack.c.b16 %v628, %v627
      %v659 = vpack.c.b16 %v630, %v629
      %v660 = vpack.c.b16 %v632, %v631
      %v661 = vpack.c.b16 %v634, %v633
      %v662 = vpack.c.b16 %v636, %v635
      %v663 = vpack.c.b16 %v638, %v637
      %v664 = vpack.c.b16 %v640, %v639
      %v665 = vpack.c.b16 %v642, %v641
      %v666 = vpack.c.b16 %v644, %v643
      %v667 = vpack.c.b16 %v646, %v645
      %v668 = vpack.c.b16 %v648, %v647
      %v669 = vpack.c.b16 %v650, %v649
      %v670 = vpack.c.b16 %v652, %v651
      %v671 = vpack.c.b16 %v654, %v653
      %v672 = vpack.c.b16 %v656, %v655
      %v677 = vunpack.c.l.b16 %v582
      %v678 = vunpack.c.l.b16 %v583
      %v679 = vunpack.c.l.b16 %v584
      %v680 = vunpack.c.l.b16 %v585
      %v681 = vpack.c.b16 %v678, %v677
      %v682 = vpack.c.b16 %v680, %v679
      %vm684 = vcmask 220160
      %v686 = vsel %vm684, %v657, 0
      %v689 = vsel %vm684, %v658, 0
      %v692 = vsel %vm684, %v659, 0
      %v695 = vsel %vm684, %v660, 0
      %v698 = vsel %vm684, %v661, 0
      %v701 = vsel %vm684, %v662, 0
      %v704 = vsel %vm684, %v663, 0
      %v707 = vsel %vm684, %v664, 0
      %v710 = vsel %vm684, %v665, 0
      %v713 = vsel %vm684, %v666, 0
      %v716 = vsel %vm684, %v667, 0
      %v719 = vsel %vm684, %v668, 0
      %v722 = vsel %vm684, %v669, 0
      %v725 = vsel %vm684, %v670, 0
      %v728 = vsel %vm684, %v671, 0
      %v731 = vsel %vm684, %v672, 0
      %vm733 = vcmask 1044480
      %vm734 = vcmask 1045504
      %v735 = vsel %vm733, 4294967295, 65535
      %v736 = vsel %vm734, %v735, 0
      %v738 = vand.u32 %v682, %v736
      %740 = vmatprep.subr.bf16.mxu0 0
      %741 = vmatpush1.bf16.msra.mxu0 %v681
      %742 = vmatprep.subr.bf16.mxu0 0
      %743 = vmatpush1.bf16.msra.mxu0 %v738
      %744 = vmatprep.subr.bf16.mxu0 0
      %745 = vmatpush1.bf16.msra.mxu0 0
      %746 = vmatprep.subr.bf16.mxu0 0
      %747 = vmatpush1.bf16.msra.mxu0 0
      %748 = vmatprep.subr.bf16.mxu0 0
      %749 = vmatpush1.bf16.msra.mxu0 0
      %750 = vmatprep.subr.bf16.mxu0 0
      %751 = vmatpush1.bf16.msra.mxu0 0
      %752 = vmatprep.subr.bf16.mxu0 0
      %753 = vmatpush1.bf16.msra.mxu0 0
      %754 = vmatprep.subr.bf16.mxu0 0
      %755 = vmatpush1.bf16.msra.mxu0 0
      %756 = vmatprep.subr.bf16.mxu0 0
      %757 = vmatpush1.bf16.msra.mxu0 0
      %758 = vmatprep.subr.bf16.mxu0 0
      %759 = vmatpush1.bf16.msra.mxu0 0
      %760 = vmatprep.subr.bf16.mxu0 0
      %761 = vmatpush1.bf16.msra.mxu0 0
      %762 = vmatprep.subr.bf16.mxu0 0
      %763 = vmatpush1.bf16.msra.mxu0 0
      %764 = vmatprep.subr.bf16.mxu0 0
      %765 = vmatpush1.bf16.msra.mxu0 0
      %766 = vmatprep.subr.bf16.mxu0 0
      %767 = vmatpush1.bf16.msra.mxu0 0
      %768 = vmatprep.subr.bf16.mxu0 0
      %769 = vmatpush1.bf16.msra.mxu0 0
      %770 = vmatprep.subr.bf16.mxu0 0
      %771 = vmatpush1.bf16.msra.mxu0 0
      %772 = vmatprep.mubr.bf16.mxu0 0
      %773 = vmatmul.mubr.bf16.gmra.mrb[0].mxu0 %v686
      %v774 = vpop.f32.mrb[0].mxu0
      %v775 = vadd.f32 %v591, %v774
      %v776 = vpop.f32.mrb[0].mxu0
      %v777 = vpop.f32.mrb[0].mxu0
      %v778 = vadd.f32 %v591, %v777
      %v779 = vpop.f32.mrb[0].mxu0
      %780 = vmatprep.mubr.bf16.mxu0 0
      %781 = vmatmul.mubr.bf16.gmra.mrb[0].mxu0 %v689
      %v782 = vpop.f32.mrb[0].mxu0
      %v783 = vadd.f32 %v591, %v782
      %v784 = vpop.f32.mrb[0].mxu0
      %v785 = vpop.f32.mrb[0].mxu0
      %v786 = vadd.f32 %v591, %v785
      %v787 = vpop.f32.mrb[0].mxu0
      %788 = vmatprep.mubr.bf16.mxu0 0
      %789 = vmatmul.mubr.bf16.gmra.mrb[0].mxu0 %v692
      %v790 = vpop.f32.mrb[0].mxu0
      %v791 = vadd.f32 %v591, %v790
      %v792 = vpop.f32.mrb[0].mxu0
      %v793 = vpop.f32.mrb[0].mxu0
      %v794 = vadd.f32 %v591, %v793
      %v795 = vpop.f32.mrb[0].mxu0
      %796 = vmatprep.mubr.bf16.mxu0 0
      %797 = vmatmul.mubr.bf16.gmra.mrb[0].mxu0 %v695
      %v798 = vpop.f32.mrb[0].mxu0
      %v799 = vadd.f32 %v591, %v798
      %v800 = vpop.f32.mrb[0].mxu0
      %v801 = vpop.f32.mrb[0].mxu0
      %v802 = vadd.f32 %v591, %v801
      %v803 = vpop.f32.mrb[0].mxu0
      %804 = vmatprep.mubr.bf16.mxu0 0
      %805 = vmatmul.mubr.bf16.gmra.mrb[0].mxu0 %v698
      %v806 = vpop.f32.mrb[0].mxu0
      %v807 = vadd.f32 %v591, %v806
      %v808 = vpop.f32.mrb[0].mxu0
      %v809 = vpop.f32.mrb[0].mxu0
      %v810 = vadd.f32 %v591, %v809
      %v811 = vpop.f32.mrb[0].mxu0
      %812 = vmatprep.mubr.bf16.mxu0 0
      %813 = vmatmul.mubr.bf16.gmra.mrb[0].mxu0 %v701
      %v814 = vpop.f32.mrb[0].mxu0
      %v815 = vadd.f32 %v591, %v814
      %v816 = vpop.f32.mrb[0].mxu0
      %v817 = vpop.f32.mrb[0].mxu0
      %v818 = vadd.f32 %v591, %v817
      %v819 = vpop.f32.mrb[0].mxu0
      %820 = vmatprep.mubr.bf16.mxu0 0
      %821 = vmatmul.mubr.bf16.gmra.mrb[0].mxu0 %v704
      %v822 = vpop.f32.mrb[0].mxu0
      %v823 = vadd.f32 %v591, %v822
      %v824 = vpop.f32.mrb[0].mxu0
      %v825 = vpop.f32.mrb[0].mxu0
      %v826 = vadd.f32 %v591, %v825
      %v827 = vpop.f32.mrb[0].mxu0
      %828 = vmatprep.mubr.bf16.mxu0 0
      %829 = vmatmul.mubr.bf16.gmra.mrb[0].mxu0 %v707
      %v830 = vpop.f32.mrb[0].mxu0
      %v831 = vadd.f32 %v591, %v830
      %v832 = vpop.f32.mrb[0].mxu0
      %v833 = vpop.f32.mrb[0].mxu0
      %v834 = vadd.f32 %v591, %v833
      %v835 = vpop.f32.mrb[0].mxu0
      %836 = vmatprep.mubr.bf16.mxu0 0
      %837 = vmatmul.mubr.bf16.gmra.mrb[0].mxu0 %v710
      %v838 = vpop.f32.mrb[0].mxu0
      %v839 = vadd.f32 %v591, %v838
      %v840 = vpop.f32.mrb[0].mxu0
      %v841 = vpop.f32.mrb[0].mxu0
      %v842 = vadd.f32 %v591, %v841
      %v843 = vpop.f32.mrb[0].mxu0
      %844 = vmatprep.mubr.bf16.mxu0 0
      %845 = vmatmul.mubr.bf16.gmra.mrb[0].mxu0 %v713
      %v846 = vpop.f32.mrb[0].mxu0
      %v847 = vadd.f32 %v591, %v846
      %v848 = vpop.f32.mrb[0].mxu0
      %v849 = vpop.f32.mrb[0].mxu0
      %v850 = vadd.f32 %v591, %v849
      %v851 = vpop.f32.mrb[0].mxu0
      %852 = vmatprep.mubr.bf16.mxu0 0
      %853 = vmatmul.mubr.bf16.gmra.mrb[0].mxu0 %v716
      %v854 = vpop.f32.mrb[0].mxu0
      %v855 = vadd.f32 %v591, %v854
      %v856 = vpop.f32.mrb[0].mxu0
      %v857 = vpop.f32.mrb[0].mxu0
      %v858 = vadd.f32 %v591, %v857
      %v859 = vpop.f32.mrb[0].mxu0
      %860 = vmatprep.mubr.bf16.mxu0 0
      %861 = vmatmul.mubr.bf16.gmra.mrb[0].mxu0 %v719
      %v862 = vpop.f32.mrb[0].mxu0
      %v863 = vadd.f32 %v591, %v862
      %v864 = vpop.f32.mrb[0].mxu0
      %v865 = vpop.f32.mrb[0].mxu0
      %v866 = vadd.f32 %v591, %v865
      %v867 = vpop.f32.mrb[0].mxu0
      %868 = vmatprep.mubr.bf16.mxu0 0
      %869 = vmatmul.mubr.bf16.gmra.mrb[0].mxu0 %v722
      %v870 = vpop.f32.mrb[0].mxu0
      %v871 = vadd.f32 %v591, %v870
      %v872 = vpop.f32.mrb[0].mxu0
      %v873 = vpop.f32.mrb[0].mxu0
      %v874 = vadd.f32 %v591, %v873
      %v875 = vpop.f32.mrb[0].mxu0
      %876 = vmatprep.mubr.bf16.mxu0 0
      %877 = vmatmul.mubr.bf16.gmra.mrb[0].mxu0 %v725
      %v878 = vpop.f32.mrb[0].mxu0
      %v879 = vadd.f32 %v591, %v878
      %v880 = vpop.f32.mrb[0].mxu0
      %v881 = vpop.f32.mrb[0].mxu0
      %v882 = vadd.f32 %v591, %v881
      %v883 = vpop.f32.mrb[0].mxu0
      %884 = vmatprep.mubr.bf16.mxu0 0
      %885 = vmatmul.mubr.bf16.gmra.mrb[0].mxu0 %v728
      %v886 = vpop.f32.mrb[0].mxu0
      %v887 = vadd.f32 %v591, %v886
      %v888 = vpop.f32.mrb[0].mxu0
      %v889 = vpop.f32.mrb[0].mxu0
      %v890 = vadd.f32 %v591, %v889
      %v891 = vpop.f32.mrb[0].mxu0
      %892 = vmatprep.mubr.bf16.mxu0 0
      %893 = vmatmul.mubr.bf16.gmra.mrb[0].mxu0 %v731
      %v894 = vpop.f32.mrb[0].mxu0
      %v895 = vadd.f32 %v591, %v894
      %v896 = vpop.f32.mrb[0].mxu0
      %v897 = vpop.f32.mrb[0].mxu0
      %v898 = vadd.f32 %v591, %v897
      %v899 = vpop.f32.mrb[0].mxu0
      %900 = vdwg.mxu0
      %v901 = vpack.c.bf16 %v778, %v775
      %v902 = vpack.c.bf16 %v786, %v783
      %v903 = vpack.c.bf16 %v794, %v791
      %v904 = vpack.c.bf16 %v802, %v799
      %v905 = vpack.c.bf16 %v810, %v807
      %v906 = vpack.c.bf16 %v818, %v815
      %v907 = vpack.c.bf16 %v826, %v823
      %v908 = vpack.c.bf16 %v834, %v831
      %v909 = vpack.c.bf16 %v842, %v839
      %v910 = vpack.c.bf16 %v850, %v847
      %v911 = vpack.c.bf16 %v858, %v855
      %v912 = vpack.c.bf16 %v866, %v863
      %v913 = vpack.c.bf16 %v874, %v871
      %v914 = vpack.c.bf16 %v882, %v879
      %v915 = vpack.c.bf16 %v890, %v887
      %v916 = vpack.c.bf16 %v898, %v895
      %v918 = vshrl.u32 0, 16
      %v920 = vrot.slane %v918, 7
      %v921 = vshll.u32 0, 16
      %v923 = vor.u32 %v920, %v921
      %v925 = vshrl.u32 %v901, 16
      %v927 = vrot.slane %v925, 7
      %v928 = vshll.u32 %v901, 16
      %v930 = vor.u32 %v927, %v928
      %v932 = vshrl.u32 %v902, 16
      %v934 = vrot.slane %v932, 7
      %v935 = vshll.u32 %v902, 16
      %v937 = vor.u32 %v934, %v935
      %v939 = vshrl.u32 %v903, 16
      %v941 = vrot.slane %v939, 7
      %v942 = vshll.u32 %v903, 16
      %v944 = vor.u32 %v941, %v942
      %v946 = vshrl.u32 %v904, 16
      %v948 = vrot.slane %v946, 7
      %v949 = vshll.u32 %v904, 16
      %v951 = vor.u32 %v948, %v949
      %v953 = vshrl.u32 %v905, 16
      %v955 = vrot.slane %v953, 7
      %v956 = vshll.u32 %v905, 16
      %v958 = vor.u32 %v955, %v956
      %v960 = vshrl.u32 %v906, 16
      %v962 = vrot.slane %v960, 7
      %v963 = vshll.u32 %v906, 16
      %v965 = vor.u32 %v962, %v963
      %v967 = vshrl.u32 %v907, 16
      %v969 = vrot.slane %v967, 7
      %v970 = vshll.u32 %v907, 16
      %v972 = vor.u32 %v969, %v970
      %v974 = vshrl.u32 %v908, 16
      %v976 = vrot.slane %v974, 7
      %v977 = vshll.u32 %v908, 16
      %v979 = vor.u32 %v976, %v977
      %v981 = vshrl.u32 %v909, 16
      %v983 = vrot.slane %v981, 7
      %v984 = vshll.u32 %v909, 16
      %v986 = vor.u32 %v983, %v984
      %v988 = vshrl.u32 %v910, 16
      %v990 = vrot.slane %v988, 7
      %v991 = vshll.u32 %v910, 16
      %v993 = vor.u32 %v990, %v991
      %v995 = vshrl.u32 %v911, 16
      %v997 = vrot.slane %v995, 7
      %v998 = vshll.u32 %v911, 16
      %v1000 = vor.u32 %v997, %v998
      %v1002 = vshrl.u32 %v912, 16
      %v1004 = vrot.slane %v1002, 7
      %v1005 = vshll.u32 %v912, 16
      %v1007 = vor.u32 %v1004, %v1005
      %v1009 = vshrl.u32 %v913, 16
      %v1011 = vrot.slane %v1009, 7
      %v1012 = vshll.u32 %v913, 16
      %v1014 = vor.u32 %v1011, %v1012
      %v1016 = vshrl.u32 %v914, 16
      %v1018 = vrot.slane %v1016, 7
      %v1019 = vshll.u32 %v914, 16
      %v1021 = vor.u32 %v1018, %v1019
      %v1023 = vshrl.u32 %v915, 16
      %v1025 = vrot.slane %v1023, 7
      %v1026 = vshll.u32 %v915, 16
      %v1028 = vor.u32 %v1025, %v1026
      %v1030 = vshrl.u32 %v916, 16
      %v1032 = vrot.slane %v1030, 7
      %v1033 = vshll.u32 %v916, 16
      %v1035 = vor.u32 %v1032, %v1033
      %vm1070 = vcmask 1040384
      %vm1071 = vsmask.f32 256
      %vm1072 = vmand %vm1070, %vm1071
      %v1073 = vsel %vm1072, 0, %v923
      %v1074 = vsel %vm1072, 0, %v930
      %v1075 = vsel %vm1072, 0, %v937
      %v1076 = vsel %vm1072, 0, %v944
      %v1077 = vsel %vm1072, 0, %v951
      %v1078 = vsel %vm1072, 0, %v958
      %v1079 = vsel %vm1072, 0, %v965
      %v1080 = vsel %vm1072, 0, %v972
      %v1081 = vsel %vm1072, 0, %v979
      %v1082 = vsel %vm1072, 0, %v986
      %v1083 = vsel %vm1072, 0, %v993
      %v1084 = vsel %vm1072, 0, %v1000
      %v1085 = vsel %vm1072, 0, %v1007
      %v1086 = vsel %vm1072, 0, %v1014
      %v1087 = vsel %vm1072, 0, %v1021
      %v1088 = vsel %vm1072, 0, %v1028
      %v1089 = vsel %vm1072, 0, %v1035
      %v1090 = vsel %vm1072, %v920, 0
      %v1091 = vsel %vm1072, %v927, 0
      %v1092 = vsel %vm1072, %v934, 0
      %v1093 = vsel %vm1072, %v941, 0
      %v1094 = vsel %vm1072, %v948, 0
      %v1095 = vsel %vm1072, %v955, 0
      %v1096 = vsel %vm1072, %v962, 0
      %v1097 = vsel %vm1072, %v969, 0
      %v1098 = vsel %vm1072, %v976, 0
      %v1099 = vsel %vm1072, %v983, 0
      %v1100 = vsel %vm1072, %v990, 0
      %v1101 = vsel %vm1072, %v997, 0
      %v1102 = vsel %vm1072, %v1004, 0
      %v1103 = vsel %vm1072, %v1011, 0
      %v1104 = vsel %vm1072, %v1018, 0
      %v1105 = vsel %vm1072, %v1025, 0
      %v1106 = vsel %vm1072, %v1032, 0
      %vm1107 = vsmask.f32 7424
      %v1109 = vshrl.u32 %v1073, 16
      %v1111 = vshll.u32 %v1073, 16
      %v1113 = vrot.slane %v1111, 1
      %v1114 = vor.u32 %v1109, %v1113
      %v1116 = vshll.u32 %v1090, 16
      %v1118 = vrot.slane %v1116, 1
      %v1119 = vsel %vm1107, %v1114, %v1118
      %v1121 = vshrl.u32 %v1074, 16
      %v1123 = vshll.u32 %v1074, 16
      %v1125 = vrot.slane %v1123, 1
      %v1126 = vor.u32 %v1121, %v1125
      %v1128 = vshll.u32 %v1091, 16
      %v1130 = vrot.slane %v1128, 1
      %v1131 = vsel %vm1107, %v1126, %v1130
      %v1133 = vshrl.u32 %v1075, 16
      %v1135 = vshll.u32 %v1075, 16
      %v1137 = vrot.slane %v1135, 1
      %v1138 = vor.u32 %v1133, %v1137
      %v1140 = vshll.u32 %v1092, 16
      %v1142 = vrot.slane %v1140, 1
      %v1143 = vsel %vm1107, %v1138, %v1142
      %v1145 = vshrl.u32 %v1076, 16
      %v1147 = vshll.u32 %v1076, 16
      %v1149 = vrot.slane %v1147, 1
      %v1150 = vor.u32 %v1145, %v1149
      %v1152 = vshll.u32 %v1093, 16
      %v1154 = vrot.slane %v1152, 1
      %v1155 = vsel %vm1107, %v1150, %v1154
      %v1157 = vshrl.u32 %v1077, 16
      %v1159 = vshll.u32 %v1077, 16
      %v1161 = vrot.slane %v1159, 1
      %v1162 = vor.u32 %v1157, %v1161
      %v1164 = vshll.u32 %v1094, 16
      %v1166 = vrot.slane %v1164, 1
      %v1167 = vsel %vm1107, %v1162, %v1166
      %v1169 = vshrl.u32 %v1078, 16
      %v1171 = vshll.u32 %v1078, 16
      %v1173 = vrot.slane %v1171, 1
      %v1174 = vor.u32 %v1169, %v1173
      %v1176 = vshll.u32 %v1095, 16
      %v1178 = vrot.slane %v1176, 1
      %v1179 = vsel %vm1107, %v1174, %v1178
      %v1181 = vshrl.u32 %v1079, 16
      %v1183 = vshll.u32 %v1079, 16
      %v1185 = vrot.slane %v1183, 1
      %v1186 = vor.u32 %v1181, %v1185
      %v1188 = vshll.u32 %v1096, 16
      %v1190 = vrot.slane %v1188, 1
      %v1191 = vsel %vm1107, %v1186, %v1190
      %v1193 = vshrl.u32 %v1080, 16
      %v1195 = vshll.u32 %v1080, 16
      %v1197 = vrot.slane %v1195, 1
      %v1198 = vor.u32 %v1193, %v1197
      %v1200 = vshll.u32 %v1097, 16
      %v1202 = vrot.slane %v1200, 1
      %v1203 = vsel %vm1107, %v1198, %v1202
      %v1205 = vshrl.u32 %v1081, 16
      %v1207 = vshll.u32 %v1081, 16
      %v1209 = vrot.slane %v1207, 1
      %v1210 = vor.u32 %v1205, %v1209
      %v1212 = vshll.u32 %v1098, 16
      %v1214 = vrot.slane %v1212, 1
      %v1215 = vsel %vm1107, %v1210, %v1214
      %v1217 = vshrl.u32 %v1082, 16
      %v1219 = vshll.u32 %v1082, 16
      %v1221 = vrot.slane %v1219, 1
      %v1222 = vor.u32 %v1217, %v1221
      %v1224 = vshll.u32 %v1099, 16
      %v1226 = vrot.slane %v1224, 1
      %v1227 = vsel %vm1107, %v1222, %v1226
      %v1229 = vshrl.u32 %v1083, 16
      %v1231 = vshll.u32 %v1083, 16
      %v1233 = vrot.slane %v1231, 1
      %v1234 = vor.u32 %v1229, %v1233
      %v1236 = vshll.u32 %v1100, 16
      %v1238 = vrot.slane %v1236, 1
      %v1239 = vsel %vm1107, %v1234, %v1238
      %v1241 = vshrl.u32 %v1084, 16
      %v1243 = vshll.u32 %v1084, 16
      %v1245 = vrot.slane %v1243, 1
      %v1246 = vor.u32 %v1241, %v1245
      %v1248 = vshll.u32 %v1101, 16
      %v1250 = vrot.slane %v1248, 1
      %v1251 = vsel %vm1107, %v1246, %v1250
      %v1253 = vshrl.u32 %v1085, 16
      %v1255 = vshll.u32 %v1085, 16
      %v1257 = vrot.slane %v1255, 1
      %v1258 = vor.u32 %v1253, %v1257
      %v1260 = vshll.u32 %v1102, 16
      %v1262 = vrot.slane %v1260, 1
      %v1263 = vsel %vm1107, %v1258, %v1262
      %v1265 = vshrl.u32 %v1086, 16
      %v1267 = vshll.u32 %v1086, 16
      %v1269 = vrot.slane %v1267, 1
      %v1270 = vor.u32 %v1265, %v1269
      %v1272 = vshll.u32 %v1103, 16
      %v1274 = vrot.slane %v1272, 1
      %v1275 = vsel %vm1107, %v1270, %v1274
      %v1277 = vshrl.u32 %v1087, 16
      %v1279 = vshll.u32 %v1087, 16
      %v1281 = vrot.slane %v1279, 1
      %v1282 = vor.u32 %v1277, %v1281
      %v1284 = vshll.u32 %v1104, 16
      %v1286 = vrot.slane %v1284, 1
      %v1287 = vsel %vm1107, %v1282, %v1286
      %v1289 = vshrl.u32 %v1088, 16
      %v1291 = vshll.u32 %v1088, 16
      %v1293 = vrot.slane %v1291, 1
      %v1294 = vor.u32 %v1289, %v1293
      %v1296 = vshll.u32 %v1105, 16
      %v1298 = vrot.slane %v1296, 1
      %v1299 = vsel %vm1107, %v1294, %v1298
      %1300 = vrot.lane.b32.xlu0 %v1119, 64
      %v1301 = vpop.permute.xlu0 %1300
      %1302 = vrot.lane.b32.xlu0 %v1131, 64
      %v1303 = vpop.permute.xlu0 %1302
      %1304 = vrot.lane.b32.xlu0 %v1143, 64
      %v1305 = vpop.permute.xlu0 %1304
      %1306 = vrot.lane.b32.xlu0 %v1155, 64
      %v1307 = vpop.permute.xlu0 %1306
      %1308 = vrot.lane.b32.xlu0 %v1167, 64
      %v1309 = vpop.permute.xlu0 %1308
      %1310 = vrot.lane.b32.xlu0 %v1179, 64
      %v1311 = vpop.permute.xlu0 %1310
      %1312 = vrot.lane.b32.xlu0 %v1191, 64
      %v1313 = vpop.permute.xlu0 %1312
      %1314 = vrot.lane.b32.xlu0 %v1203, 64
      %v1315 = vpop.permute.xlu0 %1314
      %1316 = vrot.lane.b32.xlu0 %v1215, 64
      %v1317 = vpop.permute.xlu0 %1316
      %1318 = vrot.lane.b32.xlu0 %v1227, 64
      %v1319 = vpop.permute.xlu0 %1318
      %1320 = vrot.lane.b32.xlu0 %v1239, 64
      %v1321 = vpop.permute.xlu0 %1320
      %1322 = vrot.lane.b32.xlu0 %v1251, 64
      %v1323 = vpop.permute.xlu0 %1322
      %1324 = vrot.lane.b32.xlu0 %v1263, 64
      %v1325 = vpop.permute.xlu0 %1324
      %1326 = vrot.lane.b32.xlu0 %v1275, 64
      %v1327 = vpop.permute.xlu0 %1326
      %1328 = vrot.lane.b32.xlu0 %v1287, 64
      %v1329 = vpop.permute.xlu0 %1328
      %1330 = vrot.lane.b32.xlu0 %v1299, 64
      %v1331 = vpop.permute.xlu0 %1330
      %vm1364 = vcmask 1046528
      %v1365 = vrot.slane %v1073, 1
      %v1366 = vrot.slane %v1090, 1
      %v1367 = vsel %vm1364, %v1365, %v1366
      %v1368 = vrot.slane %v1074, 1
      %v1369 = vrot.slane %v1091, 1
      %v1370 = vsel %vm1364, %v1368, %v1369
      %v1371 = vrot.slane %v1075, 1
      %v1372 = vrot.slane %v1092, 1
      %v1373 = vsel %vm1364, %v1371, %v1372
      %v1374 = vrot.slane %v1076, 1
      %v1375 = vrot.slane %v1093, 1
      %v1376 = vsel %vm1364, %v1374, %v1375
      %v1377 = vrot.slane %v1077, 1
      %v1378 = vrot.slane %v1094, 1
      %v1379 = vsel %vm1364, %v1377, %v1378
      %v1380 = vrot.slane %v1078, 1
      %v1381 = vrot.slane %v1095, 1
      %v1382 = vsel %vm1364, %v1380, %v1381
      %v1383 = vrot.slane %v1079, 1
      %v1384 = vrot.slane %v1096, 1
      %v1385 = vsel %vm1364, %v1383, %v1384
      %v1386 = vrot.slane %v1080, 1
      %v1387 = vrot.slane %v1097, 1
      %v1388 = vsel %vm1364, %v1386, %v1387
      %v1389 = vrot.slane %v1081, 1
      %v1390 = vrot.slane %v1098, 1
      %v1391 = vsel %vm1364, %v1389, %v1390
      %v1392 = vrot.slane %v1082, 1
      %v1393 = vrot.slane %v1099, 1
      %v1394 = vsel %vm1364, %v1392, %v1393
      %v1395 = vrot.slane %v1083, 1
      %v1396 = vrot.slane %v1100, 1
      %v1397 = vsel %vm1364, %v1395, %v1396
      %v1398 = vrot.slane %v1084, 1
      %v1399 = vrot.slane %v1101, 1
      %v1400 = vsel %vm1364, %v1398, %v1399
      %v1401 = vrot.slane %v1085, 1
      %v1402 = vrot.slane %v1102, 1
      %v1403 = vsel %vm1364, %v1401, %v1402
      %v1404 = vrot.slane %v1086, 1
      %v1405 = vrot.slane %v1103, 1
      %v1406 = vsel %vm1364, %v1404, %v1405
      %v1407 = vrot.slane %v1087, 1
      %v1408 = vrot.slane %v1104, 1
      %v1409 = vsel %vm1364, %v1407, %v1408
      %v1410 = vrot.slane %v1088, 1
      %v1411 = vrot.slane %v1105, 1
      %v1412 = vsel %vm1364, %v1410, %v1411
      %1414 = vrot.lane.b32.xlu0 %v1074, 64
      %v1415 = vpop.permute.xlu0 %1414
      %1416 = vrot.lane.b32.xlu0 %v1075, 64
      %v1417 = vpop.permute.xlu0 %1416
      %1418 = vrot.lane.b32.xlu0 %v1076, 64
      %v1419 = vpop.permute.xlu0 %1418
      %1420 = vrot.lane.b32.xlu0 %v1077, 64
      %v1421 = vpop.permute.xlu0 %1420
      %1422 = vrot.lane.b32.xlu0 %v1078, 64
      %v1423 = vpop.permute.xlu0 %1422
      %1424 = vrot.lane.b32.xlu0 %v1079, 64
      %v1425 = vpop.permute.xlu0 %1424
      %1426 = vrot.lane.b32.xlu0 %v1080, 64
      %v1427 = vpop.permute.xlu0 %1426
      %1428 = vrot.lane.b32.xlu0 %v1081, 64
      %v1429 = vpop.permute.xlu0 %1428
      %1430 = vrot.lane.b32.xlu0 %v1082, 64
      %v1431 = vpop.permute.xlu0 %1430
      %1432 = vrot.lane.b32.xlu0 %v1083, 64
      %v1433 = vpop.permute.xlu0 %1432
      %1434 = vrot.lane.b32.xlu0 %v1084, 64
      %v1435 = vpop.permute.xlu0 %1434
      %1436 = vrot.lane.b32.xlu0 %v1085, 64
      %v1437 = vpop.permute.xlu0 %1436
      %1438 = vrot.lane.b32.xlu0 %v1086, 64
      %v1439 = vpop.permute.xlu0 %1438
      %1440 = vrot.lane.b32.xlu0 %v1087, 64
      %v1441 = vpop.permute.xlu0 %1440
      %1442 = vrot.lane.b32.xlu0 %v1088, 64
      %v1443 = vpop.permute.xlu0 %1442
      %1444 = vrot.lane.b32.xlu0 %v1089, 64
      %v1445 = vpop.permute.xlu0 %1444
      %v1447 = vshrl.u32 %v1089, 16
      %v1449 = vshll.u32 %v1089, 16
      %v1451 = vrot.slane %v1449, 1
      %v1452 = vor.u32 %v1447, %v1451
      %v1454 = vshll.u32 %v1106, 16
      %v1456 = vrot.slane %v1454, 1
      %v1457 = vsel %vm1107, %v1452, %v1456
      %v1459 = vrot.slane %v1089, 1
      %v1460 = vrot.slane %v1106, 1
      %v1461 = vsel %vm1364, %v1459, %v1460
      %1462 = vrot.lane.b32.xlu0 %v1370, 64
      %v1463 = vpop.permute.xlu0 %1462
      %1464 = vrot.lane.b32.xlu0 %v1373, 64
      %v1465 = vpop.permute.xlu0 %1464
      %1466 = vrot.lane.b32.xlu0 %v1376, 64
      %v1467 = vpop.permute.xlu0 %1466
      %1468 = vrot.lane.b32.xlu0 %v1379, 64
      %v1469 = vpop.permute.xlu0 %1468
      %1470 = vrot.lane.b32.xlu0 %v1382, 64
      %v1471 = vpop.permute.xlu0 %1470
      %1472 = vrot.lane.b32.xlu0 %v1385, 64
      %v1473 = vpop.permute.xlu0 %1472
      %1474 = vrot.lane.b32.xlu0 %v1388, 64
      %v1475 = vpop.permute.xlu0 %1474
      %1476 = vrot.lane.b32.xlu0 %v1391, 64
      %v1477 = vpop.permute.xlu0 %1476
      %1478 = vrot.lane.b32.xlu0 %v1394, 64
      %v1479 = vpop.permute.xlu0 %1478
      %1480 = vrot.lane.b32.xlu0 %v1397, 64
      %v1481 = vpop.permute.xlu0 %1480
      %1482 = vrot.lane.b32.xlu0 %v1400, 64
      %v1483 = vpop.permute.xlu0 %1482
      %1484 = vrot.lane.b32.xlu0 %v1403, 64
      %v1485 = vpop.permute.xlu0 %1484
      %1486 = vrot.lane.b32.xlu0 %v1406, 64
      %v1487 = vpop.permute.xlu0 %1486
      %1488 = vrot.lane.b32.xlu0 %v1409, 64
      %v1489 = vpop.permute.xlu0 %1488
      %1490 = vrot.lane.b32.xlu0 %v1412, 64
      %v1491 = vpop.permute.xlu0 %1490
      %1492 = vrot.lane.b32.xlu0 %v1461, 64
      %v1493 = vpop.permute.xlu0 %1492
      %1494 = vrot.lane.b32.xlu0 %v1457, 64
      %v1495 = vpop.permute.xlu0 %1494
      %vm1496 = vcmask 523264
      %v1498 = vsel %vm1496, %v1073, %v1301
      %v1501 = vsel %vm1496, %v1074, %v1303
      %v1504 = vsel %vm1496, %v1075, %v1305
      %v1507 = vsel %vm1496, %v1076, %v1307
      %v1510 = vsel %vm1496, %v1077, %v1309
      %v1513 = vsel %vm1496, %v1078, %v1311
      %v1516 = vsel %vm1496, %v1079, %v1313
      %v1519 = vsel %vm1496, %v1080, %v1315
      %v1522 = vsel %vm1496, %v1081, %v1317
      %v1525 = vsel %vm1496, %v1082, %v1319
      %v1528 = vsel %vm1496, %v1083, %v1321
      %v1531 = vsel %vm1496, %v1084, %v1323
      %v1534 = vsel %vm1496, %v1085, %v1325
      %v1537 = vsel %vm1496, %v1086, %v1327
      %v1540 = vsel %vm1496, %v1087, %v1329
      %v1543 = vsel %vm1496, %v1088, %v1331
      %v1547 = vsel %vm1496, %v1367, %v1415
      %v1551 = vsel %vm1496, %v1370, %v1417
      %v1555 = vsel %vm1496, %v1373, %v1419
      %v1559 = vsel %vm1496, %v1376, %v1421
      %v1563 = vsel %vm1496, %v1379, %v1423
      %v1567 = vsel %vm1496, %v1382, %v1425
      %v1571 = vsel %vm1496, %v1385, %v1427
      %v1575 = vsel %vm1496, %v1388, %v1429
      %v1579 = vsel %vm1496, %v1391, %v1431
      %v1583 = vsel %vm1496, %v1394, %v1433
      %v1587 = vsel %vm1496, %v1397, %v1435
      %v1591 = vsel %vm1496, %v1400, %v1437
      %v1595 = vsel %vm1496, %v1403, %v1439
      %v1599 = vsel %vm1496, %v1406, %v1441
      %v1603 = vsel %vm1496, %v1409, %v1443
      %v1607 = vsel %vm1496, %v1412, %v1445
      %v1611 = vsel %vm1496, %v1131, %v1463
      %v1615 = vsel %vm1496, %v1143, %v1465
      %v1619 = vsel %vm1496, %v1155, %v1467
      %v1623 = vsel %vm1496, %v1167, %v1469
      %v1627 = vsel %vm1496, %v1179, %v1471
      %v1631 = vsel %vm1496, %v1191, %v1473
      %v1635 = vsel %vm1496, %v1203, %v1475
      %v1639 = vsel %vm1496, %v1215, %v1477
      %v1643 = vsel %vm1496, %v1227, %v1479
      %v1647 = vsel %vm1496, %v1239, %v1481
      %v1651 = vsel %vm1496, %v1251, %v1483
      %v1655 = vsel %vm1496, %v1263, %v1485
      %v1659 = vsel %vm1496, %v1275, %v1487
      %v1663 = vsel %vm1496, %v1287, %v1489
      %v1667 = vsel %vm1496, %v1299, %v1491
      %v1671 = vsel %vm1496, %v1457, %v1493
      %v1674 = vsel %vm1496, %v1089, %v1495
      %v1676 = vld [vmem:[%s3] sm:$0xf]
      %v1677 = vld [vmem:[%s3 + $0x4] sm:$0xf]
      %v1678 = vld [vmem:[%s3 + $0x8] sm:$0xf]
      %v1679 = vld [vmem:[%s3 + $0xc] sm:$0xf]
      %v1680 = vld [vmem:[%s3 + $0x10] sm:$0xf]
      %v1681 = vld [vmem:[%s3 + $0x14] sm:$0xf]
      %v1682 = vld [vmem:[%s3 + $0x18] sm:$0xf]
      %v1683 = vld [vmem:[%s3 + $0x1c] sm:$0xf]
      %v1684 = vld [vmem:[%s3 + $0x20] sm:$0xf]
      %v1685 = vld [vmem:[%s3 + $0x24] sm:$0xf]
      %v1686 = vld [vmem:[%s3 + $0x28] sm:$0xf]
      %v1687 = vld [vmem:[%s3 + $0x2c] sm:$0xf]
      %v1688 = vld [vmem:[%s3 + $0x30] sm:$0xf]
      %v1689 = vld [vmem:[%s3 + $0x34] sm:$0xf]
      %v1690 = vld [vmem:[%s3 + $0x38] sm:$0xf]
      %v1691 = vld [vmem:[%s3 + $0x3c] sm:$0xf]
      %v1692 = vld [vmem:[%s3 + $0x40] sm:$0xf]
      %v1693 = vld [vmem:[%s3 + $0x44] sm:$0xf]
      %v1694 = vld [vmem:[%s3 + $0x48] sm:$0xf]
      %v1695 = vld [vmem:[%s3 + $0x4c] sm:$0xf]
      %v1696 = vld [vmem:[%s3 + $0x50] sm:$0xf]
      %v1697 = vld [vmem:[%s3 + $0x54] sm:$0xf]
      %v1698 = vld [vmem:[%s3 + $0x58] sm:$0xf]
      %v1699 = vld [vmem:[%s3 + $0x5c] sm:$0xf]
      %v1700 = vld [vmem:[%s3 + $0x60] sm:$0xf]
      %v1701 = vld [vmem:[%s3 + $0x64] sm:$0xf]
      %v1702 = vld [vmem:[%s3 + $0x68] sm:$0xf]
      %v1703 = vld [vmem:[%s3 + $0x6c] sm:$0xf]
      %v1704 = vld [vmem:[%s3 + $0x70] sm:$0xf]
      %v1705 = vld [vmem:[%s3 + $0x74] sm:$0xf]
      %v1706 = vld [vmem:[%s3 + $0x78] sm:$0xf]
      %v1707 = vld [vmem:[%s3 + $0x7c] sm:$0xf]
      %v1708 = vld [vmem:[%s3 + $0x80] sm:$0xf]
      %v1709 = vld [vmem:[%s3 + $0x84] sm:$0xf]
      %v1710 = vld [vmem:[%s3 + $0x88] sm:$0xf]
      %v1711 = vld [vmem:[%s3 + $0x8c] sm:$0xf]
      %v1712 = vld [vmem:[%s3 + $0x90] sm:$0xf]
      %v1713 = vld [vmem:[%s3 + $0x94] sm:$0xf]
      %v1714 = vld [vmem:[%s3 + $0x98] sm:$0xf]
      %v1715 = vld [vmem:[%s3 + $0x9c] sm:$0xf]
      %v1716 = vld [vmem:[%s3 + $0xa0] sm:$0xf]
      %v1717 = vld [vmem:[%s3 + $0xa4] sm:$0xf]
      %v1718 = vld [vmem:[%s3 + $0xa8] sm:$0xf]
      %v1719 = vld [vmem:[%s3 + $0xac] sm:$0xf]
      %v1720 = vld [vmem:[%s3 + $0xb0] sm:$0xf]
      %v1721 = vld [vmem:[%s3 + $0xb4] sm:$0xf]
      %v1722 = vld [vmem:[%s3 + $0xb8] sm:$0xf]
      %v1723 = vld [vmem:[%s3 + $0xbc] sm:$0xf]
      %v1724 = vld [vmem:[%s3 + $0xc0] sm:$0xf]
      %v1725 = vld [vmem:[%s3 + $0xc4] sm:$0xf]
      %v1726 = vld [vmem:[%s3 + $0xc8] sm:$0xf]
      %v1727 = vld [vmem:[%s3 + $0xcc] sm:$0xf]
      %v1728 = vld [vmem:[%s3 + $0xd0] sm:$0xf]
      %v1729 = vld [vmem:[%s3 + $0xd4] sm:$0xf]
      %v1730 = vld [vmem:[%s3 + $0xd8] sm:$0xf]
      %v1731 = vld [vmem:[%s3 + $0xdc] sm:$0xf]
      %v1732 = vld [vmem:[%s3 + $0xe0] sm:$0xf]
      %v1733 = vld [vmem:[%s3 + $0xe4] sm:$0xf]
      %v1734 = vld [vmem:[%s3 + $0xe8] sm:$0xf]
      %v1735 = vld [vmem:[%s3 + $0xec] sm:$0xf]
      %v1736 = vld [vmem:[%s3 + $0xf0] sm:$0xf]
      %v1737 = vld [vmem:[%s3 + $0xf4] sm:$0xf]
      %v1738 = vld [vmem:[%s3 + $0xf8] sm:$0xf]
      %v1739 = vld [vmem:[%s3 + $0xfc] sm:$0xf]
      %v1740 = vld [vmem:[%s3 + $0x100] sm:$0xf]
      %v1741 = vld [vmem:[%s3 + $0x104] sm:$0xf]
      %v1742 = vld [vmem:[%s3 + $0x108] sm:$0xf]
      %v1743 = vld [vmem:[%s3 + $0x10c] sm:$0xf]
      %v1744 = vld [vmem:[%s3 + $0x110] sm:$0xf]
      %v1745 = vld [vmem:[%s3 + $0x114] sm:$0xf]
      %v1746 = vld [vmem:[%s3 + $0x118] sm:$0xf]
      %v1747 = vld [vmem:[%s3 + $0x11c] sm:$0xf]
      %v1748 = vld [vmem:[%s4] sm:$0x1]
      %v1750 = vlaneseq
      %v1751 = vshrl.u32 %v1750, 7
      %v1752 = vsub.s32 0, %v1751
      %v1753 = vrot.slane %v1748, %v1752
      %v1827 = vunpack.c.l.b16 %v1676
      %v1828 = vunpack.c.l.b16 %v1677
      %v1829 = vunpack.c.l.b16 %v1678
      %v1830 = vunpack.c.l.b16 %v1679
      %v1831 = vunpack.c.l.b16 %v1680
      %v1832 = vunpack.c.l.b16 %v1681
      %v1833 = vunpack.c.l.b16 %v1682
      %v1834 = vunpack.c.l.b16 %v1683
      %v1835 = vunpack.c.l.b16 %v1684
      %v1836 = vunpack.c.l.b16 %v1685
      %v1837 = vunpack.c.l.b16 %v1686
      %v1838 = vunpack.c.l.b16 %v1687
      %v1839 = vunpack.c.l.b16 %v1688
      %v1840 = vunpack.c.l.b16 %v1689
      %v1841 = vunpack.c.l.b16 %v1690
      %v1842 = vunpack.c.l.b16 %v1691
      %v1843 = vunpack.c.l.b16 %v1692
      %v1844 = vunpack.c.l.b16 %v1693
      %v1845 = vunpack.c.l.b16 %v1694
      %v1846 = vunpack.c.l.b16 %v1695
      %v1847 = vunpack.c.l.b16 %v1696
      %v1848 = vunpack.c.l.b16 %v1697
      %v1849 = vunpack.c.l.b16 %v1698
      %v1850 = vunpack.c.l.b16 %v1699
      %v1851 = vunpack.c.l.b16 %v1700
      %v1852 = vunpack.c.l.b16 %v1701
      %v1853 = vunpack.c.l.b16 %v1702
      %v1854 = vunpack.c.l.b16 %v1703
      %v1855 = vunpack.c.l.b16 %v1704
      %v1856 = vunpack.c.l.b16 %v1705
      %v1857 = vunpack.c.l.b16 %v1706
      %v1858 = vunpack.c.l.b16 %v1707
      %v1859 = vunpack.c.l.b16 %v1708
      %v1860 = vunpack.c.l.b16 %v1709
      %v1861 = vunpack.c.l.b16 %v1710
      %v1862 = vunpack.c.l.b16 %v1711
      %v1863 = vunpack.c.l.b16 %v1712
      %v1864 = vunpack.c.l.b16 %v1713
      %v1865 = vunpack.c.l.b16 %v1714
      %v1866 = vunpack.c.l.b16 %v1715
      %v1867 = vunpack.c.l.b16 %v1716
      %v1868 = vunpack.c.l.b16 %v1717
      %v1869 = vunpack.c.l.b16 %v1718
      %v1870 = vunpack.c.l.b16 %v1719
      %v1871 = vunpack.c.l.b16 %v1720
      %v1872 = vunpack.c.l.b16 %v1721
      %v1873 = vunpack.c.l.b16 %v1722
      %v1874 = vunpack.c.l.b16 %v1723
      %v1875 = vunpack.c.l.b16 %v1724
      %v1876 = vunpack.c.l.b16 %v1725
      %v1877 = vunpack.c.l.b16 %v1726
      %v1878 = vunpack.c.l.b16 %v1727
      %v1879 = vunpack.c.l.b16 %v1728
      %v1880 = vunpack.c.l.b16 %v1729
      %v1881 = vunpack.c.l.b16 %v1730
      %v1882 = vunpack.c.l.b16 %v1731
      %v1883 = vunpack.c.l.b16 %v1732
      %v1884 = vunpack.c.l.b16 %v1733
      %v1885 = vunpack.c.l.b16 %v1734
      %v1886 = vunpack.c.l.b16 %v1735
      %v1887 = vunpack.c.l.b16 %v1736
      %v1888 = vunpack.c.l.b16 %v1737
      %v1889 = vunpack.c.l.b16 %v1738
      %v1890 = vunpack.c.l.b16 %v1739
      %v1891 = vunpack.c.l.b16 %v1740
      %v1892 = vunpack.c.l.b16 %v1741
      %v1893 = vunpack.c.l.b16 %v1742
      %v1894 = vunpack.c.l.b16 %v1743
      %v1895 = vunpack.c.l.b16 %v1744
      %v1896 = vunpack.c.l.b16 %v1745
      %v1897 = vunpack.c.l.b16 %v1746
      %v1898 = vunpack.c.l.b16 %v1747
      %v1899 = vpack.c.b16 %v1828, %v1827
      %v1900 = vpack.c.b16 %v1830, %v1829
      %v1901 = vpack.c.b16 %v1832, %v1831
      %v1902 = vpack.c.b16 %v1834, %v1833
      %v1903 = vpack.c.b16 %v1836, %v1835
      %v1904 = vpack.c.b16 %v1838, %v1837
      %v1905 = vpack.c.b16 %v1840, %v1839
      %v1906 = vpack.c.b16 %v1842, %v1841
      %v1907 = vpack.c.b16 %v1844, %v1843
      %v1908 = vpack.c.b16 %v1846, %v1845
      %v1909 = vpack.c.b16 %v1848, %v1847
      %v1910 = vpack.c.b16 %v1850, %v1849
      %v1911 = vpack.c.b16 %v1852, %v1851
      %v1912 = vpack.c.b16 %v1854, %v1853
      %v1913 = vpack.c.b16 %v1856, %v1855
      %v1914 = vpack.c.b16 %v1858, %v1857
      %v1915 = vpack.c.b16 %v1860, %v1859
      %v1916 = vpack.c.b16 %v1862, %v1861
      %v1917 = vpack.c.b16 %v1864, %v1863
      %v1918 = vpack.c.b16 %v1866, %v1865
      %v1919 = vpack.c.b16 %v1868, %v1867
      %v1920 = vpack.c.b16 %v1870, %v1869
      %v1921 = vpack.c.b16 %v1872, %v1871
      %v1922 = vpack.c.b16 %v1874, %v1873
      %v1923 = vpack.c.b16 %v1876, %v1875
      %v1924 = vpack.c.b16 %v1878, %v1877
      %v1925 = vpack.c.b16 %v1880, %v1879
      %v1926 = vpack.c.b16 %v1882, %v1881
      %v1927 = vpack.c.b16 %v1884, %v1883
      %v1928 = vpack.c.b16 %v1886, %v1885
      %v1929 = vpack.c.b16 %v1888, %v1887
      %v1930 = vpack.c.b16 %v1890, %v1889
      %v1931 = vpack.c.b16 %v1892, %v1891
      %v1932 = vpack.c.b16 %v1894, %v1893
      %v1933 = vpack.c.b16 %v1896, %v1895
      %v1934 = vpack.c.b16 %v1898, %v1897
      %v1971 = vsel %vm1496, %v1373, 0
      %v1973 = vsel %vm1496, %v1376, 0
      %v1975 = vsel %vm1496, %v1379, 0
      %v1977 = vsel %vm1496, %v1382, 0
      %v1979 = vsel %vm1496, %v1385, 0
      %v1981 = vsel %vm1496, %v1388, 0
      %v1983 = vsel %vm1496, %v1391, 0
      %v1985 = vsel %vm1496, %v1394, 0
      %v1987 = vsel %vm1496, %v1397, 0
      %v1989 = vsel %vm1496, %v1400, 0
      %v1991 = vsel %vm1496, %v1403, 0
      %v1993 = vsel %vm1496, %v1406, 0
      %v1995 = vsel %vm1496, %v1409, 0
      %v1997 = vsel %vm1496, %v1412, 0
      %v2000 = vsel %vm1496, %v1461, 0
      %v2002 = vsel %vm1496, %v1367, 0
      %2004 = vmatprep.subr.bf16.mxu0 0
      %2005 = vmatpush1.bf16.msra.mxu0 %v1899
      %2006 = vmatprep.subr.bf16.mxu0 0
      %2007 = vmatpush1.bf16.msra.mxu0 %v1900
      %2008 = vmatprep.subr.bf16.mxu0 0
      %2009 = vmatpush1.bf16.msra.mxu0 %v1901
      %2010 = vmatprep.subr.bf16.mxu0 0
      %2011 = vmatpush1.bf16.msra.mxu0 %v1902
      %2012 = vmatprep.subr.bf16.mxu0 0
      %2013 = vmatpush1.bf16.msra.mxu0 %v1903
      %2014 = vmatprep.subr.bf16.mxu0 0
      %2015 = vmatpush1.bf16.msra.mxu0 %v1904
      %2016 = vmatprep.subr.bf16.mxu0 0
      %2017 = vmatpush1.bf16.msra.mxu0 %v1905
      %2018 = vmatprep.subr.bf16.mxu0 0
      %2019 = vmatpush1.bf16.msra.mxu0 %v1906
      %2020 = vmatprep.subr.bf16.mxu0 0
      %2021 = vmatpush1.bf16.msra.mxu0 %v1907
      %2022 = vmatprep.subr.bf16.mxu0 0
      %2023 = vmatpush1.bf16.msra.mxu0 %v1908
      %2024 = vmatprep.subr.bf16.mxu0 0
      %2025 = vmatpush1.bf16.msra.mxu0 %v1909
      %2026 = vmatprep.subr.bf16.mxu0 0
      %2027 = vmatpush1.bf16.msra.mxu0 %v1910
      %2028 = vmatprep.subr.bf16.mxu0 0
      %2029 = vmatpush1.bf16.msra.mxu0 %v1911
      %2030 = vmatprep.subr.bf16.mxu0 0
      %2031 = vmatpush1.bf16.msra.mxu0 %v1912
      %2032 = vmatprep.subr.bf16.mxu0 0
      %2033 = vmatpush1.bf16.msra.mxu0 %v1913
      %2034 = vmatprep.subr.bf16.mxu0 0
      %2035 = vmatpush1.bf16.msra.mxu0 %v1914
      %2036 = vmatprep.mubr.bf16.mxu0 %v1547
      %2037 = vmatmul.mubr.bf16.gmra.mrb[0].mxu0 %v1498
      %v2038 = vpop.f32.mrb[0].mxu0
      %v2039 = vadd.f32 %v1753, %v2038
      %v2040 = vpop.f32.mrb[0].mxu0
      %v2041 = vpop.f32.mrb[0].mxu0
      %v2042 = vadd.f32 %v1753, %v2041
      %v2043 = vpop.f32.mrb[0].mxu0
      %2044 = vmatprep.mubr.bf16.mxu0 %v1551
      %2045 = vmatmul.mubr.bf16.gmra.mrb[0].mxu0 %v1501
      %v2046 = vpop.f32.mrb[0].mxu0
      %v2047 = vadd.f32 %v1753, %v2046
      %v2048 = vpop.f32.mrb[0].mxu0
      %v2049 = vpop.f32.mrb[0].mxu0
      %v2050 = vadd.f32 %v1753, %v2049
      %v2051 = vpop.f32.mrb[0].mxu0
      %2052 = vmatprep.mubr.bf16.mxu0 %v1555
      %2053 = vmatmul.mubr.bf16.gmra.mrb[0].mxu0 %v1504
      %v2054 = vpop.f32.mrb[0].mxu0
      %v2055 = vadd.f32 %v1753, %v2054
      %v2056 = vpop.f32.mrb[0].mxu0
      %v2057 = vpop.f32.mrb[0].mxu0
      %v2058 = vadd.f32 %v1753, %v2057
      %v2059 = vpop.f32.mrb[0].mxu0
      %2060 = vmatprep.mubr.bf16.mxu0 %v1559
      %2061 = vmatmul.mubr.bf16.gmra.mrb[0].mxu0 %v1507
      %v2062 = vpop.f32.mrb[0].mxu0
      %v2063 = vadd.f32 %v1753, %v2062
      %v2064 = vpop.f32.mrb[0].mxu0
      %v2065 = vpop.f32.mrb[0].mxu0
      %v2066 = vadd.f32 %v1753, %v2065
      %v2067 = vpop.f32.mrb[0].mxu0
      %2068 = vmatprep.mubr.bf16.mxu0 %v1563
      %2069 = vmatmul.mubr.bf16.gmra.mrb[0].mxu0 %v1510
      %v2070 = vpop.f32.mrb[0].mxu0
      %v2071 = vadd.f32 %v1753, %v2070
      %v2072 = vpop.f32.mrb[0].mxu0
      %v2073 = vpop.f32.mrb[0].mxu0
      %v2074 = vadd.f32 %v1753, %v2073
      %v2075 = vpop.f32.mrb[0].mxu0
      %2076 = vmatprep.mubr.bf16.mxu0 %v1567
      %2077 = vmatmul.mubr.bf16.gmra.mrb[0].mxu0 %v1513
      %v2078 = vpop.f32.mrb[0].mxu0
      %v2079 = vadd.f32 %v1753, %v2078
      %v2080 = vpop.f32.mrb[0].mxu0
      %v2081 = vpop.f32.mrb[0].mxu0
      %v2082 = vadd.f32 %v1753, %v2081
      %v2083 = vpop.f32.mrb[0].mxu0
      %2084 = vmatprep.mubr.bf16.mxu0 %v1571
      %2085 = vmatmul.mubr.bf16.gmra.mrb[0].mxu0 %v1516
      %v2086 = vpop.f32.mrb[0].mxu0
      %v2087 = vadd.f32 %v1753, %v2086
      %v2088 = vpop.f32.mrb[0].mxu0
      %v2089 = vpop.f32.mrb[0].mxu0
      %v2090 = vadd.f32 %v1753, %v2089
      %v2091 = vpop.f32.mrb[0].mxu0
      %2092 = vmatprep.mubr.bf16.mxu0 %v1575
      %2093 = vmatmul.mubr.bf16.gmra.mrb[0].mxu0 %v1519
      %v2094 = vpop.f32.mrb[0].mxu0
      %v2095 = vadd.f32 %v1753, %v2094
      %v2096 = vpop.f32.mrb[0].mxu0
      %v2097 = vpop.f32.mrb[0].mxu0
      %v2098 = vadd.f32 %v1753, %v2097
      %v2099 = vpop.f32.mrb[0].mxu0
      %2100 = vmatprep.mubr.bf16.mxu0 %v1579
      %2101 = vmatmul.mubr.bf16.gmra.mrb[0].mxu0 %v1522
      %v2102 = vpop.f32.mrb[0].mxu0
      %v2103 = vadd.f32 %v1753, %v2102
      %v2104 = vpop.f32.mrb[0].mxu0
      %v2105 = vpop.f32.mrb[0].mxu0
      %v2106 = vadd.f32 %v1753, %v2105
      %v2107 = vpop.f32.mrb[0].mxu0
      %2108 = vmatprep.mubr.bf16.mxu0 %v1583
      %2109 = vmatmul.mubr.bf16.gmra.mrb[0].mxu0 %v1525
      %v2110 = vpop.f32.mrb[0].mxu0
      %v2111 = vadd.f32 %v1753, %v2110
      %v2112 = vpop.f32.mrb[0].mxu0
      %v2113 = vpop.f32.mrb[0].mxu0
      %v2114 = vadd.f32 %v1753, %v2113
      %v2115 = vpop.f32.mrb[0].mxu0
      %2116 = vmatprep.mubr.bf16.mxu0 %v1587
      %2117 = vmatmul.mubr.bf16.gmra.mrb[0].mxu0 %v1528
      %v2118 = vpop.f32.mrb[0].mxu0
      %v2119 = vadd.f32 %v1753, %v2118
      %v2120 = vpop.f32.mrb[0].mxu0
      %v2121 = vpop.f32.mrb[0].mxu0
      %v2122 = vadd.f32 %v1753, %v2121
      %v2123 = vpop.f32.mrb[0].mxu0
      %2124 = vmatprep.mubr.bf16.mxu0 %v1591
      %2125 = vmatmul.mubr.bf16.gmra.mrb[0].mxu0 %v1531
      %v2126 = vpop.f32.mrb[0].mxu0
      %v2127 = vadd.f32 %v1753, %v2126
      %v2128 = vpop.f32.mrb[0].mxu0
      %v2129 = vpop.f32.mrb[0].mxu0
      %v2130 = vadd.f32 %v1753, %v2129
      %v2131 = vpop.f32.mrb[0].mxu0
      %2132 = vmatprep.mubr.bf16.mxu0 %v1595
      %2133 = vmatmul.mubr.bf16.gmra.mrb[0].mxu0 %v1534
      %v2134 = vpop.f32.mrb[0].mxu0
      %v2135 = vadd.f32 %v1753, %v2134
      %v2136 = vpop.f32.mrb[0].mxu0
      %v2137 = vpop.f32.mrb[0].mxu0
      %v2138 = vadd.f32 %v1753, %v2137
      %v2139 = vpop.f32.mrb[0].mxu0
      %2140 = vmatprep.mubr.bf16.mxu0 %v1599
      %2141 = vmatmul.mubr.bf16.gmra.mrb[0].mxu0 %v1537
      %v2142 = vpop.f32.mrb[0].mxu0
      %v2143 = vadd.f32 %v1753, %v2142
      %v2144 = vpop.f32.mrb[0].mxu0
      %v2145 = vpop.f32.mrb[0].mxu0
      %v2146 = vadd.f32 %v1753, %v2145
      %v2147 = vpop.f32.mrb[0].mxu0
      %2148 = vmatprep.mubr.bf16.mxu0 %v1603
      %2149 = vmatmul.mubr.bf16.gmra.mrb[0].mxu0 %v1540
      %v2150 = vpop.f32.mrb[0].mxu0
      %v2151 = vadd.f32 %v1753, %v2150
      %v2152 = vpop.f32.mrb[0].mxu0
      %v2153 = vpop.f32.mrb[0].mxu0
      %v2154 = vadd.f32 %v1753, %v2153
      %v2155 = vpop.f32.mrb[0].mxu0
      %2156 = vmatprep.mubr.bf16.mxu0 %v1607
      %2157 = vmatmul.mubr.bf16.gmra.mrb[0].mxu0 %v1543
      %v2158 = vpop.f32.mrb[0].mxu0
      %v2159 = vadd.f32 %v1753, %v2158
      %v2160 = vpop.f32.mrb[0].mxu0
      %v2161 = vpop.f32.mrb[0].mxu0
      %v2162 = vadd.f32 %v1753, %v2161
      %v2163 = vpop.f32.mrb[0].mxu0
      %2164 = vdwg.mxu0
      %2165 = vmatprep.subr.bf16.mxu0 0
      %2166 = vmatpush1.bf16.msra.mxu0 %v1915
      %2167 = vmatprep.subr.bf16.mxu0 0
      %2168 = vmatpush1.bf16.msra.mxu0 %v1916
      %2169 = vmatprep.subr.bf16.mxu0 0
      %2170 = vmatpush1.bf16.msra.mxu0 %v1917
      %2171 = vmatprep.subr.bf16.mxu0 0
      %2172 = vmatpush1.bf16.msra.mxu0 %v1918
      %2173 = vmatprep.subr.bf16.mxu0 0
      %2174 = vmatpush1.bf16.msra.mxu0 %v1919
      %2175 = vmatprep.subr.bf16.mxu0 0
      %2176 = vmatpush1.bf16.msra.mxu0 %v1920
      %2177 = vmatprep.subr.bf16.mxu0 0
      %2178 = vmatpush1.bf16.msra.mxu0 %v1921
      %2179 = vmatprep.subr.bf16.mxu0 0
      %2180 = vmatpush1.bf16.msra.mxu0 %v1922
      %2181 = vmatprep.subr.bf16.mxu0 0
      %2182 = vmatpush1.bf16.msra.mxu0 %v1923
      %2183 = vmatprep.subr.bf16.mxu0 0
      %2184 = vmatpush1.bf16.msra.mxu0 %v1924
      %2185 = vmatprep.subr.bf16.mxu0 0
      %2186 = vmatpush1.bf16.msra.mxu0 %v1925
      %2187 = vmatprep.subr.bf16.mxu0 0
      %2188 = vmatpush1.bf16.msra.mxu0 %v1926
      %2189 = vmatprep.subr.bf16.mxu0 0
      %2190 = vmatpush1.bf16.msra.mxu0 %v1927
      %2191 = vmatprep.subr.bf16.mxu0 0
      %2192 = vmatpush1.bf16.msra.mxu0 %v1928
      %2193 = vmatprep.subr.bf16.mxu0 0
      %2194 = vmatpush1.bf16.msra.mxu0 %v1929
      %2195 = vmatprep.subr.bf16.mxu0 0
      %2196 = vmatpush1.bf16.msra.mxu0 %v1930
      %2197 = vmatprep.mubr.bf16.mxu0 %v1504
      %2198 = vmatmul.mubr.bf16.gmra.mrb[0].mxu0 %v1611
      %v2199 = vpop.f32.mrb[0].mxu0
      %v2200 = vadd.f32 %v2039, %v2199
      %v2201 = vpop.f32.mrb[0].mxu0
      %v2202 = vpop.f32.mrb[0].mxu0
      %v2203 = vadd.f32 %v2042, %v2202
      %v2204 = vpop.f32.mrb[0].mxu0
      %2205 = vmatprep.mubr.bf16.mxu0 %v1507
      %2206 = vmatmul.mubr.bf16.gmra.mrb[0].mxu0 %v1615
      %v2207 = vpop.f32.mrb[0].mxu0
      %v2208 = vadd.f32 %v2047, %v2207
      %v2209 = vpop.f32.mrb[0].mxu0
      %v2210 = vpop.f32.mrb[0].mxu0
      %v2211 = vadd.f32 %v2050, %v2210
      %v2212 = vpop.f32.mrb[0].mxu0
      %2213 = vmatprep.mubr.bf16.mxu0 %v1510
      %2214 = vmatmul.mubr.bf16.gmra.mrb[0].mxu0 %v1619
      %v2215 = vpop.f32.mrb[0].mxu0
      %v2216 = vadd.f32 %v2055, %v2215
      %v2217 = vpop.f32.mrb[0].mxu0
      %v2218 = vpop.f32.mrb[0].mxu0
      %v2219 = vadd.f32 %v2058, %v2218
      %v2220 = vpop.f32.mrb[0].mxu0
      %2221 = vmatprep.mubr.bf16.mxu0 %v1513
      %2222 = vmatmul.mubr.bf16.gmra.mrb[0].mxu0 %v1623
      %v2223 = vpop.f32.mrb[0].mxu0
      %v2224 = vadd.f32 %v2063, %v2223
      %v2225 = vpop.f32.mrb[0].mxu0
      %v2226 = vpop.f32.mrb[0].mxu0
      %v2227 = vadd.f32 %v2066, %v2226
      %v2228 = vpop.f32.mrb[0].mxu0
      %2229 = vmatprep.mubr.bf16.mxu0 %v1516
      %2230 = vmatmul.mubr.bf16.gmra.mrb[0].mxu0 %v1627
      %v2231 = vpop.f32.mrb[0].mxu0
      %v2232 = vadd.f32 %v2071, %v2231
      %v2233 = vpop.f32.mrb[0].mxu0
      %v2234 = vpop.f32.mrb[0].mxu0
      %v2235 = vadd.f32 %v2074, %v2234
      %v2236 = vpop.f32.mrb[0].mxu0
      %2237 = vmatprep.mubr.bf16.mxu0 %v1519
      %2238 = vmatmul.mubr.bf16.gmra.mrb[0].mxu0 %v1631
      %v2239 = vpop.f32.mrb[0].mxu0
      %v2240 = vadd.f32 %v2079, %v2239
      %v2241 = vpop.f32.mrb[0].mxu0
      %v2242 = vpop.f32.mrb[0].mxu0
      %v2243 = vadd.f32 %v2082, %v2242
      %v2244 = vpop.f32.mrb[0].mxu0
      %2245 = vmatprep.mubr.bf16.mxu0 %v1522
      %2246 = vmatmul.mubr.bf16.gmra.mrb[0].mxu0 %v1635
      %v2247 = vpop.f32.mrb[0].mxu0
      %v2248 = vadd.f32 %v2087, %v2247
      %v2249 = vpop.f32.mrb[0].mxu0
      %v2250 = vpop.f32.mrb[0].mxu0
      %v2251 = vadd.f32 %v2090, %v2250
      %v2252 = vpop.f32.mrb[0].mxu0
      %2253 = vmatprep.mubr.bf16.mxu0 %v1525
      %2254 = vmatmul.mubr.bf16.gmra.mrb[0].mxu0 %v1639
      %v2255 = vpop.f32.mrb[0].mxu0
      %v2256 = vadd.f32 %v2095, %v2255
      %v2257 = vpop.f32.mrb[0].mxu0
      %v2258 = vpop.f32.mrb[0].mxu0
      %v2259 = vadd.f32 %v2098, %v2258
      %v2260 = vpop.f32.mrb[0].mxu0
      %2261 = vmatprep.mubr.bf16.mxu0 %v1528
      %2262 = vmatmul.mubr.bf16.gmra.mrb[0].mxu0 %v1643
      %v2263 = vpop.f32.mrb[0].mxu0
      %v2264 = vadd.f32 %v2103, %v2263
      %v2265 = vpop.f32.mrb[0].mxu0
      %v2266 = vpop.f32.mrb[0].mxu0
      %v2267 = vadd.f32 %v2106, %v2266
      %v2268 = vpop.f32.mrb[0].mxu0
      %2269 = vmatprep.mubr.bf16.mxu0 %v1531
      %2270 = vmatmul.mubr.bf16.gmra.mrb[0].mxu0 %v1647
      %v2271 = vpop.f32.mrb[0].mxu0
      %v2272 = vadd.f32 %v2111, %v2271
      %v2273 = vpop.f32.mrb[0].mxu0
      %v2274 = vpop.f32.mrb[0].mxu0
      %v2275 = vadd.f32 %v2114, %v2274
      %v2276 = vpop.f32.mrb[0].mxu0
      %2277 = vmatprep.mubr.bf16.mxu0 %v1534
      %2278 = vmatmul.mubr.bf16.gmra.mrb[0].mxu0 %v1651
      %v2279 = vpop.f32.mrb[0].mxu0
      %v2280 = vadd.f32 %v2119, %v2279
      %v2281 = vpop.f32.mrb[0].mxu0
      %v2282 = vpop.f32.mrb[0].mxu0
      %v2283 = vadd.f32 %v2122, %v2282
      %v2284 = vpop.f32.mrb[0].mxu0
      %2285 = vmatprep.mubr.bf16.mxu0 %v1537
      %2286 = vmatmul.mubr.bf16.gmra.mrb[0].mxu0 %v1655
      %v2287 = vpop.f32.mrb[0].mxu0
      %v2288 = vadd.f32 %v2127, %v2287
      %v2289 = vpop.f32.mrb[0].mxu0
      %v2290 = vpop.f32.mrb[0].mxu0
      %v2291 = vadd.f32 %v2130, %v2290
      %v2292 = vpop.f32.mrb[0].mxu0
      %2293 = vmatprep.mubr.bf16.mxu0 %v1540
      %2294 = vmatmul.mubr.bf16.gmra.mrb[0].mxu0 %v1659
      %v2295 = vpop.f32.mrb[0].mxu0
      %v2296 = vadd.f32 %v2135, %v2295
      %v2297 = vpop.f32.mrb[0].mxu0
      %v2298 = vpop.f32.mrb[0].mxu0
      %v2299 = vadd.f32 %v2138, %v2298
      %v2300 = vpop.f32.mrb[0].mxu0
      %2301 = vmatprep.mubr.bf16.mxu0 %v1543
      %2302 = vmatmul.mubr.bf16.gmra.mrb[0].mxu0 %v1663
      %v2303 = vpop.f32.mrb[0].mxu0
      %v2304 = vadd.f32 %v2143, %v2303
      %v2305 = vpop.f32.mrb[0].mxu0
      %v2306 = vpop.f32.mrb[0].mxu0
      %v2307 = vadd.f32 %v2146, %v2306
      %v2308 = vpop.f32.mrb[0].mxu0
      %2309 = vmatprep.mubr.bf16.mxu0 %v1674
      %2310 = vmatmul.mubr.bf16.gmra.mrb[0].mxu0 %v1667
      %v2311 = vpop.f32.mrb[0].mxu0
      %v2312 = vadd.f32 %v2151, %v2311
      %v2313 = vpop.f32.mrb[0].mxu0
      %v2314 = vpop.f32.mrb[0].mxu0
      %v2315 = vadd.f32 %v2154, %v2314
      %v2316 = vpop.f32.mrb[0].mxu0
      %2317 = vmatprep.mubr.bf16.mxu0 %v1498
      %2318 = vmatmul.mubr.bf16.gmra.mrb[0].mxu0 %v1671
      %v2319 = vpop.f32.mrb[0].mxu0
      %v2320 = vadd.f32 %v2159, %v2319
      %v2321 = vpop.f32.mrb[0].mxu0
      %v2322 = vpop.f32.mrb[0].mxu0
      %v2323 = vadd.f32 %v2162, %v2322
      %v2324 = vpop.f32.mrb[0].mxu0
      %2325 = vdwg.mxu0
      %2326 = vmatprep.subr.bf16.mxu0 0
      %2327 = vmatpush1.bf16.msra.mxu0 %v1931
      %2328 = vmatprep.subr.bf16.mxu0 0
      %2329 = vmatpush1.bf16.msra.mxu0 %v1932
      %2330 = vmatprep.subr.bf16.mxu0 0
      %2331 = vmatpush1.bf16.msra.mxu0 %v1933
      %2332 = vmatprep.subr.bf16.mxu0 0
      %2333 = vmatpush1.bf16.msra.mxu0 %v1934
      %2334 = vmatprep.subr.bf16.mxu0 0
      %2335 = vmatpush1.bf16.msra.mxu0 0
      %2336 = vmatprep.subr.bf16.mxu0 0
      %2337 = vmatpush1.bf16.msra.mxu0 0
      %2338 = vmatprep.subr.bf16.mxu0 0
      %2339 = vmatpush1.bf16.msra.mxu0 0
      %2340 = vmatprep.subr.bf16.mxu0 0
      %2341 = vmatpush1.bf16.msra.mxu0 0
      %2342 = vmatprep.subr.bf16.mxu0 0
      %2343 = vmatpush1.bf16.msra.mxu0 0
      %2344 = vmatprep.subr.bf16.mxu0 0
      %2345 = vmatpush1.bf16.msra.mxu0 0
      %2346 = vmatprep.subr.bf16.mxu0 0
      %2347 = vmatpush1.bf16.msra.mxu0 0
      %2348 = vmatprep.subr.bf16.mxu0 0
      %2349 = vmatpush1.bf16.msra.mxu0 0
      %2350 = vmatprep.subr.bf16.mxu0 0
      %2351 = vmatpush1.bf16.msra.mxu0 0
      %2352 = vmatprep.subr.bf16.mxu0 0
      %2353 = vmatpush1.bf16.msra.mxu0 0
      %2354 = vmatprep.subr.bf16.mxu0 0
      %2355 = vmatpush1.bf16.msra.mxu0 0
      %2356 = vmatprep.subr.bf16.mxu0 0
      %2357 = vmatpush1.bf16.msra.mxu0 0
      %2358 = vmatprep.mubr.bf16.mxu0 0
      %2359 = vmatmul.mubr.bf16.gmra.mrb[0].mxu0 %v1971
      %v2360 = vpop.f32.mrb[0].mxu0
      %v2361 = vadd.f32 %v2200, %v2360
      %v2362 = vpop.f32.mrb[0].mxu0
      %v2363 = vpop.f32.mrb[0].mxu0
      %v2364 = vadd.f32 %v2203, %v2363
      %v2365 = vpop.f32.mrb[0].mxu0
      %2366 = vmatprep.mubr.bf16.mxu0 0
      %2367 = vmatmul.mubr.bf16.gmra.mrb[0].mxu0 %v1973
      %v2368 = vpop.f32.mrb[0].mxu0
      %v2369 = vadd.f32 %v2208, %v2368
      %v2370 = vpop.f32.mrb[0].mxu0
      %v2371 = vpop.f32.mrb[0].mxu0
      %v2372 = vadd.f32 %v2211, %v2371
      %v2373 = vpop.f32.mrb[0].mxu0
      %2374 = vmatprep.mubr.bf16.mxu0 0
      %2375 = vmatmul.mubr.bf16.gmra.mrb[0].mxu0 %v1975
      %v2376 = vpop.f32.mrb[0].mxu0
      %v2377 = vadd.f32 %v2216, %v2376
      %v2378 = vpop.f32.mrb[0].mxu0
      %v2379 = vpop.f32.mrb[0].mxu0
      %v2380 = vadd.f32 %v2219, %v2379
      %v2381 = vpop.f32.mrb[0].mxu0
      %2382 = vmatprep.mubr.bf16.mxu0 0
      %2383 = vmatmul.mubr.bf16.gmra.mrb[0].mxu0 %v1977
      %v2384 = vpop.f32.mrb[0].mxu0
      %v2385 = vadd.f32 %v2224, %v2384
      %v2386 = vpop.f32.mrb[0].mxu0
      %v2387 = vpop.f32.mrb[0].mxu0
      %v2388 = vadd.f32 %v2227, %v2387
      %v2389 = vpop.f32.mrb[0].mxu0
      %2390 = vmatprep.mubr.bf16.mxu0 0
      %2391 = vmatmul.mubr.bf16.gmra.mrb[0].mxu0 %v1979
      %v2392 = vpop.f32.mrb[0].mxu0
      %v2393 = vadd.f32 %v2232, %v2392
      %v2394 = vpop.f32.mrb[0].mxu0
      %v2395 = vpop.f32.mrb[0].mxu0
      %v2396 = vadd.f32 %v2235, %v2395
      %v2397 = vpop.f32.mrb[0].mxu0
      %2398 = vmatprep.mubr.bf16.mxu0 0
      %2399 = vmatmul.mubr.bf16.gmra.mrb[0].mxu0 %v1981
      %v2400 = vpop.f32.mrb[0].mxu0
      %v2401 = vadd.f32 %v2240, %v2400
      %v2402 = vpop.f32.mrb[0].mxu0
      %v2403 = vpop.f32.mrb[0].mxu0
      %v2404 = vadd.f32 %v2243, %v2403
      %v2405 = vpop.f32.mrb[0].mxu0
      %2406 = vmatprep.mubr.bf16.mxu0 0
      %2407 = vmatmul.mubr.bf16.gmra.mrb[0].mxu0 %v1983
      %v2408 = vpop.f32.mrb[0].mxu0
      %v2409 = vadd.f32 %v2248, %v2408
      %v2410 = vpop.f32.mrb[0].mxu0
      %v2411 = vpop.f32.mrb[0].mxu0
      %v2412 = vadd.f32 %v2251, %v2411
      %v2413 = vpop.f32.mrb[0].mxu0
      %2414 = vmatprep.mubr.bf16.mxu0 0
      %2415 = vmatmul.mubr.bf16.gmra.mrb[0].mxu0 %v1985
      %v2416 = vpop.f32.mrb[0].mxu0
      %v2417 = vadd.f32 %v2256, %v2416
      %v2418 = vpop.f32.mrb[0].mxu0
      %v2419 = vpop.f32.mrb[0].mxu0
      %v2420 = vadd.f32 %v2259, %v2419
      %v2421 = vpop.f32.mrb[0].mxu0
      %2422 = vmatprep.mubr.bf16.mxu0 0
      %2423 = vmatmul.mubr.bf16.gmra.mrb[0].mxu0 %v1987
      %v2424 = vpop.f32.mrb[0].mxu0
      %v2425 = vadd.f32 %v2264, %v2424
      %v2426 = vpop.f32.mrb[0].mxu0
      %v2427 = vpop.f32.mrb[0].mxu0
      %v2428 = vadd.f32 %v2267, %v2427
      %v2429 = vpop.f32.mrb[0].mxu0
      %2430 = vmatprep.mubr.bf16.mxu0 0
      %2431 = vmatmul.mubr.bf16.gmra.mrb[0].mxu0 %v1989
      %v2432 = vpop.f32.mrb[0].mxu0
      %v2433 = vadd.f32 %v2272, %v2432
      %v2434 = vpop.f32.mrb[0].mxu0
      %v2435 = vpop.f32.mrb[0].mxu0
      %v2436 = vadd.f32 %v2275, %v2435
      %v2437 = vpop.f32.mrb[0].mxu0
      %2438 = vmatprep.mubr.bf16.mxu0 0
      %2439 = vmatmul.mubr.bf16.gmra.mrb[0].mxu0 %v1991
      %v2440 = vpop.f32.mrb[0].mxu0
      %v2441 = vadd.f32 %v2280, %v2440
      %v2442 = vpop.f32.mrb[0].mxu0
      %v2443 = vpop.f32.mrb[0].mxu0
      %v2444 = vadd.f32 %v2283, %v2443
      %v2445 = vpop.f32.mrb[0].mxu0
      %2446 = vmatprep.mubr.bf16.mxu0 0
      %2447 = vmatmul.mubr.bf16.gmra.mrb[0].mxu0 %v1993
      %v2448 = vpop.f32.mrb[0].mxu0
      %v2449 = vadd.f32 %v2288, %v2448
      %v2450 = vpop.f32.mrb[0].mxu0
      %v2451 = vpop.f32.mrb[0].mxu0
      %v2452 = vadd.f32 %v2291, %v2451
      %v2453 = vpop.f32.mrb[0].mxu0
      %2454 = vmatprep.mubr.bf16.mxu0 0
      %2455 = vmatmul.mubr.bf16.gmra.mrb[0].mxu0 %v1995
      %v2456 = vpop.f32.mrb[0].mxu0
      %v2457 = vadd.f32 %v2296, %v2456
      %v2458 = vpop.f32.mrb[0].mxu0
      %v2459 = vpop.f32.mrb[0].mxu0
      %v2460 = vadd.f32 %v2299, %v2459
      %v2461 = vpop.f32.mrb[0].mxu0
      %2462 = vmatprep.mubr.bf16.mxu0 0
      %2463 = vmatmul.mubr.bf16.gmra.mrb[0].mxu0 %v1997
      %v2464 = vpop.f32.mrb[0].mxu0
      %v2465 = vadd.f32 %v2304, %v2464
      %v2466 = vpop.f32.mrb[0].mxu0
      %v2467 = vpop.f32.mrb[0].mxu0
      %v2468 = vadd.f32 %v2307, %v2467
      %v2469 = vpop.f32.mrb[0].mxu0
      %2470 = vmatprep.mubr.bf16.mxu0 0
      %2471 = vmatmul.mubr.bf16.gmra.mrb[0].mxu0 %v2000
      %v2472 = vpop.f32.mrb[0].mxu0
      %v2473 = vadd.f32 %v2312, %v2472
      %v2474 = vpop.f32.mrb[0].mxu0
      %v2475 = vpop.f32.mrb[0].mxu0
      %v2476 = vadd.f32 %v2315, %v2475
      %v2477 = vpop.f32.mrb[0].mxu0
      %2478 = vmatprep.mubr.bf16.mxu0 0
      %2479 = vmatmul.mubr.bf16.gmra.mrb[0].mxu0 %v2002
      %v2480 = vpop.f32.mrb[0].mxu0
      %v2481 = vadd.f32 %v2320, %v2480
      %v2482 = vpop.f32.mrb[0].mxu0
      %v2483 = vpop.f32.mrb[0].mxu0
      %v2484 = vadd.f32 %v2323, %v2483
      %v2485 = vpop.f32.mrb[0].mxu0
      %2486 = vdwg.mxu0
      %v2487 = vmax.f32 %v2361, 0.0
      %v2488 = vmax.f32 %v2364, 0.0
      %v2489 = vmax.f32 %v2369, 0.0
      %v2490 = vmax.f32 %v2372, 0.0
      %v2491 = vmax.f32 %v2377, 0.0
      %v2492 = vmax.f32 %v2380, 0.0
      %v2493 = vmax.f32 %v2385, 0.0
      %v2494 = vmax.f32 %v2388, 0.0
      %v2495 = vmax.f32 %v2393, 0.0
      %v2496 = vmax.f32 %v2396, 0.0
      %v2497 = vmax.f32 %v2401, 0.0
      %v2498 = vmax.f32 %v2404, 0.0
      %v2499 = vmax.f32 %v2409, 0.0
      %v2500 = vmax.f32 %v2412, 0.0
      %v2501 = vmax.f32 %v2417, 0.0
      %v2502 = vmax.f32 %v2420, 0.0
      %v2503 = vmax.f32 %v2425, 0.0
      %v2504 = vmax.f32 %v2428, 0.0
      %v2505 = vmax.f32 %v2433, 0.0
      %v2506 = vmax.f32 %v2436, 0.0
      %v2507 = vmax.f32 %v2441, 0.0
      %v2508 = vmax.f32 %v2444, 0.0
      %v2509 = vmax.f32 %v2449, 0.0
      %v2510 = vmax.f32 %v2452, 0.0
      %v2511 = vmax.f32 %v2457, 0.0
      %v2512 = vmax.f32 %v2460, 0.0
      %v2513 = vmax.f32 %v2465, 0.0
      %v2514 = vmax.f32 %v2468, 0.0
      %v2515 = vmax.f32 %v2473, 0.0
      %v2516 = vmax.f32 %v2476, 0.0
      %v2517 = vmax.f32 %v2481, 0.0
      %v2518 = vmax.f32 %v2484, 0.0
      %v2551 = vcombine.high %v2487, %v2487
      %v2553 = vunpack.c.l.s4 1983009808
      %v2554 = vunpack.c.0.s8 %v2553
      %v2555 = vlaneseq
      %v2556 = vshrl.u32 %v2555, 7
      %v2557 = vsub.s32 %v2554, %v2556
      %v2558 = vrot.slane %v2487, %v2557
      %v2560 = vunpack.c.l.s4 1983009808
      %v2561 = vunpack.c.0.s8 %v2560
      %v2562 = vlaneseq
      %v2563 = vshrl.u32 %v2562, 7
      %v2564 = vsub.s32 %v2561, %v2563
      %v2565 = vrot.slane %v2551, %v2564
      %v2566 = vcombine.high %v2558, %v2558
      %v2567 = vcombine.high %v2565, %v2565
      %v2568 = vcombine.high %v2488, %v2488
      %v2570 = vunpack.c.l.s4 1983009808
      %v2571 = vunpack.c.0.s8 %v2570
      %v2572 = vlaneseq
      %v2573 = vshrl.u32 %v2572, 7
      %v2574 = vsub.s32 %v2571, %v2573
      %v2575 = vrot.slane %v2488, %v2574
      %v2577 = vunpack.c.l.s4 1983009808
      %v2578 = vunpack.c.0.s8 %v2577
      %v2579 = vlaneseq
      %v2580 = vshrl.u32 %v2579, 7
      %v2581 = vsub.s32 %v2578, %v2580
      %v2582 = vrot.slane %v2568, %v2581
      %v2583 = vcombine.high %v2575, %v2575
      %v2584 = vcombine.high %v2582, %v2582
      %v2585 = vcombine.high %v2489, %v2489
      %v2587 = vunpack.c.l.s4 1983009808
      %v2588 = vunpack.c.0.s8 %v2587
      %v2589 = vlaneseq
      %v2590 = vshrl.u32 %v2589, 7
      %v2591 = vsub.s32 %v2588, %v2590
      %v2592 = vrot.slane %v2489, %v2591
      %v2594 = vunpack.c.l.s4 1983009808
      %v2595 = vunpack.c.0.s8 %v2594
      %v2596 = vlaneseq
      %v2597 = vshrl.u32 %v2596, 7
      %v2598 = vsub.s32 %v2595, %v2597
      %v2599 = vrot.slane %v2585, %v2598
      %v2600 = vcombine.high %v2592, %v2592
      %v2601 = vcombine.high %v2599, %v2599
      %v2602 = vcombine.high %v2490, %v2490
      %v2604 = vunpack.c.l.s4 1983009808
      %v2605 = vunpack.c.0.s8 %v2604
      %v2606 = vlaneseq
      %v2607 = vshrl.u32 %v2606, 7
      %v2608 = vsub.s32 %v2605, %v2607
      %v2609 = vrot.slane %v2490, %v2608
      %v2611 = vunpack.c.l.s4 1983009808
      %v2612 = vunpack.c.0.s8 %v2611
      %v2613 = vlaneseq
      %v2614 = vshrl.u32 %v2613, 7
      %v2615 = vsub.s32 %v2612, %v2614
      %v2616 = vrot.slane %v2602, %v2615
      %v2617 = vcombine.high %v2609, %v2609
      %v2618 = vcombine.high %v2616, %v2616
      %v2619 = vcombine.high %v2491, %v2491
      %v2621 = vunpack.c.l.s4 1983009808
      %v2622 = vunpack.c.0.s8 %v2621
      %v2623 = vlaneseq
      %v2624 = vshrl.u32 %v2623, 7
      %v2625 = vsub.s32 %v2622, %v2624
      %v2626 = vrot.slane %v2491, %v2625
      %v2628 = vunpack.c.l.s4 1983009808
      %v2629 = vunpack.c.0.s8 %v2628
      %v2630 = vlaneseq
      %v2631 = vshrl.u32 %v2630, 7
      %v2632 = vsub.s32 %v2629, %v2631
      %v2633 = vrot.slane %v2619, %v2632
      %v2634 = vcombine.high %v2626, %v2626
      %v2635 = vcombine.high %v2633, %v2633
      %v2636 = vcombine.high %v2492, %v2492
      %v2638 = vunpack.c.l.s4 1983009808
      %v2639 = vunpack.c.0.s8 %v2638
      %v2640 = vlaneseq
      %v2641 = vshrl.u32 %v2640, 7
      %v2642 = vsub.s32 %v2639, %v2641
      %v2643 = vrot.slane %v2492, %v2642
      %v2645 = vunpack.c.l.s4 1983009808
      %v2646 = vunpack.c.0.s8 %v2645
      %v2647 = vlaneseq
      %v2648 = vshrl.u32 %v2647, 7
      %v2649 = vsub.s32 %v2646, %v2648
      %v2650 = vrot.slane %v2636, %v2649
      %v2651 = vcombine.high %v2643, %v2643
      %v2652 = vcombine.high %v2650, %v2650
      %v2653 = vcombine.high %v2493, %v2493
      %v2655 = vunpack.c.l.s4 1983009808
      %v2656 = vunpack.c.0.s8 %v2655
      %v2657 = vlaneseq
      %v2658 = vshrl.u32 %v2657, 7
      %v2659 = vsub.s32 %v2656, %v2658
      %v2660 = vrot.slane %v2493, %v2659
      %v2662 = vunpack.c.l.s4 1983009808
      %v2663 = vunpack.c.0.s8 %v2662
      %v2664 = vlaneseq
      %v2665 = vshrl.u32 %v2664, 7
      %v2666 = vsub.s32 %v2663, %v2665
      %v2667 = vrot.slane %v2653, %v2666
      %v2668 = vcombine.high %v2660, %v2660
      %v2669 = vcombine.high %v2667, %v2667
      %v2670 = vcombine.high %v2494, %v2494
      %v2672 = vunpack.c.l.s4 1983009808
      %v2673 = vunpack.c.0.s8 %v2672
      %v2674 = vlaneseq
      %v2675 = vshrl.u32 %v2674, 7
      %v2676 = vsub.s32 %v2673, %v2675
      %v2677 = vrot.slane %v2494, %v2676
      %v2679 = vunpack.c.l.s4 1983009808
      %v2680 = vunpack.c.0.s8 %v2679
      %v2681 = vlaneseq
      %v2682 = vshrl.u32 %v2681, 7
      %v2683 = vsub.s32 %v2680, %v2682
      %v2684 = vrot.slane %v2670, %v2683
      %v2685 = vcombine.high %v2677, %v2677
      %v2686 = vcombine.high %v2684, %v2684
      %v2687 = vcombine.high %v2495, %v2495
      %v2689 = vunpack.c.l.s4 1983009808
      %v2690 = vunpack.c.0.s8 %v2689
      %v2691 = vlaneseq
      %v2692 = vshrl.u32 %v2691, 7
      %v2693 = vsub.s32 %v2690, %v2692
      %v2694 = vrot.slane %v2495, %v2693
      %v2696 = vunpack.c.l.s4 1983009808
      %v2697 = vunpack.c.0.s8 %v2696
      %v2698 = vlaneseq
      %v2699 = vshrl.u32 %v2698, 7
      %v2700 = vsub.s32 %v2697, %v2699
      %v2701 = vrot.slane %v2687, %v2700
      %v2702 = vcombine.high %v2694, %v2694
      %v2703 = vcombine.high %v2701, %v2701
      %v2704 = vcombine.high %v2496, %v2496
      %v2706 = vunpack.c.l.s4 1983009808
      %v2707 = vunpack.c.0.s8 %v2706
      %v2708 = vlaneseq
      %v2709 = vshrl.u32 %v2708, 7
      %v2710 = vsub.s32 %v2707, %v2709
      %v2711 = vrot.slane %v2496, %v2710
      %v2713 = vunpack.c.l.s4 1983009808
      %v2714 = vunpack.c.0.s8 %v2713
      %v2715 = vlaneseq
      %v2716 = vshrl.u32 %v2715, 7
      %v2717 = vsub.s32 %v2714, %v2716
      %v2718 = vrot.slane %v2704, %v2717
      %v2719 = vcombine.high %v2711, %v2711
      %v2720 = vcombine.high %v2718, %v2718
      %v2721 = vcombine.high %v2497, %v2497
      %v2723 = vunpack.c.l.s4 1983009808
      %v2724 = vunpack.c.0.s8 %v2723
      %v2725 = vlaneseq
      %v2726 = vshrl.u32 %v2725, 7
      %v2727 = vsub.s32 %v2724, %v2726
      %v2728 = vrot.slane %v2497, %v2727
      %v2730 = vunpack.c.l.s4 1983009808
      %v2731 = vunpack.c.0.s8 %v2730
      %v2732 = vlaneseq
      %v2733 = vshrl.u32 %v2732, 7
      %v2734 = vsub.s32 %v2731, %v2733
      %v2735 = vrot.slane %v2721, %v2734
      %v2736 = vcombine.high %v2728, %v2728
      %v2737 = vcombine.high %v2735, %v2735
      %v2738 = vcombine.high %v2498, %v2498
      %v2740 = vunpack.c.l.s4 1983009808
      %v2741 = vunpack.c.0.s8 %v2740
      %v2742 = vlaneseq
      %v2743 = vshrl.u32 %v2742, 7
      %v2744 = vsub.s32 %v2741, %v2743
      %v2745 = vrot.slane %v2498, %v2744
      %v2747 = vunpack.c.l.s4 1983009808
      %v2748 = vunpack.c.0.s8 %v2747
      %v2749 = vlaneseq
      %v2750 = vshrl.u32 %v2749, 7
      %v2751 = vsub.s32 %v2748, %v2750
      %v2752 = vrot.slane %v2738, %v2751
      %v2753 = vcombine.high %v2745, %v2745
      %v2754 = vcombine.high %v2752, %v2752
      %v2755 = vcombine.high %v2499, %v2499
      %v2757 = vunpack.c.l.s4 1983009808
      %v2758 = vunpack.c.0.s8 %v2757
      %v2759 = vlaneseq
      %v2760 = vshrl.u32 %v2759, 7
      %v2761 = vsub.s32 %v2758, %v2760
      %v2762 = vrot.slane %v2499, %v2761
      %v2764 = vunpack.c.l.s4 1983009808
      %v2765 = vunpack.c.0.s8 %v2764
      %v2766 = vlaneseq
      %v2767 = vshrl.u32 %v2766, 7
      %v2768 = vsub.s32 %v2765, %v2767
      %v2769 = vrot.slane %v2755, %v2768
      %v2770 = vcombine.high %v2762, %v2762
      %v2771 = vcombine.high %v2769, %v2769
      %v2772 = vcombine.high %v2500, %v2500
      %v2774 = vunpack.c.l.s4 1983009808
      %v2775 = vunpack.c.0.s8 %v2774
      %v2776 = vlaneseq
      %v2777 = vshrl.u32 %v2776, 7
      %v2778 = vsub.s32 %v2775, %v2777
      %v2779 = vrot.slane %v2500, %v2778
      %v2781 = vunpack.c.l.s4 1983009808
      %v2782 = vunpack.c.0.s8 %v2781
      %v2783 = vlaneseq
      %v2784 = vshrl.u32 %v2783, 7
      %v2785 = vsub.s32 %v2782, %v2784
      %v2786 = vrot.slane %v2772, %v2785
      %v2787 = vcombine.high %v2779, %v2779
      %v2788 = vcombine.high %v2786, %v2786
      %v2789 = vcombine.high %v2501, %v2501
      %v2791 = vunpack.c.l.s4 1983009808
      %v2792 = vunpack.c.0.s8 %v2791
      %v2793 = vlaneseq
      %v2794 = vshrl.u32 %v2793, 7
      %v2795 = vsub.s32 %v2792, %v2794
      %v2796 = vrot.slane %v2501, %v2795
      %v2798 = vunpack.c.l.s4 1983009808
      %v2799 = vunpack.c.0.s8 %v2798
      %v2800 = vlaneseq
      %v2801 = vshrl.u32 %v2800, 7
      %v2802 = vsub.s32 %v2799, %v2801
      %v2803 = vrot.slane %v2789, %v2802
      %v2804 = vcombine.high %v2796, %v2796
      %v2805 = vcombine.high %v2803, %v2803
      %v2806 = vcombine.high %v2502, %v2502
      %v2808 = vunpack.c.l.s4 1983009808
      %v2809 = vunpack.c.0.s8 %v2808
      %v2810 = vlaneseq
      %v2811 = vshrl.u32 %v2810, 7
      %v2812 = vsub.s32 %v2809, %v2811
      %v2813 = vrot.slane %v2502, %v2812
      %v2815 = vunpack.c.l.s4 1983009808
      %v2816 = vunpack.c.0.s8 %v2815
      %v2817 = vlaneseq
      %v2818 = vshrl.u32 %v2817, 7
      %v2819 = vsub.s32 %v2816, %v2818
      %v2820 = vrot.slane %v2806, %v2819
      %v2821 = vcombine.high %v2813, %v2813
      %v2822 = vcombine.high %v2820, %v2820
      %v2823 = vcombine.high %v2503, %v2503
      %v2825 = vunpack.c.l.s4 1983009808
      %v2826 = vunpack.c.0.s8 %v2825
      %v2827 = vlaneseq
      %v2828 = vshrl.u32 %v2827, 7
      %v2829 = vsub.s32 %v2826, %v2828
      %v2830 = vrot.slane %v2503, %v2829
      %v2832 = vunpack.c.l.s4 1983009808
      %v2833 = vunpack.c.0.s8 %v2832
      %v2834 = vlaneseq
      %v2835 = vshrl.u32 %v2834, 7
      %v2836 = vsub.s32 %v2833, %v2835
      %v2837 = vrot.slane %v2823, %v2836
      %v2838 = vcombine.high %v2830, %v2830
      %v2839 = vcombine.high %v2837, %v2837
      %v2840 = vcombine.high %v2504, %v2504
      %v2842 = vunpack.c.l.s4 1983009808
      %v2843 = vunpack.c.0.s8 %v2842
      %v2844 = vlaneseq
      %v2845 = vshrl.u32 %v2844, 7
      %v2846 = vsub.s32 %v2843, %v2845
      %v2847 = vrot.slane %v2504, %v2846
      %v2849 = vunpack.c.l.s4 1983009808
      %v2850 = vunpack.c.0.s8 %v2849
      %v2851 = vlaneseq
      %v2852 = vshrl.u32 %v2851, 7
      %v2853 = vsub.s32 %v2850, %v2852
      %v2854 = vrot.slane %v2840, %v2853
      %v2855 = vcombine.high %v2847, %v2847
      %v2856 = vcombine.high %v2854, %v2854
      %v2857 = vcombine.high %v2505, %v2505
      %v2859 = vunpack.c.l.s4 1983009808
      %v2860 = vunpack.c.0.s8 %v2859
      %v2861 = vlaneseq
      %v2862 = vshrl.u32 %v2861, 7
      %v2863 = vsub.s32 %v2860, %v2862
      %v2864 = vrot.slane %v2505, %v2863
      %v2866 = vunpack.c.l.s4 1983009808
      %v2867 = vunpack.c.0.s8 %v2866
      %v2868 = vlaneseq
      %v2869 = vshrl.u32 %v2868, 7
      %v2870 = vsub.s32 %v2867, %v2869
      %v2871 = vrot.slane %v2857, %v2870
      %v2872 = vcombine.high %v2864, %v2864
      %v2873 = vcombine.high %v2871, %v2871
      %v2874 = vcombine.high %v2506, %v2506
      %v2876 = vunpack.c.l.s4 1983009808
      %v2877 = vunpack.c.0.s8 %v2876
      %v2878 = vlaneseq
      %v2879 = vshrl.u32 %v2878, 7
      %v2880 = vsub.s32 %v2877, %v2879
      %v2881 = vrot.slane %v2506, %v2880
      %v2883 = vunpack.c.l.s4 1983009808
      %v2884 = vunpack.c.0.s8 %v2883
      %v2885 = vlaneseq
      %v2886 = vshrl.u32 %v2885, 7
      %v2887 = vsub.s32 %v2884, %v2886
      %v2888 = vrot.slane %v2874, %v2887
      %v2889 = vcombine.high %v2881, %v2881
      %v2890 = vcombine.high %v2888, %v2888
      %v2891 = vcombine.high %v2507, %v2507
      %v2893 = vunpack.c.l.s4 1983009808
      %v2894 = vunpack.c.0.s8 %v2893
      %v2895 = vlaneseq
      %v2896 = vshrl.u32 %v2895, 7
      %v2897 = vsub.s32 %v2894, %v2896
      %v2898 = vrot.slane %v2507, %v2897
      %v2900 = vunpack.c.l.s4 1983009808
      %v2901 = vunpack.c.0.s8 %v2900
      %v2902 = vlaneseq
      %v2903 = vshrl.u32 %v2902, 7
      %v2904 = vsub.s32 %v2901, %v2903
      %v2905 = vrot.slane %v2891, %v2904
      %v2906 = vcombine.high %v2898, %v2898
      %v2907 = vcombine.high %v2905, %v2905
      %v2908 = vcombine.high %v2508, %v2508
      %v2910 = vunpack.c.l.s4 1983009808
      %v2911 = vunpack.c.0.s8 %v2910
      %v2912 = vlaneseq
      %v2913 = vshrl.u32 %v2912, 7
      %v2914 = vsub.s32 %v2911, %v2913
      %v2915 = vrot.slane %v2508, %v2914
      %v2917 = vunpack.c.l.s4 1983009808
      %v2918 = vunpack.c.0.s8 %v2917
      %v2919 = vlaneseq
      %v2920 = vshrl.u32 %v2919, 7
      %v2921 = vsub.s32 %v2918, %v2920
      %v2922 = vrot.slane %v2908, %v2921
      %v2923 = vcombine.high %v2915, %v2915
      %v2924 = vcombine.high %v2922, %v2922
      %v2925 = vcombine.high %v2509, %v2509
      %v2927 = vunpack.c.l.s4 1983009808
      %v2928 = vunpack.c.0.s8 %v2927
      %v2929 = vlaneseq
      %v2930 = vshrl.u32 %v2929, 7
      %v2931 = vsub.s32 %v2928, %v2930
      %v2932 = vrot.slane %v2509, %v2931
      %v2934 = vunpack.c.l.s4 1983009808
      %v2935 = vunpack.c.0.s8 %v2934
      %v2936 = vlaneseq
      %v2937 = vshrl.u32 %v2936, 7
      %v2938 = vsub.s32 %v2935, %v2937
      %v2939 = vrot.slane %v2925, %v2938
      %v2940 = vcombine.high %v2932, %v2932
      %v2941 = vcombine.high %v2939, %v2939
      %v2942 = vcombine.high %v2510, %v2510
      %v2944 = vunpack.c.l.s4 1983009808
      %v2945 = vunpack.c.0.s8 %v2944
      %v2946 = vlaneseq
      %v2947 = vshrl.u32 %v2946, 7
      %v2948 = vsub.s32 %v2945, %v2947
      %v2949 = vrot.slane %v2510, %v2948
      %v2951 = vunpack.c.l.s4 1983009808
      %v2952 = vunpack.c.0.s8 %v2951
      %v2953 = vlaneseq
      %v2954 = vshrl.u32 %v2953, 7
      %v2955 = vsub.s32 %v2952, %v2954
      %v2956 = vrot.slane %v2942, %v2955
      %v2957 = vcombine.high %v2949, %v2949
      %v2958 = vcombine.high %v2956, %v2956
      %v2959 = vcombine.high %v2511, %v2511
      %v2961 = vunpack.c.l.s4 1983009808
      %v2962 = vunpack.c.0.s8 %v2961
      %v2963 = vlaneseq
      %v2964 = vshrl.u32 %v2963, 7
      %v2965 = vsub.s32 %v2962, %v2964
      %v2966 = vrot.slane %v2511, %v2965
      %v2968 = vunpack.c.l.s4 1983009808
      %v2969 = vunpack.c.0.s8 %v2968
      %v2970 = vlaneseq
      %v2971 = vshrl.u32 %v2970, 7
      %v2972 = vsub.s32 %v2969, %v2971
      %v2973 = vrot.slane %v2959, %v2972
      %v2974 = vcombine.high %v2966, %v2966
      %v2975 = vcombine.high %v2973, %v2973
      %v2976 = vcombine.high %v2512, %v2512
      %v2978 = vunpack.c.l.s4 1983009808
      %v2979 = vunpack.c.0.s8 %v2978
      %v2980 = vlaneseq
      %v2981 = vshrl.u32 %v2980, 7
      %v2982 = vsub.s32 %v2979, %v2981
      %v2983 = vrot.slane %v2512, %v2982
      %v2985 = vunpack.c.l.s4 1983009808
      %v2986 = vunpack.c.0.s8 %v2985
      %v2987 = vlaneseq
      %v2988 = vshrl.u32 %v2987, 7
      %v2989 = vsub.s32 %v2986, %v2988
      %v2990 = vrot.slane %v2976, %v2989
      %v2991 = vcombine.high %v2983, %v2983
      %v2992 = vcombine.high %v2990, %v2990
      %v2993 = vcombine.high %v2513, %v2513
      %v2995 = vunpack.c.l.s4 1983009808
      %v2996 = vunpack.c.0.s8 %v2995
      %v2997 = vlaneseq
      %v2998 = vshrl.u32 %v2997, 7
      %v2999 = vsub.s32 %v2996, %v2998
      %v3000 = vrot.slane %v2513, %v2999
      %v3002 = vunpack.c.l.s4 1983009808
      %v3003 = vunpack.c.0.s8 %v3002
      %v3004 = vlaneseq
      %v3005 = vshrl.u32 %v3004, 7
      %v3006 = vsub.s32 %v3003, %v3005
      %v3007 = vrot.slane %v2993, %v3006
      %v3008 = vcombine.high %v3000, %v3000
      %v3009 = vcombine.high %v3007, %v3007
      %v3010 = vcombine.high %v2514, %v2514
      %v3012 = vunpack.c.l.s4 1983009808
      %v3013 = vunpack.c.0.s8 %v3012
      %v3014 = vlaneseq
      %v3015 = vshrl.u32 %v3014, 7
      %v3016 = vsub.s32 %v3013, %v3015
      %v3017 = vrot.slane %v2514, %v3016
      %v3019 = vunpack.c.l.s4 1983009808
      %v3020 = vunpack.c.0.s8 %v3019
      %v3021 = vlaneseq
      %v3022 = vshrl.u32 %v3021, 7
      %v3023 = vsub.s32 %v3020, %v3022
      %v3024 = vrot.slane %v3010, %v3023
      %v3025 = vcombine.high %v3017, %v3017
      %v3026 = vcombine.high %v3024, %v3024
      %v3027 = vcombine.high %v2515, %v2515
      %v3029 = vunpack.c.l.s4 1983009808
      %v3030 = vunpack.c.0.s8 %v3029
      %v3031 = vlaneseq
      %v3032 = vshrl.u32 %v3031, 7
      %v3033 = vsub.s32 %v3030, %v3032
      %v3034 = vrot.slane %v2515, %v3033
      %v3036 = vunpack.c.l.s4 1983009808
      %v3037 = vunpack.c.0.s8 %v3036
      %v3038 = vlaneseq
      %v3039 = vshrl.u32 %v3038, 7
      %v3040 = vsub.s32 %v3037, %v3039
      %v3041 = vrot.slane %v3027, %v3040
      %v3042 = vcombine.high %v3034, %v3034
      %v3043 = vcombine.high %v3041, %v3041
      %v3044 = vcombine.high %v2516, %v2516
      %v3046 = vunpack.c.l.s4 1983009808
      %v3047 = vunpack.c.0.s8 %v3046
      %v3048 = vlaneseq
      %v3049 = vshrl.u32 %v3048, 7
      %v3050 = vsub.s32 %v3047, %v3049
      %v3051 = vrot.slane %v2516, %v3050
      %v3053 = vunpack.c.l.s4 1983009808
      %v3054 = vunpack.c.0.s8 %v3053
      %v3055 = vlaneseq
      %v3056 = vshrl.u32 %v3055, 7
      %v3057 = vsub.s32 %v3054, %v3056
      %v3058 = vrot.slane %v3044, %v3057
      %v3059 = vcombine.high %v3051, %v3051
      %v3060 = vcombine.high %v3058, %v3058
      %v3061 = vcombine.high %v2517, %v2517
      %v3063 = vunpack.c.l.s4 1983009808
      %v3064 = vunpack.c.0.s8 %v3063
      %v3065 = vlaneseq
      %v3066 = vshrl.u32 %v3065, 7
      %v3067 = vsub.s32 %v3064, %v3066
      %v3068 = vrot.slane %v2517, %v3067
      %v3070 = vunpack.c.l.s4 1983009808
      %v3071 = vunpack.c.0.s8 %v3070
      %v3072 = vlaneseq
      %v3073 = vshrl.u32 %v3072, 7
      %v3074 = vsub.s32 %v3071, %v3073
      %v3075 = vrot.slane %v3061, %v3074
      %v3076 = vcombine.high %v3068, %v3068
      %v3077 = vcombine.high %v3075, %v3075
      %v3078 = vcombine.high %v2518, %v2518
      %v3080 = vunpack.c.l.s4 1983009808
      %v3081 = vunpack.c.0.s8 %v3080
      %v3082 = vlaneseq
      %v3083 = vshrl.u32 %v3082, 7
      %v3084 = vsub.s32 %v3081, %v3083
      %v3085 = vrot.slane %v2518, %v3084
      %v3087 = vunpack.c.l.s4 1983009808
      %v3088 = vunpack.c.0.s8 %v3087
      %v3089 = vlaneseq
      %v3090 = vshrl.u32 %v3089, 7
      %v3091 = vsub.s32 %v3088, %v3090
      %v3092 = vrot.slane %v3078, %v3091
      %v3093 = vcombine.high %v3085, %v3085
      %v3094 = vcombine.high %v3092, %v3092
      %vm3223 = vcmask 1041408
      %v3224 = vsel %vm3223, %v2558, -inf
      %v3225 = vrot.slane %v3224, 4
      %v3226 = vmax.f32 %v3224, %v3225
      %v3227 = vrot.slane %v3226, 2
      %v3228 = vmax.f32 %v3226, %v3227
      %v3229 = vrot.slane %v3228, 1
      %v3230 = vmax.f32 %v3228, %v3229
      %v3231 = vsel %vm3223, %v2566, -inf
      %v3232 = vrot.slane %v3231, 4
      %v3233 = vmax.f32 %v3231, %v3232
      %v3234 = vrot.slane %v3233, 2
      %v3235 = vmax.f32 %v3233, %v3234
      %v3236 = vrot.slane %v3235, 1
      %v3237 = vmax.f32 %v3235, %v3236
      %v3238 = vsel %vm3223, %v2565, -inf
      %v3239 = vrot.slane %v3238, 4
      %v3240 = vmax.f32 %v3238, %v3239
      %v3241 = vrot.slane %v3240, 2
      %v3242 = vmax.f32 %v3240, %v3241
      %v3243 = vrot.slane %v3242, 1
      %v3244 = vmax.f32 %v3242, %v3243
      %v3245 = vsel %vm3223, %v2567, -inf
      %v3246 = vrot.slane %v3245, 4
      %v3247 = vmax.f32 %v3245, %v3246
      %v3248 = vrot.slane %v3247, 2
      %v3249 = vmax.f32 %v3247, %v3248
      %v3250 = vrot.slane %v3249, 1
      %v3251 = vmax.f32 %v3249, %v3250
      %v3252 = vsel %vm3223, %v2575, -inf
      %v3253 = vrot.slane %v3252, 4
      %v3254 = vmax.f32 %v3252, %v3253
      %v3255 = vrot.slane %v3254, 2
      %v3256 = vmax.f32 %v3254, %v3255
      %v3257 = vrot.slane %v3256, 1
      %v3258 = vmax.f32 %v3256, %v3257
      %v3259 = vsel %vm3223, %v2583, -inf
      %v3260 = vrot.slane %v3259, 4
      %v3261 = vmax.f32 %v3259, %v3260
      %v3262 = vrot.slane %v3261, 2
      %v3263 = vmax.f32 %v3261, %v3262
      %v3264 = vrot.slane %v3263, 1
      %v3265 = vmax.f32 %v3263, %v3264
      %v3266 = vsel %vm3223, %v2582, -inf
      %v3267 = vrot.slane %v3266, 4
      %v3268 = vmax.f32 %v3266, %v3267
      %v3269 = vrot.slane %v3268, 2
      %v3270 = vmax.f32 %v3268, %v3269
      %v3271 = vrot.slane %v3270, 1
      %v3272 = vmax.f32 %v3270, %v3271
      %v3273 = vsel %vm3223, %v2584, -inf
      %v3274 = vrot.slane %v3273, 4
      %v3275 = vmax.f32 %v3273, %v3274
      %v3276 = vrot.slane %v3275, 2
      %v3277 = vmax.f32 %v3275, %v3276
      %v3278 = vrot.slane %v3277, 1
      %v3279 = vmax.f32 %v3277, %v3278
      %v3280 = vsel %vm3223, %v2592, -inf
      %v3281 = vrot.slane %v3280, 4
      %v3282 = vmax.f32 %v3280, %v3281
      %v3283 = vrot.slane %v3282, 2
      %v3284 = vmax.f32 %v3282, %v3283
      %v3285 = vrot.slane %v3284, 1
      %v3286 = vmax.f32 %v3284, %v3285
      %v3287 = vsel %vm3223, %v2600, -inf
      %v3288 = vrot.slane %v3287, 4
      %v3289 = vmax.f32 %v3287, %v3288
      %v3290 = vrot.slane %v3289, 2
      %v3291 = vmax.f32 %v3289, %v3290
      %v3292 = vrot.slane %v3291, 1
      %v3293 = vmax.f32 %v3291, %v3292
      %v3294 = vsel %vm3223, %v2599, -inf
      %v3295 = vrot.slane %v3294, 4
      %v3296 = vmax.f32 %v3294, %v3295
      %v3297 = vrot.slane %v3296, 2
      %v3298 = vmax.f32 %v3296, %v3297
      %v3299 = vrot.slane %v3298, 1
      %v3300 = vmax.f32 %v3298, %v3299
      %v3301 = vsel %vm3223, %v2601, -inf
      %v3302 = vrot.slane %v3301, 4
      %v3303 = vmax.f32 %v3301, %v3302
      %v3304 = vrot.slane %v3303, 2
      %v3305 = vmax.f32 %v3303, %v3304
      %v3306 = vrot.slane %v3305, 1
      %v3307 = vmax.f32 %v3305, %v3306
      %v3308 = vsel %vm3223, %v2609, -inf
      %v3309 = vrot.slane %v3308, 4
      %v3310 = vmax.f32 %v3308, %v3309
      %v3311 = vrot.slane %v3310, 2
      %v3312 = vmax.f32 %v3310, %v3311
      %v3313 = vrot.slane %v3312, 1
      %v3314 = vmax.f32 %v3312, %v3313
      %v3315 = vsel %vm3223, %v2617, -inf
      %v3316 = vrot.slane %v3315, 4
      %v3317 = vmax.f32 %v3315, %v3316
      %v3318 = vrot.slane %v3317, 2
      %v3319 = vmax.f32 %v3317, %v3318
      %v3320 = vrot.slane %v3319, 1
      %v3321 = vmax.f32 %v3319, %v3320
      %v3322 = vsel %vm3223, %v2616, -inf
      %v3323 = vrot.slane %v3322, 4
      %v3324 = vmax.f32 %v3322, %v3323
      %v3325 = vrot.slane %v3324, 2
      %v3326 = vmax.f32 %v3324, %v3325
      %v3327 = vrot.slane %v3326, 1
      %v3328 = vmax.f32 %v3326, %v3327
      %v3329 = vsel %vm3223, %v2618, -inf
      %v3330 = vrot.slane %v3329, 4
      %v3331 = vmax.f32 %v3329, %v3330
      %v3332 = vrot.slane %v3331, 2
      %v3333 = vmax.f32 %v3331, %v3332
      %v3334 = vrot.slane %v3333, 1
      %v3335 = vmax.f32 %v3333, %v3334
      %v3336 = vsel %vm3223, %v2626, -inf
      %v3337 = vrot.slane %v3336, 4
      %v3338 = vmax.f32 %v3336, %v3337
      %v3339 = vrot.slane %v3338, 2
      %v3340 = vmax.f32 %v3338, %v3339
      %v3341 = vrot.slane %v3340, 1
      %v3342 = vmax.f32 %v3340, %v3341
      %v3343 = vsel %vm3223, %v2634, -inf
      %v3344 = vrot.slane %v3343, 4
      %v3345 = vmax.f32 %v3343, %v3344
      %v3346 = vrot.slane %v3345, 2
      %v3347 = vmax.f32 %v3345, %v3346
      %v3348 = vrot.slane %v3347, 1
      %v3349 = vmax.f32 %v3347, %v3348
      %v3350 = vsel %vm3223, %v2633, -inf
      %v3351 = vrot.slane %v3350, 4
      %v3352 = vmax.f32 %v3350, %v3351
      %v3353 = vrot.slane %v3352, 2
      %v3354 = vmax.f32 %v3352, %v3353
      %v3355 = vrot.slane %v3354, 1
      %v3356 = vmax.f32 %v3354, %v3355
      %v3357 = vsel %vm3223, %v2635, -inf
      %v3358 = vrot.slane %v3357, 4
      %v3359 = vmax.f32 %v3357, %v3358
      %v3360 = vrot.slane %v3359, 2
      %v3361 = vmax.f32 %v3359, %v3360
      %v3362 = vrot.slane %v3361, 1
      %v3363 = vmax.f32 %v3361, %v3362
      %v3364 = vsel %vm3223, %v2643, -inf
      %v3365 = vrot.slane %v3364, 4
      %v3366 = vmax.f32 %v3364, %v3365
      %v3367 = vrot.slane %v3366, 2
      %v3368 = vmax.f32 %v3366, %v3367
      %v3369 = vrot.slane %v3368, 1
      %v3370 = vmax.f32 %v3368, %v3369
      %v3371 = vsel %vm3223, %v2651, -inf
      %v3372 = vrot.slane %v3371, 4
      %v3373 = vmax.f32 %v3371, %v3372
      %v3374 = vrot.slane %v3373, 2
      %v3375 = vmax.f32 %v3373, %v3374
      %v3376 = vrot.slane %v3375, 1
      %v3377 = vmax.f32 %v3375, %v3376
      %v3378 = vsel %vm3223, %v2650, -inf
      %v3379 = vrot.slane %v3378, 4
      %v3380 = vmax.f32 %v3378, %v3379
      %v3381 = vrot.slane %v3380, 2
      %v3382 = vmax.f32 %v3380, %v3381
      %v3383 = vrot.slane %v3382, 1
      %v3384 = vmax.f32 %v3382, %v3383
      %v3385 = vsel %vm3223, %v2652, -inf
      %v3386 = vrot.slane %v3385, 4
      %v3387 = vmax.f32 %v3385, %v3386
      %v3388 = vrot.slane %v3387, 2
      %v3389 = vmax.f32 %v3387, %v3388
      %v3390 = vrot.slane %v3389, 1
      %v3391 = vmax.f32 %v3389, %v3390
      %v3392 = vsel %vm3223, %v2660, -inf
      %v3393 = vrot.slane %v3392, 4
      %v3394 = vmax.f32 %v3392, %v3393
      %v3395 = vrot.slane %v3394, 2
      %v3396 = vmax.f32 %v3394, %v3395
      %v3397 = vrot.slane %v3396, 1
      %v3398 = vmax.f32 %v3396, %v3397
      %v3399 = vsel %vm3223, %v2668, -inf
      %v3400 = vrot.slane %v3399, 4
      %v3401 = vmax.f32 %v3399, %v3400
      %v3402 = vrot.slane %v3401, 2
      %v3403 = vmax.f32 %v3401, %v3402
      %v3404 = vrot.slane %v3403, 1
      %v3405 = vmax.f32 %v3403, %v3404
      %v3406 = vsel %vm3223, %v2667, -inf
      %v3407 = vrot.slane %v3406, 4
      %v3408 = vmax.f32 %v3406, %v3407
      %v3409 = vrot.slane %v3408, 2
      %v3410 = vmax.f32 %v3408, %v3409
      %v3411 = vrot.slane %v3410, 1
      %v3412 = vmax.f32 %v3410, %v3411
      %v3413 = vsel %vm3223, %v2669, -inf
      %v3414 = vrot.slane %v3413, 4
      %v3415 = vmax.f32 %v3413, %v3414
      %v3416 = vrot.slane %v3415, 2
      %v3417 = vmax.f32 %v3415, %v3416
      %v3418 = vrot.slane %v3417, 1
      %v3419 = vmax.f32 %v3417, %v3418
      %v3420 = vsel %vm3223, %v2677, -inf
      %v3421 = vrot.slane %v3420, 4
      %v3422 = vmax.f32 %v3420, %v3421
      %v3423 = vrot.slane %v3422, 2
      %v3424 = vmax.f32 %v3422, %v3423
      %v3425 = vrot.slane %v3424, 1
      %v3426 = vmax.f32 %v3424, %v3425
      %v3427 = vsel %vm3223, %v2685, -inf
      %v3428 = vrot.slane %v3427, 4
      %v3429 = vmax.f32 %v3427, %v3428
      %v3430 = vrot.slane %v3429, 2
      %v3431 = vmax.f32 %v3429, %v3430
      %v3432 = vrot.slane %v3431, 1
      %v3433 = vmax.f32 %v3431, %v3432
      %v3434 = vsel %vm3223, %v2684, -inf
      %v3435 = vrot.slane %v3434, 4
      %v3436 = vmax.f32 %v3434, %v3435
      %v3437 = vrot.slane %v3436, 2
      %v3438 = vmax.f32 %v3436, %v3437
      %v3439 = vrot.slane %v3438, 1
      %v3440 = vmax.f32 %v3438, %v3439
      %v3441 = vsel %vm3223, %v2686, -inf
      %v3442 = vrot.slane %v3441, 4
      %v3443 = vmax.f32 %v3441, %v3442
      %v3444 = vrot.slane %v3443, 2
      %v3445 = vmax.f32 %v3443, %v3444
      %v3446 = vrot.slane %v3445, 1
      %v3447 = vmax.f32 %v3445, %v3446
      %v3448 = vsel %vm3223, %v2694, -inf
      %v3449 = vrot.slane %v3448, 4
      %v3450 = vmax.f32 %v3448, %v3449
      %v3451 = vrot.slane %v3450, 2
      %v3452 = vmax.f32 %v3450, %v3451
      %v3453 = vrot.slane %v3452, 1
      %v3454 = vmax.f32 %v3452, %v3453
      %v3455 = vsel %vm3223, %v2702, -inf
      %v3456 = vrot.slane %v3455, 4
      %v3457 = vmax.f32 %v3455, %v3456
      %v3458 = vrot.slane %v3457, 2
      %v3459 = vmax.f32 %v3457, %v3458
      %v3460 = vrot.slane %v3459, 1
      %v3461 = vmax.f32 %v3459, %v3460
      %v3462 = vsel %vm3223, %v2701, -inf
      %v3463 = vrot.slane %v3462, 4
      %v3464 = vmax.f32 %v3462, %v3463
      %v3465 = vrot.slane %v3464, 2
      %v3466 = vmax.f32 %v3464, %v3465
      %v3467 = vrot.slane %v3466, 1
      %v3468 = vmax.f32 %v3466, %v3467
      %v3469 = vsel %vm3223, %v2703, -inf
      %v3470 = vrot.slane %v3469, 4
      %v3471 = vmax.f32 %v3469, %v3470
      %v3472 = vrot.slane %v3471, 2
      %v3473 = vmax.f32 %v3471, %v3472
      %v3474 = vrot.slane %v3473, 1
      %v3475 = vmax.f32 %v3473, %v3474
      %v3476 = vsel %vm3223, %v2711, -inf
      %v3477 = vrot.slane %v3476, 4
      %v3478 = vmax.f32 %v3476, %v3477
      %v3479 = vrot.slane %v3478, 2
      %v3480 = vmax.f32 %v3478, %v3479
      %v3481 = vrot.slane %v3480, 1
      %v3482 = vmax.f32 %v3480, %v3481
      %v3483 = vsel %vm3223, %v2719, -inf
      %v3484 = vrot.slane %v3483, 4
      %v3485 = vmax.f32 %v3483, %v3484
      %v3486 = vrot.slane %v3485, 2
      %v3487 = vmax.f32 %v3485, %v3486
      %v3488 = vrot.slane %v3487, 1
      %v3489 = vmax.f32 %v3487, %v3488
      %v3490 = vsel %vm3223, %v2718, -inf
      %v3491 = vrot.slane %v3490, 4
      %v3492 = vmax.f32 %v3490, %v3491
      %v3493 = vrot.slane %v3492, 2
      %v3494 = vmax.f32 %v3492, %v3493
      %v3495 = vrot.slane %v3494, 1
      %v3496 = vmax.f32 %v3494, %v3495
      %v3497 = vsel %vm3223, %v2720, -inf
      %v3498 = vrot.slane %v3497, 4
      %v3499 = vmax.f32 %v3497, %v3498
      %v3500 = vrot.slane %v3499, 2
      %v3501 = vmax.f32 %v3499, %v3500
      %v3502 = vrot.slane %v3501, 1
      %v3503 = vmax.f32 %v3501, %v3502
      %v3504 = vsel %vm3223, %v2728, -inf
      %v3505 = vrot.slane %v3504, 4
      %v3506 = vmax.f32 %v3504, %v3505
      %v3507 = vrot.slane %v3506, 2
      %v3508 = vmax.f32 %v3506, %v3507
      %v3509 = vrot.slane %v3508, 1
      %v3510 = vmax.f32 %v3508, %v3509
      %v3511 = vsel %vm3223, %v2736, -inf
      %v3512 = vrot.slane %v3511, 4
      %v3513 = vmax.f32 %v3511, %v3512
      %v3514 = vrot.slane %v3513, 2
      %v3515 = vmax.f32 %v3513, %v3514
      %v3516 = vrot.slane %v3515, 1
      %v3517 = vmax.f32 %v3515, %v3516
      %v3518 = vsel %vm3223, %v2735, -inf
      %v3519 = vrot.slane %v3518, 4
      %v3520 = vmax.f32 %v3518, %v3519
      %v3521 = vrot.slane %v3520, 2
      %v3522 = vmax.f32 %v3520, %v3521
      %v3523 = vrot.slane %v3522, 1
      %v3524 = vmax.f32 %v3522, %v3523
      %v3525 = vsel %vm3223, %v2737, -inf
      %v3526 = vrot.slane %v3525, 4
      %v3527 = vmax.f32 %v3525, %v3526
      %v3528 = vrot.slane %v3527, 2
      %v3529 = vmax.f32 %v3527, %v3528
      %v3530 = vrot.slane %v3529, 1
      %v3531 = vmax.f32 %v3529, %v3530
      %v3532 = vsel %vm3223, %v2745, -inf
      %v3533 = vrot.slane %v3532, 4
      %v3534 = vmax.f32 %v3532, %v3533
      %v3535 = vrot.slane %v3534, 2
      %v3536 = vmax.f32 %v3534, %v3535
      %v3537 = vrot.slane %v3536, 1
      %v3538 = vmax.f32 %v3536, %v3537
      %v3539 = vsel %vm3223, %v2753, -inf
      %v3540 = vrot.slane %v3539, 4
      %v3541 = vmax.f32 %v3539, %v3540
      %v3542 = vrot.slane %v3541, 2
      %v3543 = vmax.f32 %v3541, %v3542
      %v3544 = vrot.slane %v3543, 1
      %v3545 = vmax.f32 %v3543, %v3544
      %v3546 = vsel %vm3223, %v2752, -inf
      %v3547 = vrot.slane %v3546, 4
      %v3548 = vmax.f32 %v3546, %v3547
      %v3549 = vrot.slane %v3548, 2
      %v3550 = vmax.f32 %v3548, %v3549
      %v3551 = vrot.slane %v3550, 1
      %v3552 = vmax.f32 %v3550, %v3551
      %v3553 = vsel %vm3223, %v2754, -inf
      %v3554 = vrot.slane %v3553, 4
      %v3555 = vmax.f32 %v3553, %v3554
      %v3556 = vrot.slane %v3555, 2
      %v3557 = vmax.f32 %v3555, %v3556
      %v3558 = vrot.slane %v3557, 1
      %v3559 = vmax.f32 %v3557, %v3558
      %v3560 = vsel %vm3223, %v2762, -inf
      %v3561 = vrot.slane %v3560, 4
      %v3562 = vmax.f32 %v3560, %v3561
      %v3563 = vrot.slane %v3562, 2
      %v3564 = vmax.f32 %v3562, %v3563
      %v3565 = vrot.slane %v3564, 1
      %v3566 = vmax.f32 %v3564, %v3565
      %v3567 = vsel %vm3223, %v2770, -inf
      %v3568 = vrot.slane %v3567, 4
      %v3569 = vmax.f32 %v3567, %v3568
      %v3570 = vrot.slane %v3569, 2
      %v3571 = vmax.f32 %v3569, %v3570
      %v3572 = vrot.slane %v3571, 1
      %v3573 = vmax.f32 %v3571, %v3572
      %v3574 = vsel %vm3223, %v2769, -inf
      %v3575 = vrot.slane %v3574, 4
      %v3576 = vmax.f32 %v3574, %v3575
      %v3577 = vrot.slane %v3576, 2
      %v3578 = vmax.f32 %v3576, %v3577
      %v3579 = vrot.slane %v3578, 1
      %v3580 = vmax.f32 %v3578, %v3579
      %v3581 = vsel %vm3223, %v2771, -inf
      %v3582 = vrot.slane %v3581, 4
      %v3583 = vmax.f32 %v3581, %v3582
      %v3584 = vrot.slane %v3583, 2
      %v3585 = vmax.f32 %v3583, %v3584
      %v3586 = vrot.slane %v3585, 1
      %v3587 = vmax.f32 %v3585, %v3586
      %v3588 = vsel %vm3223, %v2779, -inf
      %v3589 = vrot.slane %v3588, 4
      %v3590 = vmax.f32 %v3588, %v3589
      %v3591 = vrot.slane %v3590, 2
      %v3592 = vmax.f32 %v3590, %v3591
      %v3593 = vrot.slane %v3592, 1
      %v3594 = vmax.f32 %v3592, %v3593
      %v3595 = vsel %vm3223, %v2787, -inf
      %v3596 = vrot.slane %v3595, 4
      %v3597 = vmax.f32 %v3595, %v3596
      %v3598 = vrot.slane %v3597, 2
      %v3599 = vmax.f32 %v3597, %v3598
      %v3600 = vrot.slane %v3599, 1
      %v3601 = vmax.f32 %v3599, %v3600
      %v3602 = vsel %vm3223, %v2786, -inf
      %v3603 = vrot.slane %v3602, 4
      %v3604 = vmax.f32 %v3602, %v3603
      %v3605 = vrot.slane %v3604, 2
      %v3606 = vmax.f32 %v3604, %v3605
      %v3607 = vrot.slane %v3606, 1
      %v3608 = vmax.f32 %v3606, %v3607
      %v3609 = vsel %vm3223, %v2788, -inf
      %v3610 = vrot.slane %v3609, 4
      %v3611 = vmax.f32 %v3609, %v3610
      %v3612 = vrot.slane %v3611, 2
      %v3613 = vmax.f32 %v3611, %v3612
      %v3614 = vrot.slane %v3613, 1
      %v3615 = vmax.f32 %v3613, %v3614
      %v3616 = vsel %vm3223, %v2796, -inf
      %v3617 = vrot.slane %v3616, 4
      %v3618 = vmax.f32 %v3616, %v3617
      %v3619 = vrot.slane %v3618, 2
      %v3620 = vmax.f32 %v3618, %v3619
      %v3621 = vrot.slane %v3620, 1
      %v3622 = vmax.f32 %v3620, %v3621
      %v3623 = vsel %vm3223, %v2804, -inf
      %v3624 = vrot.slane %v3623, 4
      %v3625 = vmax.f32 %v3623, %v3624
      %v3626 = vrot.slane %v3625, 2
      %v3627 = vmax.f32 %v3625, %v3626
      %v3628 = vrot.slane %v3627, 1
      %v3629 = vmax.f32 %v3627, %v3628
      %v3630 = vsel %vm3223, %v2803, -inf
      %v3631 = vrot.slane %v3630, 4
      %v3632 = vmax.f32 %v3630, %v3631
      %v3633 = vrot.slane %v3632, 2
      %v3634 = vmax.f32 %v3632, %v3633
      %v3635 = vrot.slane %v3634, 1
      %v3636 = vmax.f32 %v3634, %v3635
      %v3637 = vsel %vm3223, %v2805, -inf
      %v3638 = vrot.slane %v3637, 4
      %v3639 = vmax.f32 %v3637, %v3638
      %v3640 = vrot.slane %v3639, 2
      %v3641 = vmax.f32 %v3639, %v3640
      %v3642 = vrot.slane %v3641, 1
      %v3643 = vmax.f32 %v3641, %v3642
      %v3644 = vsel %vm3223, %v2813, -inf
      %v3645 = vrot.slane %v3644, 4
      %v3646 = vmax.f32 %v3644, %v3645
      %v3647 = vrot.slane %v3646, 2
      %v3648 = vmax.f32 %v3646, %v3647
      %v3649 = vrot.slane %v3648, 1
      %v3650 = vmax.f32 %v3648, %v3649
      %v3651 = vsel %vm3223, %v2821, -inf
      %v3652 = vrot.slane %v3651, 4
      %v3653 = vmax.f32 %v3651, %v3652
      %v3654 = vrot.slane %v3653, 2
      %v3655 = vmax.f32 %v3653, %v3654
      %v3656 = vrot.slane %v3655, 1
      %v3657 = vmax.f32 %v3655, %v3656
      %v3658 = vsel %vm3223, %v2820, -inf
      %v3659 = vrot.slane %v3658, 4
      %v3660 = vmax.f32 %v3658, %v3659
      %v3661 = vrot.slane %v3660, 2
      %v3662 = vmax.f32 %v3660, %v3661
      %v3663 = vrot.slane %v3662, 1
      %v3664 = vmax.f32 %v3662, %v3663
      %v3665 = vsel %vm3223, %v2822, -inf
      %v3666 = vrot.slane %v3665, 4
      %v3667 = vmax.f32 %v3665, %v3666
      %v3668 = vrot.slane %v3667, 2
      %v3669 = vmax.f32 %v3667, %v3668
      %v3670 = vrot.slane %v3669, 1
      %v3671 = vmax.f32 %v3669, %v3670
      %v3672 = vsel %vm3223, %v2830, -inf
      %v3673 = vrot.slane %v3672, 4
      %v3674 = vmax.f32 %v3672, %v3673
      %v3675 = vrot.slane %v3674, 2
      %v3676 = vmax.f32 %v3674, %v3675
      %v3677 = vrot.slane %v3676, 1
      %v3678 = vmax.f32 %v3676, %v3677
      %v3679 = vsel %vm3223, %v2838, -inf
      %v3680 = vrot.slane %v3679, 4
      %v3681 = vmax.f32 %v3679, %v3680
      %v3682 = vrot.slane %v3681, 2
      %v3683 = vmax.f32 %v3681, %v3682
      %v3684 = vrot.slane %v3683, 1
      %v3685 = vmax.f32 %v3683, %v3684
      %v3686 = vsel %vm3223, %v2837, -inf
      %v3687 = vrot.slane %v3686, 4
      %v3688 = vmax.f32 %v3686, %v3687
      %v3689 = vrot.slane %v3688, 2
      %v3690 = vmax.f32 %v3688, %v3689
      %v3691 = vrot.slane %v3690, 1
      %v3692 = vmax.f32 %v3690, %v3691
      %v3693 = vsel %vm3223, %v2839, -inf
      %v3694 = vrot.slane %v3693, 4
      %v3695 = vmax.f32 %v3693, %v3694
      %v3696 = vrot.slane %v3695, 2
      %v3697 = vmax.f32 %v3695, %v3696
      %v3698 = vrot.slane %v3697, 1
      %v3699 = vmax.f32 %v3697, %v3698
      %v3700 = vsel %vm3223, %v2847, -inf
      %v3701 = vrot.slane %v3700, 4
      %v3702 = vmax.f32 %v3700, %v3701
      %v3703 = vrot.slane %v3702, 2
      %v3704 = vmax.f32 %v3702, %v3703
      %v3705 = vrot.slane %v3704, 1
      %v3706 = vmax.f32 %v3704, %v3705
      %v3707 = vsel %vm3223, %v2855, -inf
      %v3708 = vrot.slane %v3707, 4
      %v3709 = vmax.f32 %v3707, %v3708
      %v3710 = vrot.slane %v3709, 2
      %v3711 = vmax.f32 %v3709, %v3710
      %v3712 = vrot.slane %v3711, 1
      %v3713 = vmax.f32 %v3711, %v3712
      %v3714 = vsel %vm3223, %v2854, -inf
      %v3715 = vrot.slane %v3714, 4
      %v3716 = vmax.f32 %v3714, %v3715
      %v3717 = vrot.slane %v3716, 2
      %v3718 = vmax.f32 %v3716, %v3717
      %v3719 = vrot.slane %v3718, 1
      %v3720 = vmax.f32 %v3718, %v3719
      %v3721 = vsel %vm3223, %v2856, -inf
      %v3722 = vrot.slane %v3721, 4
      %v3723 = vmax.f32 %v3721, %v3722
      %v3724 = vrot.slane %v3723, 2
      %v3725 = vmax.f32 %v3723, %v3724
      %v3726 = vrot.slane %v3725, 1
      %v3727 = vmax.f32 %v3725, %v3726
      %v3728 = vsel %vm3223, %v2864, -inf
      %v3729 = vrot.slane %v3728, 4
      %v3730 = vmax.f32 %v3728, %v3729
      %v3731 = vrot.slane %v3730, 2
      %v3732 = vmax.f32 %v3730, %v3731
      %v3733 = vrot.slane %v3732, 1
      %v3734 = vmax.f32 %v3732, %v3733
      %v3735 = vsel %vm3223, %v2872, -inf
      %v3736 = vrot.slane %v3735, 4
      %v3737 = vmax.f32 %v3735, %v3736
      %v3738 = vrot.slane %v3737, 2
      %v3739 = vmax.f32 %v3737, %v3738
      %v3740 = vrot.slane %v3739, 1
      %v3741 = vmax.f32 %v3739, %v3740
      %v3742 = vsel %vm3223, %v2871, -inf
      %v3743 = vrot.slane %v3742, 4
      %v3744 = vmax.f32 %v3742, %v3743
      %v3745 = vrot.slane %v3744, 2
      %v3746 = vmax.f32 %v3744, %v3745
      %v3747 = vrot.slane %v3746, 1
      %v3748 = vmax.f32 %v3746, %v3747
      %v3749 = vsel %vm3223, %v2873, -inf
      %v3750 = vrot.slane %v3749, 4
      %v3751 = vmax.f32 %v3749, %v3750
      %v3752 = vrot.slane %v3751, 2
      %v3753 = vmax.f32 %v3751, %v3752
      %v3754 = vrot.slane %v3753, 1
      %v3755 = vmax.f32 %v3753, %v3754
      %v3756 = vsel %vm3223, %v2881, -inf
      %v3757 = vrot.slane %v3756, 4
      %v3758 = vmax.f32 %v3756, %v3757
      %v3759 = vrot.slane %v3758, 2
      %v3760 = vmax.f32 %v3758, %v3759
      %v3761 = vrot.slane %v3760, 1
      %v3762 = vmax.f32 %v3760, %v3761
      %v3763 = vsel %vm3223, %v2889, -inf
      %v3764 = vrot.slane %v3763, 4
      %v3765 = vmax.f32 %v3763, %v3764
      %v3766 = vrot.slane %v3765, 2
      %v3767 = vmax.f32 %v3765, %v3766
      %v3768 = vrot.slane %v3767, 1
      %v3769 = vmax.f32 %v3767, %v3768
      %v3770 = vsel %vm3223, %v2888, -inf
      %v3771 = vrot.slane %v3770, 4
      %v3772 = vmax.f32 %v3770, %v3771
      %v3773 = vrot.slane %v3772, 2
      %v3774 = vmax.f32 %v3772, %v3773
      %v3775 = vrot.slane %v3774, 1
      %v3776 = vmax.f32 %v3774, %v3775
      %v3777 = vsel %vm3223, %v2890, -inf
      %v3778 = vrot.slane %v3777, 4
      %v3779 = vmax.f32 %v3777, %v3778
      %v3780 = vrot.slane %v3779, 2
      %v3781 = vmax.f32 %v3779, %v3780
      %v3782 = vrot.slane %v3781, 1
      %v3783 = vmax.f32 %v3781, %v3782
      %v3784 = vsel %vm3223, %v2898, -inf
      %v3785 = vrot.slane %v3784, 4
      %v3786 = vmax.f32 %v3784, %v3785
      %v3787 = vrot.slane %v3786, 2
      %v3788 = vmax.f32 %v3786, %v3787
      %v3789 = vrot.slane %v3788, 1
      %v3790 = vmax.f32 %v3788, %v3789
      %v3791 = vsel %vm3223, %v2906, -inf
      %v3792 = vrot.slane %v3791, 4
      %v3793 = vmax.f32 %v3791, %v3792
      %v3794 = vrot.slane %v3793, 2
      %v3795 = vmax.f32 %v3793, %v3794
      %v3796 = vrot.slane %v3795, 1
      %v3797 = vmax.f32 %v3795, %v3796
      %v3798 = vsel %vm3223, %v2905, -inf
      %v3799 = vrot.slane %v3798, 4
      %v3800 = vmax.f32 %v3798, %v3799
      %v3801 = vrot.slane %v3800, 2
      %v3802 = vmax.f32 %v3800, %v3801
      %v3803 = vrot.slane %v3802, 1
      %v3804 = vmax.f32 %v3802, %v3803
      %v3805 = vsel %vm3223, %v2907, -inf
      %v3806 = vrot.slane %v3805, 4
      %v3807 = vmax.f32 %v3805, %v3806
      %v3808 = vrot.slane %v3807, 2
      %v3809 = vmax.f32 %v3807, %v3808
      %v3810 = vrot.slane %v3809, 1
      %v3811 = vmax.f32 %v3809, %v3810
      %v3812 = vsel %vm3223, %v2915, -inf
      %v3813 = vrot.slane %v3812, 4
      %v3814 = vmax.f32 %v3812, %v3813
      %v3815 = vrot.slane %v3814, 2
      %v3816 = vmax.f32 %v3814, %v3815
      %v3817 = vrot.slane %v3816, 1
      %v3818 = vmax.f32 %v3816, %v3817
      %v3819 = vsel %vm3223, %v2923, -inf
      %v3820 = vrot.slane %v3819, 4
      %v3821 = vmax.f32 %v3819, %v3820
      %v3822 = vrot.slane %v3821, 2
      %v3823 = vmax.f32 %v3821, %v3822
      %v3824 = vrot.slane %v3823, 1
      %v3825 = vmax.f32 %v3823, %v3824
      %v3826 = vsel %vm3223, %v2922, -inf
      %v3827 = vrot.slane %v3826, 4
      %v3828 = vmax.f32 %v3826, %v3827
      %v3829 = vrot.slane %v3828, 2
      %v3830 = vmax.f32 %v3828, %v3829
      %v3831 = vrot.slane %v3830, 1
      %v3832 = vmax.f32 %v3830, %v3831
      %v3833 = vsel %vm3223, %v2924, -inf
      %v3834 = vrot.slane %v3833, 4
      %v3835 = vmax.f32 %v3833, %v3834
      %v3836 = vrot.slane %v3835, 2
      %v3837 = vmax.f32 %v3835, %v3836
      %v3838 = vrot.slane %v3837, 1
      %v3839 = vmax.f32 %v3837, %v3838
      %v3840 = vsel %vm3223, %v2932, -inf
      %v3841 = vrot.slane %v3840, 4
      %v3842 = vmax.f32 %v3840, %v3841
      %v3843 = vrot.slane %v3842, 2
      %v3844 = vmax.f32 %v3842, %v3843
      %v3845 = vrot.slane %v3844, 1
      %v3846 = vmax.f32 %v3844, %v3845
      %v3847 = vsel %vm3223, %v2940, -inf
      %v3848 = vrot.slane %v3847, 4
      %v3849 = vmax.f32 %v3847, %v3848
      %v3850 = vrot.slane %v3849, 2
      %v3851 = vmax.f32 %v3849, %v3850
      %v3852 = vrot.slane %v3851, 1
      %v3853 = vmax.f32 %v3851, %v3852
      %v3854 = vsel %vm3223, %v2939, -inf
      %v3855 = vrot.slane %v3854, 4
      %v3856 = vmax.f32 %v3854, %v3855
      %v3857 = vrot.slane %v3856, 2
      %v3858 = vmax.f32 %v3856, %v3857
      %v3859 = vrot.slane %v3858, 1
      %v3860 = vmax.f32 %v3858, %v3859
      %v3861 = vsel %vm3223, %v2941, -inf
      %v3862 = vrot.slane %v3861, 4
      %v3863 = vmax.f32 %v3861, %v3862
      %v3864 = vrot.slane %v3863, 2
      %v3865 = vmax.f32 %v3863, %v3864
      %v3866 = vrot.slane %v3865, 1
      %v3867 = vmax.f32 %v3865, %v3866
      %v3868 = vsel %vm3223, %v2949, -inf
      %v3869 = vrot.slane %v3868, 4
      %v3870 = vmax.f32 %v3868, %v3869
      %v3871 = vrot.slane %v3870, 2
      %v3872 = vmax.f32 %v3870, %v3871
      %v3873 = vrot.slane %v3872, 1
      %v3874 = vmax.f32 %v3872, %v3873
      %v3875 = vsel %vm3223, %v2957, -inf
      %v3876 = vrot.slane %v3875, 4
      %v3877 = vmax.f32 %v3875, %v3876
      %v3878 = vrot.slane %v3877, 2
      %v3879 = vmax.f32 %v3877, %v3878
      %v3880 = vrot.slane %v3879, 1
      %v3881 = vmax.f32 %v3879, %v3880
      %v3882 = vsel %vm3223, %v2956, -inf
      %v3883 = vrot.slane %v3882, 4
      %v3884 = vmax.f32 %v3882, %v3883
      %v3885 = vrot.slane %v3884, 2
      %v3886 = vmax.f32 %v3884, %v3885
      %v3887 = vrot.slane %v3886, 1
      %v3888 = vmax.f32 %v3886, %v3887
      %v3889 = vsel %vm3223, %v2958, -inf
      %v3890 = vrot.slane %v3889, 4
      %v3891 = vmax.f32 %v3889, %v3890
      %v3892 = vrot.slane %v3891, 2
      %v3893 = vmax.f32 %v3891, %v3892
      %v3894 = vrot.slane %v3893, 1
      %v3895 = vmax.f32 %v3893, %v3894
      %v3896 = vsel %vm3223, %v2966, -inf
      %v3897 = vrot.slane %v3896, 4
      %v3898 = vmax.f32 %v3896, %v3897
      %v3899 = vrot.slane %v3898, 2
      %v3900 = vmax.f32 %v3898, %v3899
      %v3901 = vrot.slane %v3900, 1
      %v3902 = vmax.f32 %v3900, %v3901
      %v3903 = vsel %vm3223, %v2974, -inf
      %v3904 = vrot.slane %v3903, 4
      %v3905 = vmax.f32 %v3903, %v3904
      %v3906 = vrot.slane %v3905, 2
      %v3907 = vmax.f32 %v3905, %v3906
      %v3908 = vrot.slane %v3907, 1
      %v3909 = vmax.f32 %v3907, %v3908
      %v3910 = vsel %vm3223, %v2973, -inf
      %v3911 = vrot.slane %v3910, 4
      %v3912 = vmax.f32 %v3910, %v3911
      %v3913 = vrot.slane %v3912, 2
      %v3914 = vmax.f32 %v3912, %v3913
      %v3915 = vrot.slane %v3914, 1
      %v3916 = vmax.f32 %v3914, %v3915
      %v3917 = vsel %vm3223, %v2975, -inf
      %v3918 = vrot.slane %v3917, 4
      %v3919 = vmax.f32 %v3917, %v3918
      %v3920 = vrot.slane %v3919, 2
      %v3921 = vmax.f32 %v3919, %v3920
      %v3922 = vrot.slane %v3921, 1
      %v3923 = vmax.f32 %v3921, %v3922
      %v3924 = vsel %vm3223, %v2983, -inf
      %v3925 = vrot.slane %v3924, 4
      %v3926 = vmax.f32 %v3924, %v3925
      %v3927 = vrot.slane %v3926, 2
      %v3928 = vmax.f32 %v3926, %v3927
      %v3929 = vrot.slane %v3928, 1
      %v3930 = vmax.f32 %v3928, %v3929
      %v3931 = vsel %vm3223, %v2991, -inf
      %v3932 = vrot.slane %v3931, 4
      %v3933 = vmax.f32 %v3931, %v3932
      %v3934 = vrot.slane %v3933, 2
      %v3935 = vmax.f32 %v3933, %v3934
      %v3936 = vrot.slane %v3935, 1
      %v3937 = vmax.f32 %v3935, %v3936
      %v3938 = vsel %vm3223, %v2990, -inf
      %v3939 = vrot.slane %v3938, 4
      %v3940 = vmax.f32 %v3938, %v3939
      %v3941 = vrot.slane %v3940, 2
      %v3942 = vmax.f32 %v3940, %v3941
      %v3943 = vrot.slane %v3942, 1
      %v3944 = vmax.f32 %v3942, %v3943
      %v3945 = vsel %vm3223, %v2992, -inf
      %v3946 = vrot.slane %v3945, 4
      %v3947 = vmax.f32 %v3945, %v3946
      %v3948 = vrot.slane %v3947, 2
      %v3949 = vmax.f32 %v3947, %v3948
      %v3950 = vrot.slane %v3949, 1
      %v3951 = vmax.f32 %v3949, %v3950
      %v3952 = vsel %vm3223, %v3000, -inf
      %v3953 = vrot.slane %v3952, 4
      %v3954 = vmax.f32 %v3952, %v3953
      %v3955 = vrot.slane %v3954, 2
      %v3956 = vmax.f32 %v3954, %v3955
      %v3957 = vrot.slane %v3956, 1
      %v3958 = vmax.f32 %v3956, %v3957
      %v3959 = vsel %vm3223, %v3008, -inf
      %v3960 = vrot.slane %v3959, 4
      %v3961 = vmax.f32 %v3959, %v3960
      %v3962 = vrot.slane %v3961, 2
      %v3963 = vmax.f32 %v3961, %v3962
      %v3964 = vrot.slane %v3963, 1
      %v3965 = vmax.f32 %v3963, %v3964
      %v3966 = vsel %vm3223, %v3007, -inf
      %v3967 = vrot.slane %v3966, 4
      %v3968 = vmax.f32 %v3966, %v3967
      %v3969 = vrot.slane %v3968, 2
      %v3970 = vmax.f32 %v3968, %v3969
      %v3971 = vrot.slane %v3970, 1
      %v3972 = vmax.f32 %v3970, %v3971
      %v3973 = vsel %vm3223, %v3009, -inf
      %v3974 = vrot.slane %v3973, 4
      %v3975 = vmax.f32 %v3973, %v3974
      %v3976 = vrot.slane %v3975, 2
      %v3977 = vmax.f32 %v3975, %v3976
      %v3978 = vrot.slane %v3977, 1
      %v3979 = vmax.f32 %v3977, %v3978
      %v3980 = vsel %vm3223, %v3017, -inf
      %v3981 = vrot.slane %v3980, 4
      %v3982 = vmax.f32 %v3980, %v3981
      %v3983 = vrot.slane %v3982, 2
      %v3984 = vmax.f32 %v3982, %v3983
      %v3985 = vrot.slane %v3984, 1
      %v3986 = vmax.f32 %v3984, %v3985
      %v3987 = vsel %vm3223, %v3025, -inf
      %v3988 = vrot.slane %v3987, 4
      %v3989 = vmax.f32 %v3987, %v3988
      %v3990 = vrot.slane %v3989, 2
      %v3991 = vmax.f32 %v3989, %v3990
      %v3992 = vrot.slane %v3991, 1
      %v3993 = vmax.f32 %v3991, %v3992
      %v3994 = vsel %vm3223, %v3024, -inf
      %v3995 = vrot.slane %v3994, 4
      %v3996 = vmax.f32 %v3994, %v3995
      %v3997 = vrot.slane %v3996, 2
      %v3998 = vmax.f32 %v3996, %v3997
      %v3999 = vrot.slane %v3998, 1
      %v4000 = vmax.f32 %v3998, %v3999
      %v4001 = vsel %vm3223, %v3026, -inf
      %v4002 = vrot.slane %v4001, 4
      %v4003 = vmax.f32 %v4001, %v4002
      %v4004 = vrot.slane %v4003, 2
      %v4005 = vmax.f32 %v4003, %v4004
      %v4006 = vrot.slane %v4005, 1
      %v4007 = vmax.f32 %v4005, %v4006
      %v4008 = vsel %vm3223, %v3034, -inf
      %v4009 = vrot.slane %v4008, 4
      %v4010 = vmax.f32 %v4008, %v4009
      %v4011 = vrot.slane %v4010, 2
      %v4012 = vmax.f32 %v4010, %v4011
      %v4013 = vrot.slane %v4012, 1
      %v4014 = vmax.f32 %v4012, %v4013
      %v4015 = vsel %vm3223, %v3042, -inf
      %v4016 = vrot.slane %v4015, 4
      %v4017 = vmax.f32 %v4015, %v4016
      %v4018 = vrot.slane %v4017, 2
      %v4019 = vmax.f32 %v4017, %v4018
      %v4020 = vrot.slane %v4019, 1
      %v4021 = vmax.f32 %v4019, %v4020
      %v4022 = vsel %vm3223, %v3041, -inf
      %v4023 = vrot.slane %v4022, 4
      %v4024 = vmax.f32 %v4022, %v4023
      %v4025 = vrot.slane %v4024, 2
      %v4026 = vmax.f32 %v4024, %v4025
      %v4027 = vrot.slane %v4026, 1
      %v4028 = vmax.f32 %v4026, %v4027
      %v4029 = vsel %vm3223, %v3043, -inf
      %v4030 = vrot.slane %v4029, 4
      %v4031 = vmax.f32 %v4029, %v4030
      %v4032 = vrot.slane %v4031, 2
      %v4033 = vmax.f32 %v4031, %v4032
      %v4034 = vrot.slane %v4033, 1
      %v4035 = vmax.f32 %v4033, %v4034
      %v4036 = vsel %vm3223, %v3051, -inf
      %v4037 = vrot.slane %v4036, 4
      %v4038 = vmax.f32 %v4036, %v4037
      %v4039 = vrot.slane %v4038, 2
      %v4040 = vmax.f32 %v4038, %v4039
      %v4041 = vrot.slane %v4040, 1
      %v4042 = vmax.f32 %v4040, %v4041
      %v4043 = vsel %vm3223, %v3059, -inf
      %v4044 = vrot.slane %v4043, 4
      %v4045 = vmax.f32 %v4043, %v4044
      %v4046 = vrot.slane %v4045, 2
      %v4047 = vmax.f32 %v4045, %v4046
      %v4048 = vrot.slane %v4047, 1
      %v4049 = vmax.f32 %v4047, %v4048
      %v4050 = vsel %vm3223, %v3058, -inf
      %v4051 = vrot.slane %v4050, 4
      %v4052 = vmax.f32 %v4050, %v4051
      %v4053 = vrot.slane %v4052, 2
      %v4054 = vmax.f32 %v4052, %v4053
      %v4055 = vrot.slane %v4054, 1
      %v4056 = vmax.f32 %v4054, %v4055
      %v4057 = vsel %vm3223, %v3060, -inf
      %v4058 = vrot.slane %v4057, 4
      %v4059 = vmax.f32 %v4057, %v4058
      %v4060 = vrot.slane %v4059, 2
      %v4061 = vmax.f32 %v4059, %v4060
      %v4062 = vrot.slane %v4061, 1
      %v4063 = vmax.f32 %v4061, %v4062
      %v4064 = vsel %vm3223, %v3068, -inf
      %v4065 = vrot.slane %v4064, 4
      %v4066 = vmax.f32 %v4064, %v4065
      %v4067 = vrot.slane %v4066, 2
      %v4068 = vmax.f32 %v4066, %v4067
      %v4069 = vrot.slane %v4068, 1
      %v4070 = vmax.f32 %v4068, %v4069
      %v4071 = vsel %vm3223, %v3076, -inf
      %v4072 = vrot.slane %v4071, 4
      %v4073 = vmax.f32 %v4071, %v4072
      %v4074 = vrot.slane %v4073, 2
      %v4075 = vmax.f32 %v4073, %v4074
      %v4076 = vrot.slane %v4075, 1
      %v4077 = vmax.f32 %v4075, %v4076
      %v4078 = vsel %vm3223, %v3075, -inf
      %v4079 = vrot.slane %v4078, 4
      %v4080 = vmax.f32 %v4078, %v4079
      %v4081 = vrot.slane %v4080, 2
      %v4082 = vmax.f32 %v4080, %v4081
      %v4083 = vrot.slane %v4082, 1
      %v4084 = vmax.f32 %v4082, %v4083
      %v4085 = vsel %vm3223, %v3077, -inf
      %v4086 = vrot.slane %v4085, 4
      %v4087 = vmax.f32 %v4085, %v4086
      %v4088 = vrot.slane %v4087, 2
      %v4089 = vmax.f32 %v4087, %v4088
      %v4090 = vrot.slane %v4089, 1
      %v4091 = vmax.f32 %v4089, %v4090
      %v4092 = vsel %vm3223, %v3085, -inf
      %v4093 = vrot.slane %v4092, 4
      %v4094 = vmax.f32 %v4092, %v4093
      %v4095 = vrot.slane %v4094, 2
      %v4096 = vmax.f32 %v4094, %v4095
      %v4097 = vrot.slane %v4096, 1
      %v4098 = vmax.f32 %v4096, %v4097
      %v4099 = vsel %vm3223, %v3093, -inf
      %v4100 = vrot.slane %v4099, 4
      %v4101 = vmax.f32 %v4099, %v4100
      %v4102 = vrot.slane %v4101, 2
      %v4103 = vmax.f32 %v4101, %v4102
      %v4104 = vrot.slane %v4103, 1
      %v4105 = vmax.f32 %v4103, %v4104
      %v4106 = vsel %vm3223, %v3092, -inf
      %v4107 = vrot.slane %v4106, 4
      %v4108 = vmax.f32 %v4106, %v4107
      %v4109 = vrot.slane %v4108, 2
      %v4110 = vmax.f32 %v4108, %v4109
      %v4111 = vrot.slane %v4110, 1
      %v4112 = vmax.f32 %v4110, %v4111
      %v4113 = vsel %vm3223, %v3094, -inf
      %v4114 = vrot.slane %v4113, 4
      %v4115 = vmax.f32 %v4113, %v4114
      %v4116 = vrot.slane %v4115, 2
      %v4117 = vmax.f32 %v4115, %v4116
      %v4118 = vrot.slane %v4117, 1
      %v4119 = vmax.f32 %v4117, %v4118
      %v4120 = vmax.f32 %v3230, %v3286
      %v4121 = vmax.f32 %v3237, %v3293
      %v4122 = vmax.f32 %v3244, %v3300
      %v4123 = vmax.f32 %v3251, %v3307
      %v4124 = vmax.f32 %v3258, %v3314
      %v4125 = vmax.f32 %v3265, %v3321
      %v4126 = vmax.f32 %v3272, %v3328
      %v4127 = vmax.f32 %v3279, %v3335
      %v4128 = vmax.f32 %v3342, %v3398
      %v4129 = vmax.f32 %v3349, %v3405
      %v4130 = vmax.f32 %v3356, %v3412
      %v4131 = vmax.f32 %v3363, %v3419
      %v4132 = vmax.f32 %v3370, %v3426
      %v4133 = vmax.f32 %v3377, %v3433
      %v4134 = vmax.f32 %v3384, %v3440
      %v4135 = vmax.f32 %v3391, %v3447
      %v4136 = vmax.f32 %v3454, %v3510
      %v4137 = vmax.f32 %v3461, %v3517
      %v4138 = vmax.f32 %v3468, %v3524
      %v4139 = vmax.f32 %v3475, %v3531
      %v4140 = vmax.f32 %v3482, %v3538
      %v4141 = vmax.f32 %v3489, %v3545
      %v4142 = vmax.f32 %v3496, %v3552
      %v4143 = vmax.f32 %v3503, %v3559
      %v4144 = vmax.f32 %v3566, %v3622
      %v4145 = vmax.f32 %v3573, %v3629
      %v4146 = vmax.f32 %v3580, %v3636
      %v4147 = vmax.f32 %v3587, %v3643
      %v4148 = vmax.f32 %v3594, %v3650
      %v4149 = vmax.f32 %v3601, %v3657
      %v4150 = vmax.f32 %v3608, %v3664
      %v4151 = vmax.f32 %v3615, %v3671
      %v4152 = vmax.f32 %v3678, %v3734
      %v4153 = vmax.f32 %v3685, %v3741
      %v4154 = vmax.f32 %v3692, %v3748
      %v4155 = vmax.f32 %v3699, %v3755
      %v4156 = vmax.f32 %v3706, %v3762
      %v4157 = vmax.f32 %v3713, %v3769
      %v4158 = vmax.f32 %v3720, %v3776
      %v4159 = vmax.f32 %v3727, %v3783
      %v4160 = vmax.f32 %v3790, %v3846
      %v4161 = vmax.f32 %v3797, %v3853
      %v4162 = vmax.f32 %v3804, %v3860
      %v4163 = vmax.f32 %v3811, %v3867
      %v4164 = vmax.f32 %v3818, %v3874
      %v4165 = vmax.f32 %v3825, %v3881
      %v4166 = vmax.f32 %v3832, %v3888
      %v4167 = vmax.f32 %v3839, %v3895
      %v4168 = vmax.f32 %v3902, %v3958
      %v4169 = vmax.f32 %v3909, %v3965
      %v4170 = vmax.f32 %v3916, %v3972
      %v4171 = vmax.f32 %v3923, %v3979
      %v4172 = vmax.f32 %v3930, %v3986
      %v4173 = vmax.f32 %v3937, %v3993
      %v4174 = vmax.f32 %v3944, %v4000
      %v4175 = vmax.f32 %v3951, %v4007
      %v4176 = vmax.f32 %v4014, %v4070
      %v4177 = vmax.f32 %v4021, %v4077
      %v4178 = vmax.f32 %v4028, %v4084
      %v4179 = vmax.f32 %v4035, %v4091
      %v4180 = vmax.f32 %v4042, %v4098
      %v4181 = vmax.f32 %v4049, %v4105
      %v4182 = vmax.f32 %v4056, %v4112
      %v4183 = vmax.f32 %v4063, %v4119
      %v4184 = vpack.c.bf16 %v4120, %v4120
      %v4185 = vpack.c.bf16 %v4121, %v4121
      %v4186 = vpack.c.bf16 %v4122, %v4122
      %v4187 = vpack.c.bf16 %v4123, %v4123
      %v4188 = vpack.c.bf16 %v4124, %v4124
      %v4189 = vpack.c.bf16 %v4125, %v4125
      %v4190 = vpack.c.bf16 %v4126, %v4126
      %v4191 = vpack.c.bf16 %v4127, %v4127
      %v4192 = vpack.c.bf16 %v4128, %v4128
      %v4193 = vpack.c.bf16 %v4129, %v4129
      %v4194 = vpack.c.bf16 %v4130, %v4130
      %v4195 = vpack.c.bf16 %v4131, %v4131
      %v4196 = vpack.c.bf16 %v4132, %v4132
      %v4197 = vpack.c.bf16 %v4133, %v4133
      %v4198 = vpack.c.bf16 %v4134, %v4134
      %v4199 = vpack.c.bf16 %v4135, %v4135
      %v4200 = vpack.c.bf16 %v4136, %v4136
      %v4201 = vpack.c.bf16 %v4137, %v4137
      %v4202 = vpack.c.bf16 %v4138, %v4138
      %v4203 = vpack.c.bf16 %v4139, %v4139
      %v4204 = vpack.c.bf16 %v4140, %v4140
      %v4205 = vpack.c.bf16 %v4141, %v4141
      %v4206 = vpack.c.bf16 %v4142, %v4142
      %v4207 = vpack.c.bf16 %v4143, %v4143
      %v4208 = vpack.c.bf16 %v4144, %v4144
      %v4209 = vpack.c.bf16 %v4145, %v4145
      %v4210 = vpack.c.bf16 %v4146, %v4146
      %v4211 = vpack.c.bf16 %v4147, %v4147
      %v4212 = vpack.c.bf16 %v4148, %v4148
      %v4213 = vpack.c.bf16 %v4149, %v4149
      %v4214 = vpack.c.bf16 %v4150, %v4150
      %v4215 = vpack.c.bf16 %v4151, %v4151
      %v4216 = vpack.c.bf16 %v4152, %v4152
      %v4217 = vpack.c.bf16 %v4153, %v4153
      %v4218 = vpack.c.bf16 %v4154, %v4154
      %v4219 = vpack.c.bf16 %v4155, %v4155
      %v4220 = vpack.c.bf16 %v4156, %v4156
      %v4221 = vpack.c.bf16 %v4157, %v4157
      %v4222 = vpack.c.bf16 %v4158, %v4158
      %v4223 = vpack.c.bf16 %v4159, %v4159
      %v4224 = vpack.c.bf16 %v4160, %v4160
      %v4225 = vpack.c.bf16 %v4161, %v4161
      %v4226 = vpack.c.bf16 %v4162, %v4162
      %v4227 = vpack.c.bf16 %v4163, %v4163
      %v4228 = vpack.c.bf16 %v4164, %v4164
      %v4229 = vpack.c.bf16 %v4165, %v4165
      %v4230 = vpack.c.bf16 %v4166, %v4166
      %v4231 = vpack.c.bf16 %v4167, %v4167
      %v4232 = vpack.c.bf16 %v4168, %v4168
      %v4233 = vpack.c.bf16 %v4169, %v4169
      %v4234 = vpack.c.bf16 %v4170, %v4170
      %v4235 = vpack.c.bf16 %v4171, %v4171
      %v4236 = vpack.c.bf16 %v4172, %v4172
      %v4237 = vpack.c.bf16 %v4173, %v4173
      %v4238 = vpack.c.bf16 %v4174, %v4174
      %v4239 = vpack.c.bf16 %v4175, %v4175
      %v4240 = vpack.c.bf16 %v4176, %v4176
      %v4241 = vpack.c.bf16 %v4177, %v4177
      %v4242 = vpack.c.bf16 %v4178, %v4178
      %v4243 = vpack.c.bf16 %v4179, %v4179
      %v4244 = vpack.c.bf16 %v4180, %v4180
      %v4245 = vpack.c.bf16 %v4181, %v4181
      %v4246 = vpack.c.bf16 %v4182, %v4182
      %v4247 = vpack.c.bf16 %v4183, %v4183
      %v4312 = vunpack.c.l.b16 %v4184
      %v4313 = vunpack.c.l.b16 %v4185
      %v4314 = vunpack.c.l.b16 %v4186
      %v4315 = vunpack.c.l.b16 %v4187
      %v4316 = vunpack.c.l.b16 %v4188
      %v4317 = vunpack.c.l.b16 %v4189
      %v4318 = vunpack.c.l.b16 %v4190
      %v4319 = vunpack.c.l.b16 %v4191
      %v4320 = vunpack.c.l.b16 %v4192
      %v4321 = vunpack.c.l.b16 %v4193
      %v4322 = vunpack.c.l.b16 %v4194
      %v4323 = vunpack.c.l.b16 %v4195
      %v4324 = vunpack.c.l.b16 %v4196
      %v4325 = vunpack.c.l.b16 %v4197
      %v4326 = vunpack.c.l.b16 %v4198
      %v4327 = vunpack.c.l.b16 %v4199
      %v4328 = vunpack.c.l.b16 %v4200
      %v4329 = vunpack.c.l.b16 %v4201
      %v4330 = vunpack.c.l.b16 %v4202
      %v4331 = vunpack.c.l.b16 %v4203
      %v4332 = vunpack.c.l.b16 %v4204
      %v4333 = vunpack.c.l.b16 %v4205
      %v4334 = vunpack.c.l.b16 %v4206
      %v4335 = vunpack.c.l.b16 %v4207
      %v4336 = vunpack.c.l.b16 %v4208
      %v4337 = vunpack.c.l.b16 %v4209
      %v4338 = vunpack.c.l.b16 %v4210
      %v4339 = vunpack.c.l.b16 %v4211
      %v4340 = vunpack.c.l.b16 %v4212
      %v4341 = vunpack.c.l.b16 %v4213
      %v4342 = vunpack.c.l.b16 %v4214
      %v4343 = vunpack.c.l.b16 %v4215
      %v4344 = vunpack.c.l.b16 %v4216
      %v4345 = vunpack.c.l.b16 %v4217
      %v4346 = vunpack.c.l.b16 %v4218
      %v4347 = vunpack.c.l.b16 %v4219
      %v4348 = vunpack.c.l.b16 %v4220
      %v4349 = vunpack.c.l.b16 %v4221
      %v4350 = vunpack.c.l.b16 %v4222
      %v4351 = vunpack.c.l.b16 %v4223
      %v4352 = vunpack.c.l.b16 %v4224
      %v4353 = vunpack.c.l.b16 %v4225
      %v4354 = vunpack.c.l.b16 %v4226
      %v4355 = vunpack.c.l.b16 %v4227
      %v4356 = vunpack.c.l.b16 %v4228
      %v4357 = vunpack.c.l.b16 %v4229
      %v4358 = vunpack.c.l.b16 %v4230
      %v4359 = vunpack.c.l.b16 %v4231
      %v4360 = vunpack.c.l.b16 %v4232
      %v4361 = vunpack.c.l.b16 %v4233
      %v4362 = vunpack.c.l.b16 %v4234
      %v4363 = vunpack.c.l.b16 %v4235
      %v4364 = vunpack.c.l.b16 %v4236
      %v4365 = vunpack.c.l.b16 %v4237
      %v4366 = vunpack.c.l.b16 %v4238
      %v4367 = vunpack.c.l.b16 %v4239
      %v4368 = vunpack.c.l.b16 %v4240
      %v4369 = vunpack.c.l.b16 %v4241
      %v4370 = vunpack.c.l.b16 %v4242
      %v4371 = vunpack.c.l.b16 %v4243
      %v4372 = vunpack.c.l.b16 %v4244
      %v4373 = vunpack.c.l.b16 %v4245
      %v4374 = vunpack.c.l.b16 %v4246
      %v4375 = vunpack.c.l.b16 %v4247
      %vm4376 = vcmask 1041409
      %v4377 = vsel %vm4376, %v4313, %v4312
      %vm4378 = vcmask 1042434
      %v4379 = vsel %vm4378, %v4314, %v4377
      %vm4380 = vcmask 1043459
      %v4381 = vsel %vm4380, %v4315, %v4379
      %vm4382 = vcmask 1044484
      %v4383 = vsel %vm4382, %v4316, %v4381
      %vm4384 = vcmask 1045509
      %v4385 = vsel %vm4384, %v4317, %v4383
      %vm4386 = vcmask 1046534
      %v4387 = vsel %vm4386, %v4318, %v4385
      %vm4388 = vcmask 1047559
      %v4389 = vsel %vm4388, %v4319, %v4387
      %v4390 = vsel %vm4376, %v4321, %v4320
      %v4391 = vsel %vm4378, %v4322, %v4390
      %v4392 = vsel %vm4380, %v4323, %v4391
      %v4393 = vsel %vm4382, %v4324, %v4392
      %v4394 = vsel %vm4384, %v4325, %v4393
      %v4395 = vsel %vm4386, %v4326, %v4394
      %v4396 = vsel %vm4388, %v4327, %v4395
      %v4397 = vsel %vm4376, %v4329, %v4328
      %v4398 = vsel %vm4378, %v4330, %v4397
      %v4399 = vsel %vm4380, %v4331, %v4398
      %v4400 = vsel %vm4382, %v4332, %v4399
      %v4401 = vsel %vm4384, %v4333, %v4400
      %v4402 = vsel %vm4386, %v4334, %v4401
      %v4403 = vsel %vm4388, %v4335, %v4402
      %v4404 = vsel %vm4376, %v4337, %v4336
      %v4405 = vsel %vm4378, %v4338, %v4404
      %v4406 = vsel %vm4380, %v4339, %v4405
      %v4407 = vsel %vm4382, %v4340, %v4406
      %v4408 = vsel %vm4384, %v4341, %v4407
      %v4409 = vsel %vm4386, %v4342, %v4408
      %v4410 = vsel %vm4388, %v4343, %v4409
      %v4411 = vsel %vm4376, %v4345, %v4344
      %v4412 = vsel %vm4378, %v4346, %v4411
      %v4413 = vsel %vm4380, %v4347, %v4412
      %v4414 = vsel %vm4382, %v4348, %v4413
      %v4415 = vsel %vm4384, %v4349, %v4414
      %v4416 = vsel %vm4386, %v4350, %v4415
      %v4417 = vsel %vm4388, %v4351, %v4416
      %v4418 = vsel %vm4376, %v4353, %v4352
      %v4419 = vsel %vm4378, %v4354, %v4418
      %v4420 = vsel %vm4380, %v4355, %v4419
      %v4421 = vsel %vm4382, %v4356, %v4420
      %v4422 = vsel %vm4384, %v4357, %v4421
      %v4423 = vsel %vm4386, %v4358, %v4422
      %v4424 = vsel %vm4388, %v4359, %v4423
      %v4425 = vsel %vm4376, %v4361, %v4360
      %v4426 = vsel %vm4378, %v4362, %v4425
      %v4427 = vsel %vm4380, %v4363, %v4426
      %v4428 = vsel %vm4382, %v4364, %v4427
      %v4429 = vsel %vm4384, %v4365, %v4428
      %v4430 = vsel %vm4386, %v4366, %v4429
      %v4431 = vsel %vm4388, %v4367, %v4430
      %v4432 = vsel %vm4376, %v4369, %v4368
      %v4433 = vsel %vm4378, %v4370, %v4432
      %v4434 = vsel %vm4380, %v4371, %v4433
      %v4435 = vsel %vm4382, %v4372, %v4434
      %v4436 = vsel %vm4384, %v4373, %v4435
      %v4437 = vsel %vm4386, %v4374, %v4436
      %v4438 = vsel %vm4388, %v4375, %v4437
      %v4439 = vpack.c.b16 %v4389, %v4389
      %v4440 = vpack.c.b16 %v4396, %v4396
      %v4441 = vpack.c.b16 %v4403, %v4403
      %v4442 = vpack.c.b16 %v4410, %v4410
      %v4443 = vpack.c.b16 %v4417, %v4417
      %v4444 = vpack.c.b16 %v4424, %v4424
      %v4445 = vpack.c.b16 %v4431, %v4431
      %v4446 = vpack.c.b16 %v4438, %v4438
      %v4448 = vshrl.u32 %v4439, 16
      %v4450 = vrot.slane %v4448, 7
      %v4451 = vshll.u32 %v4439, 16
      %v4453 = vor.u32 %v4450, %v4451
      %v4455 = vshrl.u32 %v4440, 16
      %v4457 = vrot.slane %v4455, 7
      %v4458 = vshll.u32 %v4440, 16
      %v4460 = vor.u32 %v4457, %v4458
      %v4462 = vshrl.u32 %v4441, 16
      %v4464 = vrot.slane %v4462, 7
      %v4465 = vshll.u32 %v4441, 16
      %v4467 = vor.u32 %v4464, %v4465
      %v4469 = vshrl.u32 %v4442, 16
      %v4471 = vrot.slane %v4469, 7
      %v4472 = vshll.u32 %v4442, 16
      %v4474 = vor.u32 %v4471, %v4472
      %v4476 = vshrl.u32 %v4443, 16
      %v4478 = vrot.slane %v4476, 7
      %v4479 = vshll.u32 %v4443, 16
      %v4481 = vor.u32 %v4478, %v4479
      %v4483 = vshrl.u32 %v4444, 16
      %v4485 = vrot.slane %v4483, 7
      %v4486 = vshll.u32 %v4444, 16
      %v4488 = vor.u32 %v4485, %v4486
      %v4490 = vshrl.u32 %v4445, 16
      %v4492 = vrot.slane %v4490, 7
      %v4493 = vshll.u32 %v4445, 16
      %v4495 = vor.u32 %v4492, %v4493
      %v4497 = vshrl.u32 %v4446, 16
      %v4499 = vrot.slane %v4497, 7
      %v4500 = vshll.u32 %v4446, 16
      %v4502 = vor.u32 %v4499, %v4500
      %v4511 = vsel %vm1072, 0, %v4453
      %v4512 = vsel %vm1072, 0, %v4460
      %v4513 = vsel %vm1072, 0, %v4467
      %v4514 = vsel %vm1072, 0, %v4474
      %v4515 = vsel %vm1072, 0, %v4481
      %v4516 = vsel %vm1072, 0, %v4488
      %v4517 = vsel %vm1072, 0, %v4495
      %v4518 = vsel %vm1072, 0, %v4502
      %vm4519 = vcmask 1044480
      %vm4520 = vsmask.f32 4352
      %vm4521 = vmand %vm4519, %vm4520
      %v4522 = vsel %vm4521, %v1073, 0
      %v4523 = vsel %vm4521, %v4511, 0
      %v4524 = vsel %vm4521, %v4512, 0
      %v4525 = vsel %vm4521, %v4513, 0
      %v4526 = vsel %vm4521, %v4514, 0
      %v4527 = vsel %vm4521, %v4515, 0
      %v4528 = vsel %vm4521, %v4516, 0
      %v4529 = vsel %vm4521, %v4517, 0
      %v4530 = vsel %vm4521, %v4518, 0
      %v4532 = vshrl.u32 %v4522, 16
      %v4534 = vshll.u32 %v4522, 16
      %v4536 = vrot.slane %v4534, 1
      %v4537 = vor.u32 %v4532, %v4536
      %v4539 = vshrl.u32 %v4523, 16
      %v4541 = vshll.u32 %v4523, 16
      %v4543 = vrot.slane %v4541, 1
      %v4544 = vor.u32 %v4539, %v4543
      %v4546 = vshrl.u32 %v4524, 16
      %v4548 = vshll.u32 %v4524, 16
      %v4550 = vrot.slane %v4548, 1
      %v4551 = vor.u32 %v4546, %v4550
      %v4553 = vshrl.u32 %v4525, 16
      %v4555 = vshll.u32 %v4525, 16
      %v4557 = vrot.slane %v4555, 1
      %v4558 = vor.u32 %v4553, %v4557
      %v4560 = vshrl.u32 %v4526, 16
      %v4562 = vshll.u32 %v4526, 16
      %v4564 = vrot.slane %v4562, 1
      %v4565 = vor.u32 %v4560, %v4564
      %v4567 = vshrl.u32 %v4527, 16
      %v4569 = vshll.u32 %v4527, 16
      %v4571 = vrot.slane %v4569, 1
      %v4572 = vor.u32 %v4567, %v4571
      %v4574 = vshrl.u32 %v4528, 16
      %v4576 = vshll.u32 %v4528, 16
      %v4578 = vrot.slane %v4576, 1
      %v4579 = vor.u32 %v4574, %v4578
      %v4581 = vshrl.u32 %v4529, 16
      %v4583 = vshll.u32 %v4529, 16
      %v4585 = vrot.slane %v4583, 1
      %v4586 = vor.u32 %v4581, %v4585
      %v4595 = vrot.slane %v4522, 1
      %v4596 = vrot.slane %v4523, 1
      %v4597 = vrot.slane %v4524, 1
      %v4598 = vrot.slane %v4525, 1
      %v4599 = vrot.slane %v4526, 1
      %v4600 = vrot.slane %v4527, 1
      %v4601 = vrot.slane %v4528, 1
      %v4602 = vrot.slane %v4529, 1
      %v4604 = vshrl.u32 %v4530, 16
      %v4606 = vshll.u32 %v4530, 16
      %v4608 = vrot.slane %v4606, 1
      %v4609 = vor.u32 %v4604, %v4608
      %v4611 = vrot.slane %v4530, 1
      %v4612 = vunpack.c.l.b16 %v4522
      %v4613 = vunpack.c.l.b16 %v4537
      %v4614 = vunpack.c.l.b16 %v4595
      %v4615 = vunpack.c.l.b16 %v4523
      %v4616 = vunpack.c.l.b16 %v4544
      %v4617 = vunpack.c.l.b16 %v4596
      %v4618 = vunpack.c.l.b16 %v4524
      %v4619 = vunpack.c.l.b16 %v4551
      %v4620 = vunpack.c.l.b16 %v4597
      %v4621 = vunpack.c.l.b16 %v4525
      %v4622 = vunpack.c.l.b16 %v4558
      %v4623 = vunpack.c.l.b16 %v4598
      %v4624 = vunpack.c.l.b16 %v4526
      %v4625 = vunpack.c.l.b16 %v4565
      %v4626 = vunpack.c.l.b16 %v4599
      %v4627 = vunpack.c.l.b16 %v4527
      %v4628 = vunpack.c.l.b16 %v4572
      %v4629 = vunpack.c.l.b16 %v4600
      %v4630 = vunpack.c.l.b16 %v4528
      %v4631 = vunpack.c.l.b16 %v4579
      %v4632 = vunpack.c.l.b16 %v4601
      %v4633 = vunpack.c.l.b16 %v4529
      %v4634 = vunpack.c.l.b16 %v4586
      %v4635 = vunpack.c.l.b16 %v4602
      %v4636 = vunpack.c.l.b16 %v4530
      %v4637 = vunpack.c.l.b16 %v4609
      %v4638 = vunpack.c.l.b16 %v4611
      %v4639 = vld [vmem:[%s5] sm:$0xff]
      %v4640 = vld [vmem:[%s5 + $0x8] sm:$0xff]
      %v4641 = vld [vmem:[%s5 + $0x10] sm:$0xff]
      %v4642 = vld [vmem:[%s5 + $0x18] sm:$0xff]
      %v4643 = vld [vmem:[%s5 + $0x20] sm:$0xff]
      %v4644 = vld [vmem:[%s5 + $0x28] sm:$0xff]
      %v4645 = vld [vmem:[%s5 + $0x30] sm:$0xff]
      %v4646 = vld [vmem:[%s5 + $0x38] sm:$0xff]
      %v4647 = vld [vmem:[%s5 + $0x40] sm:$0xff]
      %v4648 = vld [vmem:[%s5 + $0x48] sm:$0xff]
      %v4649 = vld [vmem:[%s5 + $0x50] sm:$0xff]
      %v4650 = vld [vmem:[%s5 + $0x58] sm:$0xff]
      %v4651 = vld [vmem:[%s5 + $0x60] sm:$0xff]
      %v4652 = vld [vmem:[%s5 + $0x68] sm:$0xff]
      %v4653 = vld [vmem:[%s5 + $0x70] sm:$0xff]
      %v4654 = vld [vmem:[%s5 + $0x78] sm:$0xff]
      %v4655 = vld [vmem:[%s5 + $0x80] sm:$0xff]
      %v4656 = vld [vmem:[%s5 + $0x88] sm:$0xff]
      %v4657 = vld [vmem:[%s5 + $0x90] sm:$0xff]
      %v4658 = vld [vmem:[%s5 + $0x98] sm:$0xff]
      %v4659 = vld [vmem:[%s5 + $0xa0] sm:$0xff]
      %v4660 = vld [vmem:[%s5 + $0xa8] sm:$0xff]
      %v4661 = vld [vmem:[%s5 + $0xb0] sm:$0xff]
      %v4662 = vld [vmem:[%s5 + $0xb8] sm:$0xff]
      %v4663 = vld [vmem:[%s5 + $0xc0] sm:$0xff]
      %v4664 = vld [vmem:[%s5 + $0xc8] sm:$0xff]
      %v4665 = vld [vmem:[%s5 + $0xd0] sm:$0xff]
      %v4666 = vld [vmem:[%s5 + $0xd8] sm:$0xff]
      %v4667 = vld [vmem:[%s5 + $0xe0] sm:$0xff]
      %v4668 = vld [vmem:[%s5 + $0xe8] sm:$0xff]
      %v4669 = vld [vmem:[%s5 + $0xf0] sm:$0xff]
      %v4670 = vld [vmem:[%s5 + $0xf8] sm:$0xff]
      %v4671 = vld [vmem:[%s5 + $0x100] sm:$0xff]
      %v4672 = vld [vmem:[%s5 + $0x108] sm:$0xff]
      %v4673 = vld [vmem:[%s5 + $0x110] sm:$0xff]
      %v4674 = vld [vmem:[%s5 + $0x118] sm:$0xff]
      %v4675 = vld [vmem:[%s5 + $0x120] sm:$0xff]
      %v4676 = vld [vmem:[%s5 + $0x128] sm:$0xff]
      %v4677 = vld [vmem:[%s5 + $0x130] sm:$0xff]
      %v4678 = vld [vmem:[%s5 + $0x138] sm:$0xff]
      %v4679 = vld [vmem:[%s5 + $0x140] sm:$0xff]
      %v4680 = vld [vmem:[%s5 + $0x148] sm:$0xff]
      %v4681 = vld [vmem:[%s5 + $0x150] sm:$0xff]
      %v4682 = vld [vmem:[%s5 + $0x158] sm:$0xff]
      %v4683 = vld [vmem:[%s5 + $0x160] sm:$0xff]
      %v4684 = vld [vmem:[%s5 + $0x168] sm:$0xff]
      %v4685 = vld [vmem:[%s5 + $0x170] sm:$0xff]
      %v4686 = vld [vmem:[%s5 + $0x178] sm:$0xff]
      %v4687 = vld [vmem:[%s5 + $0x180] sm:$0xff]
      %v4688 = vld [vmem:[%s5 + $0x188] sm:$0xff]
      %v4689 = vld [vmem:[%s5 + $0x190] sm:$0xff]
      %v4690 = vld [vmem:[%s5 + $0x198] sm:$0xff]
      %v4691 = vld [vmem:[%s5 + $0x1a0] sm:$0xff]
      %v4692 = vld [vmem:[%s5 + $0x1a8] sm:$0xff]
      %v4693 = vld [vmem:[%s5 + $0x1b0] sm:$0xff]
      %v4694 = vld [vmem:[%s5 + $0x1b8] sm:$0xff]
      %v4695 = vld [vmem:[%s5 + $0x1c0] sm:$0xff]
      %v4696 = vld [vmem:[%s5 + $0x1c8] sm:$0xff]
      %v4697 = vld [vmem:[%s5 + $0x1d0] sm:$0xff]
      %v4698 = vld [vmem:[%s5 + $0x1d8] sm:$0xff]
      %v4699 = vld [vmem:[%s5 + $0x1e0] sm:$0xff]
      %v4700 = vld [vmem:[%s5 + $0x1e8] sm:$0xff]
      %v4701 = vld [vmem:[%s5 + $0x1f0] sm:$0xff]
      %v4702 = vld [vmem:[%s5 + $0x1f8] sm:$0xff]
      %v4703 = vld [vmem:[%s5 + $0x200] sm:$0xff]
      %v4704 = vld [vmem:[%s5 + $0x208] sm:$0xff]
      %v4705 = vld [vmem:[%s5 + $0x210] sm:$0xff]
      %v4706 = vld [vmem:[%s5 + $0x218] sm:$0xff]
      %v4707 = vld [vmem:[%s5 + $0x220] sm:$0xff]
      %v4708 = vld [vmem:[%s5 + $0x228] sm:$0xff]
      %v4709 = vld [vmem:[%s5 + $0x230] sm:$0xff]
      %v4710 = vld [vmem:[%s5 + $0x238] sm:$0xff]
      %v4711 = vld [vmem:[%s5 + $0x240] sm:$0xff]
      %v4712 = vld [vmem:[%s5 + $0x248] sm:$0xff]
      %v4713 = vld [vmem:[%s5 + $0x250] sm:$0xff]
      %v4714 = vld [vmem:[%s5 + $0x258] sm:$0xff]
      %v4715 = vld [vmem:[%s5 + $0x260] sm:$0xff]
      %v4716 = vld [vmem:[%s5 + $0x268] sm:$0xff]
      %v4717 = vld [vmem:[%s5 + $0x270] sm:$0xff]
      %v4718 = vld [vmem:[%s5 + $0x278] sm:$0xff]
      %v4719 = vld [vmem:[%s5 + $0x280] sm:$0xff]
      %v4720 = vld [vmem:[%s5 + $0x288] sm:$0xff]
      %v4721 = vld [vmem:[%s5 + $0x290] sm:$0xff]
      %v4722 = vld [vmem:[%s5 + $0x298] sm:$0xff]
      %v4723 = vld [vmem:[%s5 + $0x2a0] sm:$0xff]
      %v4724 = vld [vmem:[%s5 + $0x2a8] sm:$0xff]
      %v4725 = vld [vmem:[%s5 + $0x2b0] sm:$0xff]
      %v4726 = vld [vmem:[%s5 + $0x2b8] sm:$0xff]
      %v4727 = vld [vmem:[%s5 + $0x2c0] sm:$0xff]
      %v4728 = vld [vmem:[%s5 + $0x2c8] sm:$0xff]
      %v4729 = vld [vmem:[%s5 + $0x2d0] sm:$0xff]
      %v4730 = vld [vmem:[%s5 + $0x2d8] sm:$0xff]
      %v4731 = vld [vmem:[%s5 + $0x2e0] sm:$0xff]
      %v4732 = vld [vmem:[%s5 + $0x2e8] sm:$0xff]
      %v4733 = vld [vmem:[%s5 + $0x2f0] sm:$0xff]
      %v4734 = vld [vmem:[%s5 + $0x2f8] sm:$0xff]
      %v4735 = vld [vmem:[%s5 + $0x300] sm:$0xff]
      %v4736 = vld [vmem:[%s5 + $0x308] sm:$0xff]
      %v4737 = vld [vmem:[%s5 + $0x310] sm:$0xff]
      %v4738 = vld [vmem:[%s5 + $0x318] sm:$0xff]
      %v4739 = vld [vmem:[%s5 + $0x320] sm:$0xff]
      %v4740 = vld [vmem:[%s5 + $0x328] sm:$0xff]
      %v4741 = vld [vmem:[%s5 + $0x330] sm:$0xff]
      %v4742 = vld [vmem:[%s5 + $0x338] sm:$0xff]
      %v4743 = vld [vmem:[%s5 + $0x340] sm:$0xff]
      %v4744 = vld [vmem:[%s5 + $0x348] sm:$0xff]
      %v4745 = vld [vmem:[%s5 + $0x350] sm:$0xff]
      %v4746 = vld [vmem:[%s5 + $0x358] sm:$0xff]
      %v4747 = vld [vmem:[%s5 + $0x360] sm:$0xff]
      %v4748 = vld [vmem:[%s5 + $0x368] sm:$0xff]
      %v4749 = vld [vmem:[%s5 + $0x370] sm:$0xff]
      %v4750 = vld [vmem:[%s5 + $0x378] sm:$0xff]
      %v4751 = vld [vmem:[%s5 + $0x380] sm:$0xff]
      %v4752 = vld [vmem:[%s5 + $0x388] sm:$0xff]
      %v4753 = vld [vmem:[%s5 + $0x390] sm:$0xff]
      %v4754 = vld [vmem:[%s5 + $0x398] sm:$0xff]
      %v4755 = vld [vmem:[%s5 + $0x3a0] sm:$0xff]
      %v4756 = vld [vmem:[%s5 + $0x3a8] sm:$0xff]
      %v4757 = vld [vmem:[%s5 + $0x3b0] sm:$0xff]
      %v4758 = vld [vmem:[%s5 + $0x3b8] sm:$0xff]
      %v4759 = vld [vmem:[%s5 + $0x3c0] sm:$0xff]
      %v4760 = vld [vmem:[%s5 + $0x3c8] sm:$0xff]
      %v4761 = vld [vmem:[%s5 + $0x3d0] sm:$0xff]
      %v4762 = vld [vmem:[%s5 + $0x3d8] sm:$0xff]
      %v4763 = vld [vmem:[%s5 + $0x3e0] sm:$0xff]
      %v4764 = vld [vmem:[%s5 + $0x3e8] sm:$0xff]
      %v4765 = vld [vmem:[%s5 + $0x3f0] sm:$0xff]
      %v4766 = vld [vmem:[%s5 + $0x3f8] sm:$0xff]
      %v4767 = vld [vmem:[%s5 + $0x400] sm:$0xff]
      %v4768 = vld [vmem:[%s5 + $0x408] sm:$0xff]
      %v4769 = vld [vmem:[%s5 + $0x410] sm:$0xff]
      %v4770 = vld [vmem:[%s5 + $0x418] sm:$0xff]
      %v4771 = vld [vmem:[%s5 + $0x420] sm:$0xff]
      %v4772 = vld [vmem:[%s5 + $0x428] sm:$0xff]
      %v4773 = vld [vmem:[%s5 + $0x430] sm:$0xff]
      %v4774 = vld [vmem:[%s5 + $0x438] sm:$0xff]
      %v4775 = vld [vmem:[%s5 + $0x440] sm:$0xff]
      %v4776 = vld [vmem:[%s5 + $0x448] sm:$0xff]
      %v4777 = vld [vmem:[%s5 + $0x450] sm:$0xff]
      %v4778 = vld [vmem:[%s5 + $0x458] sm:$0xff]
      %v4779 = vld [vmem:[%s5 + $0x460] sm:$0xff]
      %v4780 = vld [vmem:[%s5 + $0x468] sm:$0xff]
      %v4781 = vld [vmem:[%s5 + $0x470] sm:$0xff]
      %v4782 = vld [vmem:[%s5 + $0x478] sm:$0xff]
      %v4783 = vld [vmem:[%s6] sm:$0x3]
      %v4785 = vlaneseq
      %v4786 = vshrl.u32 %v4785, 7
      %v4787 = vsub.s32 0, %v4786
      %v4788 = vrot.slane %v4783, %v4787
      %v4789 = vlaneseq
      %v4790 = vshrl.u32 %v4789, 7
      %v4791 = vsub.s32 1, %v4790
      %v4792 = vrot.slane %v4783, %v4791
      %v4795 = vpack.c.b16 %v4615, %v4612
      %v4796 = vpack.c.b16 %v4616, %v4613
      %v4797 = vpack.c.b16 %v4617, %v4614
      %v4798 = vpack.c.b16 %v4618, %v4615
      %v4799 = vpack.c.b16 %v4619, %v4616
      %v4800 = vpack.c.b16 %v4620, %v4617
      %v4801 = vpack.c.b16 %v4621, %v4618
      %v4802 = vpack.c.b16 %v4622, %v4619
      %v4803 = vpack.c.b16 %v4623, %v4620
      %v4804 = vpack.c.b16 %v4624, %v4621
      %v4805 = vpack.c.b16 %v4625, %v4622
      %v4806 = vpack.c.b16 %v4626, %v4623
      %v4807 = vpack.c.b16 %v4627, %v4624
      %v4808 = vpack.c.b16 %v4628, %v4625
      %v4809 = vpack.c.b16 %v4629, %v4626
      %v4810 = vpack.c.b16 %v4630, %v4627
      %v4811 = vpack.c.b16 %v4631, %v4628
      %v4812 = vpack.c.b16 %v4632, %v4629
      %v4813 = vpack.c.b16 %v4633, %v4630
      %v4814 = vpack.c.b16 %v4634, %v4631
      %v4815 = vpack.c.b16 %v4635, %v4632
      %v4816 = vpack.c.b16 %v4636, %v4633
      %v4817 = vpack.c.b16 %v4637, %v4634
      %v4818 = vpack.c.b16 %v4638, %v4635
      %v4819 = vpack.c.b16 %v4612, %v4636
      %v4820 = vpack.c.b16 %v4613, %v4637
      %v4821 = vpack.c.b16 %v4614, %v4638
      %v4993 = vunpack.c.l.b16 %v4639
      %v4994 = vunpack.c.h.b16 %v4639
      %v4995 = vunpack.c.l.b16 %v4640
      %v4996 = vunpack.c.h.b16 %v4640
      %v4997 = vunpack.c.l.b16 %v4641
      %v4998 = vunpack.c.h.b16 %v4641
      %v4999 = vunpack.c.l.b16 %v4642
      %v5000 = vunpack.c.h.b16 %v4642
      %v5001 = vunpack.c.l.b16 %v4643
      %v5002 = vunpack.c.h.b16 %v4643
      %v5003 = vunpack.c.l.b16 %v4644
      %v5004 = vunpack.c.h.b16 %v4644
      %v5005 = vunpack.c.l.b16 %v4645
      %v5006 = vunpack.c.h.b16 %v4645
      %v5007 = vunpack.c.l.b16 %v4646
      %v5008 = vunpack.c.h.b16 %v4646
      %v5009 = vunpack.c.l.b16 %v4647
      %v5010 = vunpack.c.h.b16 %v4647
      %v5011 = vunpack.c.l.b16 %v4648
      %v5012 = vunpack.c.h.b16 %v4648
      %v5013 = vunpack.c.l.b16 %v4649
      %v5014 = vunpack.c.h.b16 %v4649
      %v5015 = vunpack.c.l.b16 %v4650
      %v5016 = vunpack.c.h.b16 %v4650
      %v5017 = vunpack.c.l.b16 %v4651
      %v5018 = vunpack.c.h.b16 %v4651
      %v5019 = vunpack.c.l.b16 %v4652
      %v5020 = vunpack.c.h.b16 %v4652
      %v5021 = vunpack.c.l.b16 %v4653
      %v5022 = vunpack.c.h.b16 %v4653
      %v5023 = vunpack.c.l.b16 %v4654
      %v5024 = vunpack.c.h.b16 %v4654
      %v5025 = vunpack.c.l.b16 %v4655
      %v5026 = vunpack.c.h.b16 %v4655
      %v5027 = vunpack.c.l.b16 %v4656
      %v5028 = vunpack.c.h.b16 %v4656
      %v5029 = vunpack.c.l.b16 %v4657
      %v5030 = vunpack.c.h.b16 %v4657
      %v5031 = vunpack.c.l.b16 %v4658
      %v5032 = vunpack.c.h.b16 %v4658
      %v5033 = vunpack.c.l.b16 %v4659
      %v5034 = vunpack.c.h.b16 %v4659
      %v5035 = vunpack.c.l.b16 %v4660
      %v5036 = vunpack.c.h.b16 %v4660
      %v5037 = vunpack.c.l.b16 %v4661
      %v5038 = vunpack.c.h.b16 %v4661
      %v5039 = vunpack.c.l.b16 %v4662
      %v5040 = vunpack.c.h.b16 %v4662
      %v5041 = vunpack.c.l.b16 %v4663
      %v5042 = vunpack.c.h.b16 %v4663
      %v5043 = vunpack.c.l.b16 %v4664
      %v5044 = vunpack.c.h.b16 %v4664
      %v5045 = vunpack.c.l.b16 %v4665
      %v5046 = vunpack.c.h.b16 %v4665
      %v5047 = vunpack.c.l.b16 %v4666
      %v5048 = vunpack.c.h.b16 %v4666
      %v5049 = vunpack.c.l.b16 %v4667
      %v5050 = vunpack.c.h.b16 %v4667
      %v5051 = vunpack.c.l.b16 %v4668
      %v5052 = vunpack.c.h.b16 %v4668
      %v5053 = vunpack.c.l.b16 %v4669
      %v5054 = vunpack.c.h.b16 %v4669
      %v5055 = vunpack.c.l.b16 %v4670
      %v5056 = vunpack.c.h.b16 %v4670
      %v5057 = vunpack.c.l.b16 %v4671
      %v5058 = vunpack.c.h.b16 %v4671
      %v5059 = vunpack.c.l.b16 %v4672
      %v5060 = vunpack.c.h.b16 %v4672
      %v5061 = vunpack.c.l.b16 %v4673
      %v5062 = vunpack.c.h.b16 %v4673
      %v5063 = vunpack.c.l.b16 %v4674
      %v5064 = vunpack.c.h.b16 %v4674
      %v5065 = vunpack.c.l.b16 %v4675
      %v5066 = vunpack.c.h.b16 %v4675
      %v5067 = vunpack.c.l.b16 %v4676
      %v5068 = vunpack.c.h.b16 %v4676
      %v5069 = vunpack.c.l.b16 %v4677
      %v5070 = vunpack.c.h.b16 %v4677
      %v5071 = vunpack.c.l.b16 %v4678
      %v5072 = vunpack.c.h.b16 %v4678
      %v5073 = vunpack.c.l.b16 %v4679
      %v5074 = vunpack.c.h.b16 %v4679
      %v5075 = vunpack.c.l.b16 %v4680
      %v5076 = vunpack.c.h.b16 %v4680
      %v5077 = vunpack.c.l.b16 %v4681
      %v5078 = vunpack.c.h.b16 %v4681
      %v5079 = vunpack.c.l.b16 %v4682
      %v5080 = vunpack.c.h.b16 %v4682
      %v5081 = vunpack.c.l.b16 %v4683
      %v5082 = vunpack.c.h.b16 %v4683
      %v5083 = vunpack.c.l.b16 %v4684
      %v5084 = vunpack.c.h.b16 %v4684
      %v5085 = vunpack.c.l.b16 %v4685
      %v5086 = vunpack.c.h.b16 %v4685
      %v5087 = vunpack.c.l.b16 %v4686
      %v5088 = vunpack.c.h.b16 %v4686
      %v5089 = vunpack.c.l.b16 %v4687
      %v5090 = vunpack.c.h.b16 %v4687
      %v5091 = vunpack.c.l.b16 %v4688
      %v5092 = vunpack.c.h.b16 %v4688
      %v5093 = vunpack.c.l.b16 %v4689
      %v5094 = vunpack.c.h.b16 %v4689
      %v5095 = vunpack.c.l.b16 %v4690
      %v5096 = vunpack.c.h.b16 %v4690
      %v5097 = vunpack.c.l.b16 %v4691
      %v5098 = vunpack.c.h.b16 %v4691
      %v5099 = vunpack.c.l.b16 %v4692
      %v5100 = vunpack.c.h.b16 %v4692
      %v5101 = vunpack.c.l.b16 %v4693
      %v5102 = vunpack.c.h.b16 %v4693
      %v5103 = vunpack.c.l.b16 %v4694
      %v5104 = vunpack.c.h.b16 %v4694
      %v5105 = vunpack.c.l.b16 %v4695
      %v5106 = vunpack.c.h.b16 %v4695
      %v5107 = vunpack.c.l.b16 %v4696
      %v5108 = vunpack.c.h.b16 %v4696
      %v5109 = vunpack.c.l.b16 %v4697
      %v5110 = vunpack.c.h.b16 %v4697
      %v5111 = vunpack.c.l.b16 %v4698
      %v5112 = vunpack.c.h.b16 %v4698
      %v5113 = vunpack.c.l.b16 %v4699
      %v5114 = vunpack.c.h.b16 %v4699
      %v5115 = vunpack.c.l.b16 %v4700
      %v5116 = vunpack.c.h.b16 %v4700
      %v5117 = vunpack.c.l.b16 %v4701
      %v5118 = vunpack.c.h.b16 %v4701
      %v5119 = vunpack.c.l.b16 %v4702
      %v5120 = vunpack.c.h.b16 %v4702
      %v5121 = vunpack.c.l.b16 %v4703
      %v5122 = vunpack.c.h.b16 %v4703
      %v5123 = vunpack.c.l.b16 %v4704
      %v5124 = vunpack.c.h.b16 %v4704
      %v5125 = vunpack.c.l.b16 %v4705
      %v5126 = vunpack.c.h.b16 %v4705
      %v5127 = vunpack.c.l.b16 %v4706
      %v5128 = vunpack.c.h.b16 %v4706
      %v5129 = vunpack.c.l.b16 %v4707
      %v5130 = vunpack.c.h.b16 %v4707
      %v5131 = vunpack.c.l.b16 %v4708
      %v5132 = vunpack.c.h.b16 %v4708
      %v5133 = vunpack.c.l.b16 %v4709
      %v5134 = vunpack.c.h.b16 %v4709
      %v5135 = vunpack.c.l.b16 %v4710
      %v5136 = vunpack.c.h.b16 %v4710
      %v5137 = vunpack.c.l.b16 %v4711
      %v5138 = vunpack.c.h.b16 %v4711
      %v5139 = vunpack.c.l.b16 %v4712
      %v5140 = vunpack.c.h.b16 %v4712
      %v5141 = vunpack.c.l.b16 %v4713
      %v5142 = vunpack.c.h.b16 %v4713
      %v5143 = vunpack.c.l.b16 %v4714
      %v5144 = vunpack.c.h.b16 %v4714
      %v5145 = vunpack.c.l.b16 %v4715
      %v5146 = vunpack.c.h.b16 %v4715
      %v5147 = vunpack.c.l.b16 %v4716
      %v5148 = vunpack.c.h.b16 %v4716
      %v5149 = vunpack.c.l.b16 %v4717
      %v5150 = vunpack.c.h.b16 %v4717
      %v5151 = vunpack.c.l.b16 %v4718
      %v5152 = vunpack.c.h.b16 %v4718
      %v5153 = vunpack.c.l.b16 %v4719
      %v5154 = vunpack.c.h.b16 %v4719
      %v5155 = vunpack.c.l.b16 %v4720
      %v5156 = vunpack.c.h.b16 %v4720
      %v5157 = vunpack.c.l.b16 %v4721
      %v5158 = vunpack.c.h.b16 %v4721
      %v5159 = vunpack.c.l.b16 %v4722
      %v5160 = vunpack.c.h.b16 %v4722
      %v5161 = vunpack.c.l.b16 %v4723
      %v5162 = vunpack.c.h.b16 %v4723
      %v5163 = vunpack.c.l.b16 %v4724
      %v5164 = vunpack.c.h.b16 %v4724
      %v5165 = vunpack.c.l.b16 %v4725
      %v5166 = vunpack.c.h.b16 %v4725
      %v5167 = vunpack.c.l.b16 %v4726
      %v5168 = vunpack.c.h.b16 %v4726
      %v5169 = vunpack.c.l.b16 %v4727
      %v5170 = vunpack.c.h.b16 %v4727
      %v5171 = vunpack.c.l.b16 %v4728
      %v5172 = vunpack.c.h.b16 %v4728
      %v5173 = vunpack.c.l.b16 %v4729
      %v5174 = vunpack.c.h.b16 %v4729
      %v5175 = vunpack.c.l.b16 %v4730
      %v5176 = vunpack.c.h.b16 %v4730
      %v5177 = vunpack.c.l.b16 %v4731
      %v5178 = vunpack.c.h.b16 %v4731
      %v5179 = vunpack.c.l.b16 %v4732
      %v5180 = vunpack.c.h.b16 %v4732
      %v5181 = vunpack.c.l.b16 %v4733
      %v5182 = vunpack.c.h.b16 %v4733
      %v5183 = vunpack.c.l.b16 %v4734
      %v5184 = vunpack.c.h.b16 %v4734
      %v5185 = vunpack.c.l.b16 %v4735
      %v5186 = vunpack.c.h.b16 %v4735
      %v5187 = vunpack.c.l.b16 %v4736
      %v5188 = vunpack.c.h.b16 %v4736
      %v5189 = vunpack.c.l.b16 %v4737
      %v5190 = vunpack.c.h.b16 %v4737
      %v5191 = vunpack.c.l.b16 %v4738
      %v5192 = vunpack.c.h.b16 %v4738
      %v5193 = vunpack.c.l.b16 %v4739
      %v5194 = vunpack.c.h.b16 %v4739
      %v5195 = vunpack.c.l.b16 %v4740
      %v5196 = vunpack.c.h.b16 %v4740
      %v5197 = vunpack.c.l.b16 %v4741
      %v5198 = vunpack.c.h.b16 %v4741
      %v5199 = vunpack.c.l.b16 %v4742
      %v5200 = vunpack.c.h.b16 %v4742
      %v5201 = vunpack.c.l.b16 %v4743
      %v5202 = vunpack.c.h.b16 %v4743
      %v5203 = vunpack.c.l.b16 %v4744
      %v5204 = vunpack.c.h.b16 %v4744
      %v5205 = vunpack.c.l.b16 %v4745
      %v5206 = vunpack.c.h.b16 %v4745
      %v5207 = vunpack.c.l.b16 %v4746
      %v5208 = vunpack.c.h.b16 %v4746
      %v5209 = vunpack.c.l.b16 %v4747
      %v5210 = vunpack.c.h.b16 %v4747
      %v5211 = vunpack.c.l.b16 %v4748
      %v5212 = vunpack.c.h.b16 %v4748
      %v5213 = vunpack.c.l.b16 %v4749
      %v5214 = vunpack.c.h.b16 %v4749
      %v5215 = vunpack.c.l.b16 %v4750
      %v5216 = vunpack.c.h.b16 %v4750
      %v5217 = vunpack.c.l.b16 %v4751
      %v5218 = vunpack.c.h.b16 %v4751
      %v5219 = vunpack.c.l.b16 %v4752
      %v5220 = vunpack.c.h.b16 %v4752
      %v5221 = vunpack.c.l.b16 %v4753
      %v5222 = vunpack.c.h.b16 %v4753
      %v5223 = vunpack.c.l.b16 %v4754
      %v5224 = vunpack.c.h.b16 %v4754
      %v5225 = vunpack.c.l.b16 %v4755
      %v5226 = vunpack.c.h.b16 %v4755
      %v5227 = vunpack.c.l.b16 %v4756
      %v5228 = vunpack.c.h.b16 %v4756
      %v5229 = vunpack.c.l.b16 %v4757
      %v5230 = vunpack.c.h.b16 %v4757
      %v5231 = vunpack.c.l.b16 %v4758
      %v5232 = vunpack.c.h.b16 %v4758
      %v5233 = vunpack.c.l.b16 %v4759
      %v5234 = vunpack.c.h.b16 %v4759
      %v5235 = vunpack.c.l.b16 %v4760
      %v5236 = vunpack.c.h.b16 %v4760
      %v5237 = vunpack.c.l.b16 %v4761
      %v5238 = vunpack.c.h.b16 %v4761
      %v5239 = vunpack.c.l.b16 %v4762
      %v5240 = vunpack.c.h.b16 %v4762
      %v5241 = vunpack.c.l.b16 %v4763
      %v5242 = vunpack.c.h.b16 %v4763
      %v5243 = vunpack.c.l.b16 %v4764
      %v5244 = vunpack.c.h.b16 %v4764
      %v5245 = vunpack.c.l.b16 %v4765
      %v5246 = vunpack.c.h.b16 %v4765
      %v5247 = vunpack.c.l.b16 %v4766
      %v5248 = vunpack.c.h.b16 %v4766
      %v5249 = vunpack.c.l.b16 %v4767
      %v5250 = vunpack.c.h.b16 %v4767
      %v5251 = vunpack.c.l.b16 %v4768
      %v5252 = vunpack.c.h.b16 %v4768
      %v5253 = vunpack.c.l.b16 %v4769
      %v5254 = vunpack.c.h.b16 %v4769
      %v5255 = vunpack.c.l.b16 %v4770
      %v5256 = vunpack.c.h.b16 %v4770
      %v5257 = vunpack.c.l.b16 %v4771
      %v5258 = vunpack.c.h.b16 %v4771
      %v5259 = vunpack.c.l.b16 %v4772
      %v5260 = vunpack.c.h.b16 %v4772
      %v5261 = vunpack.c.l.b16 %v4773
      %v5262 = vunpack.c.h.b16 %v4773
      %v5263 = vunpack.c.l.b16 %v4774
      %v5264 = vunpack.c.h.b16 %v4774
      %v5265 = vunpack.c.l.b16 %v4775
      %v5266 = vunpack.c.h.b16 %v4775
      %v5267 = vunpack.c.l.b16 %v4776
      %v5268 = vunpack.c.h.b16 %v4776
      %v5269 = vunpack.c.l.b16 %v4777
      %v5270 = vunpack.c.h.b16 %v4777
      %v5271 = vunpack.c.l.b16 %v4778
      %v5272 = vunpack.c.h.b16 %v4778
      %v5273 = vunpack.c.l.b16 %v4779
      %v5274 = vunpack.c.h.b16 %v4779
      %v5275 = vunpack.c.l.b16 %v4780
      %v5276 = vunpack.c.h.b16 %v4780
      %v5277 = vunpack.c.l.b16 %v4781
      %v5278 = vunpack.c.h.b16 %v4781
      %v5279 = vunpack.c.l.b16 %v4782
      %v5280 = vunpack.c.h.b16 %v4782
      %v5281 = vpack.c.b16 %v4995, %v4993
      %v5282 = vpack.c.b16 %v4996, %v4994
      %v5283 = vpack.c.b16 %v4999, %v4997
      %v5284 = vpack.c.b16 %v5000, %v4998
      %v5285 = vpack.c.b16 %v5003, %v5001
      %v5286 = vpack.c.b16 %v5004, %v5002
      %v5287 = vpack.c.b16 %v5007, %v5005
      %v5288 = vpack.c.b16 %v5008, %v5006
      %v5289 = vpack.c.b16 %v5011, %v5009
      %v5290 = vpack.c.b16 %v5012, %v5010
      %v5291 = vpack.c.b16 %v5015, %v5013
      %v5292 = vpack.c.b16 %v5016, %v5014
      %v5293 = vpack.c.b16 %v5019, %v5017
      %v5294 = vpack.c.b16 %v5020, %v5018
      %v5295 = vpack.c.b16 %v5023, %v5021
      %v5296 = vpack.c.b16 %v5024, %v5022
      %v5297 = vpack.c.b16 %v5027, %v5025
      %v5298 = vpack.c.b16 %v5028, %v5026
      %v5299 = vpack.c.b16 %v5031, %v5029
      %v5300 = vpack.c.b16 %v5032, %v5030
      %v5301 = vpack.c.b16 %v5035, %v5033
      %v5302 = vpack.c.b16 %v5036, %v5034
      %v5303 = vpack.c.b16 %v5039, %v5037
      %v5304 = vpack.c.b16 %v5040, %v5038
      %v5305 = vpack.c.b16 %v5043, %v5041
      %v5306 = vpack.c.b16 %v5044, %v5042
      %v5307 = vpack.c.b16 %v5047, %v5045
      %v5308 = vpack.c.b16 %v5048, %v5046
      %v5309 = vpack.c.b16 %v5051, %v5049
      %v5310 = vpack.c.b16 %v5052, %v5050
      %v5311 = vpack.c.b16 %v5055, %v5053
      %v5312 = vpack.c.b16 %v5056, %v5054
      %v5313 = vpack.c.b16 %v5059, %v5057
      %v5314 = vpack.c.b16 %v5060, %v5058
      %v5315 = vpack.c.b16 %v5063, %v5061
      %v5316 = vpack.c.b16 %v5064, %v5062
      %v5317 = vpack.c.b16 %v5067, %v5065
      %v5318 = vpack.c.b16 %v5068, %v5066
      %v5319 = vpack.c.b16 %v5071, %v5069
      %v5320 = vpack.c.b16 %v5072, %v5070
      %v5321 = vpack.c.b16 %v5075, %v5073
      %v5322 = vpack.c.b16 %v5076, %v5074
      %v5323 = vpack.c.b16 %v5079, %v5077
      %v5324 = vpack.c.b16 %v5080, %v5078
      %v5325 = vpack.c.b16 %v5083, %v5081
      %v5326 = vpack.c.b16 %v5084, %v5082
      %v5327 = vpack.c.b16 %v5087, %v5085
      %v5328 = vpack.c.b16 %v5088, %v5086
      %v5329 = vpack.c.b16 %v5091, %v5089
      %v5330 = vpack.c.b16 %v5092, %v5090
      %v5331 = vpack.c.b16 %v5095, %v5093
      %v5332 = vpack.c.b16 %v5096, %v5094
      %v5333 = vpack.c.b16 %v5099, %v5097
      %v5334 = vpack.c.b16 %v5100, %v5098
      %v5335 = vpack.c.b16 %v5103, %v5101
      %v5336 = vpack.c.b16 %v5104, %v5102
      %v5337 = vpack.c.b16 %v5107, %v5105
      %v5338 = vpack.c.b16 %v5108, %v5106
      %v5339 = vpack.c.b16 %v5111, %v5109
      %v5340 = vpack.c.b16 %v5112, %v5110
      %v5341 = vpack.c.b16 %v5115, %v5113
      %v5342 = vpack.c.b16 %v5116, %v5114
      %v5343 = vpack.c.b16 %v5119, %v5117
      %v5344 = vpack.c.b16 %v5120, %v5118
      %v5345 = vpack.c.b16 %v5123, %v5121
      %v5346 = vpack.c.b16 %v5124, %v5122
      %v5347 = vpack.c.b16 %v5127, %v5125
      %v5348 = vpack.c.b16 %v5128, %v5126
      %v5349 = vpack.c.b16 %v5131, %v5129
      %v5350 = vpack.c.b16 %v5132, %v5130
      %v5351 = vpack.c.b16 %v5135, %v5133
      %v5352 = vpack.c.b16 %v5136, %v5134
      %v5353 = vpack.c.b16 %v5139, %v5137
      %v5354 = vpack.c.b16 %v5140, %v5138
      %v5355 = vpack.c.b16 %v5143, %v5141
      %v5356 = vpack.c.b16 %v5144, %v5142
      %v5357 = vpack.c.b16 %v5147, %v5145
      %v5358 = vpack.c.b16 %v5148, %v5146
      %v5359 = vpack.c.b16 %v5151, %v5149
      %v5360 = vpack.c.b16 %v5152, %v5150
      %v5361 = vpack.c.b16 %v5155, %v5153
      %v5362 = vpack.c.b16 %v5156, %v5154
      %v5363 = vpack.c.b16 %v5159, %v5157
      %v5364 = vpack.c.b16 %v5160, %v5158
      %v5365 = vpack.c.b16 %v5163, %v5161
      %v5366 = vpack.c.b16 %v5164, %v5162
      %v5367 = vpack.c.b16 %v5167, %v5165
      %v5368 = vpack.c.b16 %v5168, %v5166
      %v5369 = vpack.c.b16 %v5171, %v5169
      %v5370 = vpack.c.b16 %v5172, %v5170
      %v5371 = vpack.c.b16 %v5175, %v5173
      %v5372 = vpack.c.b16 %v5176, %v5174
      %v5373 = vpack.c.b16 %v5179, %v5177
      %v5374 = vpack.c.b16 %v5180, %v5178
      %v5375 = vpack.c.b16 %v5183, %v5181
      %v5376 = vpack.c.b16 %v5184, %v5182
      %v5377 = vpack.c.b16 %v5187, %v5185
      %v5378 = vpack.c.b16 %v5188, %v5186
      %v5379 = vpack.c.b16 %v5191, %v5189
      %v5380 = vpack.c.b16 %v5192, %v5190
      %v5381 = vpack.c.b16 %v5195, %v5193
      %v5382 = vpack.c.b16 %v5196, %v5194
      %v5383 = vpack.c.b16 %v5199, %v5197
      %v5384 = vpack.c.b16 %v5200, %v5198
      %v5385 = vpack.c.b16 %v5203, %v5201
      %v5386 = vpack.c.b16 %v5204, %v5202
      %v5387 = vpack.c.b16 %v5207, %v5205
      %v5388 = vpack.c.b16 %v5208, %v5206
      %v5389 = vpack.c.b16 %v5211, %v5209
      %v5390 = vpack.c.b16 %v5212, %v5210
      %v5391 = vpack.c.b16 %v5215, %v5213
      %v5392 = vpack.c.b16 %v5216, %v5214
      %v5393 = vpack.c.b16 %v5219, %v5217
      %v5394 = vpack.c.b16 %v5220, %v5218
      %v5395 = vpack.c.b16 %v5223, %v5221
      %v5396 = vpack.c.b16 %v5224, %v5222
      %v5397 = vpack.c.b16 %v5227, %v5225
      %v5398 = vpack.c.b16 %v5228, %v5226
      %v5399 = vpack.c.b16 %v5231, %v5229
      %v5400 = vpack.c.b16 %v5232, %v5230
      %v5401 = vpack.c.b16 %v5235, %v5233
      %v5402 = vpack.c.b16 %v5236, %v5234
      %v5403 = vpack.c.b16 %v5239, %v5237
      %v5404 = vpack.c.b16 %v5240, %v5238
      %v5405 = vpack.c.b16 %v5243, %v5241
      %v5406 = vpack.c.b16 %v5244, %v5242
      %v5407 = vpack.c.b16 %v5247, %v5245
      %v5408 = vpack.c.b16 %v5248, %v5246
      %v5409 = vpack.c.b16 %v5251, %v5249
      %v5410 = vpack.c.b16 %v5252, %v5250
      %v5411 = vpack.c.b16 %v5255, %v5253
      %v5412 = vpack.c.b16 %v5256, %v5254
      %v5413 = vpack.c.b16 %v5259, %v5257
      %v5414 = vpack.c.b16 %v5260, %v5258
      %v5415 = vpack.c.b16 %v5263, %v5261
      %v5416 = vpack.c.b16 %v5264, %v5262
      %v5417 = vpack.c.b16 %v5267, %v5265
      %v5418 = vpack.c.b16 %v5268, %v5266
      %v5419 = vpack.c.b16 %v5271, %v5269
      %v5420 = vpack.c.b16 %v5272, %v5270
      %v5421 = vpack.c.b16 %v5275, %v5273
      %v5422 = vpack.c.b16 %v5276, %v5274
      %v5423 = vpack.c.b16 %v5279, %v5277
      %v5424 = vpack.c.b16 %v5280, %v5278
      %5569 = vmatprep.subr.bf16.mxu0 %v5282
      %5570 = vmatpush1.bf16.msra.mxu0 %v5281
      %5571 = vmatprep.subr.bf16.mxu0 %v5284
      %5572 = vmatpush1.bf16.msra.mxu0 %v5283
      %5573 = vmatprep.subr.bf16.mxu0 %v5286
      %5574 = vmatpush1.bf16.msra.mxu0 %v5285
      %5575 = vmatprep.subr.bf16.mxu0 %v5288
      %5576 = vmatpush1.bf16.msra.mxu0 %v5287
      %5577 = vmatprep.subr.bf16.mxu0 %v5290
      %5578 = vmatpush1.bf16.msra.mxu0 %v5289
      %5579 = vmatprep.subr.bf16.mxu0 %v5292
      %5580 = vmatpush1.bf16.msra.mxu0 %v5291
      %5581 = vmatprep.subr.bf16.mxu0 %v5294
      %5582 = vmatpush1.bf16.msra.mxu0 %v5293
      %5583 = vmatprep.subr.bf16.mxu0 %v5296
      %5584 = vmatpush1.bf16.msra.mxu0 %v5295
      %5585 = vmatprep.subr.bf16.mxu0 %v5298
      %5586 = vmatpush1.bf16.msra.mxu0 %v5297
      %5587 = vmatprep.subr.bf16.mxu0 %v5300
      %5588 = vmatpush1.bf16.msra.mxu0 %v5299
      %5589 = vmatprep.subr.bf16.mxu0 %v5302
      %5590 = vmatpush1.bf16.msra.mxu0 %v5301
      %5591 = vmatprep.subr.bf16.mxu0 %v5304
      %5592 = vmatpush1.bf16.msra.mxu0 %v5303
      %5593 = vmatprep.subr.bf16.mxu0 %v5306
      %5594 = vmatpush1.bf16.msra.mxu0 %v5305
      %5595 = vmatprep.subr.bf16.mxu0 %v5308
      %5596 = vmatpush1.bf16.msra.mxu0 %v5307
      %5597 = vmatprep.subr.bf16.mxu0 %v5310
      %5598 = vmatpush1.bf16.msra.mxu0 %v5309
      %5599 = vmatprep.subr.bf16.mxu0 %v5312
      %5600 = vmatpush1.bf16.msra.mxu0 %v5311
      %5601 = vmatprep.mubr.bf16.mxu0 %v4796
      %5602 = vmatmul.mubr.bf16.gmra.mrb[0].mxu0 %v4795
      %v5603 = vpop.f32.mrb[0].mxu0
      %v5604 = vadd.f32 %v4788, %v5603
      %v5605 = vpop.f32.mrb[0].mxu0
      %v5606 = vadd.f32 %v4792, %v5605
      %v5607 = vpop.f32.mrb[0].mxu0
      %v5608 = vadd.f32 %v4788, %v5607
      %v5609 = vpop.f32.mrb[0].mxu0
      %v5610 = vadd.f32 %v4792, %v5609
      %5611 = vmatprep.mubr.bf16.mxu0 %v4802
      %5612 = vmatmul.mubr.bf16.gmra.mrb[0].mxu0 %v4801
      %v5613 = vpop.f32.mrb[0].mxu0
      %v5614 = vadd.f32 %v4788, %v5613
      %v5615 = vpop.f32.mrb[0].mxu0
      %v5616 = vadd.f32 %v4792, %v5615
      %v5617 = vpop.f32.mrb[0].mxu0
      %v5618 = vadd.f32 %v4788, %v5617
      %v5619 = vpop.f32.mrb[0].mxu0
      %v5620 = vadd.f32 %v4792, %v5619
      %5621 = vmatprep.mubr.bf16.mxu0 %v4808
      %5622 = vmatmul.mubr.bf16.gmra.mrb[0].mxu0 %v4807
      %v5623 = vpop.f32.mrb[0].mxu0
      %v5624 = vadd.f32 %v4788, %v5623
      %v5625 = vpop.f32.mrb[0].mxu0
      %v5626 = vadd.f32 %v4792, %v5625
      %v5627 = vpop.f32.mrb[0].mxu0
      %v5628 = vadd.f32 %v4788, %v5627
      %v5629 = vpop.f32.mrb[0].mxu0
      %v5630 = vadd.f32 %v4792, %v5629
      %5631 = vmatprep.mubr.bf16.mxu0 %v4814
      %5632 = vmatmul.mubr.bf16.gmra.mrb[0].mxu0 %v4813
      %v5633 = vpop.f32.mrb[0].mxu0
      %v5634 = vadd.f32 %v4788, %v5633
      %v5635 = vpop.f32.mrb[0].mxu0
      %v5636 = vadd.f32 %v4792, %v5635
      %v5637 = vpop.f32.mrb[0].mxu0
      %v5638 = vadd.f32 %v4788, %v5637
      %v5639 = vpop.f32.mrb[0].mxu0
      %v5640 = vadd.f32 %v4792, %v5639
      %5641 = vdwg.mxu0
      %5642 = vmatprep.subr.bf16.mxu0 %v5314
      %5643 = vmatpush1.bf16.msra.mxu0 %v5313
      %5644 = vmatprep.subr.bf16.mxu0 %v5316
      %5645 = vmatpush1.bf16.msra.mxu0 %v5315
      %5646 = vmatprep.subr.bf16.mxu0 %v5318
      %5647 = vmatpush1.bf16.msra.mxu0 %v5317
      %5648 = vmatprep.subr.bf16.mxu0 %v5320
      %5649 = vmatpush1.bf16.msra.mxu0 %v5319
      %5650 = vmatprep.subr.bf16.mxu0 %v5322
      %5651 = vmatpush1.bf16.msra.mxu0 %v5321
      %5652 = vmatprep.subr.bf16.mxu0 %v5324
      %5653 = vmatpush1.bf16.msra.mxu0 %v5323
      %5654 = vmatprep.subr.bf16.mxu0 %v5326
      %5655 = vmatpush1.bf16.msra.mxu0 %v5325
      %5656 = vmatprep.subr.bf16.mxu0 %v5328
      %5657 = vmatpush1.bf16.msra.mxu0 %v5327
      %5658 = vmatprep.subr.bf16.mxu0 %v5330
      %5659 = vmatpush1.bf16.msra.mxu0 %v5329
      %5660 = vmatprep.subr.bf16.mxu0 %v5332
      %5661 = vmatpush1.bf16.msra.mxu0 %v5331
      %5662 = vmatprep.subr.bf16.mxu0 %v5334
      %5663 = vmatpush1.bf16.msra.mxu0 %v5333
      %5664 = vmatprep.subr.bf16.mxu0 %v5336
      %5665 = vmatpush1.bf16.msra.mxu0 %v5335
      %5666 = vmatprep.subr.bf16.mxu0 %v5338
      %5667 = vmatpush1.bf16.msra.mxu0 %v5337
      %5668 = vmatprep.subr.bf16.mxu0 %v5340
      %5669 = vmatpush1.bf16.msra.mxu0 %v5339
      %5670 = vmatprep.subr.bf16.mxu0 %v5342
      %5671 = vmatpush1.bf16.msra.mxu0 %v5341
      %5672 = vmatprep.subr.bf16.mxu0 %v5344
      %5673 = vmatpush1.bf16.msra.mxu0 %v5343
      %5674 = vmatprep.mubr.bf16.mxu0 %v4798
      %5675 = vmatmul.mubr.bf16.gmra.mrb[0].mxu0 %v4797
      %v5676 = vpop.f32.mrb[0].mxu0
      %v5677 = vadd.f32 %v5604, %v5676
      %v5678 = vpop.f32.mrb[0].mxu0
      %v5679 = vadd.f32 %v5606, %v5678
      %v5680 = vpop.f32.mrb[0].mxu0
      %v5681 = vadd.f32 %v5608, %v5680
      %v5682 = vpop.f32.mrb[0].mxu0
      %v5683 = vadd.f32 %v5610, %v5682
      %5684 = vmatprep.mubr.bf16.mxu0 %v4804
      %5685 = vmatmul.mubr.bf16.gmra.mrb[0].mxu0 %v4803
      %v5686 = vpop.f32.mrb[0].mxu0
      %v5687 = vadd.f32 %v5614, %v5686
      %v5688 = vpop.f32.mrb[0].mxu0
      %v5689 = vadd.f32 %v5616, %v5688
      %v5690 = vpop.f32.mrb[0].mxu0
      %v5691 = vadd.f32 %v5618, %v5690
      %v5692 = vpop.f32.mrb[0].mxu0
      %v5693 = vadd.f32 %v5620, %v5692
      %5694 = vmatprep.mubr.bf16.mxu0 %v4810
      %5695 = vmatmul.mubr.bf16.gmra.mrb[0].mxu0 %v4809
      %v5696 = vpop.f32.mrb[0].mxu0
      %v5697 = vadd.f32 %v5624, %v5696
      %v5698 = vpop.f32.mrb[0].mxu0
      %v5699 = vadd.f32 %v5626, %v5698
      %v5700 = vpop.f32.mrb[0].mxu0
      %v5701 = vadd.f32 %v5628, %v5700
      %v5702 = vpop.f32.mrb[0].mxu0
      %v5703 = vadd.f32 %v5630, %v5702
      %5704 = vmatprep.mubr.bf16.mxu0 %v4816
      %5705 = vmatmul.mubr.bf16.gmra.mrb[0].mxu0 %v4815
      %v5706 = vpop.f32.mrb[0].mxu0
      %v5707 = vadd.f32 %v5634, %v5706
      %v5708 = vpop.f32.mrb[0].mxu0
      %v5709 = vadd.f32 %v5636, %v5708
      %v5710 = vpop.f32.mrb[0].mxu0
      %v5711 = vadd.f32 %v5638, %v5710
      %v5712 = vpop.f32.mrb[0].mxu0
      %v5713 = vadd.f32 %v5640, %v5712
      %5714 = vdwg.mxu0
      %5715 = vmatprep.subr.bf16.mxu0 %v5346
      %5716 = vmatpush1.bf16.msra.mxu0 %v5345
      %5717 = vmatprep.subr.bf16.mxu0 %v5348
      %5718 = vmatpush1.bf16.msra.mxu0 %v5347
      %5719 = vmatprep.subr.bf16.mxu0 %v5350
      %5720 = vmatpush1.bf16.msra.mxu0 %v5349
      %5721 = vmatprep.subr.bf16.mxu0 %v5352
      %5722 = vmatpush1.bf16.msra.mxu0 %v5351
      %5723 = vmatprep.subr.bf16.mxu0 %v5354
      %5724 = vmatpush1.bf16.msra.mxu0 %v5353
      %5725 = vmatprep.subr.bf16.mxu0 %v5356
      %5726 = vmatpush1.bf16.msra.mxu0 %v5355
      %5727 = vmatprep.subr.bf16.mxu0 %v5358
      %5728 = vmatpush1.bf16.msra.mxu0 %v5357
      %5729 = vmatprep.subr.bf16.mxu0 %v5360
      %5730 = vmatpush1.bf16.msra.mxu0 %v5359
      %5731 = vmatprep.subr.bf16.mxu0 %v5362
      %5732 = vmatpush1.bf16.msra.mxu0 %v5361
      %5733 = vmatprep.subr.bf16.mxu0 %v5364
      %5734 = vmatpush1.bf16.msra.mxu0 %v5363
      %5735 = vmatprep.subr.bf16.mxu0 %v5366
      %5736 = vmatpush1.bf16.msra.mxu0 %v5365
      %5737 = vmatprep.subr.bf16.mxu0 %v5368
      %5738 = vmatpush1.bf16.msra.mxu0 %v5367
      %5739 = vmatprep.subr.bf16.mxu0 %v5370
      %5740 = vmatpush1.bf16.msra.mxu0 %v5369
      %5741 = vmatprep.subr.bf16.mxu0 %v5372
      %5742 = vmatpush1.bf16.msra.mxu0 %v5371
      %5743 = vmatprep.subr.bf16.mxu0 %v5374
      %5744 = vmatpush1.bf16.msra.mxu0 %v5373
      %5745 = vmatprep.subr.bf16.mxu0 %v5376
      %5746 = vmatpush1.bf16.msra.mxu0 %v5375
      %5747 = vmatprep.mubr.bf16.mxu0 %v4800
      %5748 = vmatmul.mubr.bf16.gmra.mrb[0].mxu0 %v4799
      %v5749 = vpop.f32.mrb[0].mxu0
      %v5750 = vadd.f32 %v5677, %v5749
      %v5751 = vpop.f32.mrb[0].mxu0
      %v5752 = vadd.f32 %v5679, %v5751
      %v5753 = vpop.f32.mrb[0].mxu0
      %v5754 = vadd.f32 %v5681, %v5753
      %v5755 = vpop.f32.mrb[0].mxu0
      %v5756 = vadd.f32 %v5683, %v5755
      %5757 = vmatprep.mubr.bf16.mxu0 %v4806
      %5758 = vmatmul.mubr.bf16.gmra.mrb[0].mxu0 %v4805
      %v5759 = vpop.f32.mrb[0].mxu0
      %v5760 = vadd.f32 %v5687, %v5759
      %v5761 = vpop.f32.mrb[0].mxu0
      %v5762 = vadd.f32 %v5689, %v5761
      %v5763 = vpop.f32.mrb[0].mxu0
      %v5764 = vadd.f32 %v5691, %v5763
      %v5765 = vpop.f32.mrb[0].mxu0
      %v5766 = vadd.f32 %v5693, %v5765
      %5767 = vmatprep.mubr.bf16.mxu0 %v4812
      %5768 = vmatmul.mubr.bf16.gmra.mrb[0].mxu0 %v4811
      %v5769 = vpop.f32.mrb[0].mxu0
      %v5770 = vadd.f32 %v5697, %v5769
      %v5771 = vpop.f32.mrb[0].mxu0
      %v5772 = vadd.f32 %v5699, %v5771
      %v5773 = vpop.f32.mrb[0].mxu0
      %v5774 = vadd.f32 %v5701, %v5773
      %v5775 = vpop.f32.mrb[0].mxu0
      %v5776 = vadd.f32 %v5703, %v5775
      %5777 = vmatprep.mubr.bf16.mxu0 %v4818
      %5778 = vmatmul.mubr.bf16.gmra.mrb[0].mxu0 %v4817
      %v5779 = vpop.f32.mrb[0].mxu0
      %v5780 = vadd.f32 %v5707, %v5779
      %v5781 = vpop.f32.mrb[0].mxu0
      %v5782 = vadd.f32 %v5709, %v5781
      %v5783 = vpop.f32.mrb[0].mxu0
      %v5784 = vadd.f32 %v5711, %v5783
      %v5785 = vpop.f32.mrb[0].mxu0
      %v5786 = vadd.f32 %v5713, %v5785
      %5787 = vdwg.mxu0
      %5788 = vmatprep.subr.bf16.mxu0 %v5378
      %5789 = vmatpush1.bf16.msra.mxu0 %v5377
      %5790 = vmatprep.subr.bf16.mxu0 %v5380
      %5791 = vmatpush1.bf16.msra.mxu0 %v5379
      %5792 = vmatprep.subr.bf16.mxu0 %v5382
      %5793 = vmatpush1.bf16.msra.mxu0 %v5381
      %5794 = vmatprep.subr.bf16.mxu0 %v5384
      %5795 = vmatpush1.bf16.msra.mxu0 %v5383
      %5796 = vmatprep.subr.bf16.mxu0 %v5386
      %5797 = vmatpush1.bf16.msra.mxu0 %v5385
      %5798 = vmatprep.subr.bf16.mxu0 %v5388
      %5799 = vmatpush1.bf16.msra.mxu0 %v5387
      %5800 = vmatprep.subr.bf16.mxu0 %v5390
      %5801 = vmatpush1.bf16.msra.mxu0 %v5389
      %5802 = vmatprep.subr.bf16.mxu0 %v5392
      %5803 = vmatpush1.bf16.msra.mxu0 %v5391
      %5804 = vmatprep.subr.bf16.mxu0 %v5394
      %5805 = vmatpush1.bf16.msra.mxu0 %v5393
      %5806 = vmatprep.subr.bf16.mxu0 %v5396
      %5807 = vmatpush1.bf16.msra.mxu0 %v5395
      %5808 = vmatprep.subr.bf16.mxu0 %v5398
      %5809 = vmatpush1.bf16.msra.mxu0 %v5397
      %5810 = vmatprep.subr.bf16.mxu0 %v5400
      %5811 = vmatpush1.bf16.msra.mxu0 %v5399
      %5812 = vmatprep.subr.bf16.mxu0 %v5402
      %5813 = vmatpush1.bf16.msra.mxu0 %v5401
      %5814 = vmatprep.subr.bf16.mxu0 %v5404
      %5815 = vmatpush1.bf16.msra.mxu0 %v5403
      %5816 = vmatprep.subr.bf16.mxu0 %v5406
      %5817 = vmatpush1.bf16.msra.mxu0 %v5405
      %5818 = vmatprep.subr.bf16.mxu0 %v5408
      %5819 = vmatpush1.bf16.msra.mxu0 %v5407
      %5820 = vmatprep.mubr.bf16.mxu0 %v4802
      %5821 = vmatmul.mubr.bf16.gmra.mrb[0].mxu0 %v4801
      %v5822 = vpop.f32.mrb[0].mxu0
      %v5823 = vadd.f32 %v5750, %v5822
      %v5824 = vpop.f32.mrb[0].mxu0
      %v5825 = vadd.f32 %v5752, %v5824
      %v5826 = vpop.f32.mrb[0].mxu0
      %v5827 = vadd.f32 %v5754, %v5826
      %v5828 = vpop.f32.mrb[0].mxu0
      %v5829 = vadd.f32 %v5756, %v5828
      %5830 = vmatprep.mubr.bf16.mxu0 %v4808
      %5831 = vmatmul.mubr.bf16.gmra.mrb[0].mxu0 %v4807
      %v5832 = vpop.f32.mrb[0].mxu0
      %v5833 = vadd.f32 %v5760, %v5832
      %v5834 = vpop.f32.mrb[0].mxu0
      %v5835 = vadd.f32 %v5762, %v5834
      %v5836 = vpop.f32.mrb[0].mxu0
      %v5837 = vadd.f32 %v5764, %v5836
      %v5838 = vpop.f32.mrb[0].mxu0
      %v5839 = vadd.f32 %v5766, %v5838
      %5840 = vmatprep.mubr.bf16.mxu0 %v4814
      %5841 = vmatmul.mubr.bf16.gmra.mrb[0].mxu0 %v4813
      %v5842 = vpop.f32.mrb[0].mxu0
      %v5843 = vadd.f32 %v5770, %v5842
      %v5844 = vpop.f32.mrb[0].mxu0
      %v5845 = vadd.f32 %v5772, %v5844
      %v5846 = vpop.f32.mrb[0].mxu0
      %v5847 = vadd.f32 %v5774, %v5846
      %v5848 = vpop.f32.mrb[0].mxu0
      %v5849 = vadd.f32 %v5776, %v5848
      %5850 = vmatprep.mubr.bf16.mxu0 %v4820
      %5851 = vmatmul.mubr.bf16.gmra.mrb[0].mxu0 %v4819
      %v5852 = vpop.f32.mrb[0].mxu0
      %v5853 = vadd.f32 %v5780, %v5852
      %v5854 = vpop.f32.mrb[0].mxu0
      %v5855 = vadd.f32 %v5782, %v5854
      %v5856 = vpop.f32.mrb[0].mxu0
      %v5857 = vadd.f32 %v5784, %v5856
      %v5858 = vpop.f32.mrb[0].mxu0
      %v5859 = vadd.f32 %v5786, %v5858
      %5860 = vdwg.mxu0
      %5861 = vmatprep.subr.bf16.mxu0 %v5410
      %5862 = vmatpush1.bf16.msra.mxu0 %v5409
      %5863 = vmatprep.subr.bf16.mxu0 %v5412
      %5864 = vmatpush1.bf16.msra.mxu0 %v5411
      %5865 = vmatprep.subr.bf16.mxu0 %v5414
      %5866 = vmatpush1.bf16.msra.mxu0 %v5413
      %5867 = vmatprep.subr.bf16.mxu0 %v5416
      %5868 = vmatpush1.bf16.msra.mxu0 %v5415
      %5869 = vmatprep.subr.bf16.mxu0 %v5418
      %5870 = vmatpush1.bf16.msra.mxu0 %v5417
      %5871 = vmatprep.subr.bf16.mxu0 %v5420
      %5872 = vmatpush1.bf16.msra.mxu0 %v5419
      %5873 = vmatprep.subr.bf16.mxu0 %v5422
      %5874 = vmatpush1.bf16.msra.mxu0 %v5421
      %5875 = vmatprep.subr.bf16.mxu0 %v5424
      %5876 = vmatpush1.bf16.msra.mxu0 %v5423
      %5877 = vmatprep.subr.bf16.mxu0 0
      %5878 = vmatpush1.bf16.msra.mxu0 0
      %5879 = vmatprep.subr.bf16.mxu0 0
      %5880 = vmatpush1.bf16.msra.mxu0 0
      %5881 = vmatprep.subr.bf16.mxu0 0
      %5882 = vmatpush1.bf16.msra.mxu0 0
      %5883 = vmatprep.subr.bf16.mxu0 0
      %5884 = vmatpush1.bf16.msra.mxu0 0
      %5885 = vmatprep.subr.bf16.mxu0 0
      %5886 = vmatpush1.bf16.msra.mxu0 0
      %5887 = vmatprep.subr.bf16.mxu0 0
      %5888 = vmatpush1.bf16.msra.mxu0 0
      %5889 = vmatprep.subr.bf16.mxu0 0
      %5890 = vmatpush1.bf16.msra.mxu0 0
      %5891 = vmatprep.subr.bf16.mxu0 0
      %5892 = vmatpush1.bf16.msra.mxu0 0
      %5893 = vmatprep.mubr.bf16.mxu0 0
      %5894 = vmatmul.mubr.bf16.gmra.mrb[0].mxu0 %v4803
      %v5895 = vpop.f32.mrb[0].mxu0
      %v5896 = vadd.f32 %v5823, %v5895
      %v5897 = vpop.f32.mrb[0].mxu0
      %v5898 = vadd.f32 %v5825, %v5897
      %v5899 = vpop.f32.mrb[0].mxu0
      %v5900 = vadd.f32 %v5827, %v5899
      %v5901 = vpop.f32.mrb[0].mxu0
      %v5902 = vadd.f32 %v5829, %v5901
      %5903 = vmatprep.mubr.bf16.mxu0 0
      %5904 = vmatmul.mubr.bf16.gmra.mrb[0].mxu0 %v4809
      %v5905 = vpop.f32.mrb[0].mxu0
      %v5906 = vadd.f32 %v5833, %v5905
      %v5907 = vpop.f32.mrb[0].mxu0
      %v5908 = vadd.f32 %v5835, %v5907
      %v5909 = vpop.f32.mrb[0].mxu0
      %v5910 = vadd.f32 %v5837, %v5909
      %v5911 = vpop.f32.mrb[0].mxu0
      %v5912 = vadd.f32 %v5839, %v5911
      %5913 = vmatprep.mubr.bf16.mxu0 0
      %5914 = vmatmul.mubr.bf16.gmra.mrb[0].mxu0 %v4815
      %v5915 = vpop.f32.mrb[0].mxu0
      %v5916 = vadd.f32 %v5843, %v5915
      %v5917 = vpop.f32.mrb[0].mxu0
      %v5918 = vadd.f32 %v5845, %v5917
      %v5919 = vpop.f32.mrb[0].mxu0
      %v5920 = vadd.f32 %v5847, %v5919
      %v5921 = vpop.f32.mrb[0].mxu0
      %v5922 = vadd.f32 %v5849, %v5921
      %5923 = vmatprep.mubr.bf16.mxu0 0
      %5924 = vmatmul.mubr.bf16.gmra.mrb[0].mxu0 %v4821
      %v5925 = vpop.f32.mrb[0].mxu0
      %v5926 = vadd.f32 %v5853, %v5925
      %v5927 = vpop.f32.mrb[0].mxu0
      %v5928 = vadd.f32 %v5855, %v5927
      %v5929 = vpop.f32.mrb[0].mxu0
      %v5930 = vadd.f32 %v5857, %v5929
      %v5931 = vpop.f32.mrb[0].mxu0
      %v5932 = vadd.f32 %v5859, %v5931
      %5933 = vdwg.mxu0
      %v5934 = vmax.f32 %v5896, 0.0
      %v5935 = vmax.f32 %v5898, 0.0
      %v5936 = vmax.f32 %v5900, 0.0
      %v5937 = vmax.f32 %v5902, 0.0
      %v5938 = vmax.f32 %v5906, 0.0
      %v5939 = vmax.f32 %v5908, 0.0
      %v5940 = vmax.f32 %v5910, 0.0
      %v5941 = vmax.f32 %v5912, 0.0
      %v5942 = vmax.f32 %v5916, 0.0
      %v5943 = vmax.f32 %v5918, 0.0
      %v5944 = vmax.f32 %v5920, 0.0
      %v5945 = vmax.f32 %v5922, 0.0
      %v5946 = vmax.f32 %v5926, 0.0
      %v5947 = vmax.f32 %v5928, 0.0
      %v5948 = vmax.f32 %v5930, 0.0
      %v5949 = vmax.f32 %v5932, 0.0
      %v5966 = vcombine.low %v5934, %v5935
      %v5967 = vcombine.high %v5934, %v5935
      %v5969 = vunpack.c.l.s4 1983009808
      %v5970 = vunpack.c.0.s8 %v5969
      %v5971 = vlaneseq
      %v5972 = vshrl.u32 %v5971, 7
      %v5973 = vsub.s32 %v5970, %v5972
      %v5974 = vrot.slane %v5966, %v5973
      %v5976 = vunpack.c.l.s4 1983009808
      %v5977 = vunpack.c.0.s8 %v5976
      %v5978 = vlaneseq
      %v5979 = vshrl.u32 %v5978, 7
      %v5980 = vsub.s32 %v5977, %v5979
      %v5981 = vrot.slane %v5967, %v5980
      %v5982 = vcombine.high %v5974, %v5974
      %v5983 = vcombine.high %v5981, %v5981
      %v5984 = vcombine.low %v5936, %v5937
      %v5985 = vcombine.high %v5936, %v5937
      %v5987 = vunpack.c.l.s4 1983009808
      %v5988 = vunpack.c.0.s8 %v5987
      %v5989 = vlaneseq
      %v5990 = vshrl.u32 %v5989, 7
      %v5991 = vsub.s32 %v5988, %v5990
      %v5992 = vrot.slane %v5984, %v5991
      %v5994 = vunpack.c.l.s4 1983009808
      %v5995 = vunpack.c.0.s8 %v5994
      %v5996 = vlaneseq
      %v5997 = vshrl.u32 %v5996, 7
      %v5998 = vsub.s32 %v5995, %v5997
      %v5999 = vrot.slane %v5985, %v5998
      %v6000 = vcombine.high %v5992, %v5992
      %v6001 = vcombine.high %v5999, %v5999
      %v6002 = vcombine.low %v5938, %v5939
      %v6003 = vcombine.high %v5938, %v5939
      %v6005 = vunpack.c.l.s4 1983009808
      %v6006 = vunpack.c.0.s8 %v6005
      %v6007 = vlaneseq
      %v6008 = vshrl.u32 %v6007, 7
      %v6009 = vsub.s32 %v6006, %v6008
      %v6010 = vrot.slane %v6002, %v6009
      %v6012 = vunpack.c.l.s4 1983009808
      %v6013 = vunpack.c.0.s8 %v6012
      %v6014 = vlaneseq
      %v6015 = vshrl.u32 %v6014, 7
      %v6016 = vsub.s32 %v6013, %v6015
      %v6017 = vrot.slane %v6003, %v6016
      %v6018 = vcombine.high %v6010, %v6010
      %v6019 = vcombine.high %v6017, %v6017
      %v6020 = vcombine.low %v5940, %v5941
      %v6021 = vcombine.high %v5940, %v5941
      %v6023 = vunpack.c.l.s4 1983009808
      %v6024 = vunpack.c.0.s8 %v6023
      %v6025 = vlaneseq
      %v6026 = vshrl.u32 %v6025, 7
      %v6027 = vsub.s32 %v6024, %v6026
      %v6028 = vrot.slane %v6020, %v6027
      %v6030 = vunpack.c.l.s4 1983009808
      %v6031 = vunpack.c.0.s8 %v6030
      %v6032 = vlaneseq
      %v6033 = vshrl.u32 %v6032, 7
      %v6034 = vsub.s32 %v6031, %v6033
      %v6035 = vrot.slane %v6021, %v6034
      %v6036 = vcombine.high %v6028, %v6028
      %v6037 = vcombine.high %v6035, %v6035
      %v6038 = vcombine.low %v5942, %v5943
      %v6039 = vcombine.high %v5942, %v5943
      %v6041 = vunpack.c.l.s4 1983009808
      %v6042 = vunpack.c.0.s8 %v6041
      %v6043 = vlaneseq
      %v6044 = vshrl.u32 %v6043, 7
      %v6045 = vsub.s32 %v6042, %v6044
      %v6046 = vrot.slane %v6038, %v6045
      %v6048 = vunpack.c.l.s4 1983009808
      %v6049 = vunpack.c.0.s8 %v6048
      %v6050 = vlaneseq
      %v6051 = vshrl.u32 %v6050, 7
      %v6052 = vsub.s32 %v6049, %v6051
      %v6053 = vrot.slane %v6039, %v6052
      %v6054 = vcombine.high %v6046, %v6046
      %v6055 = vcombine.high %v6053, %v6053
      %v6056 = vcombine.low %v5944, %v5945
      %v6057 = vcombine.high %v5944, %v5945
      %v6059 = vunpack.c.l.s4 1983009808
      %v6060 = vunpack.c.0.s8 %v6059
      %v6061 = vlaneseq
      %v6062 = vshrl.u32 %v6061, 7
      %v6063 = vsub.s32 %v6060, %v6062
      %v6064 = vrot.slane %v6056, %v6063
      %v6066 = vunpack.c.l.s4 1983009808
      %v6067 = vunpack.c.0.s8 %v6066
      %v6068 = vlaneseq
      %v6069 = vshrl.u32 %v6068, 7
      %v6070 = vsub.s32 %v6067, %v6069
      %v6071 = vrot.slane %v6057, %v6070
      %v6072 = vcombine.high %v6064, %v6064
      %v6073 = vcombine.high %v6071, %v6071
      %v6074 = vcombine.low %v5946, %v5947
      %v6075 = vcombine.high %v5946, %v5947
      %v6077 = vunpack.c.l.s4 1983009808
      %v6078 = vunpack.c.0.s8 %v6077
      %v6079 = vlaneseq
      %v6080 = vshrl.u32 %v6079, 7
      %v6081 = vsub.s32 %v6078, %v6080
      %v6082 = vrot.slane %v6074, %v6081
      %v6084 = vunpack.c.l.s4 1983009808
      %v6085 = vunpack.c.0.s8 %v6084
      %v6086 = vlaneseq
      %v6087 = vshrl.u32 %v6086, 7
      %v6088 = vsub.s32 %v6085, %v6087
      %v6089 = vrot.slane %v6075, %v6088
      %v6090 = vcombine.high %v6082, %v6082
      %v6091 = vcombine.high %v6089, %v6089
      %v6092 = vcombine.low %v5948, %v5949
      %v6093 = vcombine.high %v5948, %v5949
      %v6095 = vunpack.c.l.s4 1983009808
      %v6096 = vunpack.c.0.s8 %v6095
      %v6097 = vlaneseq
      %v6098 = vshrl.u32 %v6097, 7
      %v6099 = vsub.s32 %v6096, %v6098
      %v6100 = vrot.slane %v6092, %v6099
      %v6102 = vunpack.c.l.s4 1983009808
      %v6103 = vunpack.c.0.s8 %v6102
      %v6104 = vlaneseq
      %v6105 = vshrl.u32 %v6104, 7
      %v6106 = vsub.s32 %v6103, %v6105
      %v6107 = vrot.slane %v6093, %v6106
      %v6108 = vcombine.high %v6100, %v6100
      %v6109 = vcombine.high %v6107, %v6107
      %v6111 = vunpack.c.l.s4 1983009808
      %v6112 = vunpack.c.0.s8 %v6111
      %v6113 = vlaneseq
      %v6114 = vshrl.u32 %v6113, 7
      %v6115 = vsub.s32 %v6112, %v6114
      %v6116 = vrot.slane %v5974, %v6115
      %v6117 = vcombine.high %v6116, %v6116
      %v6119 = vunpack.c.l.s4 1983009808
      %v6120 = vunpack.c.0.s8 %v6119
      %v6121 = vlaneseq
      %v6122 = vshrl.u32 %v6121, 7
      %v6123 = vsub.s32 %v6120, %v6122
      %v6124 = vrot.slane %v5982, %v6123
      %v6125 = vcombine.high %v6124, %v6124
      %v6127 = vunpack.c.l.s4 1983009808
      %v6128 = vunpack.c.0.s8 %v6127
      %v6129 = vlaneseq
      %v6130 = vshrl.u32 %v6129, 7
      %v6131 = vsub.s32 %v6128, %v6130
      %v6132 = vrot.slane %v5981, %v6131
      %v6133 = vcombine.high %v6132, %v6132
      %v6135 = vunpack.c.l.s4 1983009808
      %v6136 = vunpack.c.0.s8 %v6135
      %v6137 = vlaneseq
      %v6138 = vshrl.u32 %v6137, 7
      %v6139 = vsub.s32 %v6136, %v6138
      %v6140 = vrot.slane %v5983, %v6139
      %v6141 = vcombine.high %v6140, %v6140
      %v6143 = vunpack.c.l.s4 1983009808
      %v6144 = vunpack.c.0.s8 %v6143
      %v6145 = vlaneseq
      %v6146 = vshrl.u32 %v6145, 7
      %v6147 = vsub.s32 %v6144, %v6146
      %v6148 = vrot.slane %v5992, %v6147
      %v6149 = vcombine.high %v6148, %v6148
      %v6151 = vunpack.c.l.s4 1983009808
      %v6152 = vunpack.c.0.s8 %v6151
      %v6153 = vlaneseq
      %v6154 = vshrl.u32 %v6153, 7
      %v6155 = vsub.s32 %v6152, %v6154
      %v6156 = vrot.slane %v6000, %v6155
      %v6157 = vcombine.high %v6156, %v6156
      %v6159 = vunpack.c.l.s4 1983009808
      %v6160 = vunpack.c.0.s8 %v6159
      %v6161 = vlaneseq
      %v6162 = vshrl.u32 %v6161, 7
      %v6163 = vsub.s32 %v6160, %v6162
      %v6164 = vrot.slane %v5999, %v6163
      %v6165 = vcombine.high %v6164, %v6164
      %v6167 = vunpack.c.l.s4 1983009808
      %v6168 = vunpack.c.0.s8 %v6167
      %v6169 = vlaneseq
      %v6170 = vshrl.u32 %v6169, 7
      %v6171 = vsub.s32 %v6168, %v6170
      %v6172 = vrot.slane %v6001, %v6171
      %v6173 = vcombine.high %v6172, %v6172
      %v6175 = vunpack.c.l.s4 1983009808
      %v6176 = vunpack.c.0.s8 %v6175
      %v6177 = vlaneseq
      %v6178 = vshrl.u32 %v6177, 7
      %v6179 = vsub.s32 %v6176, %v6178
      %v6180 = vrot.slane %v6010, %v6179
      %v6181 = vcombine.high %v6180, %v6180
      %v6183 = vunpack.c.l.s4 1983009808
      %v6184 = vunpack.c.0.s8 %v6183
      %v6185 = vlaneseq
      %v6186 = vshrl.u32 %v6185, 7
      %v6187 = vsub.s32 %v6184, %v6186
      %v6188 = vrot.slane %v6018, %v6187
      %v6189 = vcombine.high %v6188, %v6188
      %v6191 = vunpack.c.l.s4 1983009808
      %v6192 = vunpack.c.0.s8 %v6191
      %v6193 = vlaneseq
      %v6194 = vshrl.u32 %v6193, 7
      %v6195 = vsub.s32 %v6192, %v6194
      %v6196 = vrot.slane %v6017, %v6195
      %v6197 = vcombine.high %v6196, %v6196
      %v6199 = vunpack.c.l.s4 1983009808
      %v6200 = vunpack.c.0.s8 %v6199
      %v6201 = vlaneseq
      %v6202 = vshrl.u32 %v6201, 7
      %v6203 = vsub.s32 %v6200, %v6202
      %v6204 = vrot.slane %v6019, %v6203
      %v6205 = vcombine.high %v6204, %v6204
      %v6207 = vunpack.c.l.s4 1983009808
      %v6208 = vunpack.c.0.s8 %v6207
      %v6209 = vlaneseq
      %v6210 = vshrl.u32 %v6209, 7
      %v6211 = vsub.s32 %v6208, %v6210
      %v6212 = vrot.slane %v6028, %v6211
      %v6213 = vcombine.high %v6212, %v6212
      %v6215 = vunpack.c.l.s4 1983009808
      %v6216 = vunpack.c.0.s8 %v6215
      %v6217 = vlaneseq
      %v6218 = vshrl.u32 %v6217, 7
      %v6219 = vsub.s32 %v6216, %v6218
      %v6220 = vrot.slane %v6036, %v6219
      %v6221 = vcombine.high %v6220, %v6220
      %v6223 = vunpack.c.l.s4 1983009808
      %v6224 = vunpack.c.0.s8 %v6223
      %v6225 = vlaneseq
      %v6226 = vshrl.u32 %v6225, 7
      %v6227 = vsub.s32 %v6224, %v6226
      %v6228 = vrot.slane %v6035, %v6227
      %v6229 = vcombine.high %v6228, %v6228
      %v6231 = vunpack.c.l.s4 1983009808
      %v6232 = vunpack.c.0.s8 %v6231
      %v6233 = vlaneseq
      %v6234 = vshrl.u32 %v6233, 7
      %v6235 = vsub.s32 %v6232, %v6234
      %v6236 = vrot.slane %v6037, %v6235
      %v6237 = vcombine.high %v6236, %v6236
      %v6239 = vunpack.c.l.s4 1983009808
      %v6240 = vunpack.c.0.s8 %v6239
      %v6241 = vlaneseq
      %v6242 = vshrl.u32 %v6241, 7
      %v6243 = vsub.s32 %v6240, %v6242
      %v6244 = vrot.slane %v6046, %v6243
      %v6245 = vcombine.high %v6244, %v6244
      %v6247 = vunpack.c.l.s4 1983009808
      %v6248 = vunpack.c.0.s8 %v6247
      %v6249 = vlaneseq
      %v6250 = vshrl.u32 %v6249, 7
      %v6251 = vsub.s32 %v6248, %v6250
      %v6252 = vrot.slane %v6054, %v6251
      %v6253 = vcombine.high %v6252, %v6252
      %v6255 = vunpack.c.l.s4 1983009808
      %v6256 = vunpack.c.0.s8 %v6255
      %v6257 = vlaneseq
      %v6258 = vshrl.u32 %v6257, 7
      %v6259 = vsub.s32 %v6256, %v6258
      %v6260 = vrot.slane %v6053, %v6259
      %v6261 = vcombine.high %v6260, %v6260
      %v6263 = vunpack.c.l.s4 1983009808
      %v6264 = vunpack.c.0.s8 %v6263
      %v6265 = vlaneseq
      %v6266 = vshrl.u32 %v6265, 7
      %v6267 = vsub.s32 %v6264, %v6266
      %v6268 = vrot.slane %v6055, %v6267
      %v6269 = vcombine.high %v6268, %v6268
      %v6271 = vunpack.c.l.s4 1983009808
      %v6272 = vunpack.c.0.s8 %v6271
      %v6273 = vlaneseq
      %v6274 = vshrl.u32 %v6273, 7
      %v6275 = vsub.s32 %v6272, %v6274
      %v6276 = vrot.slane %v6064, %v6275
      %v6277 = vcombine.high %v6276, %v6276
      %v6279 = vunpack.c.l.s4 1983009808
      %v6280 = vunpack.c.0.s8 %v6279
      %v6281 = vlaneseq
      %v6282 = vshrl.u32 %v6281, 7
      %v6283 = vsub.s32 %v6280, %v6282
      %v6284 = vrot.slane %v6072, %v6283
      %v6285 = vcombine.high %v6284, %v6284
      %v6287 = vunpack.c.l.s4 1983009808
      %v6288 = vunpack.c.0.s8 %v6287
      %v6289 = vlaneseq
      %v6290 = vshrl.u32 %v6289, 7
      %v6291 = vsub.s32 %v6288, %v6290
      %v6292 = vrot.slane %v6071, %v6291
      %v6293 = vcombine.high %v6292, %v6292
      %v6295 = vunpack.c.l.s4 1983009808
      %v6296 = vunpack.c.0.s8 %v6295
      %v6297 = vlaneseq
      %v6298 = vshrl.u32 %v6297, 7
      %v6299 = vsub.s32 %v6296, %v6298
      %v6300 = vrot.slane %v6073, %v6299
      %v6301 = vcombine.high %v6300, %v6300
      %v6303 = vunpack.c.l.s4 1983009808
      %v6304 = vunpack.c.0.s8 %v6303
      %v6305 = vlaneseq
      %v6306 = vshrl.u32 %v6305, 7
      %v6307 = vsub.s32 %v6304, %v6306
      %v6308 = vrot.slane %v6082, %v6307
      %v6309 = vcombine.high %v6308, %v6308
      %v6311 = vunpack.c.l.s4 1983009808
      %v6312 = vunpack.c.0.s8 %v6311
      %v6313 = vlaneseq
      %v6314 = vshrl.u32 %v6313, 7
      %v6315 = vsub.s32 %v6312, %v6314
      %v6316 = vrot.slane %v6090, %v6315
      %v6317 = vcombine.high %v6316, %v6316
      %v6319 = vunpack.c.l.s4 1983009808
      %v6320 = vunpack.c.0.s8 %v6319
      %v6321 = vlaneseq
      %v6322 = vshrl.u32 %v6321, 7
      %v6323 = vsub.s32 %v6320, %v6322
      %v6324 = vrot.slane %v6089, %v6323
      %v6325 = vcombine.high %v6324, %v6324
      %v6327 = vunpack.c.l.s4 1983009808
      %v6328 = vunpack.c.0.s8 %v6327
      %v6329 = vlaneseq
      %v6330 = vshrl.u32 %v6329, 7
      %v6331 = vsub.s32 %v6328, %v6330
      %v6332 = vrot.slane %v6091, %v6331
      %v6333 = vcombine.high %v6332, %v6332
      %v6335 = vunpack.c.l.s4 1983009808
      %v6336 = vunpack.c.0.s8 %v6335
      %v6337 = vlaneseq
      %v6338 = vshrl.u32 %v6337, 7
      %v6339 = vsub.s32 %v6336, %v6338
      %v6340 = vrot.slane %v6100, %v6339
      %v6341 = vcombine.high %v6340, %v6340
      %v6343 = vunpack.c.l.s4 1983009808
      %v6344 = vunpack.c.0.s8 %v6343
      %v6345 = vlaneseq
      %v6346 = vshrl.u32 %v6345, 7
      %v6347 = vsub.s32 %v6344, %v6346
      %v6348 = vrot.slane %v6108, %v6347
      %v6349 = vcombine.high %v6348, %v6348
      %v6351 = vunpack.c.l.s4 1983009808
      %v6352 = vunpack.c.0.s8 %v6351
      %v6353 = vlaneseq
      %v6354 = vshrl.u32 %v6353, 7
      %v6355 = vsub.s32 %v6352, %v6354
      %v6356 = vrot.slane %v6107, %v6355
      %v6357 = vcombine.high %v6356, %v6356
      %v6359 = vunpack.c.l.s4 1983009808
      %v6360 = vunpack.c.0.s8 %v6359
      %v6361 = vlaneseq
      %v6362 = vshrl.u32 %v6361, 7
      %v6363 = vsub.s32 %v6360, %v6362
      %v6364 = vrot.slane %v6109, %v6363
      %v6365 = vcombine.high %v6364, %v6364
      %v6430 = vsel %vm3223, %v6116, -inf
      %v6431 = vrot.slane %v6430, 4
      %v6432 = vmax.f32 %v6430, %v6431
      %v6433 = vrot.slane %v6432, 2
      %v6434 = vmax.f32 %v6432, %v6433
      %v6435 = vrot.slane %v6434, 1
      %v6436 = vmax.f32 %v6434, %v6435
      %v6437 = vsel %vm3223, %v6117, -inf
      %v6438 = vrot.slane %v6437, 4
      %v6439 = vmax.f32 %v6437, %v6438
      %v6440 = vrot.slane %v6439, 2
      %v6441 = vmax.f32 %v6439, %v6440
      %v6442 = vrot.slane %v6441, 1
      %v6443 = vmax.f32 %v6441, %v6442
      %v6444 = vsel %vm3223, %v6124, -inf
      %v6445 = vrot.slane %v6444, 4
      %v6446 = vmax.f32 %v6444, %v6445
      %v6447 = vrot.slane %v6446, 2
      %v6448 = vmax.f32 %v6446, %v6447
      %v6449 = vrot.slane %v6448, 1
      %v6450 = vmax.f32 %v6448, %v6449
      %v6451 = vsel %vm3223, %v6125, -inf
      %v6452 = vrot.slane %v6451, 4
      %v6453 = vmax.f32 %v6451, %v6452
      %v6454 = vrot.slane %v6453, 2
      %v6455 = vmax.f32 %v6453, %v6454
      %v6456 = vrot.slane %v6455, 1
      %v6457 = vmax.f32 %v6455, %v6456
      %v6458 = vsel %vm3223, %v6132, -inf
      %v6459 = vrot.slane %v6458, 4
      %v6460 = vmax.f32 %v6458, %v6459
      %v6461 = vrot.slane %v6460, 2
      %v6462 = vmax.f32 %v6460, %v6461
      %v6463 = vrot.slane %v6462, 1
      %v6464 = vmax.f32 %v6462, %v6463
      %v6465 = vsel %vm3223, %v6133, -inf
      %v6466 = vrot.slane %v6465, 4
      %v6467 = vmax.f32 %v6465, %v6466
      %v6468 = vrot.slane %v6467, 2
      %v6469 = vmax.f32 %v6467, %v6468
      %v6470 = vrot.slane %v6469, 1
      %v6471 = vmax.f32 %v6469, %v6470
      %v6472 = vsel %vm3223, %v6140, -inf
      %v6473 = vrot.slane %v6472, 4
      %v6474 = vmax.f32 %v6472, %v6473
      %v6475 = vrot.slane %v6474, 2
      %v6476 = vmax.f32 %v6474, %v6475
      %v6477 = vrot.slane %v6476, 1
      %v6478 = vmax.f32 %v6476, %v6477
      %v6479 = vsel %vm3223, %v6141, -inf
      %v6480 = vrot.slane %v6479, 4
      %v6481 = vmax.f32 %v6479, %v6480
      %v6482 = vrot.slane %v6481, 2
      %v6483 = vmax.f32 %v6481, %v6482
      %v6484 = vrot.slane %v6483, 1
      %v6485 = vmax.f32 %v6483, %v6484
      %v6486 = vsel %vm3223, %v6148, -inf
      %v6487 = vrot.slane %v6486, 4
      %v6488 = vmax.f32 %v6486, %v6487
      %v6489 = vrot.slane %v6488, 2
      %v6490 = vmax.f32 %v6488, %v6489
      %v6491 = vrot.slane %v6490, 1
      %v6492 = vmax.f32 %v6490, %v6491
      %v6493 = vsel %vm3223, %v6149, -inf
      %v6494 = vrot.slane %v6493, 4
      %v6495 = vmax.f32 %v6493, %v6494
      %v6496 = vrot.slane %v6495, 2
      %v6497 = vmax.f32 %v6495, %v6496
      %v6498 = vrot.slane %v6497, 1
      %v6499 = vmax.f32 %v6497, %v6498
      %v6500 = vsel %vm3223, %v6156, -inf
      %v6501 = vrot.slane %v6500, 4
      %v6502 = vmax.f32 %v6500, %v6501
      %v6503 = vrot.slane %v6502, 2
      %v6504 = vmax.f32 %v6502, %v6503
      %v6505 = vrot.slane %v6504, 1
      %v6506 = vmax.f32 %v6504, %v6505
      %v6507 = vsel %vm3223, %v6157, -inf
      %v6508 = vrot.slane %v6507, 4
      %v6509 = vmax.f32 %v6507, %v6508
      %v6510 = vrot.slane %v6509, 2
      %v6511 = vmax.f32 %v6509, %v6510
      %v6512 = vrot.slane %v6511, 1
      %v6513 = vmax.f32 %v6511, %v6512
      %v6514 = vsel %vm3223, %v6164, -inf
      %v6515 = vrot.slane %v6514, 4
      %v6516 = vmax.f32 %v6514, %v6515
      %v6517 = vrot.slane %v6516, 2
      %v6518 = vmax.f32 %v6516, %v6517
      %v6519 = vrot.slane %v6518, 1
      %v6520 = vmax.f32 %v6518, %v6519
      %v6521 = vsel %vm3223, %v6165, -inf
      %v6522 = vrot.slane %v6521, 4
      %v6523 = vmax.f32 %v6521, %v6522
      %v6524 = vrot.slane %v6523, 2
      %v6525 = vmax.f32 %v6523, %v6524
      %v6526 = vrot.slane %v6525, 1
      %v6527 = vmax.f32 %v6525, %v6526
      %v6528 = vsel %vm3223, %v6172, -inf
      %v6529 = vrot.slane %v6528, 4
      %v6530 = vmax.f32 %v6528, %v6529
      %v6531 = vrot.slane %v6530, 2
      %v6532 = vmax.f32 %v6530, %v6531
      %v6533 = vrot.slane %v6532, 1
      %v6534 = vmax.f32 %v6532, %v6533
      %v6535 = vsel %vm3223, %v6173, -inf
      %v6536 = vrot.slane %v6535, 4
      %v6537 = vmax.f32 %v6535, %v6536
      %v6538 = vrot.slane %v6537, 2
      %v6539 = vmax.f32 %v6537, %v6538
      %v6540 = vrot.slane %v6539, 1
      %v6541 = vmax.f32 %v6539, %v6540
      %v6542 = vsel %vm3223, %v6180, -inf
      %v6543 = vrot.slane %v6542, 4
      %v6544 = vmax.f32 %v6542, %v6543
      %v6545 = vrot.slane %v6544, 2
      %v6546 = vmax.f32 %v6544, %v6545
      %v6547 = vrot.slane %v6546, 1
      %v6548 = vmax.f32 %v6546, %v6547
      %v6549 = vsel %vm3223, %v6181, -inf
      %v6550 = vrot.slane %v6549, 4
      %v6551 = vmax.f32 %v6549, %v6550
      %v6552 = vrot.slane %v6551, 2
      %v6553 = vmax.f32 %v6551, %v6552
      %v6554 = vrot.slane %v6553, 1
      %v6555 = vmax.f32 %v6553, %v6554
      %v6556 = vsel %vm3223, %v6188, -inf
      %v6557 = vrot.slane %v6556, 4
      %v6558 = vmax.f32 %v6556, %v6557
      %v6559 = vrot.slane %v6558, 2
      %v6560 = vmax.f32 %v6558, %v6559
      %v6561 = vrot.slane %v6560, 1
      %v6562 = vmax.f32 %v6560, %v6561
      %v6563 = vsel %vm3223, %v6189, -inf
      %v6564 = vrot.slane %v6563, 4
      %v6565 = vmax.f32 %v6563, %v6564
      %v6566 = vrot.slane %v6565, 2
      %v6567 = vmax.f32 %v6565, %v6566
      %v6568 = vrot.slane %v6567, 1
      %v6569 = vmax.f32 %v6567, %v6568
      %v6570 = vsel %vm3223, %v6196, -inf
      %v6571 = vrot.slane %v6570, 4
      %v6572 = vmax.f32 %v6570, %v6571
      %v6573 = vrot.slane %v6572, 2
      %v6574 = vmax.f32 %v6572, %v6573
      %v6575 = vrot.slane %v6574, 1
      %v6576 = vmax.f32 %v6574, %v6575
      %v6577 = vsel %vm3223, %v6197, -inf
      %v6578 = vrot.slane %v6577, 4
      %v6579 = vmax.f32 %v6577, %v6578
      %v6580 = vrot.slane %v6579, 2
      %v6581 = vmax.f32 %v6579, %v6580
      %v6582 = vrot.slane %v6581, 1
      %v6583 = vmax.f32 %v6581, %v6582
      %v6584 = vsel %vm3223, %v6204, -inf
      %v6585 = vrot.slane %v6584, 4
      %v6586 = vmax.f32 %v6584, %v6585
      %v6587 = vrot.slane %v6586, 2
      %v6588 = vmax.f32 %v6586, %v6587
      %v6589 = vrot.slane %v6588, 1
      %v6590 = vmax.f32 %v6588, %v6589
      %v6591 = vsel %vm3223, %v6205, -inf
      %v6592 = vrot.slane %v6591, 4
      %v6593 = vmax.f32 %v6591, %v6592
      %v6594 = vrot.slane %v6593, 2
      %v6595 = vmax.f32 %v6593, %v6594
      %v6596 = vrot.slane %v6595, 1
      %v6597 = vmax.f32 %v6595, %v6596
      %v6598 = vsel %vm3223, %v6212, -inf
      %v6599 = vrot.slane %v6598, 4
      %v6600 = vmax.f32 %v6598, %v6599
      %v6601 = vrot.slane %v6600, 2
      %v6602 = vmax.f32 %v6600, %v6601
      %v6603 = vrot.slane %v6602, 1
      %v6604 = vmax.f32 %v6602, %v6603
      %v6605 = vsel %vm3223, %v6213, -inf
      %v6606 = vrot.slane %v6605, 4
      %v6607 = vmax.f32 %v6605, %v6606
      %v6608 = vrot.slane %v6607, 2
      %v6609 = vmax.f32 %v6607, %v6608
      %v6610 = vrot.slane %v6609, 1
      %v6611 = vmax.f32 %v6609, %v6610
      %v6612 = vsel %vm3223, %v6220, -inf
      %v6613 = vrot.slane %v6612, 4
      %v6614 = vmax.f32 %v6612, %v6613
      %v6615 = vrot.slane %v6614, 2
      %v6616 = vmax.f32 %v6614, %v6615
      %v6617 = vrot.slane %v6616, 1
      %v6618 = vmax.f32 %v6616, %v6617
      %v6619 = vsel %vm3223, %v6221, -inf
      %v6620 = vrot.slane %v6619, 4
      %v6621 = vmax.f32 %v6619, %v6620
      %v6622 = vrot.slane %v6621, 2
      %v6623 = vmax.f32 %v6621, %v6622
      %v6624 = vrot.slane %v6623, 1
      %v6625 = vmax.f32 %v6623, %v6624
      %v6626 = vsel %vm3223, %v6228, -inf
      %v6627 = vrot.slane %v6626, 4
      %v6628 = vmax.f32 %v6626, %v6627
      %v6629 = vrot.slane %v6628, 2
      %v6630 = vmax.f32 %v6628, %v6629
      %v6631 = vrot.slane %v6630, 1
      %v6632 = vmax.f32 %v6630, %v6631
      %v6633 = vsel %vm3223, %v6229, -inf
      %v6634 = vrot.slane %v6633, 4
      %v6635 = vmax.f32 %v6633, %v6634
      %v6636 = vrot.slane %v6635, 2
      %v6637 = vmax.f32 %v6635, %v6636
      %v6638 = vrot.slane %v6637, 1
      %v6639 = vmax.f32 %v6637, %v6638
      %v6640 = vsel %vm3223, %v6236, -inf
      %v6641 = vrot.slane %v6640, 4
      %v6642 = vmax.f32 %v6640, %v6641
      %v6643 = vrot.slane %v6642, 2
      %v6644 = vmax.f32 %v6642, %v6643
      %v6645 = vrot.slane %v6644, 1
      %v6646 = vmax.f32 %v6644, %v6645
      %v6647 = vsel %vm3223, %v6237, -inf
      %v6648 = vrot.slane %v6647, 4
      %v6649 = vmax.f32 %v6647, %v6648
      %v6650 = vrot.slane %v6649, 2
      %v6651 = vmax.f32 %v6649, %v6650
      %v6652 = vrot.slane %v6651, 1
      %v6653 = vmax.f32 %v6651, %v6652
      %v6654 = vsel %vm3223, %v6244, -inf
      %v6655 = vrot.slane %v6654, 4
      %v6656 = vmax.f32 %v6654, %v6655
      %v6657 = vrot.slane %v6656, 2
      %v6658 = vmax.f32 %v6656, %v6657
      %v6659 = vrot.slane %v6658, 1
      %v6660 = vmax.f32 %v6658, %v6659
      %v6661 = vsel %vm3223, %v6245, -inf
      %v6662 = vrot.slane %v6661, 4
      %v6663 = vmax.f32 %v6661, %v6662
      %v6664 = vrot.slane %v6663, 2
      %v6665 = vmax.f32 %v6663, %v6664
      %v6666 = vrot.slane %v6665, 1
      %v6667 = vmax.f32 %v6665, %v6666
      %v6668 = vsel %vm3223, %v6252, -inf
      %v6669 = vrot.slane %v6668, 4
      %v6670 = vmax.f32 %v6668, %v6669
      %v6671 = vrot.slane %v6670, 2
      %v6672 = vmax.f32 %v6670, %v6671
      %v6673 = vrot.slane %v6672, 1
      %v6674 = vmax.f32 %v6672, %v6673
      %v6675 = vsel %vm3223, %v6253, -inf
      %v6676 = vrot.slane %v6675, 4
      %v6677 = vmax.f32 %v6675, %v6676
      %v6678 = vrot.slane %v6677, 2
      %v6679 = vmax.f32 %v6677, %v6678
      %v6680 = vrot.slane %v6679, 1
      %v6681 = vmax.f32 %v6679, %v6680
      %v6682 = vsel %vm3223, %v6260, -inf
      %v6683 = vrot.slane %v6682, 4
      %v6684 = vmax.f32 %v6682, %v6683
      %v6685 = vrot.slane %v6684, 2
      %v6686 = vmax.f32 %v6684, %v6685
      %v6687 = vrot.slane %v6686, 1
      %v6688 = vmax.f32 %v6686, %v6687
      %v6689 = vsel %vm3223, %v6261, -inf
      %v6690 = vrot.slane %v6689, 4
      %v6691 = vmax.f32 %v6689, %v6690
      %v6692 = vrot.slane %v6691, 2
      %v6693 = vmax.f32 %v6691, %v6692
      %v6694 = vrot.slane %v6693, 1
      %v6695 = vmax.f32 %v6693, %v6694
      %v6696 = vsel %vm3223, %v6268, -inf
      %v6697 = vrot.slane %v6696, 4
      %v6698 = vmax.f32 %v6696, %v6697
      %v6699 = vrot.slane %v6698, 2
      %v6700 = vmax.f32 %v6698, %v6699
      %v6701 = vrot.slane %v6700, 1
      %v6702 = vmax.f32 %v6700, %v6701
      %v6703 = vsel %vm3223, %v6269, -inf
      %v6704 = vrot.slane %v6703, 4
      %v6705 = vmax.f32 %v6703, %v6704
      %v6706 = vrot.slane %v6705, 2
      %v6707 = vmax.f32 %v6705, %v6706
      %v6708 = vrot.slane %v6707, 1
      %v6709 = vmax.f32 %v6707, %v6708
      %v6710 = vsel %vm3223, %v6276, -inf
      %v6711 = vrot.slane %v6710, 4
      %v6712 = vmax.f32 %v6710, %v6711
      %v6713 = vrot.slane %v6712, 2
      %v6714 = vmax.f32 %v6712, %v6713
      %v6715 = vrot.slane %v6714, 1
      %v6716 = vmax.f32 %v6714, %v6715
      %v6717 = vsel %vm3223, %v6277, -inf
      %v6718 = vrot.slane %v6717, 4
      %v6719 = vmax.f32 %v6717, %v6718
      %v6720 = vrot.slane %v6719, 2
      %v6721 = vmax.f32 %v6719, %v6720
      %v6722 = vrot.slane %v6721, 1
      %v6723 = vmax.f32 %v6721, %v6722
      %v6724 = vsel %vm3223, %v6284, -inf
      %v6725 = vrot.slane %v6724, 4
      %v6726 = vmax.f32 %v6724, %v6725
      %v6727 = vrot.slane %v6726, 2
      %v6728 = vmax.f32 %v6726, %v6727
      %v6729 = vrot.slane %v6728, 1
      %v6730 = vmax.f32 %v6728, %v6729
      %v6731 = vsel %vm3223, %v6285, -inf
      %v6732 = vrot.slane %v6731, 4
      %v6733 = vmax.f32 %v6731, %v6732
      %v6734 = vrot.slane %v6733, 2
      %v6735 = vmax.f32 %v6733, %v6734
      %v6736 = vrot.slane %v6735, 1
      %v6737 = vmax.f32 %v6735, %v6736
      %v6738 = vsel %vm3223, %v6292, -inf
      %v6739 = vrot.slane %v6738, 4
      %v6740 = vmax.f32 %v6738, %v6739
      %v6741 = vrot.slane %v6740, 2
      %v6742 = vmax.f32 %v6740, %v6741
      %v6743 = vrot.slane %v6742, 1
      %v6744 = vmax.f32 %v6742, %v6743
      %v6745 = vsel %vm3223, %v6293, -inf
      %v6746 = vrot.slane %v6745, 4
      %v6747 = vmax.f32 %v6745, %v6746
      %v6748 = vrot.slane %v6747, 2
      %v6749 = vmax.f32 %v6747, %v6748
      %v6750 = vrot.slane %v6749, 1
      %v6751 = vmax.f32 %v6749, %v6750
      %v6752 = vsel %vm3223, %v6300, -inf
      %v6753 = vrot.slane %v6752, 4
      %v6754 = vmax.f32 %v6752, %v6753
      %v6755 = vrot.slane %v6754, 2
      %v6756 = vmax.f32 %v6754, %v6755
      %v6757 = vrot.slane %v6756, 1
      %v6758 = vmax.f32 %v6756, %v6757
      %v6759 = vsel %vm3223, %v6301, -inf
      %v6760 = vrot.slane %v6759, 4
      %v6761 = vmax.f32 %v6759, %v6760
      %v6762 = vrot.slane %v6761, 2
      %v6763 = vmax.f32 %v6761, %v6762
      %v6764 = vrot.slane %v6763, 1
      %v6765 = vmax.f32 %v6763, %v6764
      %v6766 = vsel %vm3223, %v6308, -inf
      %v6767 = vrot.slane %v6766, 4
      %v6768 = vmax.f32 %v6766, %v6767
      %v6769 = vrot.slane %v6768, 2
      %v6770 = vmax.f32 %v6768, %v6769
      %v6771 = vrot.slane %v6770, 1
      %v6772 = vmax.f32 %v6770, %v6771
      %v6773 = vsel %vm3223, %v6309, -inf
      %v6774 = vrot.slane %v6773, 4
      %v6775 = vmax.f32 %v6773, %v6774
      %v6776 = vrot.slane %v6775, 2
      %v6777 = vmax.f32 %v6775, %v6776
      %v6778 = vrot.slane %v6777, 1
      %v6779 = vmax.f32 %v6777, %v6778
      %v6780 = vsel %vm3223, %v6316, -inf
      %v6781 = vrot.slane %v6780, 4
      %v6782 = vmax.f32 %v6780, %v6781
      %v6783 = vrot.slane %v6782, 2
      %v6784 = vmax.f32 %v6782, %v6783
      %v6785 = vrot.slane %v6784, 1
      %v6786 = vmax.f32 %v6784, %v6785
      %v6787 = vsel %vm3223, %v6317, -inf
      %v6788 = vrot.slane %v6787, 4
      %v6789 = vmax.f32 %v6787, %v6788
      %v6790 = vrot.slane %v6789, 2
      %v6791 = vmax.f32 %v6789, %v6790
      %v6792 = vrot.slane %v6791, 1
      %v6793 = vmax.f32 %v6791, %v6792
      %v6794 = vsel %vm3223, %v6324, -inf
      %v6795 = vrot.slane %v6794, 4
      %v6796 = vmax.f32 %v6794, %v6795
      %v6797 = vrot.slane %v6796, 2
      %v6798 = vmax.f32 %v6796, %v6797
      %v6799 = vrot.slane %v6798, 1
      %v6800 = vmax.f32 %v6798, %v6799
      %v6801 = vsel %vm3223, %v6325, -inf
      %v6802 = vrot.slane %v6801, 4
      %v6803 = vmax.f32 %v6801, %v6802
      %v6804 = vrot.slane %v6803, 2
      %v6805 = vmax.f32 %v6803, %v6804
      %v6806 = vrot.slane %v6805, 1
      %v6807 = vmax.f32 %v6805, %v6806
      %v6808 = vsel %vm3223, %v6332, -inf
      %v6809 = vrot.slane %v6808, 4
      %v6810 = vmax.f32 %v6808, %v6809
      %v6811 = vrot.slane %v6810, 2
      %v6812 = vmax.f32 %v6810, %v6811
      %v6813 = vrot.slane %v6812, 1
      %v6814 = vmax.f32 %v6812, %v6813
      %v6815 = vsel %vm3223, %v6333, -inf
      %v6816 = vrot.slane %v6815, 4
      %v6817 = vmax.f32 %v6815, %v6816
      %v6818 = vrot.slane %v6817, 2
      %v6819 = vmax.f32 %v6817, %v6818
      %v6820 = vrot.slane %v6819, 1
      %v6821 = vmax.f32 %v6819, %v6820
      %v6822 = vsel %vm3223, %v6340, -inf
      %v6823 = vrot.slane %v6822, 4
      %v6824 = vmax.f32 %v6822, %v6823
      %v6825 = vrot.slane %v6824, 2
      %v6826 = vmax.f32 %v6824, %v6825
      %v6827 = vrot.slane %v6826, 1
      %v6828 = vmax.f32 %v6826, %v6827
      %v6829 = vsel %vm3223, %v6341, -inf
      %v6830 = vrot.slane %v6829, 4
      %v6831 = vmax.f32 %v6829, %v6830
      %v6832 = vrot.slane %v6831, 2
      %v6833 = vmax.f32 %v6831, %v6832
      %v6834 = vrot.slane %v6833, 1
      %v6835 = vmax.f32 %v6833, %v6834
      %v6836 = vsel %vm3223, %v6348, -inf
      %v6837 = vrot.slane %v6836, 4
      %v6838 = vmax.f32 %v6836, %v6837
      %v6839 = vrot.slane %v6838, 2
      %v6840 = vmax.f32 %v6838, %v6839
      %v6841 = vrot.slane %v6840, 1
      %v6842 = vmax.f32 %v6840, %v6841
      %v6843 = vsel %vm3223, %v6349, -inf
      %v6844 = vrot.slane %v6843, 4
      %v6845 = vmax.f32 %v6843, %v6844
      %v6846 = vrot.slane %v6845, 2
      %v6847 = vmax.f32 %v6845, %v6846
      %v6848 = vrot.slane %v6847, 1
      %v6849 = vmax.f32 %v6847, %v6848
      %v6850 = vsel %vm3223, %v6356, -inf
      %v6851 = vrot.slane %v6850, 4
      %v6852 = vmax.f32 %v6850, %v6851
      %v6853 = vrot.slane %v6852, 2
      %v6854 = vmax.f32 %v6852, %v6853
      %v6855 = vrot.slane %v6854, 1
      %v6856 = vmax.f32 %v6854, %v6855
      %v6857 = vsel %vm3223, %v6357, -inf
      %v6858 = vrot.slane %v6857, 4
      %v6859 = vmax.f32 %v6857, %v6858
      %v6860 = vrot.slane %v6859, 2
      %v6861 = vmax.f32 %v6859, %v6860
      %v6862 = vrot.slane %v6861, 1
      %v6863 = vmax.f32 %v6861, %v6862
      %v6864 = vsel %vm3223, %v6364, -inf
      %v6865 = vrot.slane %v6864, 4
      %v6866 = vmax.f32 %v6864, %v6865
      %v6867 = vrot.slane %v6866, 2
      %v6868 = vmax.f32 %v6866, %v6867
      %v6869 = vrot.slane %v6868, 1
      %v6870 = vmax.f32 %v6868, %v6869
      %v6871 = vsel %vm3223, %v6365, -inf
      %v6872 = vrot.slane %v6871, 4
      %v6873 = vmax.f32 %v6871, %v6872
      %v6874 = vrot.slane %v6873, 2
      %v6875 = vmax.f32 %v6873, %v6874
      %v6876 = vrot.slane %v6875, 1
      %v6877 = vmax.f32 %v6875, %v6876
      %v6878 = vmax.f32 %v6436, %v6492
      %v6879 = vmax.f32 %v6443, %v6499
      %v6880 = vmax.f32 %v6450, %v6506
      %v6881 = vmax.f32 %v6457, %v6513
      %v6882 = vmax.f32 %v6464, %v6520
      %v6883 = vmax.f32 %v6471, %v6527
      %v6884 = vmax.f32 %v6478, %v6534
      %v6885 = vmax.f32 %v6485, %v6541
      %v6886 = vmax.f32 %v6548, %v6604
      %v6887 = vmax.f32 %v6555, %v6611
      %v6888 = vmax.f32 %v6562, %v6618
      %v6889 = vmax.f32 %v6569, %v6625
      %v6890 = vmax.f32 %v6576, %v6632
      %v6891 = vmax.f32 %v6583, %v6639
      %v6892 = vmax.f32 %v6590, %v6646
      %v6893 = vmax.f32 %v6597, %v6653
      %v6894 = vmax.f32 %v6660, %v6716
      %v6895 = vmax.f32 %v6667, %v6723
      %v6896 = vmax.f32 %v6674, %v6730
      %v6897 = vmax.f32 %v6681, %v6737
      %v6898 = vmax.f32 %v6688, %v6744
      %v6899 = vmax.f32 %v6695, %v6751
      %v6900 = vmax.f32 %v6702, %v6758
      %v6901 = vmax.f32 %v6709, %v6765
      %v6902 = vmax.f32 %v6772, %v6828
      %v6903 = vmax.f32 %v6779, %v6835
      %v6904 = vmax.f32 %v6786, %v6842
      %v6905 = vmax.f32 %v6793, %v6849
      %v6906 = vmax.f32 %v6800, %v6856
      %v6907 = vmax.f32 %v6807, %v6863
      %v6908 = vmax.f32 %v6814, %v6870
      %v6909 = vmax.f32 %v6821, %v6877
      %v6910 = vpack.c.bf16 %v6878, %v6878
      %v6911 = vpack.c.bf16 %v6879, %v6879
      %v6912 = vpack.c.bf16 %v6880, %v6880
      %v6913 = vpack.c.bf16 %v6881, %v6881
      %v6914 = vpack.c.bf16 %v6882, %v6882
      %v6915 = vpack.c.bf16 %v6883, %v6883
      %v6916 = vpack.c.bf16 %v6884, %v6884
      %v6917 = vpack.c.bf16 %v6885, %v6885
      %v6918 = vpack.c.bf16 %v6886, %v6886
      %v6919 = vpack.c.bf16 %v6887, %v6887
      %v6920 = vpack.c.bf16 %v6888, %v6888
      %v6921 = vpack.c.bf16 %v6889, %v6889
      %v6922 = vpack.c.bf16 %v6890, %v6890
      %v6923 = vpack.c.bf16 %v6891, %v6891
      %v6924 = vpack.c.bf16 %v6892, %v6892
      %v6925 = vpack.c.bf16 %v6893, %v6893
      %v6926 = vpack.c.bf16 %v6894, %v6894
      %v6927 = vpack.c.bf16 %v6895, %v6895
      %v6928 = vpack.c.bf16 %v6896, %v6896
      %v6929 = vpack.c.bf16 %v6897, %v6897
      %v6930 = vpack.c.bf16 %v6898, %v6898
      %v6931 = vpack.c.bf16 %v6899, %v6899
      %v6932 = vpack.c.bf16 %v6900, %v6900
      %v6933 = vpack.c.bf16 %v6901, %v6901
      %v6934 = vpack.c.bf16 %v6902, %v6902
      %v6935 = vpack.c.bf16 %v6903, %v6903
      %v6936 = vpack.c.bf16 %v6904, %v6904
      %v6937 = vpack.c.bf16 %v6905, %v6905
      %v6938 = vpack.c.bf16 %v6906, %v6906
      %v6939 = vpack.c.bf16 %v6907, %v6907
      %v6940 = vpack.c.bf16 %v6908, %v6908
      %v6941 = vpack.c.bf16 %v6909, %v6909
      %v6974 = vunpack.c.l.b16 %v6910
      %v6975 = vunpack.c.l.b16 %v6911
      %v6976 = vunpack.c.l.b16 %v6912
      %v6977 = vunpack.c.l.b16 %v6913
      %v6978 = vunpack.c.l.b16 %v6914
      %v6979 = vunpack.c.l.b16 %v6915
      %v6980 = vunpack.c.l.b16 %v6916
      %v6981 = vunpack.c.l.b16 %v6917
      %v6982 = vunpack.c.l.b16 %v6918
      %v6983 = vunpack.c.l.b16 %v6919
      %v6984 = vunpack.c.l.b16 %v6920
      %v6985 = vunpack.c.l.b16 %v6921
      %v6986 = vunpack.c.l.b16 %v6922
      %v6987 = vunpack.c.l.b16 %v6923
      %v6988 = vunpack.c.l.b16 %v6924
      %v6989 = vunpack.c.l.b16 %v6925
      %v6990 = vunpack.c.l.b16 %v6926
      %v6991 = vunpack.c.l.b16 %v6927
      %v6992 = vunpack.c.l.b16 %v6928
      %v6993 = vunpack.c.l.b16 %v6929
      %v6994 = vunpack.c.l.b16 %v6930
      %v6995 = vunpack.c.l.b16 %v6931
      %v6996 = vunpack.c.l.b16 %v6932
      %v6997 = vunpack.c.l.b16 %v6933
      %v6998 = vunpack.c.l.b16 %v6934
      %v6999 = vunpack.c.l.b16 %v6935
      %v7000 = vunpack.c.l.b16 %v6936
      %v7001 = vunpack.c.l.b16 %v6937
      %v7002 = vunpack.c.l.b16 %v6938
      %v7003 = vunpack.c.l.b16 %v6939
      %v7004 = vunpack.c.l.b16 %v6940
      %v7005 = vunpack.c.l.b16 %v6941
      %v7006 = vsel %vm4376, %v6976, %v6974
      %v7007 = vsel %vm4378, %v6978, %v7006
      %v7008 = vsel %vm4380, %v6980, %v7007
      %v7009 = vsel %vm4376, %v6977, %v6975
      %v7010 = vsel %vm4378, %v6979, %v7009
      %v7011 = vsel %vm4380, %v6981, %v7010
      %v7012 = vsel %vm4376, %v6984, %v6982
      %v7013 = vsel %vm4378, %v6986, %v7012
      %v7014 = vsel %vm4380, %v6988, %v7013
      %v7015 = vsel %vm4376, %v6985, %v6983
      %v7016 = vsel %vm4378, %v6987, %v7015
      %v7017 = vsel %vm4380, %v6989, %v7016
      %v7018 = vsel %vm4376, %v6992, %v6990
      %v7019 = vsel %vm4378, %v6994, %v7018
      %v7020 = vsel %vm4380, %v6996, %v7019
      %v7021 = vsel %vm4376, %v6993, %v6991
      %v7022 = vsel %vm4378, %v6995, %v7021
      %v7023 = vsel %vm4380, %v6997, %v7022
      %v7024 = vsel %vm4376, %v7000, %v6998
      %v7025 = vsel %vm4378, %v7002, %v7024
      %v7026 = vsel %vm4380, %v7004, %v7025
      %v7027 = vsel %vm4376, %v7001, %v6999
      %v7028 = vsel %vm4378, %v7003, %v7027
      %v7029 = vsel %vm4380, %v7005, %v7028
      %v7030 = vpack.c.b16 %v7008, %v7008
      %v7031 = vpack.c.b16 %v7011, %v7011
      %v7032 = vpack.c.b16 %v7014, %v7014
      %v7033 = vpack.c.b16 %v7017, %v7017
      %v7034 = vpack.c.b16 %v7020, %v7020
      %v7035 = vpack.c.b16 %v7023, %v7023
      %v7036 = vpack.c.b16 %v7026, %v7026
      %v7037 = vpack.c.b16 %v7029, %v7029
      %v7039 = vshrl.u32 %v7030, 16
      %v7041 = vrot.slane %v7039, 7
      %v7042 = vshll.u32 %v7030, 16
      %v7044 = vor.u32 %v7041, %v7042
      %v7046 = vshrl.u32 %v7031, 16
      %v7048 = vrot.slane %v7046, 7
      %v7049 = vshll.u32 %v7031, 16
      %v7051 = vor.u32 %v7048, %v7049
      %v7053 = vshrl.u32 %v7032, 16
      %v7055 = vrot.slane %v7053, 7
      %v7056 = vshll.u32 %v7032, 16
      %v7058 = vor.u32 %v7055, %v7056
      %v7060 = vshrl.u32 %v7033, 16
      %v7062 = vrot.slane %v7060, 7
      %v7063 = vshll.u32 %v7033, 16
      %v7065 = vor.u32 %v7062, %v7063
      %v7067 = vshrl.u32 %v7034, 16
      %v7069 = vrot.slane %v7067, 7
      %v7070 = vshll.u32 %v7034, 16
      %v7072 = vor.u32 %v7069, %v7070
      %v7074 = vshrl.u32 %v7035, 16
      %v7076 = vrot.slane %v7074, 7
      %v7077 = vshll.u32 %v7035, 16
      %v7079 = vor.u32 %v7076, %v7077
      %v7081 = vshrl.u32 %v7036, 16
      %v7083 = vrot.slane %v7081, 7
      %v7084 = vshll.u32 %v7036, 16
      %v7086 = vor.u32 %v7083, %v7084
      %v7088 = vshrl.u32 %v7037, 16
      %v7090 = vrot.slane %v7088, 7
      %v7091 = vshll.u32 %v7037, 16
      %v7093 = vor.u32 %v7090, %v7091
      %v7102 = vsel %vm1072, 0, %v7044
      %v7103 = vsel %vm1072, 0, %v7051
      %v7104 = vsel %vm1072, 0, %v7058
      %v7105 = vsel %vm1072, 0, %v7065
      %v7106 = vsel %vm1072, 0, %v7072
      %v7107 = vsel %vm1072, 0, %v7079
      %v7108 = vsel %vm1072, 0, %v7086
      %v7109 = vsel %vm1072, 0, %v7093
      %vm7110 = vcmask 1042432
      %vm7111 = vsmask.f32 2304
      %vm7112 = vmand %vm7110, %vm7111
      %v7113 = vsel %vm7112, %v1073, 0
      %v7114 = vsel %vm7112, %v7102, 0
      %v7115 = vsel %vm7112, %v7103, 0
      %v7116 = vsel %vm7112, %v7104, 0
      %v7117 = vsel %vm7112, %v7105, 0
      %v7118 = vsel %vm7112, %v7106, 0
      %v7119 = vsel %vm7112, %v7107, 0
      %v7120 = vsel %vm7112, %v7108, 0
      %v7121 = vsel %vm7112, %v7109, 0
      %v7123 = vshrl.u32 %v7113, 16
      %v7125 = vshll.u32 %v7113, 16
      %v7127 = vrot.slane %v7125, 1
      %v7128 = vor.u32 %v7123, %v7127
      %v7130 = vshrl.u32 %v7114, 16
      %v7132 = vshll.u32 %v7114, 16
      %v7134 = vrot.slane %v7132, 1
      %v7135 = vor.u32 %v7130, %v7134
      %v7137 = vshrl.u32 %v7115, 16
      %v7139 = vshll.u32 %v7115, 16
      %v7141 = vrot.slane %v7139, 1
      %v7142 = vor.u32 %v7137, %v7141
      %v7144 = vshrl.u32 %v7116, 16
      %v7146 = vshll.u32 %v7116, 16
      %v7148 = vrot.slane %v7146, 1
      %v7149 = vor.u32 %v7144, %v7148
      %v7151 = vshrl.u32 %v7117, 16
      %v7153 = vshll.u32 %v7117, 16
      %v7155 = vrot.slane %v7153, 1
      %v7156 = vor.u32 %v7151, %v7155
      %v7158 = vshrl.u32 %v7118, 16
      %v7160 = vshll.u32 %v7118, 16
      %v7162 = vrot.slane %v7160, 1
      %v7163 = vor.u32 %v7158, %v7162
      %v7165 = vshrl.u32 %v7119, 16
      %v7167 = vshll.u32 %v7119, 16
      %v7169 = vrot.slane %v7167, 1
      %v7170 = vor.u32 %v7165, %v7169
      %v7178 = vrot.slane %v7113, 1
      %v7179 = vrot.slane %v7114, 1
      %v7180 = vrot.slane %v7115, 1
      %v7181 = vrot.slane %v7116, 1
      %v7182 = vrot.slane %v7117, 1
      %v7183 = vrot.slane %v7118, 1
      %v7184 = vrot.slane %v7119, 1
      %v7186 = vshrl.u32 %v7120, 16
      %v7188 = vshll.u32 %v7120, 16
      %v7190 = vrot.slane %v7188, 1
      %v7191 = vor.u32 %v7186, %v7190
      %v7193 = vshrl.u32 %v7121, 16
      %v7195 = vshll.u32 %v7121, 16
      %v7197 = vrot.slane %v7195, 1
      %v7198 = vor.u32 %v7193, %v7197
      %v7201 = vrot.slane %v7120, 1
      %v7202 = vrot.slane %v7121, 1
      %v7203 = vcombine.low %v7113, %v7113
      %v7204 = vcombine.low %v7128, %v7128
      %v7206 = vunpack.c.l.s4 1983009808
      %v7207 = vunpack.c.0.s8 %v7206
      %v7208 = vlaneseq
      %v7209 = vshrl.u32 %v7208, 7
      %v7210 = vsub.s32 %v7207, %v7209
      %v7211 = vrot.slane %v7203, %v7210
      %v7213 = vunpack.c.l.s4 1983009808
      %v7214 = vunpack.c.0.s8 %v7213
      %v7215 = vlaneseq
      %v7216 = vshrl.u32 %v7215, 7
      %v7217 = vsub.s32 %v7214, %v7216
      %v7218 = vrot.slane %v7204, %v7217
      %v7219 = vcombine.low %v7211, %v7218
      %v7220 = vcombine.low %v7178, %v7178
      %v7221 = vcombine.low %v7114, %v7115
      %v7223 = vunpack.c.l.s4 1983009808
      %v7224 = vunpack.c.0.s8 %v7223
      %v7225 = vlaneseq
      %v7226 = vshrl.u32 %v7225, 7
      %v7227 = vsub.s32 %v7224, %v7226
      %v7228 = vrot.slane %v7220, %v7227
      %v7230 = vunpack.c.l.s4 1983009808
      %v7231 = vunpack.c.0.s8 %v7230
      %v7232 = vlaneseq
      %v7233 = vshrl.u32 %v7232, 7
      %v7234 = vsub.s32 %v7231, %v7233
      %v7235 = vrot.slane %v7221, %v7234
      %v7236 = vcombine.low %v7228, %v7235
      %v7237 = vcombine.low %v7135, %v7142
      %v7238 = vcombine.low %v7179, %v7180
      %v7240 = vunpack.c.l.s4 1983009808
      %v7241 = vunpack.c.0.s8 %v7240
      %v7242 = vlaneseq
      %v7243 = vshrl.u32 %v7242, 7
      %v7244 = vsub.s32 %v7241, %v7243
      %v7245 = vrot.slane %v7237, %v7244
      %v7247 = vunpack.c.l.s4 1983009808
      %v7248 = vunpack.c.0.s8 %v7247
      %v7249 = vlaneseq
      %v7250 = vshrl.u32 %v7249, 7
      %v7251 = vsub.s32 %v7248, %v7250
      %v7252 = vrot.slane %v7238, %v7251
      %v7253 = vcombine.low %v7245, %v7252
      %v7254 = vcombine.low %v7116, %v7117
      %v7255 = vcombine.low %v7149, %v7156
      %v7257 = vunpack.c.l.s4 1983009808
      %v7258 = vunpack.c.0.s8 %v7257
      %v7259 = vlaneseq
      %v7260 = vshrl.u32 %v7259, 7
      %v7261 = vsub.s32 %v7258, %v7260
      %v7262 = vrot.slane %v7254, %v7261
      %v7264 = vunpack.c.l.s4 1983009808
      %v7265 = vunpack.c.0.s8 %v7264
      %v7266 = vlaneseq
      %v7267 = vshrl.u32 %v7266, 7
      %v7268 = vsub.s32 %v7265, %v7267
      %v7269 = vrot.slane %v7255, %v7268
      %v7270 = vcombine.low %v7262, %v7269
      %v7271 = vcombine.low %v7181, %v7182
      %v7273 = vunpack.c.l.s4 1983009808
      %v7274 = vunpack.c.0.s8 %v7273
      %v7275 = vlaneseq
      %v7276 = vshrl.u32 %v7275, 7
      %v7277 = vsub.s32 %v7274, %v7276
      %v7278 = vrot.slane %v7271, %v7277
      %v7279 = vcombine.low %v7235, %v7245
      %v7280 = vcombine.low %v7252, %v7262
      %v7281 = vcombine.low %v7269, %v7278
      %v7282 = vcombine.low %v7118, %v7119
      %v7283 = vcombine.low %v7163, %v7170
      %v7285 = vunpack.c.l.s4 1983009808
      %v7286 = vunpack.c.0.s8 %v7285
      %v7287 = vlaneseq
      %v7288 = vshrl.u32 %v7287, 7
      %v7289 = vsub.s32 %v7286, %v7288
      %v7290 = vrot.slane %v7282, %v7289
      %v7292 = vunpack.c.l.s4 1983009808
      %v7293 = vunpack.c.0.s8 %v7292
      %v7294 = vlaneseq
      %v7295 = vshrl.u32 %v7294, 7
      %v7296 = vsub.s32 %v7293, %v7295
      %v7297 = vrot.slane %v7283, %v7296
      %v7298 = vcombine.low %v7290, %v7297
      %v7299 = vcombine.low %v7183, %v7184
      %v7301 = vunpack.c.l.s4 1983009808
      %v7302 = vunpack.c.0.s8 %v7301
      %v7303 = vlaneseq
      %v7304 = vshrl.u32 %v7303, 7
      %v7305 = vsub.s32 %v7302, %v7304
      %v7306 = vrot.slane %v7299, %v7305
      %v7307 = vcombine.low %v7278, %v7290
      %v7308 = vcombine.low %v7297, %v7306
      %v7309 = vcombine.low %v7120, %v7121
      %v7310 = vcombine.low %v7191, %v7198
      %v7312 = vunpack.c.l.s4 1983009808
      %v7313 = vunpack.c.0.s8 %v7312
      %v7314 = vlaneseq
      %v7315 = vshrl.u32 %v7314, 7
      %v7316 = vsub.s32 %v7313, %v7315
      %v7317 = vrot.slane %v7309, %v7316
      %v7319 = vunpack.c.l.s4 1983009808
      %v7320 = vunpack.c.0.s8 %v7319
      %v7321 = vlaneseq
      %v7322 = vshrl.u32 %v7321, 7
      %v7323 = vsub.s32 %v7320, %v7322
      %v7324 = vrot.slane %v7310, %v7323
      %v7325 = vcombine.low %v7317, %v7324
      %v7326 = vcombine.low %v7201, %v7202
      %v7328 = vunpack.c.l.s4 1983009808
      %v7329 = vunpack.c.0.s8 %v7328
      %v7330 = vlaneseq
      %v7331 = vshrl.u32 %v7330, 7
      %v7332 = vsub.s32 %v7329, %v7331
      %v7333 = vrot.slane %v7326, %v7332
      %v7334 = vcombine.low %v7306, %v7317
      %v7335 = vcombine.low %v7324, %v7333
      %v7336 = vld [vmem:[%s7] sm:$0xf]
      %v7337 = vld [vmem:[%s7 + $0x4] sm:$0xf]
      %v7338 = vld [vmem:[%s7 + $0x8] sm:$0xf]
      %v7339 = vld [vmem:[%s7 + $0xc] sm:$0xf]
      %v7340 = vld [vmem:[%s7 + $0x10] sm:$0xf]
      %v7341 = vld [vmem:[%s7 + $0x14] sm:$0xf]
      %v7342 = vld [vmem:[%s7 + $0x18] sm:$0xf]
      %v7343 = vld [vmem:[%s7 + $0x1c] sm:$0xf]
      %v7344 = vld [vmem:[%s7 + $0x20] sm:$0xf]
      %v7345 = vld [vmem:[%s7 + $0x24] sm:$0xf]
      %v7346 = vld [vmem:[%s7 + $0x28] sm:$0xf]
      %v7347 = vld [vmem:[%s7 + $0x2c] sm:$0xf]
      %v7348 = vld [vmem:[%s7 + $0x30] sm:$0xf]
      %v7349 = vld [vmem:[%s7 + $0x34] sm:$0xf]
      %v7350 = vld [vmem:[%s7 + $0x38] sm:$0xf]
      %v7351 = vld [vmem:[%s7 + $0x3c] sm:$0xf]
      %v7352 = vld [vmem:[%s7 + $0x40] sm:$0xf]
      %v7353 = vld [vmem:[%s7 + $0x44] sm:$0xf]
      %v7354 = vld [vmem:[%s7 + $0x48] sm:$0xf]
      %v7355 = vld [vmem:[%s7 + $0x4c] sm:$0xf]
      %v7356 = vld [vmem:[%s7 + $0x50] sm:$0xf]
      %v7357 = vld [vmem:[%s7 + $0x54] sm:$0xf]
      %v7358 = vld [vmem:[%s7 + $0x58] sm:$0xf]
      %v7359 = vld [vmem:[%s7 + $0x5c] sm:$0xf]
      %v7360 = vld [vmem:[%s7 + $0x60] sm:$0xf]
      %v7361 = vld [vmem:[%s7 + $0x64] sm:$0xf]
      %v7362 = vld [vmem:[%s7 + $0x68] sm:$0xf]
      %v7363 = vld [vmem:[%s7 + $0x6c] sm:$0xf]
      %v7364 = vld [vmem:[%s7 + $0x70] sm:$0xf]
      %v7365 = vld [vmem:[%s7 + $0x74] sm:$0xf]
      %v7366 = vld [vmem:[%s7 + $0x78] sm:$0xf]
      %v7367 = vld [vmem:[%s7 + $0x7c] sm:$0xf]
      %v7368 = vld [vmem:[%s7 + $0x80] sm:$0xf]
      %v7369 = vld [vmem:[%s7 + $0x84] sm:$0xf]
      %v7370 = vld [vmem:[%s7 + $0x88] sm:$0xf]
      %v7371 = vld [vmem:[%s7 + $0x8c] sm:$0xf]
      %v7372 = vld [vmem:[%s7 + $0x90] sm:$0xf]
      %v7373 = vld [vmem:[%s7 + $0x94] sm:$0xf]
      %v7374 = vld [vmem:[%s7 + $0x98] sm:$0xf]
      %v7375 = vld [vmem:[%s7 + $0x9c] sm:$0xf]
      %v7376 = vld [vmem:[%s7 + $0xa0] sm:$0xf]
      %v7377 = vld [vmem:[%s7 + $0xa4] sm:$0xf]
      %v7378 = vld [vmem:[%s7 + $0xa8] sm:$0xf]
      %v7379 = vld [vmem:[%s7 + $0xac] sm:$0xf]
      %v7380 = vld [vmem:[%s7 + $0xb0] sm:$0xf]
      %v7381 = vld [vmem:[%s7 + $0xb4] sm:$0xf]
      %v7382 = vld [vmem:[%s7 + $0xb8] sm:$0xf]
      %v7383 = vld [vmem:[%s7 + $0xbc] sm:$0xf]
      %v7384 = vld [vmem:[%s7 + $0xc0] sm:$0xf]
      %v7385 = vld [vmem:[%s7 + $0xc4] sm:$0xf]
      %v7386 = vld [vmem:[%s7 + $0xc8] sm:$0xf]
      %v7387 = vld [vmem:[%s7 + $0xcc] sm:$0xf]
      %v7388 = vld [vmem:[%s7 + $0xd0] sm:$0xf]
      %v7389 = vld [vmem:[%s7 + $0xd4] sm:$0xf]
      %v7390 = vld [vmem:[%s7 + $0xd8] sm:$0xf]
      %v7391 = vld [vmem:[%s7 + $0xdc] sm:$0xf]
      %v7392 = vld [vmem:[%s7 + $0xe0] sm:$0xf]
      %v7393 = vld [vmem:[%s7 + $0xe4] sm:$0xf]
      %v7394 = vld [vmem:[%s7 + $0xe8] sm:$0xf]
      %v7395 = vld [vmem:[%s7 + $0xec] sm:$0xf]
      %v7396 = vld [vmem:[%s7 + $0xf0] sm:$0xf]
      %v7397 = vld [vmem:[%s7 + $0xf4] sm:$0xf]
      %v7398 = vld [vmem:[%s7 + $0xf8] sm:$0xf]
      %v7399 = vld [vmem:[%s7 + $0xfc] sm:$0xf]
      %v7400 = vld [vmem:[%s7 + $0x100] sm:$0xf]
      %v7401 = vld [vmem:[%s7 + $0x104] sm:$0xf]
      %v7402 = vld [vmem:[%s7 + $0x108] sm:$0xf]
      %v7403 = vld [vmem:[%s7 + $0x10c] sm:$0xf]
      %v7404 = vld [vmem:[%s7 + $0x110] sm:$0xf]
      %v7405 = vld [vmem:[%s7 + $0x114] sm:$0xf]
      %v7406 = vld [vmem:[%s7 + $0x118] sm:$0xf]
      %v7407 = vld [vmem:[%s7 + $0x11c] sm:$0xf]
      %v7408 = vld [vmem:[%s7 + $0x120] sm:$0xf]
      %v7409 = vld [vmem:[%s7 + $0x124] sm:$0xf]
      %v7410 = vld [vmem:[%s7 + $0x128] sm:$0xf]
      %v7411 = vld [vmem:[%s7 + $0x12c] sm:$0xf]
      %v7412 = vld [vmem:[%s7 + $0x130] sm:$0xf]
      %v7413 = vld [vmem:[%s7 + $0x134] sm:$0xf]
      %v7414 = vld [vmem:[%s7 + $0x138] sm:$0xf]
      %v7415 = vld [vmem:[%s7 + $0x13c] sm:$0xf]
      %v7416 = vld [vmem:[%s7 + $0x140] sm:$0xf]
      %v7417 = vld [vmem:[%s7 + $0x144] sm:$0xf]
      %v7418 = vld [vmem:[%s7 + $0x148] sm:$0xf]
      %v7419 = vld [vmem:[%s7 + $0x14c] sm:$0xf]
      %v7420 = vld [vmem:[%s7 + $0x150] sm:$0xf]
      %v7421 = vld [vmem:[%s7 + $0x154] sm:$0xf]
      %v7422 = vld [vmem:[%s7 + $0x158] sm:$0xf]
      %v7423 = vld [vmem:[%s7 + $0x15c] sm:$0xf]
      %v7424 = vld [vmem:[%s7 + $0x160] sm:$0xf]
      %v7425 = vld [vmem:[%s7 + $0x164] sm:$0xf]
      %v7426 = vld [vmem:[%s7 + $0x168] sm:$0xf]
      %v7427 = vld [vmem:[%s7 + $0x16c] sm:$0xf]
      %v7428 = vld [vmem:[%s7 + $0x170] sm:$0xf]
      %v7429 = vld [vmem:[%s7 + $0x174] sm:$0xf]
      %v7430 = vld [vmem:[%s7 + $0x178] sm:$0xf]
      %v7431 = vld [vmem:[%s7 + $0x17c] sm:$0xf]
      %v7432 = vld [vmem:[%s7 + $0x180] sm:$0xf]
      %v7433 = vld [vmem:[%s7 + $0x184] sm:$0xf]
      %v7434 = vld [vmem:[%s7 + $0x188] sm:$0xf]
      %v7435 = vld [vmem:[%s7 + $0x18c] sm:$0xf]
      %v7436 = vld [vmem:[%s7 + $0x190] sm:$0xf]
      %v7437 = vld [vmem:[%s7 + $0x194] sm:$0xf]
      %v7438 = vld [vmem:[%s7 + $0x198] sm:$0xf]
      %v7439 = vld [vmem:[%s7 + $0x19c] sm:$0xf]
      %v7440 = vld [vmem:[%s7 + $0x1a0] sm:$0xf]
      %v7441 = vld [vmem:[%s7 + $0x1a4] sm:$0xf]
      %v7442 = vld [vmem:[%s7 + $0x1a8] sm:$0xf]
      %v7443 = vld [vmem:[%s7 + $0x1ac] sm:$0xf]
      %v7444 = vld [vmem:[%s7 + $0x1b0] sm:$0xf]
      %v7445 = vld [vmem:[%s7 + $0x1b4] sm:$0xf]
      %v7446 = vld [vmem:[%s7 + $0x1b8] sm:$0xf]
      %v7447 = vld [vmem:[%s7 + $0x1bc] sm:$0xf]
      %v7448 = vld [vmem:[%s7 + $0x1c0] sm:$0xf]
      %v7449 = vld [vmem:[%s7 + $0x1c4] sm:$0xf]
      %v7450 = vld [vmem:[%s7 + $0x1c8] sm:$0xf]
      %v7451 = vld [vmem:[%s7 + $0x1cc] sm:$0xf]
      %v7452 = vld [vmem:[%s7 + $0x1d0] sm:$0xf]
      %v7453 = vld [vmem:[%s7 + $0x1d4] sm:$0xf]
      %v7454 = vld [vmem:[%s7 + $0x1d8] sm:$0xf]
      %v7455 = vld [vmem:[%s7 + $0x1dc] sm:$0xf]
      %v7456 = vld [vmem:[%s7 + $0x1e0] sm:$0xf]
      %v7457 = vld [vmem:[%s7 + $0x1e4] sm:$0xf]
      %v7458 = vld [vmem:[%s7 + $0x1e8] sm:$0xf]
      %v7459 = vld [vmem:[%s7 + $0x1ec] sm:$0xf]
      %v7460 = vld [vmem:[%s7 + $0x1f0] sm:$0xf]
      %v7461 = vld [vmem:[%s7 + $0x1f4] sm:$0xf]
      %v7462 = vld [vmem:[%s7 + $0x1f8] sm:$0xf]
      %v7463 = vld [vmem:[%s7 + $0x1fc] sm:$0xf]
      %v7464 = vld [vmem:[%s7 + $0x200] sm:$0xf]
      %v7465 = vld [vmem:[%s7 + $0x204] sm:$0xf]
      %v7466 = vld [vmem:[%s7 + $0x208] sm:$0xf]
      %v7467 = vld [vmem:[%s7 + $0x20c] sm:$0xf]
      %v7468 = vld [vmem:[%s7 + $0x210] sm:$0xf]
      %v7469 = vld [vmem:[%s7 + $0x214] sm:$0xf]
      %v7470 = vld [vmem:[%s7 + $0x218] sm:$0xf]
      %v7471 = vld [vmem:[%s7 + $0x21c] sm:$0xf]
      %v7472 = vld [vmem:[%s7 + $0x220] sm:$0xf]
      %v7473 = vld [vmem:[%s7 + $0x224] sm:$0xf]
      %v7474 = vld [vmem:[%s7 + $0x228] sm:$0xf]
      %v7475 = vld [vmem:[%s7 + $0x22c] sm:$0xf]
      %v7476 = vld [vmem:[%s7 + $0x230] sm:$0xf]
      %v7477 = vld [vmem:[%s7 + $0x234] sm:$0xf]
      %v7478 = vld [vmem:[%s7 + $0x238] sm:$0xf]
      %v7479 = vld [vmem:[%s7 + $0x23c] sm:$0xf]
      %v7480 = vld [vmem:[%s7 + $0x240] sm:$0xf]
      %v7481 = vld [vmem:[%s7 + $0x244] sm:$0xf]
      %v7482 = vld [vmem:[%s7 + $0x248] sm:$0xf]
      %v7483 = vld [vmem:[%s7 + $0x24c] sm:$0xf]
      %v7484 = vld [vmem:[%s7 + $0x250] sm:$0xf]
      %v7485 = vld [vmem:[%s7 + $0x254] sm:$0xf]
      %v7486 = vld [vmem:[%s7 + $0x258] sm:$0xf]
      %v7487 = vld [vmem:[%s7 + $0x25c] sm:$0xf]
      %v7488 = vld [vmem:[%s7 + $0x260] sm:$0xf]
      %v7489 = vld [vmem:[%s7 + $0x264] sm:$0xf]
      %v7490 = vld [vmem:[%s7 + $0x268] sm:$0xf]
      %v7491 = vld [vmem:[%s7 + $0x26c] sm:$0xf]
      %v7492 = vld [vmem:[%s7 + $0x270] sm:$0xf]
      %v7493 = vld [vmem:[%s7 + $0x274] sm:$0xf]
      %v7494 = vld [vmem:[%s7 + $0x278] sm:$0xf]
      %v7495 = vld [vmem:[%s7 + $0x27c] sm:$0xf]
      %v7496 = vld [vmem:[%s7 + $0x280] sm:$0xf]
      %v7497 = vld [vmem:[%s7 + $0x284] sm:$0xf]
      %v7498 = vld [vmem:[%s7 + $0x288] sm:$0xf]
      %v7499 = vld [vmem:[%s7 + $0x28c] sm:$0xf]
      %v7500 = vld [vmem:[%s7 + $0x290] sm:$0xf]
      %v7501 = vld [vmem:[%s7 + $0x294] sm:$0xf]
      %v7502 = vld [vmem:[%s7 + $0x298] sm:$0xf]
      %v7503 = vld [vmem:[%s7 + $0x29c] sm:$0xf]
      %v7504 = vld [vmem:[%s7 + $0x2a0] sm:$0xf]
      %v7505 = vld [vmem:[%s7 + $0x2a4] sm:$0xf]
      %v7506 = vld [vmem:[%s7 + $0x2a8] sm:$0xf]
      %v7507 = vld [vmem:[%s7 + $0x2ac] sm:$0xf]
      %v7508 = vld [vmem:[%s7 + $0x2b0] sm:$0xf]
      %v7509 = vld [vmem:[%s7 + $0x2b4] sm:$0xf]
      %v7510 = vld [vmem:[%s7 + $0x2b8] sm:$0xf]
      %v7511 = vld [vmem:[%s7 + $0x2bc] sm:$0xf]
      %v7512 = vld [vmem:[%s7 + $0x2c0] sm:$0xf]
      %v7513 = vld [vmem:[%s7 + $0x2c4] sm:$0xf]
      %v7514 = vld [vmem:[%s7 + $0x2c8] sm:$0xf]
      %v7515 = vld [vmem:[%s7 + $0x2cc] sm:$0xf]
      %v7516 = vld [vmem:[%s7 + $0x2d0] sm:$0xf]
      %v7517 = vld [vmem:[%s7 + $0x2d4] sm:$0xf]
      %v7518 = vld [vmem:[%s7 + $0x2d8] sm:$0xf]
      %v7519 = vld [vmem:[%s7 + $0x2dc] sm:$0xf]
      %v7520 = vld [vmem:[%s7 + $0x2e0] sm:$0xf]
      %v7521 = vld [vmem:[%s7 + $0x2e4] sm:$0xf]
      %v7522 = vld [vmem:[%s7 + $0x2e8] sm:$0xf]
      %v7523 = vld [vmem:[%s7 + $0x2ec] sm:$0xf]
      %v7524 = vld [vmem:[%s7 + $0x2f0] sm:$0xf]
      %v7525 = vld [vmem:[%s7 + $0x2f4] sm:$0xf]
      %v7526 = vld [vmem:[%s7 + $0x2f8] sm:$0xf]
      %v7527 = vld [vmem:[%s7 + $0x2fc] sm:$0xf]
      %v7528 = vld [vmem:[%s7 + $0x300] sm:$0xf]
      %v7529 = vld [vmem:[%s7 + $0x304] sm:$0xf]
      %v7530 = vld [vmem:[%s7 + $0x308] sm:$0xf]
      %v7531 = vld [vmem:[%s7 + $0x30c] sm:$0xf]
      %v7532 = vld [vmem:[%s7 + $0x310] sm:$0xf]
      %v7533 = vld [vmem:[%s7 + $0x314] sm:$0xf]
      %v7534 = vld [vmem:[%s7 + $0x318] sm:$0xf]
      %v7535 = vld [vmem:[%s7 + $0x31c] sm:$0xf]
      %v7536 = vld [vmem:[%s7 + $0x320] sm:$0xf]
      %v7537 = vld [vmem:[%s7 + $0x324] sm:$0xf]
      %v7538 = vld [vmem:[%s7 + $0x328] sm:$0xf]
      %v7539 = vld [vmem:[%s7 + $0x32c] sm:$0xf]
      %v7540 = vld [vmem:[%s7 + $0x330] sm:$0xf]
      %v7541 = vld [vmem:[%s7 + $0x334] sm:$0xf]
      %v7542 = vld [vmem:[%s7 + $0x338] sm:$0xf]
      %v7543 = vld [vmem:[%s7 + $0x33c] sm:$0xf]
      %v7544 = vld [vmem:[%s7 + $0x340] sm:$0xf]
      %v7545 = vld [vmem:[%s7 + $0x344] sm:$0xf]
      %v7546 = vld [vmem:[%s7 + $0x348] sm:$0xf]
      %v7547 = vld [vmem:[%s7 + $0x34c] sm:$0xf]
      %v7548 = vld [vmem:[%s7 + $0x350] sm:$0xf]
      %v7549 = vld [vmem:[%s7 + $0x354] sm:$0xf]
      %v7550 = vld [vmem:[%s7 + $0x358] sm:$0xf]
      %v7551 = vld [vmem:[%s7 + $0x35c] sm:$0xf]
      %v7552 = vld [vmem:[%s7 + $0x360] sm:$0xf]
      %v7553 = vld [vmem:[%s7 + $0x364] sm:$0xf]
      %v7554 = vld [vmem:[%s7 + $0x368] sm:$0xf]
      %v7555 = vld [vmem:[%s7 + $0x36c] sm:$0xf]
      %v7556 = vld [vmem:[%s7 + $0x370] sm:$0xf]
      %v7557 = vld [vmem:[%s7 + $0x374] sm:$0xf]
      %v7558 = vld [vmem:[%s7 + $0x378] sm:$0xf]
      %v7559 = vld [vmem:[%s7 + $0x37c] sm:$0xf]
      %v7560 = vld [vmem:[%s7 + $0x380] sm:$0xf]
      %v7561 = vld [vmem:[%s7 + $0x384] sm:$0xf]
      %v7562 = vld [vmem:[%s7 + $0x388] sm:$0xf]
      %v7563 = vld [vmem:[%s7 + $0x38c] sm:$0xf]
      %v7564 = vld [vmem:[%s7 + $0x390] sm:$0xf]
      %v7565 = vld [vmem:[%s7 + $0x394] sm:$0xf]
      %v7566 = vld [vmem:[%s7 + $0x398] sm:$0xf]
      %v7567 = vld [vmem:[%s7 + $0x39c] sm:$0xf]
      %v7568 = vld [vmem:[%s7 + $0x3a0] sm:$0xf]
      %v7569 = vld [vmem:[%s7 + $0x3a4] sm:$0xf]
      %v7570 = vld [vmem:[%s7 + $0x3a8] sm:$0xf]
      %v7571 = vld [vmem:[%s7 + $0x3ac] sm:$0xf]
      %v7572 = vld [vmem:[%s7 + $0x3b0] sm:$0xf]
      %v7573 = vld [vmem:[%s7 + $0x3b4] sm:$0xf]
      %v7574 = vld [vmem:[%s7 + $0x3b8] sm:$0xf]
      %v7575 = vld [vmem:[%s7 + $0x3bc] sm:$0xf]
      %v7576 = vld [vmem:[%s7 + $0x3c0] sm:$0xf]
      %v7577 = vld [vmem:[%s7 + $0x3c4] sm:$0xf]
      %v7578 = vld [vmem:[%s7 + $0x3c8] sm:$0xf]
      %v7579 = vld [vmem:[%s7 + $0x3cc] sm:$0xf]
      %v7580 = vld [vmem:[%s7 + $0x3d0] sm:$0xf]
      %v7581 = vld [vmem:[%s7 + $0x3d4] sm:$0xf]
      %v7582 = vld [vmem:[%s7 + $0x3d8] sm:$0xf]
      %v7583 = vld [vmem:[%s7 + $0x3dc] sm:$0xf]
      %v7584 = vld [vmem:[%s7 + $0x3e0] sm:$0xf]
      %v7585 = vld [vmem:[%s7 + $0x3e4] sm:$0xf]
      %v7586 = vld [vmem:[%s7 + $0x3e8] sm:$0xf]
      %v7587 = vld [vmem:[%s7 + $0x3ec] sm:$0xf]
      %v7588 = vld [vmem:[%s7 + $0x3f0] sm:$0xf]
      %v7589 = vld [vmem:[%s7 + $0x3f4] sm:$0xf]
      %v7590 = vld [vmem:[%s7 + $0x3f8] sm:$0xf]
      %v7591 = vld [vmem:[%s7 + $0x3fc] sm:$0xf]
      %v7592 = vld [vmem:[%s7 + $0x400] sm:$0xf]
      %v7593 = vld [vmem:[%s7 + $0x404] sm:$0xf]
      %v7594 = vld [vmem:[%s7 + $0x408] sm:$0xf]
      %v7595 = vld [vmem:[%s7 + $0x40c] sm:$0xf]
      %v7596 = vld [vmem:[%s7 + $0x410] sm:$0xf]
      %v7597 = vld [vmem:[%s7 + $0x414] sm:$0xf]
      %v7598 = vld [vmem:[%s7 + $0x418] sm:$0xf]
      %v7599 = vld [vmem:[%s7 + $0x41c] sm:$0xf]
      %v7600 = vld [vmem:[%s7 + $0x420] sm:$0xf]
      %v7601 = vld [vmem:[%s7 + $0x424] sm:$0xf]
      %v7602 = vld [vmem:[%s7 + $0x428] sm:$0xf]
      %v7603 = vld [vmem:[%s7 + $0x42c] sm:$0xf]
      %v7604 = vld [vmem:[%s7 + $0x430] sm:$0xf]
      %v7605 = vld [vmem:[%s7 + $0x434] sm:$0xf]
      %v7606 = vld [vmem:[%s7 + $0x438] sm:$0xf]
      %v7607 = vld [vmem:[%s7 + $0x43c] sm:$0xf]
      %v7608 = vld [vmem:[%s7 + $0x440] sm:$0xf]
      %v7609 = vld [vmem:[%s7 + $0x444] sm:$0xf]
      %v7610 = vld [vmem:[%s7 + $0x448] sm:$0xf]
      %v7611 = vld [vmem:[%s7 + $0x44c] sm:$0xf]
      %v7612 = vld [vmem:[%s7 + $0x450] sm:$0xf]
      %v7613 = vld [vmem:[%s7 + $0x454] sm:$0xf]
      %v7614 = vld [vmem:[%s7 + $0x458] sm:$0xf]
      %v7615 = vld [vmem:[%s7 + $0x45c] sm:$0xf]
      %v7616 = vld [vmem:[%s7 + $0x460] sm:$0xf]
      %v7617 = vld [vmem:[%s7 + $0x464] sm:$0xf]
      %v7618 = vld [vmem:[%s7 + $0x468] sm:$0xf]
      %v7619 = vld [vmem:[%s7 + $0x46c] sm:$0xf]
      %v7620 = vld [vmem:[%s7 + $0x470] sm:$0xf]
      %v7621 = vld [vmem:[%s7 + $0x474] sm:$0xf]
      %v7622 = vld [vmem:[%s7 + $0x478] sm:$0xf]
      %v7623 = vld [vmem:[%s7 + $0x47c] sm:$0xf]
      %v7624 = vld [vmem:[%s8] sm:$0x1]
      %v7626 = vlaneseq
      %v7627 = vshrl.u32 %v7626, 7
      %v7628 = vsub.s32 0, %v7627
      %v7629 = vrot.slane %v7624, %v7628
      %v7631 = vcombine.low %v7219, %v7279
      %v7632 = vcombine.high %v7219, %v7279
      %v7633 = vcombine.low %v7270, %v7298
      %v7634 = vcombine.high %v7270, %v7298
      %v7636 = vunpack.c.l.s4 1983009808
      %v7637 = vunpack.c.0.s8 %v7636
      %v7638 = vlaneseq
      %v7639 = vshrl.u32 %v7638, 7
      %v7640 = vsub.s32 %v7637, %v7639
      %v7641 = vrot.slane %v7631, %v7640
      %v7643 = vunpack.c.l.s4 1983009808
      %v7644 = vunpack.c.0.s8 %v7643
      %v7645 = vlaneseq
      %v7646 = vshrl.u32 %v7645, 7
      %v7647 = vsub.s32 %v7644, %v7646
      %v7648 = vrot.slane %v7632, %v7647
      %v7650 = vunpack.c.l.s4 1983009808
      %v7651 = vunpack.c.0.s8 %v7650
      %v7652 = vlaneseq
      %v7653 = vshrl.u32 %v7652, 7
      %v7654 = vsub.s32 %v7651, %v7653
      %v7655 = vrot.slane %v7633, %v7654
      %v7657 = vunpack.c.l.s4 1983009808
      %v7658 = vunpack.c.0.s8 %v7657
      %v7659 = vlaneseq
      %v7660 = vshrl.u32 %v7659, 7
      %v7661 = vsub.s32 %v7658, %v7660
      %v7662 = vrot.slane %v7634, %v7661
      %v7663 = vcombine.low %v7641, %v7655
      %v7664 = vcombine.high %v7641, %v7655
      %v7665 = vcombine.low %v7648, %v7662
      %v7666 = vcombine.high %v7648, %v7662
      %v7667 = vcombine.low %v7236, %v7280
      %v7668 = vcombine.high %v7236, %v7280
      %v7669 = vcombine.low %v7307, %v7334
      %v7670 = vcombine.high %v7307, %v7334
      %v7672 = vunpack.c.l.s4 1983009808
      %v7673 = vunpack.c.0.s8 %v7672
      %v7674 = vlaneseq
      %v7675 = vshrl.u32 %v7674, 7
      %v7676 = vsub.s32 %v7673, %v7675
      %v7677 = vrot.slane %v7667, %v7676
      %v7679 = vunpack.c.l.s4 1983009808
      %v7680 = vunpack.c.0.s8 %v7679
      %v7681 = vlaneseq
      %v7682 = vshrl.u32 %v7681, 7
      %v7683 = vsub.s32 %v7680, %v7682
      %v7684 = vrot.slane %v7668, %v7683
      %v7686 = vunpack.c.l.s4 1983009808
      %v7687 = vunpack.c.0.s8 %v7686
      %v7688 = vlaneseq
      %v7689 = vshrl.u32 %v7688, 7
      %v7690 = vsub.s32 %v7687, %v7689
      %v7691 = vrot.slane %v7669, %v7690
      %v7693 = vunpack.c.l.s4 1983009808
      %v7694 = vunpack.c.0.s8 %v7693
      %v7695 = vlaneseq
      %v7696 = vshrl.u32 %v7695, 7
      %v7697 = vsub.s32 %v7694, %v7696
      %v7698 = vrot.slane %v7670, %v7697
      %v7699 = vcombine.low %v7677, %v7691
      %v7700 = vcombine.high %v7677, %v7691
      %v7701 = vcombine.low %v7684, %v7698
      %v7702 = vcombine.high %v7684, %v7698
      %v7703 = vcombine.low %v7253, %v7281
      %v7704 = vcombine.high %v7253, %v7281
      %v7705 = vcombine.low %v7308, %v7335
      %v7706 = vcombine.high %v7308, %v7335
      %v7708 = vunpack.c.l.s4 1983009808
      %v7709 = vunpack.c.0.s8 %v7708
      %v7710 = vlaneseq
      %v7711 = vshrl.u32 %v7710, 7
      %v7712 = vsub.s32 %v7709, %v7711
      %v7713 = vrot.slane %v7703, %v7712
      %v7715 = vunpack.c.l.s4 1983009808
      %v7716 = vunpack.c.0.s8 %v7715
      %v7717 = vlaneseq
      %v7718 = vshrl.u32 %v7717, 7
      %v7719 = vsub.s32 %v7716, %v7718
      %v7720 = vrot.slane %v7704, %v7719
      %v7722 = vunpack.c.l.s4 1983009808
      %v7723 = vunpack.c.0.s8 %v7722
      %v7724 = vlaneseq
      %v7725 = vshrl.u32 %v7724, 7
      %v7726 = vsub.s32 %v7723, %v7725
      %v7727 = vrot.slane %v7705, %v7726
      %v7729 = vunpack.c.l.s4 1983009808
      %v7730 = vunpack.c.0.s8 %v7729
      %v7731 = vlaneseq
      %v7732 = vshrl.u32 %v7731, 7
      %v7733 = vsub.s32 %v7730, %v7732
      %v7734 = vrot.slane %v7706, %v7733
      %v7735 = vcombine.low %v7713, %v7727
      %v7736 = vcombine.high %v7713, %v7727
      %v7737 = vcombine.low %v7720, %v7734
      %v7738 = vcombine.high %v7720, %v7734
      %v7739 = vcombine.low %v7325, %v7219
      %v7740 = vcombine.high %v7325, %v7219
      %v7742 = vunpack.c.l.s4 1983009808
      %v7743 = vunpack.c.0.s8 %v7742
      %v7744 = vlaneseq
      %v7745 = vshrl.u32 %v7744, 7
      %v7746 = vsub.s32 %v7743, %v7745
      %v7747 = vrot.slane %v7739, %v7746
      %v7749 = vunpack.c.l.s4 1983009808
      %v7750 = vunpack.c.0.s8 %v7749
      %v7751 = vlaneseq
      %v7752 = vshrl.u32 %v7751, 7
      %v7753 = vsub.s32 %v7750, %v7752
      %v7754 = vrot.slane %v7740, %v7753
      %v7755 = vcombine.low %v7655, %v7747
      %v7756 = vcombine.high %v7655, %v7747
      %v7757 = vcombine.low %v7662, %v7754
      %v7758 = vcombine.high %v7662, %v7754
      %v7759 = vcombine.low %v7278, %v7306
      %v7760 = vcombine.low %v7333, %v7228
      %v7762 = vunpack.c.l.s4 1983009808
      %v7763 = vunpack.c.0.s8 %v7762
      %v7764 = vlaneseq
      %v7765 = vshrl.u32 %v7764, 7
      %v7766 = vsub.s32 %v7763, %v7765
      %v7767 = vrot.slane %v7759, %v7766
      %v7769 = vunpack.c.l.s4 1983009808
      %v7770 = vunpack.c.0.s8 %v7769
      %v7771 = vlaneseq
      %v7772 = vshrl.u32 %v7771, 7
      %v7773 = vsub.s32 %v7770, %v7772
      %v7774 = vrot.slane %v7760, %v7773
      %v7775 = vcombine.low %v7767, %v7774
      %v7776 = vcombine.high %v7767, %v7774
      %v8083 = vunpack.c.l.b16 %v7336
      %v8084 = vunpack.c.l.b16 %v7337
      %v8085 = vunpack.c.l.b16 %v7338
      %v8086 = vunpack.c.l.b16 %v7339
      %v8087 = vunpack.c.l.b16 %v7340
      %v8088 = vunpack.c.l.b16 %v7341
      %v8089 = vunpack.c.l.b16 %v7342
      %v8090 = vunpack.c.l.b16 %v7343
      %v8091 = vunpack.c.l.b16 %v7344
      %v8092 = vunpack.c.l.b16 %v7345
      %v8093 = vunpack.c.l.b16 %v7346
      %v8094 = vunpack.c.l.b16 %v7347
      %v8095 = vunpack.c.l.b16 %v7348
      %v8096 = vunpack.c.l.b16 %v7349
      %v8097 = vunpack.c.l.b16 %v7350
      %v8098 = vunpack.c.l.b16 %v7351
      %v8099 = vunpack.c.l.b16 %v7352
      %v8100 = vunpack.c.l.b16 %v7353
      %v8101 = vunpack.c.l.b16 %v7354
      %v8102 = vunpack.c.l.b16 %v7355
      %v8103 = vunpack.c.l.b16 %v7356
      %v8104 = vunpack.c.l.b16 %v7357
      %v8105 = vunpack.c.l.b16 %v7358
      %v8106 = vunpack.c.l.b16 %v7359
      %v8107 = vunpack.c.l.b16 %v7360
      %v8108 = vunpack.c.l.b16 %v7361
      %v8109 = vunpack.c.l.b16 %v7362
      %v8110 = vunpack.c.l.b16 %v7363
      %v8111 = vunpack.c.l.b16 %v7364
      %v8112 = vunpack.c.l.b16 %v7365
      %v8113 = vunpack.c.l.b16 %v7366
      %v8114 = vunpack.c.l.b16 %v7367
      %v8115 = vunpack.c.l.b16 %v7368
      %v8116 = vunpack.c.l.b16 %v7369
      %v8117 = vunpack.c.l.b16 %v7370
      %v8118 = vunpack.c.l.b16 %v7371
      %v8119 = vunpack.c.l.b16 %v7372
      %v8120 = vunpack.c.l.b16 %v7373
      %v8121 = vunpack.c.l.b16 %v7374
      %v8122 = vunpack.c.l.b16 %v7375
      %v8123 = vunpack.c.l.b16 %v7376
      %v8124 = vunpack.c.l.b16 %v7377
      %v8125 = vunpack.c.l.b16 %v7378
      %v8126 = vunpack.c.l.b16 %v7379
      %v8127 = vunpack.c.l.b16 %v7380
      %v8128 = vunpack.c.l.b16 %v7381
      %v8129 = vunpack.c.l.b16 %v7382
      %v8130 = vunpack.c.l.b16 %v7383
      %v8131 = vunpack.c.l.b16 %v7384
      %v8132 = vunpack.c.l.b16 %v7385
      %v8133 = vunpack.c.l.b16 %v7386
      %v8134 = vunpack.c.l.b16 %v7387
      %v8135 = vunpack.c.l.b16 %v7388
      %v8136 = vunpack.c.l.b16 %v7389
      %v8137 = vunpack.c.l.b16 %v7390
      %v8138 = vunpack.c.l.b16 %v7391
      %v8139 = vunpack.c.l.b16 %v7392
      %v8140 = vunpack.c.l.b16 %v7393
      %v8141 = vunpack.c.l.b16 %v7394
      %v8142 = vunpack.c.l.b16 %v7395
      %v8143 = vunpack.c.l.b16 %v7396
      %v8144 = vunpack.c.l.b16 %v7397
      %v8145 = vunpack.c.l.b16 %v7398
      %v8146 = vunpack.c.l.b16 %v7399
      %v8147 = vunpack.c.l.b16 %v7400
      %v8148 = vunpack.c.l.b16 %v7401
      %v8149 = vunpack.c.l.b16 %v7402
      %v8150 = vunpack.c.l.b16 %v7403
      %v8151 = vunpack.c.l.b16 %v7404
      %v8152 = vunpack.c.l.b16 %v7405
      %v8153 = vunpack.c.l.b16 %v7406
      %v8154 = vunpack.c.l.b16 %v7407
      %v8155 = vunpack.c.l.b16 %v7408
      %v8156 = vunpack.c.l.b16 %v7409
      %v8157 = vunpack.c.l.b16 %v7410
      %v8158 = vunpack.c.l.b16 %v7411
      %v8159 = vunpack.c.l.b16 %v7412
      %v8160 = vunpack.c.l.b16 %v7413
      %v8161 = vunpack.c.l.b16 %v7414
      %v8162 = vunpack.c.l.b16 %v7415
      %v8163 = vunpack.c.l.b16 %v7416
      %v8164 = vunpack.c.l.b16 %v7417
      %v8165 = vunpack.c.l.b16 %v7418
      %v8166 = vunpack.c.l.b16 %v7419
      %v8167 = vunpack.c.l.b16 %v7420
      %v8168 = vunpack.c.l.b16 %v7421
      %v8169 = vunpack.c.l.b16 %v7422
      %v8170 = vunpack.c.l.b16 %v7423
      %v8171 = vunpack.c.l.b16 %v7424
      %v8172 = vunpack.c.l.b16 %v7425
      %v8173 = vunpack.c.l.b16 %v7426
      %v8174 = vunpack.c.l.b16 %v7427
      %v8175 = vunpack.c.l.b16 %v7428
      %v8176 = vunpack.c.l.b16 %v7429
      %v8177 = vunpack.c.l.b16 %v7430
      %v8178 = vunpack.c.l.b16 %v7431
      %v8179 = vunpack.c.l.b16 %v7432
      %v8180 = vunpack.c.l.b16 %v7433
      %v8181 = vunpack.c.l.b16 %v7434
      %v8182 = vunpack.c.l.b16 %v7435
      %v8183 = vunpack.c.l.b16 %v7436
      %v8184 = vunpack.c.l.b16 %v7437
      %v8185 = vunpack.c.l.b16 %v7438
      %v8186 = vunpack.c.l.b16 %v7439
      %v8187 = vunpack.c.l.b16 %v7440
      %v8188 = vunpack.c.l.b16 %v7441
      %v8189 = vunpack.c.l.b16 %v7442
      %v8190 = vunpack.c.l.b16 %v7443
      %v8191 = vunpack.c.l.b16 %v7444
      %v8192 = vunpack.c.l.b16 %v7445
      %v8193 = vunpack.c.l.b16 %v7446
      %v8194 = vunpack.c.l.b16 %v7447
      %v8195 = vunpack.c.l.b16 %v7448
      %v8196 = vunpack.c.l.b16 %v7449
      %v8197 = vunpack.c.l.b16 %v7450
      %v8198 = vunpack.c.l.b16 %v7451
      %v8199 = vunpack.c.l.b16 %v7452
      %v8200 = vunpack.c.l.b16 %v7453
      %v8201 = vunpack.c.l.b16 %v7454
      %v8202 = vunpack.c.l.b16 %v7455
      %v8203 = vunpack.c.l.b16 %v7456
      %v8204 = vunpack.c.l.b16 %v7457
      %v8205 = vunpack.c.l.b16 %v7458
      %v8206 = vunpack.c.l.b16 %v7459
      %v8207 = vunpack.c.l.b16 %v7460
      %v8208 = vunpack.c.l.b16 %v7461
      %v8209 = vunpack.c.l.b16 %v7462
      %v8210 = vunpack.c.l.b16 %v7463
      %v8211 = vunpack.c.l.b16 %v7464
      %v8212 = vunpack.c.l.b16 %v7465
      %v8213 = vunpack.c.l.b16 %v7466
      %v8214 = vunpack.c.l.b16 %v7467
      %v8215 = vunpack.c.l.b16 %v7468
      %v8216 = vunpack.c.l.b16 %v7469
      %v8217 = vunpack.c.l.b16 %v7470
      %v8218 = vunpack.c.l.b16 %v7471
      %v8219 = vunpack.c.l.b16 %v7472
      %v8220 = vunpack.c.l.b16 %v7473
      %v8221 = vunpack.c.l.b16 %v7474
      %v8222 = vunpack.c.l.b16 %v7475
      %v8223 = vunpack.c.l.b16 %v7476
      %v8224 = vunpack.c.l.b16 %v7477
      %v8225 = vunpack.c.l.b16 %v7478
      %v8226 = vunpack.c.l.b16 %v7479
      %v8227 = vunpack.c.l.b16 %v7480
      %v8228 = vunpack.c.l.b16 %v7481
      %v8229 = vunpack.c.l.b16 %v7482
      %v8230 = vunpack.c.l.b16 %v7483
      %v8231 = vunpack.c.l.b16 %v7484
      %v8232 = vunpack.c.l.b16 %v7485
      %v8233 = vunpack.c.l.b16 %v7486
      %v8234 = vunpack.c.l.b16 %v7487
      %v8235 = vunpack.c.l.b16 %v7488
      %v8236 = vunpack.c.l.b16 %v7489
      %v8237 = vunpack.c.l.b16 %v7490
      %v8238 = vunpack.c.l.b16 %v7491
      %v8239 = vunpack.c.l.b16 %v7492
      %v8240 = vunpack.c.l.b16 %v7493
      %v8241 = vunpack.c.l.b16 %v7494
      %v8242 = vunpack.c.l.b16 %v7495
      %v8243 = vunpack.c.l.b16 %v7496
      %v8244 = vunpack.c.l.b16 %v7497
      %v8245 = vunpack.c.l.b16 %v7498
      %v8246 = vunpack.c.l.b16 %v7499
      %v8247 = vunpack.c.l.b16 %v7500
      %v8248 = vunpack.c.l.b16 %v7501
      %v8249 = vunpack.c.l.b16 %v7502
      %v8250 = vunpack.c.l.b16 %v7503
      %v8251 = vunpack.c.l.b16 %v7504
      %v8252 = vunpack.c.l.b16 %v7505
      %v8253 = vunpack.c.l.b16 %v7506
      %v8254 = vunpack.c.l.b16 %v7507
      %v8255 = vunpack.c.l.b16 %v7508
      %v8256 = vunpack.c.l.b16 %v7509
      %v8257 = vunpack.c.l.b16 %v7510
      %v8258 = vunpack.c.l.b16 %v7511
      %v8259 = vunpack.c.l.b16 %v7512
      %v8260 = vunpack.c.l.b16 %v7513
      %v8261 = vunpack.c.l.b16 %v7514
      %v8262 = vunpack.c.l.b16 %v7515
      %v8263 = vunpack.c.l.b16 %v7516
      %v8264 = vunpack.c.l.b16 %v7517
      %v8265 = vunpack.c.l.b16 %v7518
      %v8266 = vunpack.c.l.b16 %v7519
      %v8267 = vunpack.c.l.b16 %v7520
      %v8268 = vunpack.c.l.b16 %v7521
      %v8269 = vunpack.c.l.b16 %v7522
      %v8270 = vunpack.c.l.b16 %v7523
      %v8271 = vunpack.c.l.b16 %v7524
      %v8272 = vunpack.c.l.b16 %v7525
      %v8273 = vunpack.c.l.b16 %v7526
      %v8274 = vunpack.c.l.b16 %v7527
      %v8275 = vunpack.c.l.b16 %v7528
      %v8276 = vunpack.c.l.b16 %v7529
      %v8277 = vunpack.c.l.b16 %v7530
      %v8278 = vunpack.c.l.b16 %v7531
      %v8279 = vunpack.c.l.b16 %v7532
      %v8280 = vunpack.c.l.b16 %v7533
      %v8281 = vunpack.c.l.b16 %v7534
      %v8282 = vunpack.c.l.b16 %v7535
      %v8283 = vunpack.c.l.b16 %v7536
      %v8284 = vunpack.c.l.b16 %v7537
      %v8285 = vunpack.c.l.b16 %v7538
      %v8286 = vunpack.c.l.b16 %v7539
      %v8287 = vunpack.c.l.b16 %v7540
      %v8288 = vunpack.c.l.b16 %v7541
      %v8289 = vunpack.c.l.b16 %v7542
      %v8290 = vunpack.c.l.b16 %v7543
      %v8291 = vunpack.c.l.b16 %v7544
      %v8292 = vunpack.c.l.b16 %v7545
      %v8293 = vunpack.c.l.b16 %v7546
      %v8294 = vunpack.c.l.b16 %v7547
      %v8295 = vunpack.c.l.b16 %v7548
      %v8296 = vunpack.c.l.b16 %v7549
      %v8297 = vunpack.c.l.b16 %v7550
      %v8298 = vunpack.c.l.b16 %v7551
      %v8299 = vunpack.c.l.b16 %v7552
      %v8300 = vunpack.c.l.b16 %v7553
      %v8301 = vunpack.c.l.b16 %v7554
      %v8302 = vunpack.c.l.b16 %v7555
      %v8303 = vunpack.c.l.b16 %v7556
      %v8304 = vunpack.c.l.b16 %v7557
      %v8305 = vunpack.c.l.b16 %v7558
      %v8306 = vunpack.c.l.b16 %v7559
      %v8307 = vunpack.c.l.b16 %v7560
      %v8308 = vunpack.c.l.b16 %v7561
      %v8309 = vunpack.c.l.b16 %v7562
      %v8310 = vunpack.c.l.b16 %v7563
      %v8311 = vunpack.c.l.b16 %v7564
      %v8312 = vunpack.c.l.b16 %v7565
      %v8313 = vunpack.c.l.b16 %v7566
      %v8314 = vunpack.c.l.b16 %v7567
      %v8315 = vunpack.c.l.b16 %v7568
      %v8316 = vunpack.c.l.b16 %v7569
      %v8317 = vunpack.c.l.b16 %v7570
      %v8318 = vunpack.c.l.b16 %v7571
      %v8319 = vunpack.c.l.b16 %v7572
      %v8320 = vunpack.c.l.b16 %v7573
      %v8321 = vunpack.c.l.b16 %v7574
      %v8322 = vunpack.c.l.b16 %v7575
      %v8323 = vunpack.c.l.b16 %v7576
      %v8324 = vunpack.c.l.b16 %v7577
      %v8325 = vunpack.c.l.b16 %v7578
      %v8326 = vunpack.c.l.b16 %v7579
      %v8327 = vunpack.c.l.b16 %v7580
      %v8328 = vunpack.c.l.b16 %v7581
      %v8329 = vunpack.c.l.b16 %v7582
      %v8330 = vunpack.c.l.b16 %v7583
      %v8331 = vunpack.c.l.b16 %v7584
      %v8332 = vunpack.c.l.b16 %v7585
      %v8333 = vunpack.c.l.b16 %v7586
      %v8334 = vunpack.c.l.b16 %v7587
      %v8335 = vunpack.c.l.b16 %v7588
      %v8336 = vunpack.c.l.b16 %v7589
      %v8337 = vunpack.c.l.b16 %v7590
      %v8338 = vunpack.c.l.b16 %v7591
      %v8339 = vunpack.c.l.b16 %v7592
      %v8340 = vunpack.c.l.b16 %v7593
      %v8341 = vunpack.c.l.b16 %v7594
      %v8342 = vunpack.c.l.b16 %v7595
      %v8343 = vunpack.c.l.b16 %v7596
      %v8344 = vunpack.c.l.b16 %v7597
      %v8345 = vunpack.c.l.b16 %v7598
      %v8346 = vunpack.c.l.b16 %v7599
      %v8347 = vunpack.c.l.b16 %v7600
      %v8348 = vunpack.c.l.b16 %v7601
      %v8349 = vunpack.c.l.b16 %v7602
      %v8350 = vunpack.c.l.b16 %v7603
      %v8351 = vunpack.c.l.b16 %v7604
      %v8352 = vunpack.c.l.b16 %v7605
      %v8353 = vunpack.c.l.b16 %v7606
      %v8354 = vunpack.c.l.b16 %v7607
      %v8355 = vunpack.c.l.b16 %v7608
      %v8356 = vunpack.c.l.b16 %v7609
      %v8357 = vunpack.c.l.b16 %v7610
      %v8358 = vunpack.c.l.b16 %v7611
      %v8359 = vunpack.c.l.b16 %v7612
      %v8360 = vunpack.c.l.b16 %v7613
      %v8361 = vunpack.c.l.b16 %v7614
      %v8362 = vunpack.c.l.b16 %v7615
      %v8363 = vunpack.c.l.b16 %v7616
      %v8364 = vunpack.c.l.b16 %v7617
      %v8365 = vunpack.c.l.b16 %v7618
      %v8366 = vunpack.c.l.b16 %v7619
      %v8367 = vunpack.c.l.b16 %v7620
      %v8368 = vunpack.c.l.b16 %v7621
      %v8369 = vunpack.c.l.b16 %v7622
      %v8370 = vunpack.c.l.b16 %v7623
      %v8371 = vpack.c.b16 %v8084, %v8083
      %v8372 = vpack.c.b16 %v8086, %v8085
      %v8373 = vpack.c.b16 %v8088, %v8087
      %v8374 = vpack.c.b16 %v8090, %v8089
      %v8375 = vpack.c.b16 %v8092, %v8091
      %v8376 = vpack.c.b16 %v8094, %v8093
      %v8377 = vpack.c.b16 %v8096, %v8095
      %v8378 = vpack.c.b16 %v8098, %v8097
      %v8379 = vpack.c.b16 %v8100, %v8099
      %v8380 = vpack.c.b16 %v8102, %v8101
      %v8381 = vpack.c.b16 %v8104, %v8103
      %v8382 = vpack.c.b16 %v8106, %v8105
      %v8383 = vpack.c.b16 %v8108, %v8107
      %v8384 = vpack.c.b16 %v8110, %v8109
      %v8385 = vpack.c.b16 %v8112, %v8111
      %v8386 = vpack.c.b16 %v8114, %v8113
      %v8387 = vpack.c.b16 %v8116, %v8115
      %v8388 = vpack.c.b16 %v8118, %v8117
      %v8389 = vpack.c.b16 %v8120, %v8119
      %v8390 = vpack.c.b16 %v8122, %v8121
      %v8391 = vpack.c.b16 %v8124, %v8123
      %v8392 = vpack.c.b16 %v8126, %v8125
      %v8393 = vpack.c.b16 %v8128, %v8127
      %v8394 = vpack.c.b16 %v8130, %v8129
      %v8395 = vpack.c.b16 %v8132, %v8131
      %v8396 = vpack.c.b16 %v8134, %v8133
      %v8397 = vpack.c.b16 %v8136, %v8135
      %v8398 = vpack.c.b16 %v8138, %v8137
      %v8399 = vpack.c.b16 %v8140, %v8139
      %v8400 = vpack.c.b16 %v8142, %v8141
      %v8401 = vpack.c.b16 %v8144, %v8143
      %v8402 = vpack.c.b16 %v8146, %v8145
      %v8403 = vpack.c.b16 %v8148, %v8147
      %v8404 = vpack.c.b16 %v8150, %v8149
      %v8405 = vpack.c.b16 %v8152, %v8151
      %v8406 = vpack.c.b16 %v8154, %v8153
      %v8407 = vpack.c.b16 %v8156, %v8155
      %v8408 = vpack.c.b16 %v8158, %v8157
      %v8409 = vpack.c.b16 %v8160, %v8159
      %v8410 = vpack.c.b16 %v8162, %v8161
      %v8411 = vpack.c.b16 %v8164, %v8163
      %v8412 = vpack.c.b16 %v8166, %v8165
      %v8413 = vpack.c.b16 %v8168, %v8167
      %v8414 = vpack.c.b16 %v8170, %v8169
      %v8415 = vpack.c.b16 %v8172, %v8171
      %v8416 = vpack.c.b16 %v8174, %v8173
      %v8417 = vpack.c.b16 %v8176, %v8175
      %v8418 = vpack.c.b16 %v8178, %v8177
      %v8419 = vpack.c.b16 %v8180, %v8179
      %v8420 = vpack.c.b16 %v8182, %v8181
      %v8421 = vpack.c.b16 %v8184, %v8183
      %v8422 = vpack.c.b16 %v8186, %v8185
      %v8423 = vpack.c.b16 %v8188, %v8187
      %v8424 = vpack.c.b16 %v8190, %v8189
      %v8425 = vpack.c.b16 %v8192, %v8191
      %v8426 = vpack.c.b16 %v8194, %v8193
      %v8427 = vpack.c.b16 %v8196, %v8195
      %v8428 = vpack.c.b16 %v8198, %v8197
      %v8429 = vpack.c.b16 %v8200, %v8199
      %v8430 = vpack.c.b16 %v8202, %v8201
      %v8431 = vpack.c.b16 %v8204, %v8203
      %v8432 = vpack.c.b16 %v8206, %v8205
      %v8433 = vpack.c.b16 %v8208, %v8207
      %v8434 = vpack.c.b16 %v8210, %v8209
      %v8435 = vpack.c.b16 %v8212, %v8211
      %v8436 = vpack.c.b16 %v8214, %v8213
      %v8437 = vpack.c.b16 %v8216, %v8215
      %v8438 = vpack.c.b16 %v8218, %v8217
      %v8439 = vpack.c.b16 %v8220, %v8219
      %v8440 = vpack.c.b16 %v8222, %v8221
      %v8441 = vpack.c.b16 %v8224, %v8223
      %v8442 = vpack.c.b16 %v8226, %v8225
      %v8443 = vpack.c.b16 %v8228, %v8227
      %v8444 = vpack.c.b16 %v8230, %v8229
      %v8445 = vpack.c.b16 %v8232, %v8231
      %v8446 = vpack.c.b16 %v8234, %v8233
      %v8447 = vpack.c.b16 %v8236, %v8235
      %v8448 = vpack.c.b16 %v8238, %v8237
      %v8449 = vpack.c.b16 %v8240, %v8239
      %v8450 = vpack.c.b16 %v8242, %v8241
      %v8451 = vpack.c.b16 %v8244, %v8243
      %v8452 = vpack.c.b16 %v8246, %v8245
      %v8453 = vpack.c.b16 %v8248, %v8247
      %v8454 = vpack.c.b16 %v8250, %v8249
      %v8455 = vpack.c.b16 %v8252, %v8251
      %v8456 = vpack.c.b16 %v8254, %v8253
      %v8457 = vpack.c.b16 %v8256, %v8255
      %v8458 = vpack.c.b16 %v8258, %v8257
      %v8459 = vpack.c.b16 %v8260, %v8259
      %v8460 = vpack.c.b16 %v8262, %v8261
      %v8461 = vpack.c.b16 %v8264, %v8263
      %v8462 = vpack.c.b16 %v8266, %v8265
      %v8463 = vpack.c.b16 %v8268, %v8267
      %v8464 = vpack.c.b16 %v8270, %v8269
      %v8465 = vpack.c.b16 %v8272, %v8271
      %v8466 = vpack.c.b16 %v8274, %v8273
      %v8467 = vpack.c.b16 %v8276, %v8275
      %v8468 = vpack.c.b16 %v8278, %v8277
      %v8469 = vpack.c.b16 %v8280, %v8279
      %v8470 = vpack.c.b16 %v8282, %v8281
      %v8471 = vpack.c.b16 %v8284, %v8283
      %v8472 = vpack.c.b16 %v8286, %v8285
      %v8473 = vpack.c.b16 %v8288, %v8287
      %v8474 = vpack.c.b16 %v8290, %v8289
      %v8475 = vpack.c.b16 %v8292, %v8291
      %v8476 = vpack.c.b16 %v8294, %v8293
      %v8477 = vpack.c.b16 %v8296, %v8295
      %v8478 = vpack.c.b16 %v8298, %v8297
      %v8479 = vpack.c.b16 %v8300, %v8299
      %v8480 = vpack.c.b16 %v8302, %v8301
      %v8481 = vpack.c.b16 %v8304, %v8303
      %v8482 = vpack.c.b16 %v8306, %v8305
      %v8483 = vpack.c.b16 %v8308, %v8307
      %v8484 = vpack.c.b16 %v8310, %v8309
      %v8485 = vpack.c.b16 %v8312, %v8311
      %v8486 = vpack.c.b16 %v8314, %v8313
      %v8487 = vpack.c.b16 %v8316, %v8315
      %v8488 = vpack.c.b16 %v8318, %v8317
      %v8489 = vpack.c.b16 %v8320, %v8319
      %v8490 = vpack.c.b16 %v8322, %v8321
      %v8491 = vpack.c.b16 %v8324, %v8323
      %v8492 = vpack.c.b16 %v8326, %v8325
      %v8493 = vpack.c.b16 %v8328, %v8327
      %v8494 = vpack.c.b16 %v8330, %v8329
      %v8495 = vpack.c.b16 %v8332, %v8331
      %v8496 = vpack.c.b16 %v8334, %v8333
      %v8497 = vpack.c.b16 %v8336, %v8335
      %v8498 = vpack.c.b16 %v8338, %v8337
      %v8499 = vpack.c.b16 %v8340, %v8339
      %v8500 = vpack.c.b16 %v8342, %v8341
      %v8501 = vpack.c.b16 %v8344, %v8343
      %v8502 = vpack.c.b16 %v8346, %v8345
      %v8503 = vpack.c.b16 %v8348, %v8347
      %v8504 = vpack.c.b16 %v8350, %v8349
      %v8505 = vpack.c.b16 %v8352, %v8351
      %v8506 = vpack.c.b16 %v8354, %v8353
      %v8507 = vpack.c.b16 %v8356, %v8355
      %v8508 = vpack.c.b16 %v8358, %v8357
      %v8509 = vpack.c.b16 %v8360, %v8359
      %v8510 = vpack.c.b16 %v8362, %v8361
      %v8511 = vpack.c.b16 %v8364, %v8363
      %v8512 = vpack.c.b16 %v8366, %v8365
      %v8513 = vpack.c.b16 %v8368, %v8367
      %v8514 = vpack.c.b16 %v8370, %v8369
      %8659 = vmatprep.subr.bf16.mxu0 0
      %8660 = vmatpush1.bf16.msra.mxu0 %v8371
      %8661 = vmatprep.subr.bf16.mxu0 0
      %8662 = vmatpush1.bf16.msra.mxu0 %v8372
      %8663 = vmatprep.subr.bf16.mxu0 0
      %8664 = vmatpush1.bf16.msra.mxu0 %v8373
      %8665 = vmatprep.subr.bf16.mxu0 0
      %8666 = vmatpush1.bf16.msra.mxu0 %v8374
      %8667 = vmatprep.subr.bf16.mxu0 0
      %8668 = vmatpush1.bf16.msra.mxu0 %v8375
      %8669 = vmatprep.subr.bf16.mxu0 0
      %8670 = vmatpush1.bf16.msra.mxu0 %v8376
      %8671 = vmatprep.subr.bf16.mxu0 0
      %8672 = vmatpush1.bf16.msra.mxu0 %v8377
      %8673 = vmatprep.subr.bf16.mxu0 0
      %8674 = vmatpush1.bf16.msra.mxu0 %v8378
      %8675 = vmatprep.subr.bf16.mxu0 0
      %8676 = vmatpush1.bf16.msra.mxu0 %v8379
      %8677 = vmatprep.subr.bf16.mxu0 0
      %8678 = vmatpush1.bf16.msra.mxu0 %v8380
      %8679 = vmatprep.subr.bf16.mxu0 0
      %8680 = vmatpush1.bf16.msra.mxu0 %v8381
      %8681 = vmatprep.subr.bf16.mxu0 0
      %8682 = vmatpush1.bf16.msra.mxu0 %v8382
      %8683 = vmatprep.subr.bf16.mxu0 0
      %8684 = vmatpush1.bf16.msra.mxu0 %v8383
      %8685 = vmatprep.subr.bf16.mxu0 0
      %8686 = vmatpush1.bf16.msra.mxu0 %v8384
      %8687 = vmatprep.subr.bf16.mxu0 0
      %8688 = vmatpush1.bf16.msra.mxu0 %v8385
      %8689 = vmatprep.subr.bf16.mxu0 0
      %8690 = vmatpush1.bf16.msra.mxu0 %v8386
      %8691 = vmatprep.mubr.bf16.mxu0 %v7664
      %8692 = vmatmul.mubr.bf16.gmra.mrb[0].mxu0 %v7663
      %v8693 = vpop.f32.mrb[0].mxu0
      %v8694 = vadd.f32 %v7629, %v8693
      %v8695 = vpop.f32.mrb[0].mxu0
      %v8696 = vpop.f32.mrb[0].mxu0
      %v8697 = vadd.f32 %v7629, %v8696
      %v8698 = vpop.f32.mrb[0].mxu0
      %8699 = vdwg.mxu0
      %8700 = vmatprep.subr.bf16.mxu0 0
      %8701 = vmatpush1.bf16.msra.mxu0 %v8387
      %8702 = vmatprep.subr.bf16.mxu0 0
      %8703 = vmatpush1.bf16.msra.mxu0 %v8388
      %8704 = vmatprep.subr.bf16.mxu0 0
      %8705 = vmatpush1.bf16.msra.mxu0 %v8389
      %8706 = vmatprep.subr.bf16.mxu0 0
      %8707 = vmatpush1.bf16.msra.mxu0 %v8390
      %8708 = vmatprep.subr.bf16.mxu0 0
      %8709 = vmatpush1.bf16.msra.mxu0 %v8391
      %8710 = vmatprep.subr.bf16.mxu0 0
      %8711 = vmatpush1.bf16.msra.mxu0 %v8392
      %8712 = vmatprep.subr.bf16.mxu0 0
      %8713 = vmatpush1.bf16.msra.mxu0 %v8393
      %8714 = vmatprep.subr.bf16.mxu0 0
      %8715 = vmatpush1.bf16.msra.mxu0 %v8394
      %8716 = vmatprep.subr.bf16.mxu0 0
      %8717 = vmatpush1.bf16.msra.mxu0 %v8395
      %8718 = vmatprep.subr.bf16.mxu0 0
      %8719 = vmatpush1.bf16.msra.mxu0 %v8396
      %8720 = vmatprep.subr.bf16.mxu0 0
      %8721 = vmatpush1.bf16.msra.mxu0 %v8397
      %8722 = vmatprep.subr.bf16.mxu0 0
      %8723 = vmatpush1.bf16.msra.mxu0 %v8398
      %8724 = vmatprep.subr.bf16.mxu0 0
      %8725 = vmatpush1.bf16.msra.mxu0 %v8399
      %8726 = vmatprep.subr.bf16.mxu0 0
      %8727 = vmatpush1.bf16.msra.mxu0 %v8400
      %8728 = vmatprep.subr.bf16.mxu0 0
      %8729 = vmatpush1.bf16.msra.mxu0 %v8401
      %8730 = vmatprep.subr.bf16.mxu0 0
      %8731 = vmatpush1.bf16.msra.mxu0 %v8402
      %8732 = vmatprep.mubr.bf16.mxu0 %v7666
      %8733 = vmatmul.mubr.bf16.gmra.mrb[0].mxu0 %v7665
      %v8734 = vpop.f32.mrb[0].mxu0
      %v8735 = vadd.f32 %v8694, %v8734
      %v8736 = vpop.f32.mrb[0].mxu0
      %v8737 = vpop.f32.mrb[0].mxu0
      %v8738 = vadd.f32 %v8697, %v8737
      %v8739 = vpop.f32.mrb[0].mxu0
      %8740 = vdwg.mxu0
      %8741 = vmatprep.subr.bf16.mxu0 0
      %8742 = vmatpush1.bf16.msra.mxu0 %v8403
      %8743 = vmatprep.subr.bf16.mxu0 0
      %8744 = vmatpush1.bf16.msra.mxu0 %v8404
      %8745 = vmatprep.subr.bf16.mxu0 0
      %8746 = vmatpush1.bf16.msra.mxu0 %v8405
      %8747 = vmatprep.subr.bf16.mxu0 0
      %8748 = vmatpush1.bf16.msra.mxu0 %v8406
      %8749 = vmatprep.subr.bf16.mxu0 0
      %8750 = vmatpush1.bf16.msra.mxu0 %v8407
      %8751 = vmatprep.subr.bf16.mxu0 0
      %8752 = vmatpush1.bf16.msra.mxu0 %v8408
      %8753 = vmatprep.subr.bf16.mxu0 0
      %8754 = vmatpush1.bf16.msra.mxu0 %v8409
      %8755 = vmatprep.subr.bf16.mxu0 0
      %8756 = vmatpush1.bf16.msra.mxu0 %v8410
      %8757 = vmatprep.subr.bf16.mxu0 0
      %8758 = vmatpush1.bf16.msra.mxu0 %v8411
      %8759 = vmatprep.subr.bf16.mxu0 0
      %8760 = vmatpush1.bf16.msra.mxu0 %v8412
      %8761 = vmatprep.subr.bf16.mxu0 0
      %8762 = vmatpush1.bf16.msra.mxu0 %v8413
      %8763 = vmatprep.subr.bf16.mxu0 0
      %8764 = vmatpush1.bf16.msra.mxu0 %v8414
      %8765 = vmatprep.subr.bf16.mxu0 0
      %8766 = vmatpush1.bf16.msra.mxu0 %v8415
      %8767 = vmatprep.subr.bf16.mxu0 0
      %8768 = vmatpush1.bf16.msra.mxu0 %v8416
      %8769 = vmatprep.subr.bf16.mxu0 0
      %8770 = vmatpush1.bf16.msra.mxu0 %v8417
      %8771 = vmatprep.subr.bf16.mxu0 0
      %8772 = vmatpush1.bf16.msra.mxu0 %v8418
      %8773 = vmatprep.mubr.bf16.mxu0 %v7700
      %8774 = vmatmul.mubr.bf16.gmra.mrb[0].mxu0 %v7699
      %v8775 = vpop.f32.mrb[0].mxu0
      %v8776 = vadd.f32 %v8735, %v8775
      %v8777 = vpop.f32.mrb[0].mxu0
      %v8778 = vpop.f32.mrb[0].mxu0
      %v8779 = vadd.f32 %v8738, %v8778
      %v8780 = vpop.f32.mrb[0].mxu0
      %8781 = vdwg.mxu0
      %8782 = vmatprep.subr.bf16.mxu0 0
      %8783 = vmatpush1.bf16.msra.mxu0 %v8419
      %8784 = vmatprep.subr.bf16.mxu0 0
      %8785 = vmatpush1.bf16.msra.mxu0 %v8420
      %8786 = vmatprep.subr.bf16.mxu0 0
      %8787 = vmatpush1.bf16.msra.mxu0 %v8421
      %8788 = vmatprep.subr.bf16.mxu0 0
      %8789 = vmatpush1.bf16.msra.mxu0 %v8422
      %8790 = vmatprep.subr.bf16.mxu0 0
      %8791 = vmatpush1.bf16.msra.mxu0 %v8423
      %8792 = vmatprep.subr.bf16.mxu0 0
      %8793 = vmatpush1.bf16.msra.mxu0 %v8424
      %8794 = vmatprep.subr.bf16.mxu0 0
      %8795 = vmatpush1.bf16.msra.mxu0 %v8425
      %8796 = vmatprep.subr.bf16.mxu0 0
      %8797 = vmatpush1.bf16.msra.mxu0 %v8426
      %8798 = vmatprep.subr.bf16.mxu0 0
      %8799 = vmatpush1.bf16.msra.mxu0 %v8427
      %8800 = vmatprep.subr.bf16.mxu0 0
      %8801 = vmatpush1.bf16.msra.mxu0 %v8428
      %8802 = vmatprep.subr.bf16.mxu0 0
      %8803 = vmatpush1.bf16.msra.mxu0 %v8429
      %8804 = vmatprep.subr.bf16.mxu0 0
      %8805 = vmatpush1.bf16.msra.mxu0 %v8430
      %8806 = vmatprep.subr.bf16.mxu0 0
      %8807 = vmatpush1.bf16.msra.mxu0 %v8431
      %8808 = vmatprep.subr.bf16.mxu0 0
      %8809 = vmatpush1.bf16.msra.mxu0 %v8432
      %8810 = vmatprep.subr.bf16.mxu0 0
      %8811 = vmatpush1.bf16.msra.mxu0 %v8433
      %8812 = vmatprep.subr.bf16.mxu0 0
      %8813 = vmatpush1.bf16.msra.mxu0 %v8434
      %8814 = vmatprep.mubr.bf16.mxu0 %v7702
      %8815 = vmatmul.mubr.bf16.gmra.mrb[0].mxu0 %v7701
      %v8816 = vpop.f32.mrb[0].mxu0
      %v8817 = vadd.f32 %v8776, %v8816
      %v8818 = vpop.f32.mrb[0].mxu0
      %v8819 = vpop.f32.mrb[0].mxu0
      %v8820 = vadd.f32 %v8779, %v8819
      %v8821 = vpop.f32.mrb[0].mxu0
      %8822 = vdwg.mxu0
      %8823 = vmatprep.subr.bf16.mxu0 0
      %8824 = vmatpush1.bf16.msra.mxu0 %v8435
      %8825 = vmatprep.subr.bf16.mxu0 0
      %8826 = vmatpush1.bf16.msra.mxu0 %v8436
      %8827 = vmatprep.subr.bf16.mxu0 0
      %8828 = vmatpush1.bf16.msra.mxu0 %v8437
      %8829 = vmatprep.subr.bf16.mxu0 0
      %8830 = vmatpush1.bf16.msra.mxu0 %v8438
      %8831 = vmatprep.subr.bf16.mxu0 0
      %8832 = vmatpush1.bf16.msra.mxu0 %v8439
      %8833 = vmatprep.subr.bf16.mxu0 0
      %8834 = vmatpush1.bf16.msra.mxu0 %v8440
      %8835 = vmatprep.subr.bf16.mxu0 0
      %8836 = vmatpush1.bf16.msra.mxu0 %v8441
      %8837 = vmatprep.subr.bf16.mxu0 0
      %8838 = vmatpush1.bf16.msra.mxu0 %v8442
      %8839 = vmatprep.subr.bf16.mxu0 0
      %8840 = vmatpush1.bf16.msra.mxu0 %v8443
      %8841 = vmatprep.subr.bf16.mxu0 0
      %8842 = vmatpush1.bf16.msra.mxu0 %v8444
      %8843 = vmatprep.subr.bf16.mxu0 0
      %8844 = vmatpush1.bf16.msra.mxu0 %v8445
      %8845 = vmatprep.subr.bf16.mxu0 0
      %8846 = vmatpush1.bf16.msra.mxu0 %v8446
      %8847 = vmatprep.subr.bf16.mxu0 0
      %8848 = vmatpush1.bf16.msra.mxu0 %v8447
      %8849 = vmatprep.subr.bf16.mxu0 0
      %8850 = vmatpush1.bf16.msra.mxu0 %v8448
      %8851 = vmatprep.subr.bf16.mxu0 0
      %8852 = vmatpush1.bf16.msra.mxu0 %v8449
      %8853 = vmatprep.subr.bf16.mxu0 0
      %8854 = vmatpush1.bf16.msra.mxu0 %v8450
      %8855 = vmatprep.mubr.bf16.mxu0 %v7736
      %8856 = vmatmul.mubr.bf16.gmra.mrb[0].mxu0 %v7735
      %v8857 = vpop.f32.mrb[0].mxu0
      %v8858 = vadd.f32 %v8817, %v8857
      %v8859 = vpop.f32.mrb[0].mxu0
      %v8860 = vpop.f32.mrb[0].mxu0
      %v8861 = vadd.f32 %v8820, %v8860
      %v8862 = vpop.f32.mrb[0].mxu0
      %8863 = vdwg.mxu0
      %8864 = vmatprep.subr.bf16.mxu0 0
      %8865 = vmatpush1.bf16.msra.mxu0 %v8451
      %8866 = vmatprep.subr.bf16.mxu0 0
      %8867 = vmatpush1.bf16.msra.mxu0 %v8452
      %8868 = vmatprep.subr.bf16.mxu0 0
      %8869 = vmatpush1.bf16.msra.mxu0 %v8453
      %8870 = vmatprep.subr.bf16.mxu0 0
      %8871 = vmatpush1.bf16.msra.mxu0 %v8454
      %8872 = vmatprep.subr.bf16.mxu0 0
      %8873 = vmatpush1.bf16.msra.mxu0 %v8455
      %8874 = vmatprep.subr.bf16.mxu0 0
      %8875 = vmatpush1.bf16.msra.mxu0 %v8456
      %8876 = vmatprep.subr.bf16.mxu0 0
      %8877 = vmatpush1.bf16.msra.mxu0 %v8457
      %8878 = vmatprep.subr.bf16.mxu0 0
      %8879 = vmatpush1.bf16.msra.mxu0 %v8458
      %8880 = vmatprep.subr.bf16.mxu0 0
      %8881 = vmatpush1.bf16.msra.mxu0 %v8459
      %8882 = vmatprep.subr.bf16.mxu0 0
      %8883 = vmatpush1.bf16.msra.mxu0 %v8460
      %8884 = vmatprep.subr.bf16.mxu0 0
      %8885 = vmatpush1.bf16.msra.mxu0 %v8461
      %8886 = vmatprep.subr.bf16.mxu0 0
      %8887 = vmatpush1.bf16.msra.mxu0 %v8462
      %8888 = vmatprep.subr.bf16.mxu0 0
      %8889 = vmatpush1.bf16.msra.mxu0 %v8463
      %8890 = vmatprep.subr.bf16.mxu0 0
      %8891 = vmatpush1.bf16.msra.mxu0 %v8464
      %8892 = vmatprep.subr.bf16.mxu0 0
      %8893 = vmatpush1.bf16.msra.mxu0 %v8465
      %8894 = vmatprep.subr.bf16.mxu0 0
      %8895 = vmatpush1.bf16.msra.mxu0 %v8466
      %8896 = vmatprep.mubr.bf16.mxu0 %v7738
      %8897 = vmatmul.mubr.bf16.gmra.mrb[0].mxu0 %v7737
      %v8898 = vpop.f32.mrb[0].mxu0
      %v8899 = vadd.f32 %v8858, %v8898
      %v8900 = vpop.f32.mrb[0].mxu0
      %v8901 = vpop.f32.mrb[0].mxu0
      %v8902 = vadd.f32 %v8861, %v8901
      %v8903 = vpop.f32.mrb[0].mxu0
      %8904 = vdwg.mxu0
      %8905 = vmatprep.subr.bf16.mxu0 0
      %8906 = vmatpush1.bf16.msra.mxu0 %v8467
      %8907 = vmatprep.subr.bf16.mxu0 0
      %8908 = vmatpush1.bf16.msra.mxu0 %v8468
      %8909 = vmatprep.subr.bf16.mxu0 0
      %8910 = vmatpush1.bf16.msra.mxu0 %v8469
      %8911 = vmatprep.subr.bf16.mxu0 0
      %8912 = vmatpush1.bf16.msra.mxu0 %v8470
      %8913 = vmatprep.subr.bf16.mxu0 0
      %8914 = vmatpush1.bf16.msra.mxu0 %v8471
      %8915 = vmatprep.subr.bf16.mxu0 0
      %8916 = vmatpush1.bf16.msra.mxu0 %v8472
      %8917 = vmatprep.subr.bf16.mxu0 0
      %8918 = vmatpush1.bf16.msra.mxu0 %v8473
      %8919 = vmatprep.subr.bf16.mxu0 0
      %8920 = vmatpush1.bf16.msra.mxu0 %v8474
      %8921 = vmatprep.subr.bf16.mxu0 0
      %8922 = vmatpush1.bf16.msra.mxu0 %v8475
      %8923 = vmatprep.subr.bf16.mxu0 0
      %8924 = vmatpush1.bf16.msra.mxu0 %v8476
      %8925 = vmatprep.subr.bf16.mxu0 0
      %8926 = vmatpush1.bf16.msra.mxu0 %v8477
      %8927 = vmatprep.subr.bf16.mxu0 0
      %8928 = vmatpush1.bf16.msra.mxu0 %v8478
      %8929 = vmatprep.subr.bf16.mxu0 0
      %8930 = vmatpush1.bf16.msra.mxu0 %v8479
      %8931 = vmatprep.subr.bf16.mxu0 0
      %8932 = vmatpush1.bf16.msra.mxu0 %v8480
      %8933 = vmatprep.subr.bf16.mxu0 0
      %8934 = vmatpush1.bf16.msra.mxu0 %v8481
      %8935 = vmatprep.subr.bf16.mxu0 0
      %8936 = vmatpush1.bf16.msra.mxu0 %v8482
      %8937 = vmatprep.mubr.bf16.mxu0 %v7756
      %8938 = vmatmul.mubr.bf16.gmra.mrb[0].mxu0 %v7755
      %v8939 = vpop.f32.mrb[0].mxu0
      %v8940 = vadd.f32 %v8899, %v8939
      %v8941 = vpop.f32.mrb[0].mxu0
      %v8942 = vpop.f32.mrb[0].mxu0
      %v8943 = vadd.f32 %v8902, %v8942
      %v8944 = vpop.f32.mrb[0].mxu0
      %8945 = vdwg.mxu0
      %8946 = vmatprep.subr.bf16.mxu0 0
      %8947 = vmatpush1.bf16.msra.mxu0 %v8483
      %8948 = vmatprep.subr.bf16.mxu0 0
      %8949 = vmatpush1.bf16.msra.mxu0 %v8484
      %8950 = vmatprep.subr.bf16.mxu0 0
      %8951 = vmatpush1.bf16.msra.mxu0 %v8485
      %8952 = vmatprep.subr.bf16.mxu0 0
      %8953 = vmatpush1.bf16.msra.mxu0 %v8486
      %8954 = vmatprep.subr.bf16.mxu0 0
      %8955 = vmatpush1.bf16.msra.mxu0 %v8487
      %8956 = vmatprep.subr.bf16.mxu0 0
      %8957 = vmatpush1.bf16.msra.mxu0 %v8488
      %8958 = vmatprep.subr.bf16.mxu0 0
      %8959 = vmatpush1.bf16.msra.mxu0 %v8489
      %8960 = vmatprep.subr.bf16.mxu0 0
      %8961 = vmatpush1.bf16.msra.mxu0 %v8490
      %8962 = vmatprep.subr.bf16.mxu0 0
      %8963 = vmatpush1.bf16.msra.mxu0 %v8491
      %8964 = vmatprep.subr.bf16.mxu0 0
      %8965 = vmatpush1.bf16.msra.mxu0 %v8492
      %8966 = vmatprep.subr.bf16.mxu0 0
      %8967 = vmatpush1.bf16.msra.mxu0 %v8493
      %8968 = vmatprep.subr.bf16.mxu0 0
      %8969 = vmatpush1.bf16.msra.mxu0 %v8494
      %8970 = vmatprep.subr.bf16.mxu0 0
      %8971 = vmatpush1.bf16.msra.mxu0 %v8495
      %8972 = vmatprep.subr.bf16.mxu0 0
      %8973 = vmatpush1.bf16.msra.mxu0 %v8496
      %8974 = vmatprep.subr.bf16.mxu0 0
      %8975 = vmatpush1.bf16.msra.mxu0 %v8497
      %8976 = vmatprep.subr.bf16.mxu0 0
      %8977 = vmatpush1.bf16.msra.mxu0 %v8498
      %8978 = vmatprep.mubr.bf16.mxu0 %v7758
      %8979 = vmatmul.mubr.bf16.gmra.mrb[0].mxu0 %v7757
      %v8980 = vpop.f32.mrb[0].mxu0
      %v8981 = vadd.f32 %v8940, %v8980
      %v8982 = vpop.f32.mrb[0].mxu0
      %v8983 = vpop.f32.mrb[0].mxu0
      %v8984 = vadd.f32 %v8943, %v8983
      %v8985 = vpop.f32.mrb[0].mxu0
      %8986 = vdwg.mxu0
      %8987 = vmatprep.subr.bf16.mxu0 0
      %8988 = vmatpush1.bf16.msra.mxu0 %v8499
      %8989 = vmatprep.subr.bf16.mxu0 0
      %8990 = vmatpush1.bf16.msra.mxu0 %v8500
      %8991 = vmatprep.subr.bf16.mxu0 0
      %8992 = vmatpush1.bf16.msra.mxu0 %v8501
      %8993 = vmatprep.subr.bf16.mxu0 0
      %8994 = vmatpush1.bf16.msra.mxu0 %v8502
      %8995 = vmatprep.subr.bf16.mxu0 0
      %8996 = vmatpush1.bf16.msra.mxu0 %v8503
      %8997 = vmatprep.subr.bf16.mxu0 0
      %8998 = vmatpush1.bf16.msra.mxu0 %v8504
      %8999 = vmatprep.subr.bf16.mxu0 0
      %9000 = vmatpush1.bf16.msra.mxu0 %v8505
      %9001 = vmatprep.subr.bf16.mxu0 0
      %9002 = vmatpush1.bf16.msra.mxu0 %v8506
      %9003 = vmatprep.subr.bf16.mxu0 0
      %9004 = vmatpush1.bf16.msra.mxu0 %v8507
      %9005 = vmatprep.subr.bf16.mxu0 0
      %9006 = vmatpush1.bf16.msra.mxu0 %v8508
      %9007 = vmatprep.subr.bf16.mxu0 0
      %9008 = vmatpush1.bf16.msra.mxu0 %v8509
      %9009 = vmatprep.subr.bf16.mxu0 0
      %9010 = vmatpush1.bf16.msra.mxu0 %v8510
      %9011 = vmatprep.subr.bf16.mxu0 0
      %9012 = vmatpush1.bf16.msra.mxu0 %v8511
      %9013 = vmatprep.subr.bf16.mxu0 0
      %9014 = vmatpush1.bf16.msra.mxu0 %v8512
      %9015 = vmatprep.subr.bf16.mxu0 0
      %9016 = vmatpush1.bf16.msra.mxu0 %v8513
      %9017 = vmatprep.subr.bf16.mxu0 0
      %9018 = vmatpush1.bf16.msra.mxu0 %v8514
      %9019 = vmatprep.mubr.bf16.mxu0 %v7776
      %9020 = vmatmul.mubr.bf16.gmra.mrb[0].mxu0 %v7775
      %v9021 = vpop.f32.mrb[0].mxu0
      %v9022 = vadd.f32 %v8981, %v9021
      %v9023 = vpop.f32.mrb[0].mxu0
      %v9024 = vpop.f32.mrb[0].mxu0
      %v9025 = vadd.f32 %v8984, %v9024
      %v9026 = vpop.f32.mrb[0].mxu0
      %9027 = vdwg.mxu0
      %v9028 = vmax.f32 %v9022, 0.0
      %v9029 = vmax.f32 %v9025, 0.0
      %v9030 = vpack.c.bf16 %v9029, %v9028
      %v9032 = vcombine.high %v9030, %v9030
      %v9034 = vunpack.c.l.s4 1983009808
      %v9035 = vunpack.c.0.s8 %v9034
      %v9036 = vlaneseq
      %v9037 = vshrl.u32 %v9036, 7
      %v9038 = vsub.s32 %v9035, %v9037
      %v9039 = vrot.slane %v9030, %v9038
      %v9041 = vunpack.c.l.s4 1983009808
      %v9042 = vunpack.c.0.s8 %v9041
      %v9043 = vlaneseq
      %v9044 = vshrl.u32 %v9043, 7
      %v9045 = vsub.s32 %v9042, %v9044
      %v9046 = vrot.slane %v9032, %v9045
      %v9047 = vcombine.high %v9039, %v9039
      %v9048 = vcombine.high %v9046, %v9046
      %v9049 = vld [vmem:[%s9] sm:$0xf]
      %vm9050 = vcmask 31744
      %v9052 = vsel %vm9050, %v9049, 0
      %v9055 = vsel %vm3223, %v9039, 0
      %9057 = vmatprep.subr.bf16.mxu0 0
      %9058 = vmatpush1.bf16.msra.mxu0 %v9055
      %9059 = vmatprep.subr.bf16.mxu0 0
      %9060 = vmatpush1.bf16.msra.mxu0 0
      %9061 = vmatprep.subr.bf16.mxu0 0
      %9062 = vmatpush1.bf16.msra.mxu0 0
      %9063 = vmatprep.subr.bf16.mxu0 0
      %9064 = vmatpush1.bf16.msra.mxu0 0
      %9065 = vmatprep.subr.bf16.mxu0 0
      %9066 = vmatpush1.bf16.msra.mxu0 0
      %9067 = vmatprep.subr.bf16.mxu0 0
      %9068 = vmatpush1.bf16.msra.mxu0 0
      %9069 = vmatprep.subr.bf16.mxu0 0
      %9070 = vmatpush1.bf16.msra.mxu0 0
      %9071 = vmatprep.subr.bf16.mxu0 0
      %9072 = vmatpush1.bf16.msra.mxu0 0
      %9073 = vmatprep.subr.bf16.mxu0 0
      %9074 = vmatpush1.bf16.msra.mxu0 0
      %9075 = vmatprep.subr.bf16.mxu0 0
      %9076 = vmatpush1.bf16.msra.mxu0 0
      %9077 = vmatprep.subr.bf16.mxu0 0
      %9078 = vmatpush1.bf16.msra.mxu0 0
      %9079 = vmatprep.subr.bf16.mxu0 0
      %9080 = vmatpush1.bf16.msra.mxu0 0
      %9081 = vmatprep.subr.bf16.mxu0 0
      %9082 = vmatpush1.bf16.msra.mxu0 0
      %9083 = vmatprep.subr.bf16.mxu0 0
      %9084 = vmatpush1.bf16.msra.mxu0 0
      %9085 = vmatprep.subr.bf16.mxu0 0
      %9086 = vmatpush1.bf16.msra.mxu0 0
      %9087 = vmatprep.subr.bf16.mxu0 0
      %9088 = vmatpush1.bf16.msra.mxu0 0
      %9089 = vmatprep.mubr.bf16.mxu0 0
      %9090 = vmatmul.mubr.bf16.gmra.mrb[0].mxu0 %v9052
      %v9091 = vpop.f32.mrb[0].mxu0
      %v9092 = vadd.f32 0.0, %v9091
      %v9093 = vpop.f32.mrb[0].mxu0
      %v9094 = vpop.f32.mrb[0].mxu0
      %v9095 = vpop.f32.mrb[0].mxu0
      %9096 = vdwg.mxu0
      %v9098 = vsel %vm3223, %v9047, 0
      %9100 = vmatprep.subr.bf16.mxu0 0
      %9101 = vmatpush1.bf16.msra.mxu0 %v9098
      %9102 = vmatprep.subr.bf16.mxu0 0
      %9103 = vmatpush1.bf16.msra.mxu0 0
      %9104 = vmatprep.subr.bf16.mxu0 0
      %9105 = vmatpush1.bf16.msra.mxu0 0
      %9106 = vmatprep.subr.bf16.mxu0 0
      %9107 = vmatpush1.bf16.msra.mxu0 0
      %9108 = vmatprep.subr.bf16.mxu0 0
      %9109 = vmatpush1.bf16.msra.mxu0 0
      %9110 = vmatprep.subr.bf16.mxu0 0
      %9111 = vmatpush1.bf16.msra.mxu0 0
      %9112 = vmatprep.subr.bf16.mxu0 0
      %9113 = vmatpush1.bf16.msra.mxu0 0
      %9114 = vmatprep.subr.bf16.mxu0 0
      %9115 = vmatpush1.bf16.msra.mxu0 0
      %9116 = vmatprep.subr.bf16.mxu0 0
      %9117 = vmatpush1.bf16.msra.mxu0 0
      %9118 = vmatprep.subr.bf16.mxu0 0
      %9119 = vmatpush1.bf16.msra.mxu0 0
      %9120 = vmatprep.subr.bf16.mxu0 0
      %9121 = vmatpush1.bf16.msra.mxu0 0
      %9122 = vmatprep.subr.bf16.mxu0 0
      %9123 = vmatpush1.bf16.msra.mxu0 0
      %9124 = vmatprep.subr.bf16.mxu0 0
      %9125 = vmatpush1.bf16.msra.mxu0 0
      %9126 = vmatprep.subr.bf16.mxu0 0
      %9127 = vmatpush1.bf16.msra.mxu0 0
      %9128 = vmatprep.subr.bf16.mxu0 0
      %9129 = vmatpush1.bf16.msra.mxu0 0
      %9130 = vmatprep.subr.bf16.mxu0 0
      %9131 = vmatpush1.bf16.msra.mxu0 0
      %9132 = vmatprep.mubr.bf16.mxu0 0
      %9133 = vmatmul.mubr.bf16.gmra.mrb[0].mxu0 %v9052
      %v9134 = vpop.f32.mrb[0].mxu0
      %v9135 = vadd.f32 0.0, %v9134
      %v9136 = vpop.f32.mrb[0].mxu0
      %v9137 = vpop.f32.mrb[0].mxu0
      %v9138 = vpop.f32.mrb[0].mxu0
      %9139 = vdwg.mxu0
      %v9141 = vsel %vm3223, %v9046, 0
      %9143 = vmatprep.subr.bf16.mxu0 0
      %9144 = vmatpush1.bf16.msra.mxu0 %v9141
      %9145 = vmatprep.subr.bf16.mxu0 0
      %9146 = vmatpush1.bf16.msra.mxu0 0
      %9147 = vmatprep.subr.bf16.mxu0 0
      %9148 = vmatpush1.bf16.msra.mxu0 0
      %9149 = vmatprep.subr.bf16.mxu0 0
      %9150 = vmatpush1.bf16.msra.mxu0 0
      %9151 = vmatprep.subr.bf16.mxu0 0
      %9152 = vmatpush1.bf16.msra.mxu0 0
      %9153 = vmatprep.subr.bf16.mxu0 0
      %9154 = vmatpush1.bf16.msra.mxu0 0
      %9155 = vmatprep.subr.bf16.mxu0 0
      %9156 = vmatpush1.bf16.msra.mxu0 0
      %9157 = vmatprep.subr.bf16.mxu0 0
      %9158 = vmatpush1.bf16.msra.mxu0 0
      %9159 = vmatprep.subr.bf16.mxu0 0
      %9160 = vmatpush1.bf16.msra.mxu0 0
      %9161 = vmatprep.subr.bf16.mxu0 0
      %9162 = vmatpush1.bf16.msra.mxu0 0
      %9163 = vmatprep.subr.bf16.mxu0 0
      %9164 = vmatpush1.bf16.msra.mxu0 0
      %9165 = vmatprep.subr.bf16.mxu0 0
      %9166 = vmatpush1.bf16.msra.mxu0 0
      %9167 = vmatprep.subr.bf16.mxu0 0
      %9168 = vmatpush1.bf16.msra.mxu0 0
      %9169 = vmatprep.subr.bf16.mxu0 0
      %9170 = vmatpush1.bf16.msra.mxu0 0
      %9171 = vmatprep.subr.bf16.mxu0 0
      %9172 = vmatpush1.bf16.msra.mxu0 0
      %9173 = vmatprep.subr.bf16.mxu0 0
      %9174 = vmatpush1.bf16.msra.mxu0 0
      %9175 = vmatprep.mubr.bf16.mxu0 0
      %9176 = vmatmul.mubr.bf16.gmra.mrb[0].mxu0 %v9052
      %v9177 = vpop.f32.mrb[0].mxu0
      %v9178 = vadd.f32 0.0, %v9177
      %v9179 = vpop.f32.mrb[0].mxu0
      %v9180 = vpop.f32.mrb[0].mxu0
      %v9181 = vpop.f32.mrb[0].mxu0
      %9182 = vdwg.mxu0
      %v9184 = vsel %vm3223, %v9048, 0
      %9186 = vmatprep.subr.bf16.mxu0 0
      %9187 = vmatpush1.bf16.msra.mxu0 %v9184
      %9188 = vmatprep.subr.bf16.mxu0 0
      %9189 = vmatpush1.bf16.msra.mxu0 0
      %9190 = vmatprep.subr.bf16.mxu0 0
      %9191 = vmatpush1.bf16.msra.mxu0 0
      %9192 = vmatprep.subr.bf16.mxu0 0
      %9193 = vmatpush1.bf16.msra.mxu0 0
      %9194 = vmatprep.subr.bf16.mxu0 0
      %9195 = vmatpush1.bf16.msra.mxu0 0
      %9196 = vmatprep.subr.bf16.mxu0 0
      %9197 = vmatpush1.bf16.msra.mxu0 0
      %9198 = vmatprep.subr.bf16.mxu0 0
      %9199 = vmatpush1.bf16.msra.mxu0 0
      %9200 = vmatprep.subr.bf16.mxu0 0
      %9201 = vmatpush1.bf16.msra.mxu0 0
      %9202 = vmatprep.subr.bf16.mxu0 0
      %9203 = vmatpush1.bf16.msra.mxu0 0
      %9204 = vmatprep.subr.bf16.mxu0 0
      %9205 = vmatpush1.bf16.msra.mxu0 0
      %9206 = vmatprep.subr.bf16.mxu0 0
      %9207 = vmatpush1.bf16.msra.mxu0 0
      %9208 = vmatprep.subr.bf16.mxu0 0
      %9209 = vmatpush1.bf16.msra.mxu0 0
      %9210 = vmatprep.subr.bf16.mxu0 0
      %9211 = vmatpush1.bf16.msra.mxu0 0
      %9212 = vmatprep.subr.bf16.mxu0 0
      %9213 = vmatpush1.bf16.msra.mxu0 0
      %9214 = vmatprep.subr.bf16.mxu0 0
      %9215 = vmatpush1.bf16.msra.mxu0 0
      %9216 = vmatprep.subr.bf16.mxu0 0
      %9217 = vmatpush1.bf16.msra.mxu0 0
      %9218 = vmatprep.mubr.bf16.mxu0 0
      %9219 = vmatmul.mubr.bf16.gmra.mrb[0].mxu0 %v9052
      %v9220 = vpop.f32.mrb[0].mxu0
      %v9221 = vadd.f32 0.0, %v9220
      %v9222 = vpop.f32.mrb[0].mxu0
      %v9223 = vpop.f32.mrb[0].mxu0
      %v9224 = vpop.f32.mrb[0].mxu0
      %9225 = vdwg.mxu0
      %v9226 = vpack.c.bf16 %v9092, %v9092
      %v9228 = vunpack.c.l.s4 1983009808
      %v9229 = vunpack.c.0.s8 %v9228
      %v9230 = vlaneseq
      %v9231 = vshrl.u32 %v9230, 7
      %v9232 = vsub.s32 %v9229, %v9231
      %v9233 = vrot.slane %v9226, %v9232
      %v9234 = vpack.c.bf16 %v9178, %v9178
      %v9236 = vunpack.c.l.s4 1983009808
      %v9237 = vunpack.c.0.s8 %v9236
      %v9238 = vlaneseq
      %v9239 = vshrl.u32 %v9238, 7
      %v9240 = vsub.s32 %v9237, %v9239
      %v9241 = vrot.slane %v9234, %v9240
      %v9242 = vcombine.low %v9233, %v9241
      %v9243 = vcombine.high %v9233, %v9241
      %v9245 = vunpack.c.l.s4 1934713408
      %v9246 = vunpack.c.0.s8 %v9245
      %v9247 = vlaneseq
      %v9248 = vshrl.u32 %v9247, 7
      %v9249 = vsub.s32 %v9246, %v9248
      %v9250 = vrot.slane %v9242, %v9249
      %v9252 = vunpack.c.l.s4 1934713408
      %v9253 = vunpack.c.0.s8 %v9252
      %v9254 = vlaneseq
      %v9255 = vshrl.u32 %v9254, 7
      %v9256 = vsub.s32 %v9253, %v9255
      %v9257 = vrot.slane %v9243, %v9256
      %v9258 = vcombine.high %v9250, 0
      %v9259 = vcombine.high %v9257, 0
      %v9260 = vpack.c.bf16 %v9135, %v9135
      %v9262 = vunpack.c.l.s4 1983009808
      %v9263 = vunpack.c.0.s8 %v9262
      %v9264 = vlaneseq
      %v9265 = vshrl.u32 %v9264, 7
      %v9266 = vsub.s32 %v9263, %v9265
      %v9267 = vrot.slane %v9260, %v9266
      %v9268 = vpack.c.bf16 %v9221, %v9221
      %v9270 = vunpack.c.l.s4 1983009808
      %v9271 = vunpack.c.0.s8 %v9270
      %v9272 = vlaneseq
      %v9273 = vshrl.u32 %v9272, 7
      %v9274 = vsub.s32 %v9271, %v9273
      %v9275 = vrot.slane %v9268, %v9274
      %v9276 = vcombine.low %v9267, %v9275
      %v9277 = vcombine.high %v9267, %v9275
      %v9279 = vunpack.c.l.s4 1934713408
      %v9280 = vunpack.c.0.s8 %v9279
      %v9281 = vlaneseq
      %v9282 = vshrl.u32 %v9281, 7
      %v9283 = vsub.s32 %v9280, %v9282
      %v9284 = vrot.slane %v9276, %v9283
      %v9286 = vunpack.c.l.s4 1934713408
      %v9287 = vunpack.c.0.s8 %v9286
      %v9288 = vlaneseq
      %v9289 = vshrl.u32 %v9288, 7
      %v9290 = vsub.s32 %v9287, %v9289
      %v9291 = vrot.slane %v9277, %v9290
      %v9292 = vcombine.high %v9284, 0
      %v9293 = vcombine.high %v9291, 0
      %v9296 = vpack.i.b16 %v9284, %v9250
      %v9297 = vshrl.u32 %v9250, 16
      %v9298 = vshrl.u32 %v9284, 16
      %v9299 = vpack.i.b16 %v9298, %v9297
      %v9302 = vpack.i.b16 %v9292, %v9258
      %v9303 = vshrl.u32 %v9258, 16
      %v9304 = vshrl.u32 %v9292, 16
      %v9305 = vpack.i.b16 %v9304, %v9303
      %v9308 = vpack.i.b16 %v9291, %v9257
      %v9309 = vshrl.u32 %v9257, 16
      %v9310 = vshrl.u32 %v9291, 16
      %v9311 = vpack.i.b16 %v9310, %v9309
      %v9314 = vpack.i.b16 %v9293, %v9259
      %v9315 = vshrl.u32 %v9259, 16
      %v9316 = vshrl.u32 %v9293, 16
      %v9317 = vpack.i.b16 %v9316, %v9315
      %v9318 = vld [vmem:[%s10] sm:$0xf]
      %v9320 = vsel %vm9050, %v9318, 0
      %v9323 = vsel %vm3223, %v9296, 0
      %v9326 = vsel %vm3223, %v9299, 0
      %v9329 = vsel %vm3223, %v9302, 0
      %v9332 = vsel %vm3223, %v9305, 0
      %v9335 = vsel %vm3223, %v9308, 0
      %v9338 = vsel %vm3223, %v9311, 0
      %v9341 = vsel %vm3223, %v9314, 0
      %v9344 = vsel %vm3223, %v9317, 0
      %9346 = vmatprep.subr.bf16.mxu0 %v9326
      %9347 = vmatpush1.bf16.msra.mxu0 %v9323
      %9348 = vmatprep.subr.bf16.mxu0 0
      %9349 = vmatpush1.bf16.msra.mxu0 0
      %9350 = vmatprep.subr.bf16.mxu0 0
      %9351 = vmatpush1.bf16.msra.mxu0 0
      %9352 = vmatprep.subr.bf16.mxu0 0
      %9353 = vmatpush1.bf16.msra.mxu0 0
      %9354 = vmatprep.subr.bf16.mxu0 0
      %9355 = vmatpush1.bf16.msra.mxu0 0
      %9356 = vmatprep.subr.bf16.mxu0 0
      %9357 = vmatpush1.bf16.msra.mxu0 0
      %9358 = vmatprep.subr.bf16.mxu0 0
      %9359 = vmatpush1.bf16.msra.mxu0 0
      %9360 = vmatprep.subr.bf16.mxu0 0
      %9361 = vmatpush1.bf16.msra.mxu0 0
      %9362 = vmatprep.subr.bf16.mxu0 0
      %9363 = vmatpush1.bf16.msra.mxu0 0
      %9364 = vmatprep.subr.bf16.mxu0 0
      %9365 = vmatpush1.bf16.msra.mxu0 0
      %9366 = vmatprep.subr.bf16.mxu0 0
      %9367 = vmatpush1.bf16.msra.mxu0 0
      %9368 = vmatprep.subr.bf16.mxu0 0
      %9369 = vmatpush1.bf16.msra.mxu0 0
      %9370 = vmatprep.subr.bf16.mxu0 0
      %9371 = vmatpush1.bf16.msra.mxu0 0
      %9372 = vmatprep.subr.bf16.mxu0 0
      %9373 = vmatpush1.bf16.msra.mxu0 0
      %9374 = vmatprep.subr.bf16.mxu0 0
      %9375 = vmatpush1.bf16.msra.mxu0 0
      %9376 = vmatprep.subr.bf16.mxu0 0
      %9377 = vmatpush1.bf16.msra.mxu0 0
      %9378 = vmatprep.mubr.bf16.mxu0 0
      %9379 = vmatmul.mubr.bf16.gmra.mrb[0].mxu0 %v9320
      %v9380 = vpop.f32.mrb[0].mxu0
      %v9381 = vadd.f32 0.0, %v9380
      %v9382 = vpop.f32.mrb[0].mxu0
      %v9383 = vadd.f32 0.0, %v9382
      %v9384 = vpop.f32.mrb[0].mxu0
      %v9385 = vpop.f32.mrb[0].mxu0
      %9386 = vdwg.mxu0
      %9387 = vmatprep.subr.bf16.mxu0 %v9332
      %9388 = vmatpush1.bf16.msra.mxu0 %v9329
      %9389 = vmatprep.subr.bf16.mxu0 0
      %9390 = vmatpush1.bf16.msra.mxu0 0
      %9391 = vmatprep.subr.bf16.mxu0 0
      %9392 = vmatpush1.bf16.msra.mxu0 0
      %9393 = vmatprep.subr.bf16.mxu0 0
      %9394 = vmatpush1.bf16.msra.mxu0 0
      %9395 = vmatprep.subr.bf16.mxu0 0
      %9396 = vmatpush1.bf16.msra.mxu0 0
      %9397 = vmatprep.subr.bf16.mxu0 0
      %9398 = vmatpush1.bf16.msra.mxu0 0
      %9399 = vmatprep.subr.bf16.mxu0 0
      %9400 = vmatpush1.bf16.msra.mxu0 0
      %9401 = vmatprep.subr.bf16.mxu0 0
      %9402 = vmatpush1.bf16.msra.mxu0 0
      %9403 = vmatprep.subr.bf16.mxu0 0
      %9404 = vmatpush1.bf16.msra.mxu0 0
      %9405 = vmatprep.subr.bf16.mxu0 0
      %9406 = vmatpush1.bf16.msra.mxu0 0
      %9407 = vmatprep.subr.bf16.mxu0 0
      %9408 = vmatpush1.bf16.msra.mxu0 0
      %9409 = vmatprep.subr.bf16.mxu0 0
      %9410 = vmatpush1.bf16.msra.mxu0 0
      %9411 = vmatprep.subr.bf16.mxu0 0
      %9412 = vmatpush1.bf16.msra.mxu0 0
      %9413 = vmatprep.subr.bf16.mxu0 0
      %9414 = vmatpush1.bf16.msra.mxu0 0
      %9415 = vmatprep.subr.bf16.mxu0 0
      %9416 = vmatpush1.bf16.msra.mxu0 0
      %9417 = vmatprep.subr.bf16.mxu0 0
      %9418 = vmatpush1.bf16.msra.mxu0 0
      %9419 = vmatprep.mubr.bf16.mxu0 0
      %9420 = vmatmul.mubr.bf16.gmra.mrb[0].mxu0 %v9320
      %v9421 = vpop.f32.mrb[0].mxu0
      %v9422 = vadd.f32 0.0, %v9421
      %v9423 = vpop.f32.mrb[0].mxu0
      %v9424 = vadd.f32 0.0, %v9423
      %v9425 = vpop.f32.mrb[0].mxu0
      %v9426 = vpop.f32.mrb[0].mxu0
      %9427 = vdwg.mxu0
      %9428 = vmatprep.subr.bf16.mxu0 %v9338
      %9429 = vmatpush1.bf16.msra.mxu0 %v9335
      %9430 = vmatprep.subr.bf16.mxu0 0
      %9431 = vmatpush1.bf16.msra.mxu0 0
      %9432 = vmatprep.subr.bf16.mxu0 0
      %9433 = vmatpush1.bf16.msra.mxu0 0
      %9434 = vmatprep.subr.bf16.mxu0 0
      %9435 = vmatpush1.bf16.msra.mxu0 0
      %9436 = vmatprep.subr.bf16.mxu0 0
      %9437 = vmatpush1.bf16.msra.mxu0 0
      %9438 = vmatprep.subr.bf16.mxu0 0
      %9439 = vmatpush1.bf16.msra.mxu0 0
      %9440 = vmatprep.subr.bf16.mxu0 0
      %9441 = vmatpush1.bf16.msra.mxu0 0
      %9442 = vmatprep.subr.bf16.mxu0 0
      %9443 = vmatpush1.bf16.msra.mxu0 0
      %9444 = vmatprep.subr.bf16.mxu0 0
      %9445 = vmatpush1.bf16.msra.mxu0 0
      %9446 = vmatprep.subr.bf16.mxu0 0
      %9447 = vmatpush1.bf16.msra.mxu0 0
      %9448 = vmatprep.subr.bf16.mxu0 0
      %9449 = vmatpush1.bf16.msra.mxu0 0
      %9450 = vmatprep.subr.bf16.mxu0 0
      %9451 = vmatpush1.bf16.msra.mxu0 0
      %9452 = vmatprep.subr.bf16.mxu0 0
      %9453 = vmatpush1.bf16.msra.mxu0 0
      %9454 = vmatprep.subr.bf16.mxu0 0
      %9455 = vmatpush1.bf16.msra.mxu0 0
      %9456 = vmatprep.subr.bf16.mxu0 0
      %9457 = vmatpush1.bf16.msra.mxu0 0
      %9458 = vmatprep.subr.bf16.mxu0 0
      %9459 = vmatpush1.bf16.msra.mxu0 0
      %9460 = vmatprep.mubr.bf16.mxu0 0
      %9461 = vmatmul.mubr.bf16.gmra.mrb[0].mxu0 %v9320
      %v9462 = vpop.f32.mrb[0].mxu0
      %v9463 = vadd.f32 0.0, %v9462
      %v9464 = vpop.f32.mrb[0].mxu0
      %v9465 = vadd.f32 0.0, %v9464
      %v9466 = vpop.f32.mrb[0].mxu0
      %v9467 = vpop.f32.mrb[0].mxu0
      %9468 = vdwg.mxu0
      %9469 = vmatprep.subr.bf16.mxu0 %v9344
      %9470 = vmatpush1.bf16.msra.mxu0 %v9341
      %9471 = vmatprep.subr.bf16.mxu0 0
      %9472 = vmatpush1.bf16.msra.mxu0 0
      %9473 = vmatprep.subr.bf16.mxu0 0
      %9474 = vmatpush1.bf16.msra.mxu0 0
      %9475 = vmatprep.subr.bf16.mxu0 0
      %9476 = vmatpush1.bf16.msra.mxu0 0
      %9477 = vmatprep.subr.bf16.mxu0 0
      %9478 = vmatpush1.bf16.msra.mxu0 0
      %9479 = vmatprep.subr.bf16.mxu0 0
      %9480 = vmatpush1.bf16.msra.mxu0 0
      %9481 = vmatprep.subr.bf16.mxu0 0
      %9482 = vmatpush1.bf16.msra.mxu0 0
      %9483 = vmatprep.subr.bf16.mxu0 0
      %9484 = vmatpush1.bf16.msra.mxu0 0
      %9485 = vmatprep.subr.bf16.mxu0 0
      %9486 = vmatpush1.bf16.msra.mxu0 0
      %9487 = vmatprep.subr.bf16.mxu0 0
      %9488 = vmatpush1.bf16.msra.mxu0 0
      %9489 = vmatprep.subr.bf16.mxu0 0
      %9490 = vmatpush1.bf16.msra.mxu0 0
      %9491 = vmatprep.subr.bf16.mxu0 0
      %9492 = vmatpush1.bf16.msra.mxu0 0
      %9493 = vmatprep.subr.bf16.mxu0 0
      %9494 = vmatpush1.bf16.msra.mxu0 0
      %9495 = vmatprep.subr.bf16.mxu0 0
      %9496 = vmatpush1.bf16.msra.mxu0 0
      %9497 = vmatprep.subr.bf16.mxu0 0
      %9498 = vmatpush1.bf16.msra.mxu0 0
      %9499 = vmatprep.subr.bf16.mxu0 0
      %9500 = vmatpush1.bf16.msra.mxu0 0
      %9501 = vmatprep.mubr.bf16.mxu0 0
      %9502 = vmatmul.mubr.bf16.gmra.mrb[0].mxu0 %v9320
      %v9503 = vpop.f32.mrb[0].mxu0
      %v9504 = vadd.f32 0.0, %v9503
      %v9505 = vpop.f32.mrb[0].mxu0
      %v9506 = vadd.f32 0.0, %v9505
      %v9507 = vpop.f32.mrb[0].mxu0
      %v9508 = vpop.f32.mrb[0].mxu0
      %9509 = vdwg.mxu0
      %v9510 = vcombine.low %v9381, %v9422
      %v9511 = vcombine.high %v9381, %v9422
      %v9513 = vunpack.c.l.s4 1983009808
      %v9514 = vunpack.c.0.s8 %v9513
      %v9515 = vlaneseq
      %v9516 = vshrl.u32 %v9515, 7
      %v9517 = vsub.s32 %v9514, %v9516
      %v9518 = vrot.slane %v9510, %v9517
      %v9520 = vunpack.c.l.s4 1983009808
      %v9521 = vunpack.c.0.s8 %v9520
      %v9522 = vlaneseq
      %v9523 = vshrl.u32 %v9522, 7
      %v9524 = vsub.s32 %v9521, %v9523
      %v9525 = vrot.slane %v9511, %v9524
      %v9526 = vcombine.low %v9383, %v9424
      %v9527 = vcombine.high %v9383, %v9424
      %v9529 = vunpack.c.l.s4 1983009808
      %v9530 = vunpack.c.0.s8 %v9529
      %v9531 = vlaneseq
      %v9532 = vshrl.u32 %v9531, 7
      %v9533 = vsub.s32 %v9530, %v9532
      %v9534 = vrot.slane %v9526, %v9533
      %v9536 = vunpack.c.l.s4 1983009808
      %v9537 = vunpack.c.0.s8 %v9536
      %v9538 = vlaneseq
      %v9539 = vshrl.u32 %v9538, 7
      %v9540 = vsub.s32 %v9537, %v9539
      %v9541 = vrot.slane %v9527, %v9540
      %v9542 = vcombine.low %v9463, %v9504
      %v9543 = vcombine.high %v9463, %v9504
      %v9545 = vunpack.c.l.s4 1983009808
      %v9546 = vunpack.c.0.s8 %v9545
      %v9547 = vlaneseq
      %v9548 = vshrl.u32 %v9547, 7
      %v9549 = vsub.s32 %v9546, %v9548
      %v9550 = vrot.slane %v9542, %v9549
      %v9552 = vunpack.c.l.s4 1983009808
      %v9553 = vunpack.c.0.s8 %v9552
      %v9554 = vlaneseq
      %v9555 = vshrl.u32 %v9554, 7
      %v9556 = vsub.s32 %v9553, %v9555
      %v9557 = vrot.slane %v9543, %v9556
      %v9558 = vcombine.low %v9465, %v9506
      %v9559 = vcombine.high %v9465, %v9506
      %v9561 = vunpack.c.l.s4 1983009808
      %v9562 = vunpack.c.0.s8 %v9561
      %v9563 = vlaneseq
      %v9564 = vshrl.u32 %v9563, 7
      %v9565 = vsub.s32 %v9562, %v9564
      %v9566 = vrot.slane %v9558, %v9565
      %v9568 = vunpack.c.l.s4 1983009808
      %v9569 = vunpack.c.0.s8 %v9568
      %v9570 = vlaneseq
      %v9571 = vshrl.u32 %v9570, 7
      %v9572 = vsub.s32 %v9569, %v9571
      %v9573 = vrot.slane %v9559, %v9572
      %v9574 = vcombine.low %v9518, %v9534
      %v9575 = vcombine.high %v9518, %v9534
      %v9577 = vunpack.c.l.s4 1934713408
      %v9578 = vunpack.c.0.s8 %v9577
      %v9579 = vlaneseq
      %v9580 = vshrl.u32 %v9579, 7
      %v9581 = vsub.s32 %v9578, %v9580
      %v9582 = vrot.slane %v9574, %v9581
      %v9584 = vunpack.c.l.s4 1934713408
      %v9585 = vunpack.c.0.s8 %v9584
      %v9586 = vlaneseq
      %v9587 = vshrl.u32 %v9586, 7
      %v9588 = vsub.s32 %v9585, %v9587
      %v9589 = vrot.slane %v9575, %v9588
      %v9590 = vcombine.low %v9525, %v9541
      %v9591 = vcombine.high %v9525, %v9541
      %v9593 = vunpack.c.l.s4 1934713408
      %v9594 = vunpack.c.0.s8 %v9593
      %v9595 = vlaneseq
      %v9596 = vshrl.u32 %v9595, 7
      %v9597 = vsub.s32 %v9594, %v9596
      %v9598 = vrot.slane %v9590, %v9597
      %v9600 = vunpack.c.l.s4 1934713408
      %v9601 = vunpack.c.0.s8 %v9600
      %v9602 = vlaneseq
      %v9603 = vshrl.u32 %v9602, 7
      %v9604 = vsub.s32 %v9601, %v9603
      %v9605 = vrot.slane %v9591, %v9604
      %v9606 = vcombine.low %v9550, %v9566
      %v9607 = vcombine.high %v9550, %v9566
      %v9609 = vunpack.c.l.s4 1934713408
      %v9610 = vunpack.c.0.s8 %v9609
      %v9611 = vlaneseq
      %v9612 = vshrl.u32 %v9611, 7
      %v9613 = vsub.s32 %v9610, %v9612
      %v9614 = vrot.slane %v9606, %v9613
      %v9616 = vunpack.c.l.s4 1934713408
      %v9617 = vunpack.c.0.s8 %v9616
      %v9618 = vlaneseq
      %v9619 = vshrl.u32 %v9618, 7
      %v9620 = vsub.s32 %v9617, %v9619
      %v9621 = vrot.slane %v9607, %v9620
      %v9622 = vcombine.low %v9557, %v9573
      %v9623 = vcombine.high %v9557, %v9573
      %v9625 = vunpack.c.l.s4 1934713408
      %v9626 = vunpack.c.0.s8 %v9625
      %v9627 = vlaneseq
      %v9628 = vshrl.u32 %v9627, 7
      %v9629 = vsub.s32 %v9626, %v9628
      %v9630 = vrot.slane %v9622, %v9629
      %v9632 = vunpack.c.l.s4 1934713408
      %v9633 = vunpack.c.0.s8 %v9632
      %v9634 = vlaneseq
      %v9635 = vshrl.u32 %v9634, 7
      %v9636 = vsub.s32 %v9633, %v9635
      %v9637 = vrot.slane %v9623, %v9636
      %v9638 = vcombine.low %v9582, %v9614
      %v9639 = vcombine.high %v9582, %v9614
      %v9640 = vcombine.low %v9589, %v9621
      %v9641 = vcombine.high %v9589, %v9621
      %v9642 = vcombine.low %v9598, %v9630
      %v9643 = vcombine.high %v9598, %v9630
      %v9644 = vcombine.low %v9605, %v9637
      %v9645 = vcombine.high %v9605, %v9637
      %v9646 = vpack.c.bf16 %v9638, %v9638
      %v9647 = vpack.c.bf16 %v9639, %v9639
      %v9648 = vpack.c.bf16 %v9640, %v9640
      %v9649 = vpack.c.bf16 %v9641, %v9641
      %v9650 = vpack.c.bf16 %v9642, %v9642
      %v9651 = vpack.c.bf16 %v9643, %v9643
      %v9652 = vpack.c.bf16 %v9644, %v9644
      %v9653 = vpack.c.bf16 %v9645, %v9645
      %v9655 = vshrl.u32 %v9646, 16
      %v9657 = vrot.slane %v9655, 7
      %v9658 = vshll.u32 %v9646, 16
      %v9660 = vor.u32 %v9657, %v9658
      %v9662 = vshrl.u32 %v9647, 16
      %v9664 = vrot.slane %v9662, 7
      %v9665 = vshll.u32 %v9647, 16
      %v9667 = vor.u32 %v9664, %v9665
      %v9669 = vshrl.u32 %v9648, 16
      %v9671 = vrot.slane %v9669, 7
      %v9672 = vshll.u32 %v9648, 16
      %v9674 = vor.u32 %v9671, %v9672
      %v9676 = vshrl.u32 %v9649, 16
      %v9678 = vrot.slane %v9676, 7
      %v9679 = vshll.u32 %v9649, 16
      %v9681 = vor.u32 %v9678, %v9679
      %v9683 = vshrl.u32 %v9650, 16
      %v9685 = vrot.slane %v9683, 7
      %v9686 = vshll.u32 %v9650, 16
      %v9688 = vor.u32 %v9685, %v9686
      %v9690 = vshrl.u32 %v9651, 16
      %v9692 = vrot.slane %v9690, 7
      %v9693 = vshll.u32 %v9651, 16
      %v9695 = vor.u32 %v9692, %v9693
      %v9697 = vshrl.u32 %v9652, 16
      %v9699 = vrot.slane %v9697, 7
      %v9700 = vshll.u32 %v9652, 16
      %v9702 = vor.u32 %v9699, %v9700
      %v9704 = vshrl.u32 %v9653, 16
      %v9706 = vrot.slane %v9704, 7
      %v9707 = vshll.u32 %v9653, 16
      %v9709 = vor.u32 %v9706, %v9707
      %v9718 = vsel %vm1072, 0, %v9660
      %v9719 = vsel %vm1072, 0, %v9667
      %v9720 = vsel %vm1072, 0, %v9674
      %v9721 = vsel %vm1072, 0, %v9681
      %v9722 = vsel %vm1072, 0, %v9688
      %v9723 = vsel %vm1072, 0, %v9695
      %v9724 = vsel %vm1072, 0, %v9702
      %v9725 = vsel %vm1072, 0, %v9709
      %v9726 = vsel %vm4521, %v9718, 0
      %v9727 = vsel %vm4521, %v9719, 0
      %v9728 = vsel %vm4521, %v9720, 0
      %v9729 = vsel %vm4521, %v9721, 0
      %v9730 = vsel %vm4521, %v9722, 0
      %v9731 = vsel %vm4521, %v9723, 0
      %v9732 = vsel %vm4521, %v9724, 0
      %v9733 = vsel %vm4521, %v9725, 0
      %v9735 = vshrl.u32 %v9726, 16
      %v9737 = vshll.u32 %v9726, 16
      %v9739 = vrot.slane %v9737, 1
      %v9740 = vor.u32 %v9735, %v9739
      %v9742 = vshrl.u32 %v9727, 16
      %v9744 = vshll.u32 %v9727, 16
      %v9746 = vrot.slane %v9744, 1
      %v9747 = vor.u32 %v9742, %v9746
      %v9749 = vshrl.u32 %v9728, 16
      %v9751 = vshll.u32 %v9728, 16
      %v9753 = vrot.slane %v9751, 1
      %v9754 = vor.u32 %v9749, %v9753
      %v9756 = vshrl.u32 %v9729, 16
      %v9758 = vshll.u32 %v9729, 16
      %v9760 = vrot.slane %v9758, 1
      %v9761 = vor.u32 %v9756, %v9760
      %v9763 = vshrl.u32 %v9730, 16
      %v9765 = vshll.u32 %v9730, 16
      %v9767 = vrot.slane %v9765, 1
      %v9768 = vor.u32 %v9763, %v9767
      %v9770 = vshrl.u32 %v9731, 16
      %v9772 = vshll.u32 %v9731, 16
      %v9774 = vrot.slane %v9772, 1
      %v9775 = vor.u32 %v9770, %v9774
      %v9777 = vshrl.u32 %v9732, 16
      %v9779 = vshll.u32 %v9732, 16
      %v9781 = vrot.slane %v9779, 1
      %v9782 = vor.u32 %v9777, %v9781
      %v9790 = vrot.slane %v9726, 1
      %v9791 = vrot.slane %v9727, 1
      %v9792 = vrot.slane %v9728, 1
      %v9793 = vrot.slane %v9729, 1
      %v9794 = vrot.slane %v9730, 1
      %v9795 = vrot.slane %v9731, 1
      %v9796 = vrot.slane %v9732, 1
      %v9798 = vshrl.u32 %v9733, 16
      %v9800 = vshll.u32 %v9733, 16
      %v9802 = vrot.slane %v9800, 1
      %v9803 = vor.u32 %v9798, %v9802
      %v9805 = vrot.slane %v9733, 1
      %v9806 = vunpack.c.l.b16 %v9726
      %v9807 = vunpack.c.l.b16 %v9740
      %v9808 = vunpack.c.l.b16 %v9790
      %v9809 = vunpack.c.l.b16 %v9727
      %v9810 = vunpack.c.l.b16 %v9747
      %v9811 = vunpack.c.l.b16 %v9791
      %v9812 = vunpack.c.l.b16 %v9728
      %v9813 = vunpack.c.l.b16 %v9754
      %v9814 = vunpack.c.l.b16 %v9792
      %v9815 = vunpack.c.l.b16 %v9729
      %v9816 = vunpack.c.l.b16 %v9761
      %v9817 = vunpack.c.l.b16 %v9793
      %v9818 = vunpack.c.l.b16 %v9730
      %v9819 = vunpack.c.l.b16 %v9768
      %v9820 = vunpack.c.l.b16 %v9794
      %v9821 = vunpack.c.l.b16 %v9731
      %v9822 = vunpack.c.l.b16 %v9775
      %v9823 = vunpack.c.l.b16 %v9795
      %v9824 = vunpack.c.l.b16 %v9732
      %v9825 = vunpack.c.l.b16 %v9782
      %v9826 = vunpack.c.l.b16 %v9796
      %v9827 = vunpack.c.l.b16 %v9733
      %v9828 = vunpack.c.l.b16 %v9803
      %v9829 = vunpack.c.l.b16 %v9805
      %v9830 = vld [vmem:[%s11] sm:$0xf]
      %v9831 = vld [vmem:[%s11 + $0x4] sm:$0xf]
      %v9832 = vld [vmem:[%s11 + $0x8] sm:$0xf]
      %v9833 = vld [vmem:[%s11 + $0xc] sm:$0xf]
      %v9834 = vld [vmem:[%s11 + $0x10] sm:$0xf]
      %v9835 = vld [vmem:[%s11 + $0x14] sm:$0xf]
      %v9836 = vld [vmem:[%s11 + $0x18] sm:$0xf]
      %v9837 = vld [vmem:[%s11 + $0x1c] sm:$0xf]
      %v9838 = vld [vmem:[%s11 + $0x20] sm:$0xf]
      %v9839 = vld [vmem:[%s11 + $0x24] sm:$0xf]
      %v9840 = vld [vmem:[%s11 + $0x28] sm:$0xf]
      %v9841 = vld [vmem:[%s11 + $0x2c] sm:$0xf]
      %v9842 = vld [vmem:[%s11 + $0x30] sm:$0xf]
      %v9843 = vld [vmem:[%s11 + $0x34] sm:$0xf]
      %v9844 = vld [vmem:[%s11 + $0x38] sm:$0xf]
      %v9845 = vld [vmem:[%s11 + $0x3c] sm:$0xf]
      %v9846 = vld [vmem:[%s11 + $0x40] sm:$0xf]
      %v9847 = vld [vmem:[%s11 + $0x44] sm:$0xf]
      %v9848 = vld [vmem:[%s11 + $0x48] sm:$0xf]
      %v9849 = vld [vmem:[%s11 + $0x4c] sm:$0xf]
      %v9850 = vld [vmem:[%s11 + $0x50] sm:$0xf]
      %v9851 = vld [vmem:[%s11 + $0x54] sm:$0xf]
      %v9852 = vld [vmem:[%s11 + $0x58] sm:$0xf]
      %v9853 = vld [vmem:[%s11 + $0x5c] sm:$0xf]
      %v9854 = vld [vmem:[%s11 + $0x60] sm:$0xf]
      %v9855 = vld [vmem:[%s11 + $0x64] sm:$0xf]
      %v9856 = vld [vmem:[%s11 + $0x68] sm:$0xf]
      %v9857 = vld [vmem:[%s11 + $0x6c] sm:$0xf]
      %v9858 = vld [vmem:[%s11 + $0x70] sm:$0xf]
      %v9859 = vld [vmem:[%s11 + $0x74] sm:$0xf]
      %v9860 = vld [vmem:[%s11 + $0x78] sm:$0xf]
      %v9861 = vld [vmem:[%s11 + $0x7c] sm:$0xf]
      %v9862 = vld [vmem:[%s11 + $0x80] sm:$0xf]
      %v9863 = vld [vmem:[%s11 + $0x84] sm:$0xf]
      %v9864 = vld [vmem:[%s11 + $0x88] sm:$0xf]
      %v9865 = vld [vmem:[%s11 + $0x8c] sm:$0xf]
      %v9866 = vld [vmem:[%s11 + $0x90] sm:$0xf]
      %v9867 = vld [vmem:[%s11 + $0x94] sm:$0xf]
      %v9868 = vld [vmem:[%s11 + $0x98] sm:$0xf]
      %v9869 = vld [vmem:[%s11 + $0x9c] sm:$0xf]
      %v9870 = vld [vmem:[%s11 + $0xa0] sm:$0xf]
      %v9871 = vld [vmem:[%s11 + $0xa4] sm:$0xf]
      %v9872 = vld [vmem:[%s11 + $0xa8] sm:$0xf]
      %v9873 = vld [vmem:[%s11 + $0xac] sm:$0xf]
      %v9874 = vld [vmem:[%s11 + $0xb0] sm:$0xf]
      %v9875 = vld [vmem:[%s11 + $0xb4] sm:$0xf]
      %v9876 = vld [vmem:[%s11 + $0xb8] sm:$0xf]
      %v9877 = vld [vmem:[%s11 + $0xbc] sm:$0xf]
      %v9878 = vld [vmem:[%s11 + $0xc0] sm:$0xf]
      %v9879 = vld [vmem:[%s11 + $0xc4] sm:$0xf]
      %v9880 = vld [vmem:[%s11 + $0xc8] sm:$0xf]
      %v9881 = vld [vmem:[%s11 + $0xcc] sm:$0xf]
      %v9882 = vld [vmem:[%s11 + $0xd0] sm:$0xf]
      %v9883 = vld [vmem:[%s11 + $0xd4] sm:$0xf]
      %v9884 = vld [vmem:[%s11 + $0xd8] sm:$0xf]
      %v9885 = vld [vmem:[%s11 + $0xdc] sm:$0xf]
      %v9886 = vld [vmem:[%s11 + $0xe0] sm:$0xf]
      %v9887 = vld [vmem:[%s11 + $0xe4] sm:$0xf]
      %v9888 = vld [vmem:[%s11 + $0xe8] sm:$0xf]
      %v9889 = vld [vmem:[%s11 + $0xec] sm:$0xf]
      %v9890 = vld [vmem:[%s11 + $0xf0] sm:$0xf]
      %v9891 = vld [vmem:[%s11 + $0xf4] sm:$0xf]
      %v9892 = vld [vmem:[%s11 + $0xf8] sm:$0xf]
      %v9893 = vld [vmem:[%s11 + $0xfc] sm:$0xf]
      %v9894 = vld [vmem:[%s11 + $0x100] sm:$0xf]
      %v9895 = vld [vmem:[%s11 + $0x104] sm:$0xf]
      %v9896 = vld [vmem:[%s11 + $0x108] sm:$0xf]
      %v9897 = vld [vmem:[%s11 + $0x10c] sm:$0xf]
      %v9898 = vld [vmem:[%s11 + $0x110] sm:$0xf]
      %v9899 = vld [vmem:[%s11 + $0x114] sm:$0xf]
      %v9900 = vld [vmem:[%s11 + $0x118] sm:$0xf]
      %v9901 = vld [vmem:[%s11 + $0x11c] sm:$0xf]
      %v9902 = vld [vmem:[%s11 + $0x120] sm:$0xf]
      %v9903 = vld [vmem:[%s11 + $0x124] sm:$0xf]
      %v9904 = vld [vmem:[%s11 + $0x128] sm:$0xf]
      %v9905 = vld [vmem:[%s11 + $0x12c] sm:$0xf]
      %v9906 = vld [vmem:[%s11 + $0x130] sm:$0xf]
      %v9907 = vld [vmem:[%s11 + $0x134] sm:$0xf]
      %v9908 = vld [vmem:[%s11 + $0x138] sm:$0xf]
      %v9909 = vld [vmem:[%s11 + $0x13c] sm:$0xf]
      %v9910 = vld [vmem:[%s11 + $0x140] sm:$0xf]
      %v9911 = vld [vmem:[%s11 + $0x144] sm:$0xf]
      %v9912 = vld [vmem:[%s11 + $0x148] sm:$0xf]
      %v9913 = vld [vmem:[%s11 + $0x14c] sm:$0xf]
      %v9914 = vld [vmem:[%s11 + $0x150] sm:$0xf]
      %v9915 = vld [vmem:[%s11 + $0x154] sm:$0xf]
      %v9916 = vld [vmem:[%s11 + $0x158] sm:$0xf]
      %v9917 = vld [vmem:[%s11 + $0x15c] sm:$0xf]
      %v9918 = vld [vmem:[%s11 + $0x160] sm:$0xf]
      %v9919 = vld [vmem:[%s11 + $0x164] sm:$0xf]
      %v9920 = vld [vmem:[%s11 + $0x168] sm:$0xf]
      %v9921 = vld [vmem:[%s11 + $0x16c] sm:$0xf]
      %v9922 = vld [vmem:[%s11 + $0x170] sm:$0xf]
      %v9923 = vld [vmem:[%s11 + $0x174] sm:$0xf]
      %v9924 = vld [vmem:[%s11 + $0x178] sm:$0xf]
      %v9925 = vld [vmem:[%s11 + $0x17c] sm:$0xf]
      %v9926 = vld [vmem:[%s11 + $0x180] sm:$0xf]
      %v9927 = vld [vmem:[%s11 + $0x184] sm:$0xf]
      %v9928 = vld [vmem:[%s11 + $0x188] sm:$0xf]
      %v9929 = vld [vmem:[%s11 + $0x18c] sm:$0xf]
      %v9930 = vld [vmem:[%s11 + $0x190] sm:$0xf]
      %v9931 = vld [vmem:[%s11 + $0x194] sm:$0xf]
      %v9932 = vld [vmem:[%s11 + $0x198] sm:$0xf]
      %v9933 = vld [vmem:[%s11 + $0x19c] sm:$0xf]
      %v9934 = vld [vmem:[%s11 + $0x1a0] sm:$0xf]
      %v9935 = vld [vmem:[%s11 + $0x1a4] sm:$0xf]
      %v9936 = vld [vmem:[%s11 + $0x1a8] sm:$0xf]
      %v9937 = vld [vmem:[%s11 + $0x1ac] sm:$0xf]
      %v9938 = vld [vmem:[%s11 + $0x1b0] sm:$0xf]
      %v9939 = vld [vmem:[%s11 + $0x1b4] sm:$0xf]
      %v9940 = vld [vmem:[%s11 + $0x1b8] sm:$0xf]
      %v9941 = vld [vmem:[%s11 + $0x1bc] sm:$0xf]
      %v9942 = vld [vmem:[%s11 + $0x1c0] sm:$0xf]
      %v9943 = vld [vmem:[%s11 + $0x1c4] sm:$0xf]
      %v9944 = vld [vmem:[%s11 + $0x1c8] sm:$0xf]
      %v9945 = vld [vmem:[%s11 + $0x1cc] sm:$0xf]
      %v9946 = vld [vmem:[%s11 + $0x1d0] sm:$0xf]
      %v9947 = vld [vmem:[%s11 + $0x1d4] sm:$0xf]
      %v9948 = vld [vmem:[%s11 + $0x1d8] sm:$0xf]
      %v9949 = vld [vmem:[%s11 + $0x1dc] sm:$0xf]
      %v9950 = vld [vmem:[%s11 + $0x1e0] sm:$0xf]
      %v9951 = vld [vmem:[%s11 + $0x1e4] sm:$0xf]
      %v9952 = vld [vmem:[%s11 + $0x1e8] sm:$0xf]
      %v9953 = vld [vmem:[%s11 + $0x1ec] sm:$0xf]
      %v9954 = vld [vmem:[%s11 + $0x1f0] sm:$0xf]
      %v9955 = vld [vmem:[%s11 + $0x1f4] sm:$0xf]
      %v9956 = vld [vmem:[%s11 + $0x1f8] sm:$0xf]
      %v9957 = vld [vmem:[%s11 + $0x1fc] sm:$0xf]
      %v9958 = vld [vmem:[%s11 + $0x200] sm:$0xf]
      %v9959 = vld [vmem:[%s11 + $0x204] sm:$0xf]
      %v9960 = vld [vmem:[%s11 + $0x208] sm:$0xf]
      %v9961 = vld [vmem:[%s11 + $0x20c] sm:$0xf]
      %v9962 = vld [vmem:[%s11 + $0x210] sm:$0xf]
      %v9963 = vld [vmem:[%s11 + $0x214] sm:$0xf]
      %v9964 = vld [vmem:[%s11 + $0x218] sm:$0xf]
      %v9965 = vld [vmem:[%s11 + $0x21c] sm:$0xf]
      %v9966 = vld [vmem:[%s11 + $0x220] sm:$0xf]
      %v9967 = vld [vmem:[%s11 + $0x224] sm:$0xf]
      %v9968 = vld [vmem:[%s11 + $0x228] sm:$0xf]
      %v9969 = vld [vmem:[%s11 + $0x22c] sm:$0xf]
      %v9970 = vld [vmem:[%s11 + $0x230] sm:$0xf]
      %v9971 = vld [vmem:[%s11 + $0x234] sm:$0xf]
      %v9972 = vld [vmem:[%s11 + $0x238] sm:$0xf]
      %v9973 = vld [vmem:[%s11 + $0x23c] sm:$0xf]
      %v9974 = vld [vmem:[%s12] sm:$0x1]
      %v9976 = vlaneseq
      %v9977 = vshrl.u32 %v9976, 7
      %v9978 = vsub.s32 0, %v9977
      %v9979 = vrot.slane %v9974, %v9978
      %v9981 = vpack.c.b16 %v9806, %v4612
      %v9982 = vpack.c.b16 %v9807, %v4613
      %v9983 = vpack.c.b16 %v9808, %v4614
      %v9984 = vpack.c.b16 %v9809, %v9806
      %v9985 = vpack.c.b16 %v9810, %v9807
      %v9986 = vpack.c.b16 %v9811, %v9808
      %v9987 = vpack.c.b16 %v9812, %v9809
      %v9988 = vpack.c.b16 %v9813, %v9810
      %v9989 = vpack.c.b16 %v9814, %v9811
      %v9990 = vpack.c.b16 %v9815, %v9812
      %v9991 = vpack.c.b16 %v9816, %v9813
      %v9992 = vpack.c.b16 %v9817, %v9814
      %v9993 = vpack.c.b16 %v9818, %v9815
      %v9994 = vpack.c.b16 %v9819, %v9816
      %v9995 = vpack.c.b16 %v9820, %v9817
      %v9996 = vpack.c.b16 %v9821, %v9818
      %v9997 = vpack.c.b16 %v9822, %v9819
      %v9998 = vpack.c.b16 %v9823, %v9820
      %v9999 = vpack.c.b16 %v9824, %v9821
      %v10000 = vpack.c.b16 %v9825, %v9822
      %v10001 = vpack.c.b16 %v9826, %v9823
      %v10002 = vpack.c.b16 %v9827, %v9824
      %v10003 = vpack.c.b16 %v9828, %v9825
      %v10004 = vpack.c.b16 %v9829, %v9826
      %v10005 = vpack.c.b16 %v4612, %v9827
      %v10006 = vpack.c.b16 %v4613, %v9828
      %v10007 = vpack.c.b16 %v4614, %v9829
      %v10179 = vunpack.c.l.b16 %v9830
      %v10180 = vunpack.c.l.b16 %v9831
      %v10181 = vunpack.c.l.b16 %v9832
      %v10182 = vunpack.c.l.b16 %v9833
      %v10183 = vunpack.c.l.b16 %v9834
      %v10184 = vunpack.c.l.b16 %v9835
      %v10185 = vunpack.c.l.b16 %v9836
      %v10186 = vunpack.c.l.b16 %v9837
      %v10187 = vunpack.c.l.b16 %v9838
      %v10188 = vunpack.c.l.b16 %v9839
      %v10189 = vunpack.c.l.b16 %v9840
      %v10190 = vunpack.c.l.b16 %v9841
      %v10191 = vunpack.c.l.b16 %v9842
      %v10192 = vunpack.c.l.b16 %v9843
      %v10193 = vunpack.c.l.b16 %v9844
      %v10194 = vunpack.c.l.b16 %v9845
      %v10195 = vunpack.c.l.b16 %v9846
      %v10196 = vunpack.c.l.b16 %v9847
      %v10197 = vunpack.c.l.b16 %v9848
      %v10198 = vunpack.c.l.b16 %v9849
      %v10199 = vunpack.c.l.b16 %v9850
      %v10200 = vunpack.c.l.b16 %v9851
      %v10201 = vunpack.c.l.b16 %v9852
      %v10202 = vunpack.c.l.b16 %v9853
      %v10203 = vunpack.c.l.b16 %v9854
      %v10204 = vunpack.c.l.b16 %v9855
      %v10205 = vunpack.c.l.b16 %v9856
      %v10206 = vunpack.c.l.b16 %v9857
      %v10207 = vunpack.c.l.b16 %v9858
      %v10208 = vunpack.c.l.b16 %v9859
      %v10209 = vunpack.c.l.b16 %v9860
      %v10210 = vunpack.c.l.b16 %v9861
      %v10211 = vunpack.c.l.b16 %v9862
      %v10212 = vunpack.c.l.b16 %v9863
      %v10213 = vunpack.c.l.b16 %v9864
      %v10214 = vunpack.c.l.b16 %v9865
      %v10215 = vunpack.c.l.b16 %v9866
      %v10216 = vunpack.c.l.b16 %v9867
      %v10217 = vunpack.c.l.b16 %v9868
      %v10218 = vunpack.c.l.b16 %v9869
      %v10219 = vunpack.c.l.b16 %v9870
      %v10220 = vunpack.c.l.b16 %v9871
      %v10221 = vunpack.c.l.b16 %v9872
      %v10222 = vunpack.c.l.b16 %v9873
      %v10223 = vunpack.c.l.b16 %v9874
      %v10224 = vunpack.c.l.b16 %v9875
      %v10225 = vunpack.c.l.b16 %v9876
      %v10226 = vunpack.c.l.b16 %v9877
      %v10227 = vunpack.c.l.b16 %v9878
      %v10228 = vunpack.c.l.b16 %v9879
      %v10229 = vunpack.c.l.b16 %v9880
      %v10230 = vunpack.c.l.b16 %v9881
      %v10231 = vunpack.c.l.b16 %v9882
      %v10232 = vunpack.c.l.b16 %v9883
      %v10233 = vunpack.c.l.b16 %v9884
      %v10234 = vunpack.c.l.b16 %v9885
      %v10235 = vunpack.c.l.b16 %v9886
      %v10236 = vunpack.c.l.b16 %v9887
      %v10237 = vunpack.c.l.b16 %v9888
      %v10238 = vunpack.c.l.b16 %v9889
      %v10239 = vunpack.c.l.b16 %v9890
      %v10240 = vunpack.c.l.b16 %v9891
      %v10241 = vunpack.c.l.b16 %v9892
      %v10242 = vunpack.c.l.b16 %v9893
      %v10243 = vunpack.c.l.b16 %v9894
      %v10244 = vunpack.c.l.b16 %v9895
      %v10245 = vunpack.c.l.b16 %v9896
      %v10246 = vunpack.c.l.b16 %v9897
      %v10247 = vunpack.c.l.b16 %v9898
      %v10248 = vunpack.c.l.b16 %v9899
      %v10249 = vunpack.c.l.b16 %v9900
      %v10250 = vunpack.c.l.b16 %v9901
      %v10251 = vunpack.c.l.b16 %v9902
      %v10252 = vunpack.c.l.b16 %v9903
      %v10253 = vunpack.c.l.b16 %v9904
      %v10254 = vunpack.c.l.b16 %v9905
      %v10255 = vunpack.c.l.b16 %v9906
      %v10256 = vunpack.c.l.b16 %v9907
      %v10257 = vunpack.c.l.b16 %v9908
      %v10258 = vunpack.c.l.b16 %v9909
      %v10259 = vunpack.c.l.b16 %v9910
      %v10260 = vunpack.c.l.b16 %v9911
      %v10261 = vunpack.c.l.b16 %v9912
      %v10262 = vunpack.c.l.b16 %v9913
      %v10263 = vunpack.c.l.b16 %v9914
      %v10264 = vunpack.c.l.b16 %v9915
      %v10265 = vunpack.c.l.b16 %v9916
      %v10266 = vunpack.c.l.b16 %v9917
      %v10267 = vunpack.c.l.b16 %v9918
      %v10268 = vunpack.c.l.b16 %v9919
      %v10269 = vunpack.c.l.b16 %v9920
      %v10270 = vunpack.c.l.b16 %v9921
      %v10271 = vunpack.c.l.b16 %v9922
      %v10272 = vunpack.c.l.b16 %v9923
      %v10273 = vunpack.c.l.b16 %v9924
      %v10274 = vunpack.c.l.b16 %v9925
      %v10275 = vunpack.c.l.b16 %v9926
      %v10276 = vunpack.c.l.b16 %v9927
      %v10277 = vunpack.c.l.b16 %v9928
      %v10278 = vunpack.c.l.b16 %v9929
      %v10279 = vunpack.c.l.b16 %v9930
      %v10280 = vunpack.c.l.b16 %v9931
      %v10281 = vunpack.c.l.b16 %v9932
      %v10282 = vunpack.c.l.b16 %v9933
      %v10283 = vunpack.c.l.b16 %v9934
      %v10284 = vunpack.c.l.b16 %v9935
      %v10285 = vunpack.c.l.b16 %v9936
      %v10286 = vunpack.c.l.b16 %v9937
      %v10287 = vunpack.c.l.b16 %v9938
      %v10288 = vunpack.c.l.b16 %v9939
      %v10289 = vunpack.c.l.b16 %v9940
      %v10290 = vunpack.c.l.b16 %v9941
      %v10291 = vunpack.c.l.b16 %v9942
      %v10292 = vunpack.c.l.b16 %v9943
      %v10293 = vunpack.c.l.b16 %v9944
      %v10294 = vunpack.c.l.b16 %v9945
      %v10295 = vunpack.c.l.b16 %v9946
      %v10296 = vunpack.c.l.b16 %v9947
      %v10297 = vunpack.c.l.b16 %v9948
      %v10298 = vunpack.c.l.b16 %v9949
      %v10299 = vunpack.c.l.b16 %v9950
      %v10300 = vunpack.c.l.b16 %v9951
      %v10301 = vunpack.c.l.b16 %v9952
      %v10302 = vunpack.c.l.b16 %v9953
      %v10303 = vunpack.c.l.b16 %v9954
      %v10304 = vunpack.c.l.b16 %v9955
      %v10305 = vunpack.c.l.b16 %v9956
      %v10306 = vunpack.c.l.b16 %v9957
      %v10307 = vunpack.c.l.b16 %v9958
      %v10308 = vunpack.c.l.b16 %v9959
      %v10309 = vunpack.c.l.b16 %v9960
      %v10310 = vunpack.c.l.b16 %v9961
      %v10311 = vunpack.c.l.b16 %v9962
      %v10312 = vunpack.c.l.b16 %v9963
      %v10313 = vunpack.c.l.b16 %v9964
      %v10314 = vunpack.c.l.b16 %v9965
      %v10315 = vunpack.c.l.b16 %v9966
      %v10316 = vunpack.c.l.b16 %v9967
      %v10317 = vunpack.c.l.b16 %v9968
      %v10318 = vunpack.c.l.b16 %v9969
      %v10319 = vunpack.c.l.b16 %v9970
      %v10320 = vunpack.c.l.b16 %v9971
      %v10321 = vunpack.c.l.b16 %v9972
      %v10322 = vunpack.c.l.b16 %v9973
      %v10323 = vpack.c.b16 %v10180, %v10179
      %v10324 = vpack.c.b16 %v10182, %v10181
      %v10325 = vpack.c.b16 %v10184, %v10183
      %v10326 = vpack.c.b16 %v10186, %v10185
      %v10327 = vpack.c.b16 %v10188, %v10187
      %v10328 = vpack.c.b16 %v10190, %v10189
      %v10329 = vpack.c.b16 %v10192, %v10191
      %v10330 = vpack.c.b16 %v10194, %v10193
      %v10331 = vpack.c.b16 %v10196, %v10195
      %v10332 = vpack.c.b16 %v10198, %v10197
      %v10333 = vpack.c.b16 %v10200, %v10199
      %v10334 = vpack.c.b16 %v10202, %v10201
      %v10335 = vpack.c.b16 %v10204, %v10203
      %v10336 = vpack.c.b16 %v10206, %v10205
      %v10337 = vpack.c.b16 %v10208, %v10207
      %v10338 = vpack.c.b16 %v10210, %v10209
      %v10339 = vpack.c.b16 %v10212, %v10211
      %v10340 = vpack.c.b16 %v10214, %v10213
      %v10341 = vpack.c.b16 %v10216, %v10215
      %v10342 = vpack.c.b16 %v10218, %v10217
      %v10343 = vpack.c.b16 %v10220, %v10219
      %v10344 = vpack.c.b16 %v10222, %v10221
      %v10345 = vpack.c.b16 %v10224, %v10223
      %v10346 = vpack.c.b16 %v10226, %v10225
      %v10347 = vpack.c.b16 %v10228, %v10227
      %v10348 = vpack.c.b16 %v10230, %v10229
      %v10349 = vpack.c.b16 %v10232, %v10231
      %v10350 = vpack.c.b16 %v10234, %v10233
      %v10351 = vpack.c.b16 %v10236, %v10235
      %v10352 = vpack.c.b16 %v10238, %v10237
      %v10353 = vpack.c.b16 %v10240, %v10239
      %v10354 = vpack.c.b16 %v10242, %v10241
      %v10355 = vpack.c.b16 %v10244, %v10243
      %v10356 = vpack.c.b16 %v10246, %v10245
      %v10357 = vpack.c.b16 %v10248, %v10247
      %v10358 = vpack.c.b16 %v10250, %v10249
      %v10359 = vpack.c.b16 %v10252, %v10251
      %v10360 = vpack.c.b16 %v10254, %v10253
      %v10361 = vpack.c.b16 %v10256, %v10255
      %v10362 = vpack.c.b16 %v10258, %v10257
      %v10363 = vpack.c.b16 %v10260, %v10259
      %v10364 = vpack.c.b16 %v10262, %v10261
      %v10365 = vpack.c.b16 %v10264, %v10263
      %v10366 = vpack.c.b16 %v10266, %v10265
      %v10367 = vpack.c.b16 %v10268, %v10267
      %v10368 = vpack.c.b16 %v10270, %v10269
      %v10369 = vpack.c.b16 %v10272, %v10271
      %v10370 = vpack.c.b16 %v10274, %v10273
      %v10371 = vpack.c.b16 %v10276, %v10275
      %v10372 = vpack.c.b16 %v10278, %v10277
      %v10373 = vpack.c.b16 %v10280, %v10279
      %v10374 = vpack.c.b16 %v10282, %v10281
      %v10375 = vpack.c.b16 %v10284, %v10283
      %v10376 = vpack.c.b16 %v10286, %v10285
      %v10377 = vpack.c.b16 %v10288, %v10287
      %v10378 = vpack.c.b16 %v10290, %v10289
      %v10379 = vpack.c.b16 %v10292, %v10291
      %v10380 = vpack.c.b16 %v10294, %v10293
      %v10381 = vpack.c.b16 %v10296, %v10295
      %v10382 = vpack.c.b16 %v10298, %v10297
      %v10383 = vpack.c.b16 %v10300, %v10299
      %v10384 = vpack.c.b16 %v10302, %v10301
      %v10385 = vpack.c.b16 %v10304, %v10303
      %v10386 = vpack.c.b16 %v10306, %v10305
      %v10387 = vpack.c.b16 %v10308, %v10307
      %v10388 = vpack.c.b16 %v10310, %v10309
      %v10389 = vpack.c.b16 %v10312, %v10311
      %v10390 = vpack.c.b16 %v10314, %v10313
      %v10391 = vpack.c.b16 %v10316, %v10315
      %v10392 = vpack.c.b16 %v10318, %v10317
      %v10393 = vpack.c.b16 %v10320, %v10319
      %v10394 = vpack.c.b16 %v10322, %v10321
      %10467 = vmatprep.subr.bf16.mxu0 0
      %10468 = vmatpush1.bf16.msra.mxu0 %v10323
      %10469 = vmatprep.subr.bf16.mxu0 0
      %10470 = vmatpush1.bf16.msra.mxu0 %v10324
      %10471 = vmatprep.subr.bf16.mxu0 0
      %10472 = vmatpush1.bf16.msra.mxu0 %v10325
      %10473 = vmatprep.subr.bf16.mxu0 0
      %10474 = vmatpush1.bf16.msra.mxu0 %v10326
      %10475 = vmatprep.subr.bf16.mxu0 0
      %10476 = vmatpush1.bf16.msra.mxu0 %v10327
      %10477 = vmatprep.subr.bf16.mxu0 0
      %10478 = vmatpush1.bf16.msra.mxu0 %v10328
      %10479 = vmatprep.subr.bf16.mxu0 0
      %10480 = vmatpush1.bf16.msra.mxu0 %v10329
      %10481 = vmatprep.subr.bf16.mxu0 0
      %10482 = vmatpush1.bf16.msra.mxu0 %v10330
      %10483 = vmatprep.subr.bf16.mxu0 0
      %10484 = vmatpush1.bf16.msra.mxu0 %v10331
      %10485 = vmatprep.subr.bf16.mxu0 0
      %10486 = vmatpush1.bf16.msra.mxu0 %v10332
      %10487 = vmatprep.subr.bf16.mxu0 0
      %10488 = vmatpush1.bf16.msra.mxu0 %v10333
      %10489 = vmatprep.subr.bf16.mxu0 0
      %10490 = vmatpush1.bf16.msra.mxu0 %v10334
      %10491 = vmatprep.subr.bf16.mxu0 0
      %10492 = vmatpush1.bf16.msra.mxu0 %v10335
      %10493 = vmatprep.subr.bf16.mxu0 0
      %10494 = vmatpush1.bf16.msra.mxu0 %v10336
      %10495 = vmatprep.subr.bf16.mxu0 0
      %10496 = vmatpush1.bf16.msra.mxu0 %v10337
      %10497 = vmatprep.subr.bf16.mxu0 0
      %10498 = vmatpush1.bf16.msra.mxu0 %v10338
      %10499 = vmatprep.mubr.bf16.mxu0 %v9982
      %10500 = vmatmul.mubr.bf16.gmra.mrb[0].mxu0 %v9981
      %v10501 = vpop.f32.mrb[0].mxu0
      %v10502 = vadd.f32 %v9979, %v10501
      %v10503 = vpop.f32.mrb[0].mxu0
      %v10504 = vpop.f32.mrb[0].mxu0
      %v10505 = vadd.f32 %v9979, %v10504
      %v10506 = vpop.f32.mrb[0].mxu0
      %10507 = vmatprep.mubr.bf16.mxu0 %v9988
      %10508 = vmatmul.mubr.bf16.gmra.mrb[0].mxu0 %v9987
      %v10509 = vpop.f32.mrb[0].mxu0
      %v10510 = vadd.f32 %v9979, %v10509
      %v10511 = vpop.f32.mrb[0].mxu0
      %v10512 = vpop.f32.mrb[0].mxu0
      %v10513 = vadd.f32 %v9979, %v10512
      %v10514 = vpop.f32.mrb[0].mxu0
      %10515 = vmatprep.mubr.bf16.mxu0 %v9994
      %10516 = vmatmul.mubr.bf16.gmra.mrb[0].mxu0 %v9993
      %v10517 = vpop.f32.mrb[0].mxu0
      %v10518 = vadd.f32 %v9979, %v10517
      %v10519 = vpop.f32.mrb[0].mxu0
      %v10520 = vpop.f32.mrb[0].mxu0
      %v10521 = vadd.f32 %v9979, %v10520
      %v10522 = vpop.f32.mrb[0].mxu0
      %10523 = vmatprep.mubr.bf16.mxu0 %v10000
      %10524 = vmatmul.mubr.bf16.gmra.mrb[0].mxu0 %v9999
      %v10525 = vpop.f32.mrb[0].mxu0
      %v10526 = vadd.f32 %v9979, %v10525
      %v10527 = vpop.f32.mrb[0].mxu0
      %v10528 = vpop.f32.mrb[0].mxu0
      %v10529 = vadd.f32 %v9979, %v10528
      %v10530 = vpop.f32.mrb[0].mxu0
      %10531 = vdwg.mxu0
      %10532 = vmatprep.subr.bf16.mxu0 0
      %10533 = vmatpush1.bf16.msra.mxu0 %v10339
      %10534 = vmatprep.subr.bf16.mxu0 0
      %10535 = vmatpush1.bf16.msra.mxu0 %v10340
      %10536 = vmatprep.subr.bf16.mxu0 0
      %10537 = vmatpush1.bf16.msra.mxu0 %v10341
      %10538 = vmatprep.subr.bf16.mxu0 0
      %10539 = vmatpush1.bf16.msra.mxu0 %v10342
      %10540 = vmatprep.subr.bf16.mxu0 0
      %10541 = vmatpush1.bf16.msra.mxu0 %v10343
      %10542 = vmatprep.subr.bf16.mxu0 0
      %10543 = vmatpush1.bf16.msra.mxu0 %v10344
      %10544 = vmatprep.subr.bf16.mxu0 0
      %10545 = vmatpush1.bf16.msra.mxu0 %v10345
      %10546 = vmatprep.subr.bf16.mxu0 0
      %10547 = vmatpush1.bf16.msra.mxu0 %v10346
      %10548 = vmatprep.subr.bf16.mxu0 0
      %10549 = vmatpush1.bf16.msra.mxu0 %v10347
      %10550 = vmatprep.subr.bf16.mxu0 0
      %10551 = vmatpush1.bf16.msra.mxu0 %v10348
      %10552 = vmatprep.subr.bf16.mxu0 0
      %10553 = vmatpush1.bf16.msra.mxu0 %v10349
      %10554 = vmatprep.subr.bf16.mxu0 0
      %10555 = vmatpush1.bf16.msra.mxu0 %v10350
      %10556 = vmatprep.subr.bf16.mxu0 0
      %10557 = vmatpush1.bf16.msra.mxu0 %v10351
      %10558 = vmatprep.subr.bf16.mxu0 0
      %10559 = vmatpush1.bf16.msra.mxu0 %v10352
      %10560 = vmatprep.subr.bf16.mxu0 0
      %10561 = vmatpush1.bf16.msra.mxu0 %v10353
      %10562 = vmatprep.subr.bf16.mxu0 0
      %10563 = vmatpush1.bf16.msra.mxu0 %v10354
      %10564 = vmatprep.mubr.bf16.mxu0 %v9984
      %10565 = vmatmul.mubr.bf16.gmra.mrb[0].mxu0 %v9983
      %v10566 = vpop.f32.mrb[0].mxu0
      %v10567 = vadd.f32 %v10502, %v10566
      %v10568 = vpop.f32.mrb[0].mxu0
      %v10569 = vpop.f32.mrb[0].mxu0
      %v10570 = vadd.f32 %v10505, %v10569
      %v10571 = vpop.f32.mrb[0].mxu0
      %10572 = vmatprep.mubr.bf16.mxu0 %v9990
      %10573 = vmatmul.mubr.bf16.gmra.mrb[0].mxu0 %v9989
      %v10574 = vpop.f32.mrb[0].mxu0
      %v10575 = vadd.f32 %v10510, %v10574
      %v10576 = vpop.f32.mrb[0].mxu0
      %v10577 = vpop.f32.mrb[0].mxu0
      %v10578 = vadd.f32 %v10513, %v10577
      %v10579 = vpop.f32.mrb[0].mxu0
      %10580 = vmatprep.mubr.bf16.mxu0 %v9996
      %10581 = vmatmul.mubr.bf16.gmra.mrb[0].mxu0 %v9995
      %v10582 = vpop.f32.mrb[0].mxu0
      %v10583 = vadd.f32 %v10518, %v10582
      %v10584 = vpop.f32.mrb[0].mxu0
      %v10585 = vpop.f32.mrb[0].mxu0
      %v10586 = vadd.f32 %v10521, %v10585
      %v10587 = vpop.f32.mrb[0].mxu0
      %10588 = vmatprep.mubr.bf16.mxu0 %v10002
      %10589 = vmatmul.mubr.bf16.gmra.mrb[0].mxu0 %v10001
      %v10590 = vpop.f32.mrb[0].mxu0
      %v10591 = vadd.f32 %v10526, %v10590
      %v10592 = vpop.f32.mrb[0].mxu0
      %v10593 = vpop.f32.mrb[0].mxu0
      %v10594 = vadd.f32 %v10529, %v10593
      %v10595 = vpop.f32.mrb[0].mxu0
      %10596 = vdwg.mxu0
      %10597 = vmatprep.subr.bf16.mxu0 0
      %10598 = vmatpush1.bf16.msra.mxu0 %v10355
      %10599 = vmatprep.subr.bf16.mxu0 0
      %10600 = vmatpush1.bf16.msra.mxu0 %v10356
      %10601 = vmatprep.subr.bf16.mxu0 0
      %10602 = vmatpush1.bf16.msra.mxu0 %v10357
      %10603 = vmatprep.subr.bf16.mxu0 0
      %10604 = vmatpush1.bf16.msra.mxu0 %v10358
      %10605 = vmatprep.subr.bf16.mxu0 0
      %10606 = vmatpush1.bf16.msra.mxu0 %v10359
      %10607 = vmatprep.subr.bf16.mxu0 0
      %10608 = vmatpush1.bf16.msra.mxu0 %v10360
      %10609 = vmatprep.subr.bf16.mxu0 0
      %10610 = vmatpush1.bf16.msra.mxu0 %v10361
      %10611 = vmatprep.subr.bf16.mxu0 0
      %10612 = vmatpush1.bf16.msra.mxu0 %v10362
      %10613 = vmatprep.subr.bf16.mxu0 0
      %10614 = vmatpush1.bf16.msra.mxu0 %v10363
      %10615 = vmatprep.subr.bf16.mxu0 0
      %10616 = vmatpush1.bf16.msra.mxu0 %v10364
      %10617 = vmatprep.subr.bf16.mxu0 0
      %10618 = vmatpush1.bf16.msra.mxu0 %v10365
      %10619 = vmatprep.subr.bf16.mxu0 0
      %10620 = vmatpush1.bf16.msra.mxu0 %v10366
      %10621 = vmatprep.subr.bf16.mxu0 0
      %10622 = vmatpush1.bf16.msra.mxu0 %v10367
      %10623 = vmatprep.subr.bf16.mxu0 0
      %10624 = vmatpush1.bf16.msra.mxu0 %v10368
      %10625 = vmatprep.subr.bf16.mxu0 0
      %10626 = vmatpush1.bf16.msra.mxu0 %v10369
      %10627 = vmatprep.subr.bf16.mxu0 0
      %10628 = vmatpush1.bf16.msra.mxu0 %v10370
      %10629 = vmatprep.mubr.bf16.mxu0 %v9986
      %10630 = vmatmul.mubr.bf16.gmra.mrb[0].mxu0 %v9985
      %v10631 = vpop.f32.mrb[0].mxu0
      %v10632 = vadd.f32 %v10567, %v10631
      %v10633 = vpop.f32.mrb[0].mxu0
      %v10634 = vpop.f32.mrb[0].mxu0
      %v10635 = vadd.f32 %v10570, %v10634
      %v10636 = vpop.f32.mrb[0].mxu0
      %10637 = vmatprep.mubr.bf16.mxu0 %v9992
      %10638 = vmatmul.mubr.bf16.gmra.mrb[0].mxu0 %v9991
      %v10639 = vpop.f32.mrb[0].mxu0
      %v10640 = vadd.f32 %v10575, %v10639
      %v10641 = vpop.f32.mrb[0].mxu0
      %v10642 = vpop.f32.mrb[0].mxu0
      %v10643 = vadd.f32 %v10578, %v10642
      %v10644 = vpop.f32.mrb[0].mxu0
      %10645 = vmatprep.mubr.bf16.mxu0 %v9998
      %10646 = vmatmul.mubr.bf16.gmra.mrb[0].mxu0 %v9997
      %v10647 = vpop.f32.mrb[0].mxu0
      %v10648 = vadd.f32 %v10583, %v10647
      %v10649 = vpop.f32.mrb[0].mxu0
      %v10650 = vpop.f32.mrb[0].mxu0
      %v10651 = vadd.f32 %v10586, %v10650
      %v10652 = vpop.f32.mrb[0].mxu0
      %10653 = vmatprep.mubr.bf16.mxu0 %v10004
      %10654 = vmatmul.mubr.bf16.gmra.mrb[0].mxu0 %v10003
      %v10655 = vpop.f32.mrb[0].mxu0
      %v10656 = vadd.f32 %v10591, %v10655
      %v10657 = vpop.f32.mrb[0].mxu0
      %v10658 = vpop.f32.mrb[0].mxu0
      %v10659 = vadd.f32 %v10594, %v10658
      %v10660 = vpop.f32.mrb[0].mxu0
      %10661 = vdwg.mxu0
      %10662 = vmatprep.subr.bf16.mxu0 0
      %10663 = vmatpush1.bf16.msra.mxu0 %v10371
      %10664 = vmatprep.subr.bf16.mxu0 0
      %10665 = vmatpush1.bf16.msra.mxu0 %v10372
      %10666 = vmatprep.subr.bf16.mxu0 0
      %10667 = vmatpush1.bf16.msra.mxu0 %v10373
      %10668 = vmatprep.subr.bf16.mxu0 0
      %10669 = vmatpush1.bf16.msra.mxu0 %v10374
      %10670 = vmatprep.subr.bf16.mxu0 0
      %10671 = vmatpush1.bf16.msra.mxu0 %v10375
      %10672 = vmatprep.subr.bf16.mxu0 0
      %10673 = vmatpush1.bf16.msra.mxu0 %v10376
      %10674 = vmatprep.subr.bf16.mxu0 0
      %10675 = vmatpush1.bf16.msra.mxu0 %v10377
      %10676 = vmatprep.subr.bf16.mxu0 0
      %10677 = vmatpush1.bf16.msra.mxu0 %v10378
      %10678 = vmatprep.subr.bf16.mxu0 0
      %10679 = vmatpush1.bf16.msra.mxu0 %v10379
      %10680 = vmatprep.subr.bf16.mxu0 0
      %10681 = vmatpush1.bf16.msra.mxu0 %v10380
      %10682 = vmatprep.subr.bf16.mxu0 0
      %10683 = vmatpush1.bf16.msra.mxu0 %v10381
      %10684 = vmatprep.subr.bf16.mxu0 0
      %10685 = vmatpush1.bf16.msra.mxu0 %v10382
      %10686 = vmatprep.subr.bf16.mxu0 0
      %10687 = vmatpush1.bf16.msra.mxu0 %v10383
      %10688 = vmatprep.subr.bf16.mxu0 0
      %10689 = vmatpush1.bf16.msra.mxu0 %v10384
      %10690 = vmatprep.subr.bf16.mxu0 0
      %10691 = vmatpush1.bf16.msra.mxu0 %v10385
      %10692 = vmatprep.subr.bf16.mxu0 0
      %10693 = vmatpush1.bf16.msra.mxu0 %v10386
      %10694 = vmatprep.mubr.bf16.mxu0 %v9988
      %10695 = vmatmul.mubr.bf16.gmra.mrb[0].mxu0 %v9987
      %v10696 = vpop.f32.mrb[0].mxu0
      %v10697 = vadd.f32 %v10632, %v10696
      %v10698 = vpop.f32.mrb[0].mxu0
      %v10699 = vpop.f32.mrb[0].mxu0
      %v10700 = vadd.f32 %v10635, %v10699
      %v10701 = vpop.f32.mrb[0].mxu0
      %10702 = vmatprep.mubr.bf16.mxu0 %v9994
      %10703 = vmatmul.mubr.bf16.gmra.mrb[0].mxu0 %v9993
      %v10704 = vpop.f32.mrb[0].mxu0
      %v10705 = vadd.f32 %v10640, %v10704
      %v10706 = vpop.f32.mrb[0].mxu0
      %v10707 = vpop.f32.mrb[0].mxu0
      %v10708 = vadd.f32 %v10643, %v10707
      %v10709 = vpop.f32.mrb[0].mxu0
      %10710 = vmatprep.mubr.bf16.mxu0 %v10000
      %10711 = vmatmul.mubr.bf16.gmra.mrb[0].mxu0 %v9999
      %v10712 = vpop.f32.mrb[0].mxu0
      %v10713 = vadd.f32 %v10648, %v10712
      %v10714 = vpop.f32.mrb[0].mxu0
      %v10715 = vpop.f32.mrb[0].mxu0
      %v10716 = vadd.f32 %v10651, %v10715
      %v10717 = vpop.f32.mrb[0].mxu0
      %10718 = vmatprep.mubr.bf16.mxu0 %v10006
      %10719 = vmatmul.mubr.bf16.gmra.mrb[0].mxu0 %v10005
      %v10720 = vpop.f32.mrb[0].mxu0
      %v10721 = vadd.f32 %v10656, %v10720
      %v10722 = vpop.f32.mrb[0].mxu0
      %v10723 = vpop.f32.mrb[0].mxu0
      %v10724 = vadd.f32 %v10659, %v10723
      %v10725 = vpop.f32.mrb[0].mxu0
      %10726 = vdwg.mxu0
      %10727 = vmatprep.subr.bf16.mxu0 0
      %10728 = vmatpush1.bf16.msra.mxu0 %v10387
      %10729 = vmatprep.subr.bf16.mxu0 0
      %10730 = vmatpush1.bf16.msra.mxu0 %v10388
      %10731 = vmatprep.subr.bf16.mxu0 0
      %10732 = vmatpush1.bf16.msra.mxu0 %v10389
      %10733 = vmatprep.subr.bf16.mxu0 0
      %10734 = vmatpush1.bf16.msra.mxu0 %v10390
      %10735 = vmatprep.subr.bf16.mxu0 0
      %10736 = vmatpush1.bf16.msra.mxu0 %v10391
      %10737 = vmatprep.subr.bf16.mxu0 0
      %10738 = vmatpush1.bf16.msra.mxu0 %v10392
      %10739 = vmatprep.subr.bf16.mxu0 0
      %10740 = vmatpush1.bf16.msra.mxu0 %v10393
      %10741 = vmatprep.subr.bf16.mxu0 0
      %10742 = vmatpush1.bf16.msra.mxu0 %v10394
      %10743 = vmatprep.subr.bf16.mxu0 0
      %10744 = vmatpush1.bf16.msra.mxu0 0
      %10745 = vmatprep.subr.bf16.mxu0 0
      %10746 = vmatpush1.bf16.msra.mxu0 0
      %10747 = vmatprep.subr.bf16.mxu0 0
      %10748 = vmatpush1.bf16.msra.mxu0 0
      %10749 = vmatprep.subr.bf16.mxu0 0
      %10750 = vmatpush1.bf16.msra.mxu0 0
      %10751 = vmatprep.subr.bf16.mxu0 0
      %10752 = vmatpush1.bf16.msra.mxu0 0
      %10753 = vmatprep.subr.bf16.mxu0 0
      %10754 = vmatpush1.bf16.msra.mxu0 0
      %10755 = vmatprep.subr.bf16.mxu0 0
      %10756 = vmatpush1.bf16.msra.mxu0 0
      %10757 = vmatprep.subr.bf16.mxu0 0
      %10758 = vmatpush1.bf16.msra.mxu0 0
      %10759 = vmatprep.mubr.bf16.mxu0 0
      %10760 = vmatmul.mubr.bf16.gmra.mrb[0].mxu0 %v9989
      %v10761 = vpop.f32.mrb[0].mxu0
      %v10762 = vadd.f32 %v10697, %v10761
      %v10763 = vpop.f32.mrb[0].mxu0
      %v10764 = vpop.f32.mrb[0].mxu0
      %v10765 = vadd.f32 %v10700, %v10764
      %v10766 = vpop.f32.mrb[0].mxu0
      %10767 = vmatprep.mubr.bf16.mxu0 0
      %10768 = vmatmul.mubr.bf16.gmra.mrb[0].mxu0 %v9995
      %v10769 = vpop.f32.mrb[0].mxu0
      %v10770 = vadd.f32 %v10705, %v10769
      %v10771 = vpop.f32.mrb[0].mxu0
      %v10772 = vpop.f32.mrb[0].mxu0
      %v10773 = vadd.f32 %v10708, %v10772
      %v10774 = vpop.f32.mrb[0].mxu0
      %10775 = vmatprep.mubr.bf16.mxu0 0
      %10776 = vmatmul.mubr.bf16.gmra.mrb[0].mxu0 %v10001
      %v10777 = vpop.f32.mrb[0].mxu0
      %v10778 = vadd.f32 %v10713, %v10777
      %v10779 = vpop.f32.mrb[0].mxu0
      %v10780 = vpop.f32.mrb[0].mxu0
      %v10781 = vadd.f32 %v10716, %v10780
      %v10782 = vpop.f32.mrb[0].mxu0
      %10783 = vmatprep.mubr.bf16.mxu0 0
      %10784 = vmatmul.mubr.bf16.gmra.mrb[0].mxu0 %v10007
      %v10785 = vpop.f32.mrb[0].mxu0
      %v10786 = vadd.f32 %v10721, %v10785
      %v10787 = vpop.f32.mrb[0].mxu0
      %v10788 = vpop.f32.mrb[0].mxu0
      %v10789 = vadd.f32 %v10724, %v10788
      %v10790 = vpop.f32.mrb[0].mxu0
      %10791 = vdwg.mxu0
      %v10792 = vmax.f32 %v10762, 0.0
      %v10793 = vmax.f32 %v10765, 0.0
      %v10794 = vmax.f32 %v10770, 0.0
      %v10795 = vmax.f32 %v10773, 0.0
      %v10796 = vmax.f32 %v10778, 0.0
      %v10797 = vmax.f32 %v10781, 0.0
      %v10798 = vmax.f32 %v10786, 0.0
      %v10799 = vmax.f32 %v10789, 0.0
      %v10800 = vpack.c.bf16 %v10793, %v10792
      %v10801 = vpack.c.bf16 %v10795, %v10794
      %v10802 = vpack.c.bf16 %v10797, %v10796
      %v10803 = vpack.c.bf16 %v10799, %v10798
      %v10808 = vunpack.c.l.b16 %v10800
      %v10809 = vunpack.c.h.b16 %v10800
      %v10810 = vunpack.c.l.b16 %v10801
      %v10811 = vunpack.c.h.b16 %v10801
      %v10812 = vunpack.c.l.b16 %v10802
      %v10813 = vunpack.c.h.b16 %v10802
      %v10814 = vunpack.c.l.b16 %v10803
      %v10815 = vunpack.c.h.b16 %v10803
      %v10816 = vpack.c.b16 %v10808, %v10808
      %v10817 = vpack.c.b16 %v10809, %v10809
      %v10818 = vpack.c.b16 %v10810, %v10810
      %v10819 = vpack.c.b16 %v10811, %v10811
      %v10820 = vpack.c.b16 %v10812, %v10812
      %v10821 = vpack.c.b16 %v10813, %v10813
      %v10822 = vpack.c.b16 %v10814, %v10814
      %v10823 = vpack.c.b16 %v10815, %v10815
      %v10824 = vld [vmem:[%s13] sm:$0xf]
      %v10825 = vld [vmem:[%s13 + $0x4] sm:$0xf]
      %v10828 = vunpack.c.l.b16 %v10824
      %v10829 = vunpack.c.l.b16 %v10825
      %v10830 = vpack.c.b16 %v10829, %v10828
      %vm10831 = vcmask 64512
      %v10833 = vsel %vm10831, %v10830, 0
      %vm10835 = vcmask 1043456
      %v10837 = vsel %vm10835, %v10816, 0
      %10839 = vmatprep.subr.bf16.mxu0 0
      %10840 = vmatpush1.bf16.msra.mxu0 %v10837
      %10841 = vmatprep.subr.bf16.mxu0 0
      %10842 = vmatpush1.bf16.msra.mxu0 0
      %10843 = vmatprep.subr.bf16.mxu0 0
      %10844 = vmatpush1.bf16.msra.mxu0 0
      %10845 = vmatprep.subr.bf16.mxu0 0
      %10846 = vmatpush1.bf16.msra.mxu0 0
      %10847 = vmatprep.subr.bf16.mxu0 0
      %10848 = vmatpush1.bf16.msra.mxu0 0
      %10849 = vmatprep.subr.bf16.mxu0 0
      %10850 = vmatpush1.bf16.msra.mxu0 0
      %10851 = vmatprep.subr.bf16.mxu0 0
      %10852 = vmatpush1.bf16.msra.mxu0 0
      %10853 = vmatprep.subr.bf16.mxu0 0
      %10854 = vmatpush1.bf16.msra.mxu0 0
      %10855 = vmatprep.subr.bf16.mxu0 0
      %10856 = vmatpush1.bf16.msra.mxu0 0
      %10857 = vmatprep.subr.bf16.mxu0 0
      %10858 = vmatpush1.bf16.msra.mxu0 0
      %10859 = vmatprep.subr.bf16.mxu0 0
      %10860 = vmatpush1.bf16.msra.mxu0 0
      %10861 = vmatprep.subr.bf16.mxu0 0
      %10862 = vmatpush1.bf16.msra.mxu0 0
      %10863 = vmatprep.subr.bf16.mxu0 0
      %10864 = vmatpush1.bf16.msra.mxu0 0
      %10865 = vmatprep.subr.bf16.mxu0 0
      %10866 = vmatpush1.bf16.msra.mxu0 0
      %10867 = vmatprep.subr.bf16.mxu0 0
      %10868 = vmatpush1.bf16.msra.mxu0 0
      %10869 = vmatprep.subr.bf16.mxu0 0
      %10870 = vmatpush1.bf16.msra.mxu0 0
      %10871 = vmatprep.mubr.bf16.mxu0 0
      %10872 = vmatmul.mubr.bf16.gmra.mrb[0].mxu0 %v10833
      %v10873 = vpop.f32.mrb[0].mxu0
      %v10874 = vadd.f32 0.0, %v10873
      %v10875 = vpop.f32.mrb[0].mxu0
      %v10876 = vpop.f32.mrb[0].mxu0
      %v10877 = vadd.f32 0.0, %v10876
      %v10878 = vpop.f32.mrb[0].mxu0
      %10879 = vdwg.mxu0
      %v10881 = vsel %vm10835, %v10817, 0
      %10883 = vmatprep.subr.bf16.mxu0 0
      %10884 = vmatpush1.bf16.msra.mxu0 %v10881
      %10885 = vmatprep.subr.bf16.mxu0 0
      %10886 = vmatpush1.bf16.msra.mxu0 0
      %10887 = vmatprep.subr.bf16.mxu0 0
      %10888 = vmatpush1.bf16.msra.mxu0 0
      %10889 = vmatprep.subr.bf16.mxu0 0
      %10890 = vmatpush1.bf16.msra.mxu0 0
      %10891 = vmatprep.subr.bf16.mxu0 0
      %10892 = vmatpush1.bf16.msra.mxu0 0
      %10893 = vmatprep.subr.bf16.mxu0 0
      %10894 = vmatpush1.bf16.msra.mxu0 0
      %10895 = vmatprep.subr.bf16.mxu0 0
      %10896 = vmatpush1.bf16.msra.mxu0 0
      %10897 = vmatprep.subr.bf16.mxu0 0
      %10898 = vmatpush1.bf16.msra.mxu0 0
      %10899 = vmatprep.subr.bf16.mxu0 0
      %10900 = vmatpush1.bf16.msra.mxu0 0
      %10901 = vmatprep.subr.bf16.mxu0 0
      %10902 = vmatpush1.bf16.msra.mxu0 0
      %10903 = vmatprep.subr.bf16.mxu0 0
      %10904 = vmatpush1.bf16.msra.mxu0 0
      %10905 = vmatprep.subr.bf16.mxu0 0
      %10906 = vmatpush1.bf16.msra.mxu0 0
      %10907 = vmatprep.subr.bf16.mxu0 0
      %10908 = vmatpush1.bf16.msra.mxu0 0
      %10909 = vmatprep.subr.bf16.mxu0 0
      %10910 = vmatpush1.bf16.msra.mxu0 0
      %10911 = vmatprep.subr.bf16.mxu0 0
      %10912 = vmatpush1.bf16.msra.mxu0 0
      %10913 = vmatprep.subr.bf16.mxu0 0
      %10914 = vmatpush1.bf16.msra.mxu0 0
      %10915 = vmatprep.mubr.bf16.mxu0 0
      %10916 = vmatmul.mubr.bf16.gmra.mrb[0].mxu0 %v10833
      %v10917 = vpop.f32.mrb[0].mxu0
      %v10918 = vadd.f32 0.0, %v10917
      %v10919 = vpop.f32.mrb[0].mxu0
      %v10920 = vpop.f32.mrb[0].mxu0
      %v10921 = vadd.f32 0.0, %v10920
      %v10922 = vpop.f32.mrb[0].mxu0
      %10923 = vdwg.mxu0
      %v10925 = vsel %vm10835, %v10818, 0
      %10927 = vmatprep.subr.bf16.mxu0 0
      %10928 = vmatpush1.bf16.msra.mxu0 %v10925
      %10929 = vmatprep.subr.bf16.mxu0 0
      %10930 = vmatpush1.bf16.msra.mxu0 0
      %10931 = vmatprep.subr.bf16.mxu0 0
      %10932 = vmatpush1.bf16.msra.mxu0 0
      %10933 = vmatprep.subr.bf16.mxu0 0
      %10934 = vmatpush1.bf16.msra.mxu0 0
      %10935 = vmatprep.subr.bf16.mxu0 0
      %10936 = vmatpush1.bf16.msra.mxu0 0
      %10937 = vmatprep.subr.bf16.mxu0 0
      %10938 = vmatpush1.bf16.msra.mxu0 0
      %10939 = vmatprep.subr.bf16.mxu0 0
      %10940 = vmatpush1.bf16.msra.mxu0 0
      %10941 = vmatprep.subr.bf16.mxu0 0
      %10942 = vmatpush1.bf16.msra.mxu0 0
      %10943 = vmatprep.subr.bf16.mxu0 0
      %10944 = vmatpush1.bf16.msra.mxu0 0
      %10945 = vmatprep.subr.bf16.mxu0 0
      %10946 = vmatpush1.bf16.msra.mxu0 0
      %10947 = vmatprep.subr.bf16.mxu0 0
      %10948 = vmatpush1.bf16.msra.mxu0 0
      %10949 = vmatprep.subr.bf16.mxu0 0
      %10950 = vmatpush1.bf16.msra.mxu0 0
      %10951 = vmatprep.subr.bf16.mxu0 0
      %10952 = vmatpush1.bf16.msra.mxu0 0
      %10953 = vmatprep.subr.bf16.mxu0 0
      %10954 = vmatpush1.bf16.msra.mxu0 0
      %10955 = vmatprep.subr.bf16.mxu0 0
      %10956 = vmatpush1.bf16.msra.mxu0 0
      %10957 = vmatprep.subr.bf16.mxu0 0
      %10958 = vmatpush1.bf16.msra.mxu0 0
      %10959 = vmatprep.mubr.bf16.mxu0 0
      %10960 = vmatmul.mubr.bf16.gmra.mrb[0].mxu0 %v10833
      %v10961 = vpop.f32.mrb[0].mxu0
      %v10962 = vadd.f32 0.0, %v10961
      %v10963 = vpop.f32.mrb[0].mxu0
      %v10964 = vpop.f32.mrb[0].mxu0
      %v10965 = vadd.f32 0.0, %v10964
      %v10966 = vpop.f32.mrb[0].mxu0
      %10967 = vdwg.mxu0
      %v10969 = vsel %vm10835, %v10819, 0
      %10971 = vmatprep.subr.bf16.mxu0 0
      %10972 = vmatpush1.bf16.msra.mxu0 %v10969
      %10973 = vmatprep.subr.bf16.mxu0 0
      %10974 = vmatpush1.bf16.msra.mxu0 0
      %10975 = vmatprep.subr.bf16.mxu0 0
      %10976 = vmatpush1.bf16.msra.mxu0 0
      %10977 = vmatprep.subr.bf16.mxu0 0
      %10978 = vmatpush1.bf16.msra.mxu0 0
      %10979 = vmatprep.subr.bf16.mxu0 0
      %10980 = vmatpush1.bf16.msra.mxu0 0
      %10981 = vmatprep.subr.bf16.mxu0 0
      %10982 = vmatpush1.bf16.msra.mxu0 0
      %10983 = vmatprep.subr.bf16.mxu0 0
      %10984 = vmatpush1.bf16.msra.mxu0 0
      %10985 = vmatprep.subr.bf16.mxu0 0
      %10986 = vmatpush1.bf16.msra.mxu0 0
      %10987 = vmatprep.subr.bf16.mxu0 0
      %10988 = vmatpush1.bf16.msra.mxu0 0
      %10989 = vmatprep.subr.bf16.mxu0 0
      %10990 = vmatpush1.bf16.msra.mxu0 0
      %10991 = vmatprep.subr.bf16.mxu0 0
      %10992 = vmatpush1.bf16.msra.mxu0 0
      %10993 = vmatprep.subr.bf16.mxu0 0
      %10994 = vmatpush1.bf16.msra.mxu0 0
      %10995 = vmatprep.subr.bf16.mxu0 0
      %10996 = vmatpush1.bf16.msra.mxu0 0
      %10997 = vmatprep.subr.bf16.mxu0 0
      %10998 = vmatpush1.bf16.msra.mxu0 0
      %10999 = vmatprep.subr.bf16.mxu0 0
      %11000 = vmatpush1.bf16.msra.mxu0 0
      %11001 = vmatprep.subr.bf16.mxu0 0
      %11002 = vmatpush1.bf16.msra.mxu0 0
      %11003 = vmatprep.mubr.bf16.mxu0 0
      %11004 = vmatmul.mubr.bf16.gmra.mrb[0].mxu0 %v10833
      %v11005 = vpop.f32.mrb[0].mxu0
      %v11006 = vadd.f32 0.0, %v11005
      %v11007 = vpop.f32.mrb[0].mxu0
      %v11008 = vpop.f32.mrb[0].mxu0
      %v11009 = vadd.f32 0.0, %v11008
      %v11010 = vpop.f32.mrb[0].mxu0
      %11011 = vdwg.mxu0
      %v11013 = vsel %vm10835, %v10820, 0
      %11015 = vmatprep.subr.bf16.mxu0 0
      %11016 = vmatpush1.bf16.msra.mxu0 %v11013
      %11017 = vmatprep.subr.bf16.mxu0 0
      %11018 = vmatpush1.bf16.msra.mxu0 0
      %11019 = vmatprep.subr.bf16.mxu0 0
      %11020 = vmatpush1.bf16.msra.mxu0 0
      %11021 = vmatprep.subr.bf16.mxu0 0
      %11022 = vmatpush1.bf16.msra.mxu0 0
      %11023 = vmatprep.subr.bf16.mxu0 0
      %11024 = vmatpush1.bf16.msra.mxu0 0
      %11025 = vmatprep.subr.bf16.mxu0 0
      %11026 = vmatpush1.bf16.msra.mxu0 0
      %11027 = vmatprep.subr.bf16.mxu0 0
      %11028 = vmatpush1.bf16.msra.mxu0 0
      %11029 = vmatprep.subr.bf16.mxu0 0
      %11030 = vmatpush1.bf16.msra.mxu0 0
      %11031 = vmatprep.subr.bf16.mxu0 0
      %11032 = vmatpush1.bf16.msra.mxu0 0
      %11033 = vmatprep.subr.bf16.mxu0 0
      %11034 = vmatpush1.bf16.msra.mxu0 0
      %11035 = vmatprep.subr.bf16.mxu0 0
      %11036 = vmatpush1.bf16.msra.mxu0 0
      %11037 = vmatprep.subr.bf16.mxu0 0
      %11038 = vmatpush1.bf16.msra.mxu0 0
      %11039 = vmatprep.subr.bf16.mxu0 0
      %11040 = vmatpush1.bf16.msra.mxu0 0
      %11041 = vmatprep.subr.bf16.mxu0 0
      %11042 = vmatpush1.bf16.msra.mxu0 0
      %11043 = vmatprep.subr.bf16.mxu0 0
      %11044 = vmatpush1.bf16.msra.mxu0 0
      %11045 = vmatprep.subr.bf16.mxu0 0
      %11046 = vmatpush1.bf16.msra.mxu0 0
      %11047 = vmatprep.mubr.bf16.mxu0 0
      %11048 = vmatmul.mubr.bf16.gmra.mrb[0].mxu0 %v10833
      %v11049 = vpop.f32.mrb[0].mxu0
      %v11050 = vadd.f32 0.0, %v11049
      %v11051 = vpop.f32.mrb[0].mxu0
      %v11052 = vpop.f32.mrb[0].mxu0
      %v11053 = vadd.f32 0.0, %v11052
      %v11054 = vpop.f32.mrb[0].mxu0
      %11055 = vdwg.mxu0
      %v11057 = vsel %vm10835, %v10821, 0
      %11059 = vmatprep.subr.bf16.mxu0 0
      %11060 = vmatpush1.bf16.msra.mxu0 %v11057
      %11061 = vmatprep.subr.bf16.mxu0 0
      %11062 = vmatpush1.bf16.msra.mxu0 0
      %11063 = vmatprep.subr.bf16.mxu0 0
      %11064 = vmatpush1.bf16.msra.mxu0 0
      %11065 = vmatprep.subr.bf16.mxu0 0
      %11066 = vmatpush1.bf16.msra.mxu0 0
      %11067 = vmatprep.subr.bf16.mxu0 0
      %11068 = vmatpush1.bf16.msra.mxu0 0
      %11069 = vmatprep.subr.bf16.mxu0 0
      %11070 = vmatpush1.bf16.msra.mxu0 0
      %11071 = vmatprep.subr.bf16.mxu0 0
      %11072 = vmatpush1.bf16.msra.mxu0 0
      %11073 = vmatprep.subr.bf16.mxu0 0
      %11074 = vmatpush1.bf16.msra.mxu0 0
      %11075 = vmatprep.subr.bf16.mxu0 0
      %11076 = vmatpush1.bf16.msra.mxu0 0
      %11077 = vmatprep.subr.bf16.mxu0 0
      %11078 = vmatpush1.bf16.msra.mxu0 0
      %11079 = vmatprep.subr.bf16.mxu0 0
      %11080 = vmatpush1.bf16.msra.mxu0 0
      %11081 = vmatprep.subr.bf16.mxu0 0
      %11082 = vmatpush1.bf16.msra.mxu0 0
      %11083 = vmatprep.subr.bf16.mxu0 0
      %11084 = vmatpush1.bf16.msra.mxu0 0
      %11085 = vmatprep.subr.bf16.mxu0 0
      %11086 = vmatpush1.bf16.msra.mxu0 0
      %11087 = vmatprep.subr.bf16.mxu0 0
      %11088 = vmatpush1.bf16.msra.mxu0 0
      %11089 = vmatprep.subr.bf16.mxu0 0
      %11090 = vmatpush1.bf16.msra.mxu0 0
      %11091 = vmatprep.mubr.bf16.mxu0 0
      %11092 = vmatmul.mubr.bf16.gmra.mrb[0].mxu0 %v10833
      %v11093 = vpop.f32.mrb[0].mxu0
      %v11094 = vadd.f32 0.0, %v11093
      %v11095 = vpop.f32.mrb[0].mxu0
      %v11096 = vpop.f32.mrb[0].mxu0
      %v11097 = vadd.f32 0.0, %v11096
      %v11098 = vpop.f32.mrb[0].mxu0
      %11099 = vdwg.mxu0
      %v11101 = vsel %vm10835, %v10822, 0
      %11103 = vmatprep.subr.bf16.mxu0 0
      %11104 = vmatpush1.bf16.msra.mxu0 %v11101
      %11105 = vmatprep.subr.bf16.mxu0 0
      %11106 = vmatpush1.bf16.msra.mxu0 0
      %11107 = vmatprep.subr.bf16.mxu0 0
      %11108 = vmatpush1.bf16.msra.mxu0 0
      %11109 = vmatprep.subr.bf16.mxu0 0
      %11110 = vmatpush1.bf16.msra.mxu0 0
      %11111 = vmatprep.subr.bf16.mxu0 0
      %11112 = vmatpush1.bf16.msra.mxu0 0
      %11113 = vmatprep.subr.bf16.mxu0 0
      %11114 = vmatpush1.bf16.msra.mxu0 0
      %11115 = vmatprep.subr.bf16.mxu0 0
      %11116 = vmatpush1.bf16.msra.mxu0 0
      %11117 = vmatprep.subr.bf16.mxu0 0
      %11118 = vmatpush1.bf16.msra.mxu0 0
      %11119 = vmatprep.subr.bf16.mxu0 0
      %11120 = vmatpush1.bf16.msra.mxu0 0
      %11121 = vmatprep.subr.bf16.mxu0 0
      %11122 = vmatpush1.bf16.msra.mxu0 0
      %11123 = vmatprep.subr.bf16.mxu0 0
      %11124 = vmatpush1.bf16.msra.mxu0 0
      %11125 = vmatprep.subr.bf16.mxu0 0
      %11126 = vmatpush1.bf16.msra.mxu0 0
      %11127 = vmatprep.subr.bf16.mxu0 0
      %11128 = vmatpush1.bf16.msra.mxu0 0
      %11129 = vmatprep.subr.bf16.mxu0 0
      %11130 = vmatpush1.bf16.msra.mxu0 0
      %11131 = vmatprep.subr.bf16.mxu0 0
      %11132 = vmatpush1.bf16.msra.mxu0 0
      %11133 = vmatprep.subr.bf16.mxu0 0
      %11134 = vmatpush1.bf16.msra.mxu0 0
      %11135 = vmatprep.mubr.bf16.mxu0 0
      %11136 = vmatmul.mubr.bf16.gmra.mrb[0].mxu0 %v10833
      %v11137 = vpop.f32.mrb[0].mxu0
      %v11138 = vadd.f32 0.0, %v11137
      %v11139 = vpop.f32.mrb[0].mxu0
      %v11140 = vpop.f32.mrb[0].mxu0
      %v11141 = vadd.f32 0.0, %v11140
      %v11142 = vpop.f32.mrb[0].mxu0
      %11143 = vdwg.mxu0
      %v11145 = vsel %vm10835, %v10823, 0
      %11147 = vmatprep.subr.bf16.mxu0 0
      %11148 = vmatpush1.bf16.msra.mxu0 %v11145
      %11149 = vmatprep.subr.bf16.mxu0 0
      %11150 = vmatpush1.bf16.msra.mxu0 0
      %11151 = vmatprep.subr.bf16.mxu0 0
      %11152 = vmatpush1.bf16.msra.mxu0 0
      %11153 = vmatprep.subr.bf16.mxu0 0
      %11154 = vmatpush1.bf16.msra.mxu0 0
      %11155 = vmatprep.subr.bf16.mxu0 0
      %11156 = vmatpush1.bf16.msra.mxu0 0
      %11157 = vmatprep.subr.bf16.mxu0 0
      %11158 = vmatpush1.bf16.msra.mxu0 0
      %11159 = vmatprep.subr.bf16.mxu0 0
      %11160 = vmatpush1.bf16.msra.mxu0 0
      %11161 = vmatprep.subr.bf16.mxu0 0
      %11162 = vmatpush1.bf16.msra.mxu0 0
      %11163 = vmatprep.subr.bf16.mxu0 0
      %11164 = vmatpush1.bf16.msra.mxu0 0
      %11165 = vmatprep.subr.bf16.mxu0 0
      %11166 = vmatpush1.bf16.msra.mxu0 0
      %11167 = vmatprep.subr.bf16.mxu0 0
      %11168 = vmatpush1.bf16.msra.mxu0 0
      %11169 = vmatprep.subr.bf16.mxu0 0
      %11170 = vmatpush1.bf16.msra.mxu0 0
      %11171 = vmatprep.subr.bf16.mxu0 0
      %11172 = vmatpush1.bf16.msra.mxu0 0
      %11173 = vmatprep.subr.bf16.mxu0 0
      %11174 = vmatpush1.bf16.msra.mxu0 0
      %11175 = vmatprep.subr.bf16.mxu0 0
      %11176 = vmatpush1.bf16.msra.mxu0 0
      %11177 = vmatprep.subr.bf16.mxu0 0
      %11178 = vmatpush1.bf16.msra.mxu0 0
      %11179 = vmatprep.mubr.bf16.mxu0 0
      %11180 = vmatmul.mubr.bf16.gmra.mrb[0].mxu0 %v10833
      %v11181 = vpop.f32.mrb[0].mxu0
      %v11182 = vadd.f32 0.0, %v11181
      %v11183 = vpop.f32.mrb[0].mxu0
      %v11184 = vpop.f32.mrb[0].mxu0
      %v11185 = vadd.f32 0.0, %v11184
      %v11186 = vpop.f32.mrb[0].mxu0
      %11187 = vdwg.mxu0
      %v11188 = vpack.c.bf16 %v10877, %v10874
      %v11189 = vpack.c.bf16 %v10921, %v10918
      %v11190 = vpack.c.bf16 %v10965, %v10962
      %v11191 = vpack.c.bf16 %v11009, %v11006
      %v11192 = vpack.c.bf16 %v11053, %v11050
      %v11193 = vpack.c.bf16 %v11097, %v11094
      %v11194 = vpack.c.bf16 %v11141, %v11138
      %v11195 = vpack.c.bf16 %v11185, %v11182
      %v11198 = vpack.i.b16 %v11189, %v11188
      %v11200 = vshrl.u32 %v11188, 16
      %v11201 = vshrl.u32 %v11189, 16
      %v11202 = vpack.i.b16 %v11201, %v11200
      %v11206 = vpack.i.b16 %v11191, %v11190
      %v11208 = vshrl.u32 %v11190, 16
      %v11209 = vshrl.u32 %v11191, 16
      %v11210 = vpack.i.b16 %v11209, %v11208
      %v11214 = vpack.i.b16 %v11193, %v11192
      %v11216 = vshrl.u32 %v11192, 16
      %v11217 = vshrl.u32 %v11193, 16
      %v11218 = vpack.i.b16 %v11217, %v11216
      %v11222 = vpack.i.b16 %v11195, %v11194
      %v11224 = vshrl.u32 %v11194, 16
      %v11225 = vshrl.u32 %v11195, 16
      %v11226 = vpack.i.b16 %v11225, %v11224
      %v11228 = vcombine.low %v11198, %v11214
      %v11229 = vcombine.high %v11198, %v11214
      %v11231 = vunpack.c.l.s4 1983009808
      %v11232 = vunpack.c.0.s8 %v11231
      %v11233 = vlaneseq
      %v11234 = vshrl.u32 %v11233, 7
      %v11235 = vsub.s32 %v11232, %v11234
      %v11236 = vrot.slane %v11228, %v11235
      %v11238 = vunpack.c.l.s4 1983009808
      %v11239 = vunpack.c.0.s8 %v11238
      %v11240 = vlaneseq
      %v11241 = vshrl.u32 %v11240, 7
      %v11242 = vsub.s32 %v11239, %v11241
      %v11243 = vrot.slane %v11229, %v11242
      %v11244 = vcombine.low %v11206, %v11222
      %v11245 = vcombine.high %v11206, %v11222
      %v11247 = vunpack.c.l.s4 1983009808
      %v11248 = vunpack.c.0.s8 %v11247
      %v11249 = vlaneseq
      %v11250 = vshrl.u32 %v11249, 7
      %v11251 = vsub.s32 %v11248, %v11250
      %v11252 = vrot.slane %v11244, %v11251
      %v11254 = vunpack.c.l.s4 1983009808
      %v11255 = vunpack.c.0.s8 %v11254
      %v11256 = vlaneseq
      %v11257 = vshrl.u32 %v11256, 7
      %v11258 = vsub.s32 %v11255, %v11257
      %v11259 = vrot.slane %v11245, %v11258
      %v11260 = vcombine.low %v11236, %v11252
      %v11261 = vcombine.high %v11236, %v11252
      %v11263 = vunpack.c.l.s4 1934713408
      %v11264 = vunpack.c.0.s8 %v11263
      %v11265 = vlaneseq
      %v11266 = vshrl.u32 %v11265, 7
      %v11267 = vsub.s32 %v11264, %v11266
      %v11268 = vrot.slane %v11260, %v11267
      %v11270 = vunpack.c.l.s4 1934713408
      %v11271 = vunpack.c.0.s8 %v11270
      %v11272 = vlaneseq
      %v11273 = vshrl.u32 %v11272, 7
      %v11274 = vsub.s32 %v11271, %v11273
      %v11275 = vrot.slane %v11261, %v11274
      %v11276 = vcombine.low %v11243, %v11259
      %v11277 = vcombine.high %v11243, %v11259
      %v11279 = vunpack.c.l.s4 1934713408
      %v11280 = vunpack.c.0.s8 %v11279
      %v11281 = vlaneseq
      %v11282 = vshrl.u32 %v11281, 7
      %v11283 = vsub.s32 %v11280, %v11282
      %v11284 = vrot.slane %v11276, %v11283
      %v11286 = vunpack.c.l.s4 1934713408
      %v11287 = vunpack.c.0.s8 %v11286
      %v11288 = vlaneseq
      %v11289 = vshrl.u32 %v11288, 7
      %v11290 = vsub.s32 %v11287, %v11289
      %v11291 = vrot.slane %v11277, %v11290
      %v11292 = vcombine.high %v11268, 0
      %v11293 = vcombine.high %v11275, 0
      %v11294 = vcombine.high %v11284, 0
      %v11295 = vcombine.high %v11291, 0
      %v11296 = vcombine.low %v11202, %v11218
      %v11297 = vcombine.high %v11202, %v11218
      %v11299 = vunpack.c.l.s4 1983009808
      %v11300 = vunpack.c.0.s8 %v11299
      %v11301 = vlaneseq
      %v11302 = vshrl.u32 %v11301, 7
      %v11303 = vsub.s32 %v11300, %v11302
      %v11304 = vrot.slane %v11296, %v11303
      %v11306 = vunpack.c.l.s4 1983009808
      %v11307 = vunpack.c.0.s8 %v11306
      %v11308 = vlaneseq
      %v11309 = vshrl.u32 %v11308, 7
      %v11310 = vsub.s32 %v11307, %v11309
      %v11311 = vrot.slane %v11297, %v11310
      %v11312 = vcombine.low %v11210, %v11226
      %v11313 = vcombine.high %v11210, %v11226
      %v11315 = vunpack.c.l.s4 1983009808
      %v11316 = vunpack.c.0.s8 %v11315
      %v11317 = vlaneseq
      %v11318 = vshrl.u32 %v11317, 7
      %v11319 = vsub.s32 %v11316, %v11318
      %v11320 = vrot.slane %v11312, %v11319
      %v11322 = vunpack.c.l.s4 1983009808
      %v11323 = vunpack.c.0.s8 %v11322
      %v11324 = vlaneseq
      %v11325 = vshrl.u32 %v11324, 7
      %v11326 = vsub.s32 %v11323, %v11325
      %v11327 = vrot.slane %v11313, %v11326
      %v11328 = vcombine.low %v11304, %v11320
      %v11329 = vcombine.high %v11304, %v11320
      %v11331 = vunpack.c.l.s4 1934713408
      %v11332 = vunpack.c.0.s8 %v11331
      %v11333 = vlaneseq
      %v11334 = vshrl.u32 %v11333, 7
      %v11335 = vsub.s32 %v11332, %v11334
      %v11336 = vrot.slane %v11328, %v11335
      %v11338 = vunpack.c.l.s4 1934713408
      %v11339 = vunpack.c.0.s8 %v11338
      %v11340 = vlaneseq
      %v11341 = vshrl.u32 %v11340, 7
      %v11342 = vsub.s32 %v11339, %v11341
      %v11343 = vrot.slane %v11329, %v11342
      %v11344 = vcombine.low %v11311, %v11327
      %v11345 = vcombine.high %v11311, %v11327
      %v11347 = vunpack.c.l.s4 1934713408
      %v11348 = vunpack.c.0.s8 %v11347
      %v11349 = vlaneseq
      %v11350 = vshrl.u32 %v11349, 7
      %v11351 = vsub.s32 %v11348, %v11350
      %v11352 = vrot.slane %v11344, %v11351
      %v11354 = vunpack.c.l.s4 1934713408
      %v11355 = vunpack.c.0.s8 %v11354
      %v11356 = vlaneseq
      %v11357 = vshrl.u32 %v11356, 7
      %v11358 = vsub.s32 %v11355, %v11357
      %v11359 = vrot.slane %v11345, %v11358
      %v11360 = vcombine.high %v11336, 0
      %v11361 = vcombine.high %v11343, 0
      %v11362 = vcombine.high %v11352, 0
      %v11363 = vcombine.high %v11359, 0
      %11365 = vrot.lane.b32.xlu0 %v11336, 64
      %v11366 = vpop.permute.xlu0 %11365
      %11368 = vrot.lane.b32.xlu0 %v11360, 64
      %v11369 = vpop.permute.xlu0 %11368
      %11371 = vrot.lane.b32.xlu0 %v11343, 64
      %v11372 = vpop.permute.xlu0 %11371
      %11374 = vrot.lane.b32.xlu0 %v11361, 64
      %v11375 = vpop.permute.xlu0 %11374
      %11377 = vrot.lane.b32.xlu0 %v11352, 64
      %v11378 = vpop.permute.xlu0 %11377
      %11380 = vrot.lane.b32.xlu0 %v11362, 64
      %v11381 = vpop.permute.xlu0 %11380
      %11383 = vrot.lane.b32.xlu0 %v11359, 64
      %v11384 = vpop.permute.xlu0 %11383
      %11386 = vrot.lane.b32.xlu0 %v11363, 64
      %v11387 = vpop.permute.xlu0 %11386
      %v11390 = vsel %vm1496, %v11268, %v11366
      %v11393 = vsel %vm1496, %v11292, %v11369
      %v11396 = vsel %vm1496, %v11275, %v11372
      %v11399 = vsel %vm1496, %v11293, %v11375
      %v11402 = vsel %vm1496, %v11284, %v11378
      %v11405 = vsel %vm1496, %v11294, %v11381
      %v11408 = vsel %vm1496, %v11291, %v11384
      %v11411 = vsel %vm1496, %v11295, %v11387
      %v11412 = vld [vmem:[%s14] sm:$0xf]
      %v11413 = vld [vmem:[%s14 + $0x4] sm:$0xf]
      %v11416 = vunpack.c.l.b16 %v11412
      %v11417 = vunpack.c.l.b16 %v11413
      %v11418 = vpack.c.b16 %v11417, %v11416
      %v11420 = vsel %vm10831, %v11418, 0
      %v11422 = vsel %vm10835, %v11390, 0
      %v11424 = vsel %vm10835, %v11393, 0
      %v11426 = vsel %vm10835, %v11396, 0
      %v11428 = vsel %vm10835, %v11399, 0
      %v11430 = vsel %vm10835, %v11402, 0
      %v11432 = vsel %vm10835, %v11405, 0
      %v11434 = vsel %vm10835, %v11408, 0
      %v11436 = vsel %vm10835, %v11411, 0
      %11438 = vmatprep.subr.bf16.mxu0 %v11424
      %11439 = vmatpush1.bf16.msra.mxu0 %v11422
      %11440 = vmatprep.subr.bf16.mxu0 0
      %11441 = vmatpush1.bf16.msra.mxu0 0
      %11442 = vmatprep.subr.bf16.mxu0 0
      %11443 = vmatpush1.bf16.msra.mxu0 0
      %11444 = vmatprep.subr.bf16.mxu0 0
      %11445 = vmatpush1.bf16.msra.mxu0 0
      %11446 = vmatprep.subr.bf16.mxu0 0
      %11447 = vmatpush1.bf16.msra.mxu0 0
      %11448 = vmatprep.subr.bf16.mxu0 0
      %11449 = vmatpush1.bf16.msra.mxu0 0
      %11450 = vmatprep.subr.bf16.mxu0 0
      %11451 = vmatpush1.bf16.msra.mxu0 0
      %11452 = vmatprep.subr.bf16.mxu0 0
      %11453 = vmatpush1.bf16.msra.mxu0 0
      %11454 = vmatprep.subr.bf16.mxu0 0
      %11455 = vmatpush1.bf16.msra.mxu0 0
      %11456 = vmatprep.subr.bf16.mxu0 0
      %11457 = vmatpush1.bf16.msra.mxu0 0
      %11458 = vmatprep.subr.bf16.mxu0 0
      %11459 = vmatpush1.bf16.msra.mxu0 0
      %11460 = vmatprep.subr.bf16.mxu0 0
      %11461 = vmatpush1.bf16.msra.mxu0 0
      %11462 = vmatprep.subr.bf16.mxu0 0
      %11463 = vmatpush1.bf16.msra.mxu0 0
      %11464 = vmatprep.subr.bf16.mxu0 0
      %11465 = vmatpush1.bf16.msra.mxu0 0
      %11466 = vmatprep.subr.bf16.mxu0 0
      %11467 = vmatpush1.bf16.msra.mxu0 0
      %11468 = vmatprep.subr.bf16.mxu0 0
      %11469 = vmatpush1.bf16.msra.mxu0 0
      %11470 = vmatprep.mubr.bf16.mxu0 0
      %11471 = vmatmul.mubr.bf16.gmra.mrb[0].mxu0 %v11420
      %v11472 = vpop.f32.mrb[0].mxu0
      %v11473 = vadd.f32 0.0, %v11472
      %v11474 = vpop.f32.mrb[0].mxu0
      %v11475 = vadd.f32 0.0, %v11474
      %v11476 = vpop.f32.mrb[0].mxu0
      %v11477 = vadd.f32 0.0, %v11476
      %v11478 = vpop.f32.mrb[0].mxu0
      %v11479 = vadd.f32 0.0, %v11478
      %11480 = vdwg.mxu0
      %11481 = vmatprep.subr.bf16.mxu0 %v11428
      %11482 = vmatpush1.bf16.msra.mxu0 %v11426
      %11483 = vmatprep.subr.bf16.mxu0 0
      %11484 = vmatpush1.bf16.msra.mxu0 0
      %11485 = vmatprep.subr.bf16.mxu0 0
      %11486 = vmatpush1.bf16.msra.mxu0 0
      %11487 = vmatprep.subr.bf16.mxu0 0
      %11488 = vmatpush1.bf16.msra.mxu0 0
      %11489 = vmatprep.subr.bf16.mxu0 0
      %11490 = vmatpush1.bf16.msra.mxu0 0
      %11491 = vmatprep.subr.bf16.mxu0 0
      %11492 = vmatpush1.bf16.msra.mxu0 0
      %11493 = vmatprep.subr.bf16.mxu0 0
      %11494 = vmatpush1.bf16.msra.mxu0 0
      %11495 = vmatprep.subr.bf16.mxu0 0
      %11496 = vmatpush1.bf16.msra.mxu0 0
      %11497 = vmatprep.subr.bf16.mxu0 0
      %11498 = vmatpush1.bf16.msra.mxu0 0
      %11499 = vmatprep.subr.bf16.mxu0 0
      %11500 = vmatpush1.bf16.msra.mxu0 0
      %11501 = vmatprep.subr.bf16.mxu0 0
      %11502 = vmatpush1.bf16.msra.mxu0 0
      %11503 = vmatprep.subr.bf16.mxu0 0
      %11504 = vmatpush1.bf16.msra.mxu0 0
      %11505 = vmatprep.subr.bf16.mxu0 0
      %11506 = vmatpush1.bf16.msra.mxu0 0
      %11507 = vmatprep.subr.bf16.mxu0 0
      %11508 = vmatpush1.bf16.msra.mxu0 0
      %11509 = vmatprep.subr.bf16.mxu0 0
      %11510 = vmatpush1.bf16.msra.mxu0 0
      %11511 = vmatprep.subr.bf16.mxu0 0
      %11512 = vmatpush1.bf16.msra.mxu0 0
      %11513 = vmatprep.mubr.bf16.mxu0 0
      %11514 = vmatmul.mubr.bf16.gmra.mrb[0].mxu0 %v11420
      %v11515 = vpop.f32.mrb[0].mxu0
      %v11516 = vadd.f32 0.0, %v11515
      %v11517 = vpop.f32.mrb[0].mxu0
      %v11518 = vadd.f32 0.0, %v11517
      %v11519 = vpop.f32.mrb[0].mxu0
      %v11520 = vadd.f32 0.0, %v11519
      %v11521 = vpop.f32.mrb[0].mxu0
      %v11522 = vadd.f32 0.0, %v11521
      %11523 = vdwg.mxu0
      %11524 = vmatprep.subr.bf16.mxu0 %v11432
      %11525 = vmatpush1.bf16.msra.mxu0 %v11430
      %11526 = vmatprep.subr.bf16.mxu0 0
      %11527 = vmatpush1.bf16.msra.mxu0 0
      %11528 = vmatprep.subr.bf16.mxu0 0
      %11529 = vmatpush1.bf16.msra.mxu0 0
      %11530 = vmatprep.subr.bf16.mxu0 0
      %11531 = vmatpush1.bf16.msra.mxu0 0
      %11532 = vmatprep.subr.bf16.mxu0 0
      %11533 = vmatpush1.bf16.msra.mxu0 0
      %11534 = vmatprep.subr.bf16.mxu0 0
      %11535 = vmatpush1.bf16.msra.mxu0 0
      %11536 = vmatprep.subr.bf16.mxu0 0
      %11537 = vmatpush1.bf16.msra.mxu0 0
      %11538 = vmatprep.subr.bf16.mxu0 0
      %11539 = vmatpush1.bf16.msra.mxu0 0
      %11540 = vmatprep.subr.bf16.mxu0 0
      %11541 = vmatpush1.bf16.msra.mxu0 0
      %11542 = vmatprep.subr.bf16.mxu0 0
      %11543 = vmatpush1.bf16.msra.mxu0 0
      %11544 = vmatprep.subr.bf16.mxu0 0
      %11545 = vmatpush1.bf16.msra.mxu0 0
      %11546 = vmatprep.subr.bf16.mxu0 0
      %11547 = vmatpush1.bf16.msra.mxu0 0
      %11548 = vmatprep.subr.bf16.mxu0 0
      %11549 = vmatpush1.bf16.msra.mxu0 0
      %11550 = vmatprep.subr.bf16.mxu0 0
      %11551 = vmatpush1.bf16.msra.mxu0 0
      %11552 = vmatprep.subr.bf16.mxu0 0
      %11553 = vmatpush1.bf16.msra.mxu0 0
      %11554 = vmatprep.subr.bf16.mxu0 0
      %11555 = vmatpush1.bf16.msra.mxu0 0
      %11556 = vmatprep.mubr.bf16.mxu0 0
      %11557 = vmatmul.mubr.bf16.gmra.mrb[0].mxu0 %v11420
      %v11558 = vpop.f32.mrb[0].mxu0
      %v11559 = vadd.f32 0.0, %v11558
      %v11560 = vpop.f32.mrb[0].mxu0
      %v11561 = vadd.f32 0.0, %v11560
      %v11562 = vpop.f32.mrb[0].mxu0
      %v11563 = vadd.f32 0.0, %v11562
      %v11564 = vpop.f32.mrb[0].mxu0
      %v11565 = vadd.f32 0.0, %v11564
      %11566 = vdwg.mxu0
      %11567 = vmatprep.subr.bf16.mxu0 %v11436
      %11568 = vmatpush1.bf16.msra.mxu0 %v11434
      %11569 = vmatprep.subr.bf16.mxu0 0
      %11570 = vmatpush1.bf16.msra.mxu0 0
      %11571 = vmatprep.subr.bf16.mxu0 0
      %11572 = vmatpush1.bf16.msra.mxu0 0
      %11573 = vmatprep.subr.bf16.mxu0 0
      %11574 = vmatpush1.bf16.msra.mxu0 0
      %11575 = vmatprep.subr.bf16.mxu0 0
      %11576 = vmatpush1.bf16.msra.mxu0 0
      %11577 = vmatprep.subr.bf16.mxu0 0
      %11578 = vmatpush1.bf16.msra.mxu0 0
      %11579 = vmatprep.subr.bf16.mxu0 0
      %11580 = vmatpush1.bf16.msra.mxu0 0
      %11581 = vmatprep.subr.bf16.mxu0 0
      %11582 = vmatpush1.bf16.msra.mxu0 0
      %11583 = vmatprep.subr.bf16.mxu0 0
      %11584 = vmatpush1.bf16.msra.mxu0 0
      %11585 = vmatprep.subr.bf16.mxu0 0
      %11586 = vmatpush1.bf16.msra.mxu0 0
      %11587 = vmatprep.subr.bf16.mxu0 0
      %11588 = vmatpush1.bf16.msra.mxu0 0
      %11589 = vmatprep.subr.bf16.mxu0 0
      %11590 = vmatpush1.bf16.msra.mxu0 0
      %11591 = vmatprep.subr.bf16.mxu0 0
      %11592 = vmatpush1.bf16.msra.mxu0 0
      %11593 = vmatprep.subr.bf16.mxu0 0
      %11594 = vmatpush1.bf16.msra.mxu0 0
      %11595 = vmatprep.subr.bf16.mxu0 0
      %11596 = vmatpush1.bf16.msra.mxu0 0
      %11597 = vmatprep.subr.bf16.mxu0 0
      %11598 = vmatpush1.bf16.msra.mxu0 0
      %11599 = vmatprep.mubr.bf16.mxu0 0
      %11600 = vmatmul.mubr.bf16.gmra.mrb[0].mxu0 %v11420
      %v11601 = vpop.f32.mrb[0].mxu0
      %v11602 = vadd.f32 0.0, %v11601
      %v11603 = vpop.f32.mrb[0].mxu0
      %v11604 = vadd.f32 0.0, %v11603
      %v11605 = vpop.f32.mrb[0].mxu0
      %v11606 = vadd.f32 0.0, %v11605
      %v11607 = vpop.f32.mrb[0].mxu0
      %v11608 = vadd.f32 0.0, %v11607
      %11609 = vdwg.mxu0
      %11612 = vrot.lane.b32.xlu0 %v11473, 64
      %v11613 = vpop.permute.xlu0 %11612
      %11614 = vrot.lane.b32.xlu0 %v11477, 64
      %v11615 = vpop.permute.xlu0 %11614
      %11620 = vrot.lane.b32.xlu0 %v11475, 64
      %v11621 = vpop.permute.xlu0 %11620
      %11622 = vrot.lane.b32.xlu0 %v11479, 64
      %v11623 = vpop.permute.xlu0 %11622
      %11628 = vrot.lane.b32.xlu0 %v11516, 64
      %v11629 = vpop.permute.xlu0 %11628
      %11630 = vrot.lane.b32.xlu0 %v11520, 64
      %v11631 = vpop.permute.xlu0 %11630
      %11636 = vrot.lane.b32.xlu0 %v11518, 64
      %v11637 = vpop.permute.xlu0 %11636
      %11638 = vrot.lane.b32.xlu0 %v11522, 64
      %v11639 = vpop.permute.xlu0 %11638
      %11644 = vrot.lane.b32.xlu0 %v11559, 64
      %v11645 = vpop.permute.xlu0 %11644
      %11646 = vrot.lane.b32.xlu0 %v11563, 64
      %v11647 = vpop.permute.xlu0 %11646
      %11652 = vrot.lane.b32.xlu0 %v11561, 64
      %v11653 = vpop.permute.xlu0 %11652
      %11654 = vrot.lane.b32.xlu0 %v11565, 64
      %v11655 = vpop.permute.xlu0 %11654
      %11660 = vrot.lane.b32.xlu0 %v11602, 64
      %v11661 = vpop.permute.xlu0 %11660
      %11662 = vrot.lane.b32.xlu0 %v11606, 64
      %v11663 = vpop.permute.xlu0 %11662
      %11668 = vrot.lane.b32.xlu0 %v11604, 64
      %v11669 = vpop.permute.xlu0 %11668
      %11670 = vrot.lane.b32.xlu0 %v11608, 64
      %v11671 = vpop.permute.xlu0 %11670
      %v11674 = vcombine.low %v11473, %v11475
      %v11675 = vcombine.high %v11473, %v11475
      %v11677 = vunpack.c.l.s4 1983009808
      %v11678 = vunpack.c.0.s8 %v11677
      %v11679 = vlaneseq
      %v11680 = vshrl.u32 %v11679, 7
      %v11681 = vsub.s32 %v11678, %v11680
      %v11682 = vrot.slane %v11674, %v11681
      %v11684 = vunpack.c.l.s4 1983009808
      %v11685 = vunpack.c.0.s8 %v11684
      %v11686 = vlaneseq
      %v11687 = vshrl.u32 %v11686, 7
      %v11688 = vsub.s32 %v11685, %v11687
      %v11689 = vrot.slane %v11675, %v11688
      %v11690 = vcombine.low %v11613, %v11621
      %v11691 = vcombine.high %v11613, %v11621
      %v11693 = vunpack.c.l.s4 1983009808
      %v11694 = vunpack.c.0.s8 %v11693
      %v11695 = vlaneseq
      %v11696 = vshrl.u32 %v11695, 7
      %v11697 = vsub.s32 %v11694, %v11696
      %v11698 = vrot.slane %v11690, %v11697
      %v11700 = vunpack.c.l.s4 1983009808
      %v11701 = vunpack.c.0.s8 %v11700
      %v11702 = vlaneseq
      %v11703 = vshrl.u32 %v11702, 7
      %v11704 = vsub.s32 %v11701, %v11703
      %v11705 = vrot.slane %v11691, %v11704
      %v11706 = vcombine.low %v11516, %v11518
      %v11707 = vcombine.high %v11516, %v11518
      %v11709 = vunpack.c.l.s4 1983009808
      %v11710 = vunpack.c.0.s8 %v11709
      %v11711 = vlaneseq
      %v11712 = vshrl.u32 %v11711, 7
      %v11713 = vsub.s32 %v11710, %v11712
      %v11714 = vrot.slane %v11706, %v11713
      %v11716 = vunpack.c.l.s4 1983009808
      %v11717 = vunpack.c.0.s8 %v11716
      %v11718 = vlaneseq
      %v11719 = vshrl.u32 %v11718, 7
      %v11720 = vsub.s32 %v11717, %v11719
      %v11721 = vrot.slane %v11707, %v11720
      %v11722 = vcombine.low %v11629, %v11637
      %v11723 = vcombine.high %v11629, %v11637
      %v11725 = vunpack.c.l.s4 1983009808
      %v11726 = vunpack.c.0.s8 %v11725
      %v11727 = vlaneseq
      %v11728 = vshrl.u32 %v11727, 7
      %v11729 = vsub.s32 %v11726, %v11728
      %v11730 = vrot.slane %v11722, %v11729
      %v11732 = vunpack.c.l.s4 1983009808
      %v11733 = vunpack.c.0.s8 %v11732
      %v11734 = vlaneseq
      %v11735 = vshrl.u32 %v11734, 7
      %v11736 = vsub.s32 %v11733, %v11735
      %v11737 = vrot.slane %v11723, %v11736
      %v11738 = vcombine.low %v11682, %v11698
      %v11739 = vcombine.high %v11682, %v11698
      %v11741 = vunpack.c.l.s4 1934713408
      %v11742 = vunpack.c.0.s8 %v11741
      %v11743 = vlaneseq
      %v11744 = vshrl.u32 %v11743, 7
      %v11745 = vsub.s32 %v11742, %v11744
      %v11746 = vrot.slane %v11738, %v11745
      %v11748 = vunpack.c.l.s4 1934713408
      %v11749 = vunpack.c.0.s8 %v11748
      %v11750 = vlaneseq
      %v11751 = vshrl.u32 %v11750, 7
      %v11752 = vsub.s32 %v11749, %v11751
      %v11753 = vrot.slane %v11739, %v11752
      %v11754 = vcombine.low %v11689, %v11705
      %v11755 = vcombine.high %v11689, %v11705
      %v11757 = vunpack.c.l.s4 1934713408
      %v11758 = vunpack.c.0.s8 %v11757
      %v11759 = vlaneseq
      %v11760 = vshrl.u32 %v11759, 7
      %v11761 = vsub.s32 %v11758, %v11760
      %v11762 = vrot.slane %v11754, %v11761
      %v11764 = vunpack.c.l.s4 1934713408
      %v11765 = vunpack.c.0.s8 %v11764
      %v11766 = vlaneseq
      %v11767 = vshrl.u32 %v11766, 7
      %v11768 = vsub.s32 %v11765, %v11767
      %v11769 = vrot.slane %v11755, %v11768
      %v11770 = vcombine.low %v11714, %v11730
      %v11771 = vcombine.high %v11714, %v11730
      %v11773 = vunpack.c.l.s4 1934713408
      %v11774 = vunpack.c.0.s8 %v11773
      %v11775 = vlaneseq
      %v11776 = vshrl.u32 %v11775, 7
      %v11777 = vsub.s32 %v11774, %v11776
      %v11778 = vrot.slane %v11770, %v11777
      %v11780 = vunpack.c.l.s4 1934713408
      %v11781 = vunpack.c.0.s8 %v11780
      %v11782 = vlaneseq
      %v11783 = vshrl.u32 %v11782, 7
      %v11784 = vsub.s32 %v11781, %v11783
      %v11785 = vrot.slane %v11771, %v11784
      %v11786 = vcombine.low %v11721, %v11737
      %v11787 = vcombine.high %v11721, %v11737
      %v11789 = vunpack.c.l.s4 1934713408
      %v11790 = vunpack.c.0.s8 %v11789
      %v11791 = vlaneseq
      %v11792 = vshrl.u32 %v11791, 7
      %v11793 = vsub.s32 %v11790, %v11792
      %v11794 = vrot.slane %v11786, %v11793
      %v11796 = vunpack.c.l.s4 1934713408
      %v11797 = vunpack.c.0.s8 %v11796
      %v11798 = vlaneseq
      %v11799 = vshrl.u32 %v11798, 7
      %v11800 = vsub.s32 %v11797, %v11799
      %v11801 = vrot.slane %v11787, %v11800
      %v11802 = vcombine.low %v11746, %v11778
      %v11803 = vcombine.high %v11746, %v11778
      %v11804 = vcombine.low %v11753, %v11785
      %v11805 = vcombine.high %v11753, %v11785
      %v11806 = vcombine.low %v11762, %v11794
      %v11807 = vcombine.high %v11762, %v11794
      %v11808 = vcombine.low %v11769, %v11801
      %v11809 = vcombine.high %v11769, %v11801
      %v11810 = vcombine.low %v11559, %v11561
      %v11811 = vcombine.high %v11559, %v11561
      %v11813 = vunpack.c.l.s4 1983009808
      %v11814 = vunpack.c.0.s8 %v11813
      %v11815 = vlaneseq
      %v11816 = vshrl.u32 %v11815, 7
      %v11817 = vsub.s32 %v11814, %v11816
      %v11818 = vrot.slane %v11810, %v11817
      %v11820 = vunpack.c.l.s4 1983009808
      %v11821 = vunpack.c.0.s8 %v11820
      %v11822 = vlaneseq
      %v11823 = vshrl.u32 %v11822, 7
      %v11824 = vsub.s32 %v11821, %v11823
      %v11825 = vrot.slane %v11811, %v11824
      %v11826 = vcombine.low %v11645, %v11653
      %v11827 = vcombine.high %v11645, %v11653
      %v11829 = vunpack.c.l.s4 1983009808
      %v11830 = vunpack.c.0.s8 %v11829
      %v11831 = vlaneseq
      %v11832 = vshrl.u32 %v11831, 7
      %v11833 = vsub.s32 %v11830, %v11832
      %v11834 = vrot.slane %v11826, %v11833
      %v11836 = vunpack.c.l.s4 1983009808
      %v11837 = vunpack.c.0.s8 %v11836
      %v11838 = vlaneseq
      %v11839 = vshrl.u32 %v11838, 7
      %v11840 = vsub.s32 %v11837, %v11839
      %v11841 = vrot.slane %v11827, %v11840
      %v11842 = vcombine.low %v11602, %v11604
      %v11843 = vcombine.high %v11602, %v11604
      %v11845 = vunpack.c.l.s4 1983009808
      %v11846 = vunpack.c.0.s8 %v11845
      %v11847 = vlaneseq
      %v11848 = vshrl.u32 %v11847, 7
      %v11849 = vsub.s32 %v11846, %v11848
      %v11850 = vrot.slane %v11842, %v11849
      %v11852 = vunpack.c.l.s4 1983009808
      %v11853 = vunpack.c.0.s8 %v11852
      %v11854 = vlaneseq
      %v11855 = vshrl.u32 %v11854, 7
      %v11856 = vsub.s32 %v11853, %v11855
      %v11857 = vrot.slane %v11843, %v11856
      %v11858 = vcombine.low %v11661, %v11669
      %v11859 = vcombine.high %v11661, %v11669
      %v11861 = vunpack.c.l.s4 1983009808
      %v11862 = vunpack.c.0.s8 %v11861
      %v11863 = vlaneseq
      %v11864 = vshrl.u32 %v11863, 7
      %v11865 = vsub.s32 %v11862, %v11864
      %v11866 = vrot.slane %v11858, %v11865
      %v11868 = vunpack.c.l.s4 1983009808
      %v11869 = vunpack.c.0.s8 %v11868
      %v11870 = vlaneseq
      %v11871 = vshrl.u32 %v11870, 7
      %v11872 = vsub.s32 %v11869, %v11871
      %v11873 = vrot.slane %v11859, %v11872
      %v11874 = vcombine.low %v11818, %v11834
      %v11875 = vcombine.high %v11818, %v11834
      %v11877 = vunpack.c.l.s4 1934713408
      %v11878 = vunpack.c.0.s8 %v11877
      %v11879 = vlaneseq
      %v11880 = vshrl.u32 %v11879, 7
      %v11881 = vsub.s32 %v11878, %v11880
      %v11882 = vrot.slane %v11874, %v11881
      %v11884 = vunpack.c.l.s4 1934713408
      %v11885 = vunpack.c.0.s8 %v11884
      %v11886 = vlaneseq
      %v11887 = vshrl.u32 %v11886, 7
      %v11888 = vsub.s32 %v11885, %v11887
      %v11889 = vrot.slane %v11875, %v11888
      %v11890 = vcombine.low %v11825, %v11841
      %v11891 = vcombine.high %v11825, %v11841
      %v11893 = vunpack.c.l.s4 1934713408
      %v11894 = vunpack.c.0.s8 %v11893
      %v11895 = vlaneseq
      %v11896 = vshrl.u32 %v11895, 7
      %v11897 = vsub.s32 %v11894, %v11896
      %v11898 = vrot.slane %v11890, %v11897
      %v11900 = vunpack.c.l.s4 1934713408
      %v11901 = vunpack.c.0.s8 %v11900
      %v11902 = vlaneseq
      %v11903 = vshrl.u32 %v11902, 7
      %v11904 = vsub.s32 %v11901, %v11903
      %v11905 = vrot.slane %v11891, %v11904
      %v11906 = vcombine.low %v11850, %v11866
      %v11907 = vcombine.high %v11850, %v11866
      %v11909 = vunpack.c.l.s4 1934713408
      %v11910 = vunpack.c.0.s8 %v11909
      %v11911 = vlaneseq
      %v11912 = vshrl.u32 %v11911, 7
      %v11913 = vsub.s32 %v11910, %v11912
      %v11914 = vrot.slane %v11906, %v11913
      %v11916 = vunpack.c.l.s4 1934713408
      %v11917 = vunpack.c.0.s8 %v11916
      %v11918 = vlaneseq
      %v11919 = vshrl.u32 %v11918, 7
      %v11920 = vsub.s32 %v11917, %v11919
      %v11921 = vrot.slane %v11907, %v11920
      %v11922 = vcombine.low %v11857, %v11873
      %v11923 = vcombine.high %v11857, %v11873
      %v11925 = vunpack.c.l.s4 1934713408
      %v11926 = vunpack.c.0.s8 %v11925
      %v11927 = vlaneseq
      %v11928 = vshrl.u32 %v11927, 7
      %v11929 = vsub.s32 %v11926, %v11928
      %v11930 = vrot.slane %v11922, %v11929
      %v11932 = vunpack.c.l.s4 1934713408
      %v11933 = vunpack.c.0.s8 %v11932
      %v11934 = vlaneseq
      %v11935 = vshrl.u32 %v11934, 7
      %v11936 = vsub.s32 %v11933, %v11935
      %v11937 = vrot.slane %v11923, %v11936
      %v11938 = vcombine.low %v11882, %v11914
      %v11939 = vcombine.high %v11882, %v11914
      %v11940 = vcombine.low %v11889, %v11921
      %v11941 = vcombine.high %v11889, %v11921
      %v11942 = vcombine.low %v11898, %v11930
      %v11943 = vcombine.high %v11898, %v11930
      %v11944 = vcombine.low %v11905, %v11937
      %v11945 = vcombine.high %v11905, %v11937
      %v11946 = vcombine.low %v11477, %v11479
      %v11947 = vcombine.high %v11477, %v11479
      %v11949 = vunpack.c.l.s4 1983009808
      %v11950 = vunpack.c.0.s8 %v11949
      %v11951 = vlaneseq
      %v11952 = vshrl.u32 %v11951, 7
      %v11953 = vsub.s32 %v11950, %v11952
      %v11954 = vrot.slane %v11946, %v11953
      %v11956 = vunpack.c.l.s4 1983009808
      %v11957 = vunpack.c.0.s8 %v11956
      %v11958 = vlaneseq
      %v11959 = vshrl.u32 %v11958, 7
      %v11960 = vsub.s32 %v11957, %v11959
      %v11961 = vrot.slane %v11947, %v11960
      %v11962 = vcombine.low %v11615, %v11623
      %v11963 = vcombine.high %v11615, %v11623
      %v11965 = vunpack.c.l.s4 1983009808
      %v11966 = vunpack.c.0.s8 %v11965
      %v11967 = vlaneseq
      %v11968 = vshrl.u32 %v11967, 7
      %v11969 = vsub.s32 %v11966, %v11968
      %v11970 = vrot.slane %v11962, %v11969
      %v11972 = vunpack.c.l.s4 1983009808
      %v11973 = vunpack.c.0.s8 %v11972
      %v11974 = vlaneseq
      %v11975 = vshrl.u32 %v11974, 7
      %v11976 = vsub.s32 %v11973, %v11975
      %v11977 = vrot.slane %v11963, %v11976
      %v11978 = vcombine.low %v11520, %v11522
      %v11979 = vcombine.high %v11520, %v11522
      %v11981 = vunpack.c.l.s4 1983009808
      %v11982 = vunpack.c.0.s8 %v11981
      %v11983 = vlaneseq
      %v11984 = vshrl.u32 %v11983, 7
      %v11985 = vsub.s32 %v11982, %v11984
      %v11986 = vrot.slane %v11978, %v11985
      %v11988 = vunpack.c.l.s4 1983009808
      %v11989 = vunpack.c.0.s8 %v11988
      %v11990 = vlaneseq
      %v11991 = vshrl.u32 %v11990, 7
      %v11992 = vsub.s32 %v11989, %v11991
      %v11993 = vrot.slane %v11979, %v11992
      %v11994 = vcombine.low %v11631, %v11639
      %v11995 = vcombine.high %v11631, %v11639
      %v11997 = vunpack.c.l.s4 1983009808
      %v11998 = vunpack.c.0.s8 %v11997
      %v11999 = vlaneseq
      %v12000 = vshrl.u32 %v11999, 7
      %v12001 = vsub.s32 %v11998, %v12000
      %v12002 = vrot.slane %v11994, %v12001
      %v12004 = vunpack.c.l.s4 1983009808
      %v12005 = vunpack.c.0.s8 %v12004
      %v12006 = vlaneseq
      %v12007 = vshrl.u32 %v12006, 7
      %v12008 = vsub.s32 %v12005, %v12007
      %v12009 = vrot.slane %v11995, %v12008
      %v12010 = vcombine.low %v11954, %v11970
      %v12011 = vcombine.high %v11954, %v11970
      %v12013 = vunpack.c.l.s4 1934713408
      %v12014 = vunpack.c.0.s8 %v12013
      %v12015 = vlaneseq
      %v12016 = vshrl.u32 %v12015, 7
      %v12017 = vsub.s32 %v12014, %v12016
      %v12018 = vrot.slane %v12010, %v12017
      %v12020 = vunpack.c.l.s4 1934713408
      %v12021 = vunpack.c.0.s8 %v12020
      %v12022 = vlaneseq
      %v12023 = vshrl.u32 %v12022, 7
      %v12024 = vsub.s32 %v12021, %v12023
      %v12025 = vrot.slane %v12011, %v12024
      %v12026 = vcombine.low %v11961, %v11977
      %v12027 = vcombine.high %v11961, %v11977
      %v12029 = vunpack.c.l.s4 1934713408
      %v12030 = vunpack.c.0.s8 %v12029
      %v12031 = vlaneseq
      %v12032 = vshrl.u32 %v12031, 7
      %v12033 = vsub.s32 %v12030, %v12032
      %v12034 = vrot.slane %v12026, %v12033
      %v12036 = vunpack.c.l.s4 1934713408
      %v12037 = vunpack.c.0.s8 %v12036
      %v12038 = vlaneseq
      %v12039 = vshrl.u32 %v12038, 7
      %v12040 = vsub.s32 %v12037, %v12039
      %v12041 = vrot.slane %v12027, %v12040
      %v12042 = vcombine.low %v11986, %v12002
      %v12043 = vcombine.high %v11986, %v12002
      %v12045 = vunpack.c.l.s4 1934713408
      %v12046 = vunpack.c.0.s8 %v12045
      %v12047 = vlaneseq
      %v12048 = vshrl.u32 %v12047, 7
      %v12049 = vsub.s32 %v12046, %v12048
      %v12050 = vrot.slane %v12042, %v12049
      %v12052 = vunpack.c.l.s4 1934713408
      %v12053 = vunpack.c.0.s8 %v12052
      %v12054 = vlaneseq
      %v12055 = vshrl.u32 %v12054, 7
      %v12056 = vsub.s32 %v12053, %v12055
      %v12057 = vrot.slane %v12043, %v12056
      %v12058 = vcombine.low %v11993, %v12009
      %v12059 = vcombine.high %v11993, %v12009
      %v12061 = vunpack.c.l.s4 1934713408
      %v12062 = vunpack.c.0.s8 %v12061
      %v12063 = vlaneseq
      %v12064 = vshrl.u32 %v12063, 7
      %v12065 = vsub.s32 %v12062, %v12064
      %v12066 = vrot.slane %v12058, %v12065
      %v12068 = vunpack.c.l.s4 1934713408
      %v12069 = vunpack.c.0.s8 %v12068
      %v12070 = vlaneseq
      %v12071 = vshrl.u32 %v12070, 7
      %v12072 = vsub.s32 %v12069, %v12071
      %v12073 = vrot.slane %v12059, %v12072
      %v12074 = vcombine.low %v12018, %v12050
      %v12075 = vcombine.high %v12018, %v12050
      %v12076 = vcombine.low %v12025, %v12057
      %v12077 = vcombine.high %v12025, %v12057
      %v12078 = vcombine.low %v12034, %v12066
      %v12079 = vcombine.high %v12034, %v12066
      %v12080 = vcombine.low %v12041, %v12073
      %v12081 = vcombine.high %v12041, %v12073
      %v12082 = vcombine.low %v11563, %v11565
      %v12083 = vcombine.high %v11563, %v11565
      %v12085 = vunpack.c.l.s4 1983009808
      %v12086 = vunpack.c.0.s8 %v12085
      %v12087 = vlaneseq
      %v12088 = vshrl.u32 %v12087, 7
      %v12089 = vsub.s32 %v12086, %v12088
      %v12090 = vrot.slane %v12082, %v12089
      %v12092 = vunpack.c.l.s4 1983009808
      %v12093 = vunpack.c.0.s8 %v12092
      %v12094 = vlaneseq
      %v12095 = vshrl.u32 %v12094, 7
      %v12096 = vsub.s32 %v12093, %v12095
      %v12097 = vrot.slane %v12083, %v12096
      %v12098 = vcombine.low %v11647, %v11655
      %v12099 = vcombine.high %v11647, %v11655
      %v12101 = vunpack.c.l.s4 1983009808
      %v12102 = vunpack.c.0.s8 %v12101
      %v12103 = vlaneseq
      %v12104 = vshrl.u32 %v12103, 7
      %v12105 = vsub.s32 %v12102, %v12104
      %v12106 = vrot.slane %v12098, %v12105
      %v12108 = vunpack.c.l.s4 1983009808
      %v12109 = vunpack.c.0.s8 %v12108
      %v12110 = vlaneseq
      %v12111 = vshrl.u32 %v12110, 7
      %v12112 = vsub.s32 %v12109, %v12111
      %v12113 = vrot.slane %v12099, %v12112
      %v12114 = vcombine.low %v11606, %v11608
      %v12115 = vcombine.high %v11606, %v11608
      %v12117 = vunpack.c.l.s4 1983009808
      %v12118 = vunpack.c.0.s8 %v12117
      %v12119 = vlaneseq
      %v12120 = vshrl.u32 %v12119, 7
      %v12121 = vsub.s32 %v12118, %v12120
      %v12122 = vrot.slane %v12114, %v12121
      %v12124 = vunpack.c.l.s4 1983009808
      %v12125 = vunpack.c.0.s8 %v12124
      %v12126 = vlaneseq
      %v12127 = vshrl.u32 %v12126, 7
      %v12128 = vsub.s32 %v12125, %v12127
      %v12129 = vrot.slane %v12115, %v12128
      %v12130 = vcombine.low %v11663, %v11671
      %v12131 = vcombine.high %v11663, %v11671
      %v12133 = vunpack.c.l.s4 1983009808
      %v12134 = vunpack.c.0.s8 %v12133
      %v12135 = vlaneseq
      %v12136 = vshrl.u32 %v12135, 7
      %v12137 = vsub.s32 %v12134, %v12136
      %v12138 = vrot.slane %v12130, %v12137
      %v12140 = vunpack.c.l.s4 1983009808
      %v12141 = vunpack.c.0.s8 %v12140
      %v12142 = vlaneseq
      %v12143 = vshrl.u32 %v12142, 7
      %v12144 = vsub.s32 %v12141, %v12143
      %v12145 = vrot.slane %v12131, %v12144
      %v12146 = vcombine.low %v12090, %v12106
      %v12147 = vcombine.high %v12090, %v12106
      %v12149 = vunpack.c.l.s4 1934713408
      %v12150 = vunpack.c.0.s8 %v12149
      %v12151 = vlaneseq
      %v12152 = vshrl.u32 %v12151, 7
      %v12153 = vsub.s32 %v12150, %v12152
      %v12154 = vrot.slane %v12146, %v12153
      %v12156 = vunpack.c.l.s4 1934713408
      %v12157 = vunpack.c.0.s8 %v12156
      %v12158 = vlaneseq
      %v12159 = vshrl.u32 %v12158, 7
      %v12160 = vsub.s32 %v12157, %v12159
      %v12161 = vrot.slane %v12147, %v12160
      %v12162 = vcombine.low %v12097, %v12113
      %v12163 = vcombine.high %v12097, %v12113
      %v12165 = vunpack.c.l.s4 1934713408
      %v12166 = vunpack.c.0.s8 %v12165
      %v12167 = vlaneseq
      %v12168 = vshrl.u32 %v12167, 7
      %v12169 = vsub.s32 %v12166, %v12168
      %v12170 = vrot.slane %v12162, %v12169
      %v12172 = vunpack.c.l.s4 1934713408
      %v12173 = vunpack.c.0.s8 %v12172
      %v12174 = vlaneseq
      %v12175 = vshrl.u32 %v12174, 7
      %v12176 = vsub.s32 %v12173, %v12175
      %v12177 = vrot.slane %v12163, %v12176
      %v12178 = vcombine.low %v12122, %v12138
      %v12179 = vcombine.high %v12122, %v12138
      %v12181 = vunpack.c.l.s4 1934713408
      %v12182 = vunpack.c.0.s8 %v12181
      %v12183 = vlaneseq
      %v12184 = vshrl.u32 %v12183, 7
      %v12185 = vsub.s32 %v12182, %v12184
      %v12186 = vrot.slane %v12178, %v12185
      %v12188 = vunpack.c.l.s4 1934713408
      %v12189 = vunpack.c.0.s8 %v12188
      %v12190 = vlaneseq
      %v12191 = vshrl.u32 %v12190, 7
      %v12192 = vsub.s32 %v12189, %v12191
      %v12193 = vrot.slane %v12179, %v12192
      %v12194 = vcombine.low %v12129, %v12145
      %v12195 = vcombine.high %v12129, %v12145
      %v12197 = vunpack.c.l.s4 1934713408
      %v12198 = vunpack.c.0.s8 %v12197
      %v12199 = vlaneseq
      %v12200 = vshrl.u32 %v12199, 7
      %v12201 = vsub.s32 %v12198, %v12200
      %v12202 = vrot.slane %v12194, %v12201
      %v12204 = vunpack.c.l.s4 1934713408
      %v12205 = vunpack.c.0.s8 %v12204
      %v12206 = vlaneseq
      %v12207 = vshrl.u32 %v12206, 7
      %v12208 = vsub.s32 %v12205, %v12207
      %v12209 = vrot.slane %v12195, %v12208
      %v12210 = vcombine.low %v12154, %v12186
      %v12211 = vcombine.high %v12154, %v12186
      %v12212 = vcombine.low %v12161, %v12193
      %v12213 = vcombine.high %v12161, %v12193
      %v12214 = vcombine.low %v12170, %v12202
      %v12215 = vcombine.high %v12170, %v12202
      %v12216 = vcombine.low %v12177, %v12209
      %v12217 = vcombine.high %v12177, %v12209
      %v12218 = vpack.c.bf16 %v11938, %v11802
      %v12219 = vpack.c.bf16 %v11939, %v11803
      %v12220 = vpack.c.bf16 %v11940, %v11804
      %v12221 = vpack.c.bf16 %v11941, %v11805
      %v12222 = vpack.c.bf16 %v11942, %v11806
      %v12223 = vpack.c.bf16 %v11943, %v11807
      %v12224 = vpack.c.bf16 %v11944, %v11808
      %v12225 = vpack.c.bf16 %v11945, %v11809
      %v12226 = vpack.c.bf16 %v12210, %v12074
      %v12227 = vpack.c.bf16 %v12211, %v12075
      %v12228 = vpack.c.bf16 %v12212, %v12076
      %v12229 = vpack.c.bf16 %v12213, %v12077
      %v12230 = vpack.c.bf16 %v12214, %v12078
      %v12231 = vpack.c.bf16 %v12215, %v12079
      %v12232 = vpack.c.bf16 %v12216, %v12080
      %v12233 = vpack.c.bf16 %v12217, %v12081
      %v12235 = vshrl.u32 %v12218, 16
      %v12237 = vrot.slane %v12235, 7
      %v12238 = vshll.u32 %v12218, 16
      %v12240 = vor.u32 %v12237, %v12238
      %v12242 = vshrl.u32 %v12219, 16
      %v12244 = vrot.slane %v12242, 7
      %v12245 = vshll.u32 %v12219, 16
      %v12247 = vor.u32 %v12244, %v12245
      %v12249 = vshrl.u32 %v12220, 16
      %v12251 = vrot.slane %v12249, 7
      %v12252 = vshll.u32 %v12220, 16
      %v12254 = vor.u32 %v12251, %v12252
      %v12256 = vshrl.u32 %v12221, 16
      %v12258 = vrot.slane %v12256, 7
      %v12259 = vshll.u32 %v12221, 16
      %v12261 = vor.u32 %v12258, %v12259
      %v12263 = vshrl.u32 %v12222, 16
      %v12265 = vrot.slane %v12263, 7
      %v12266 = vshll.u32 %v12222, 16
      %v12268 = vor.u32 %v12265, %v12266
      %v12270 = vshrl.u32 %v12223, 16
      %v12272 = vrot.slane %v12270, 7
      %v12273 = vshll.u32 %v12223, 16
      %v12275 = vor.u32 %v12272, %v12273
      %v12277 = vshrl.u32 %v12224, 16
      %v12279 = vrot.slane %v12277, 7
      %v12280 = vshll.u32 %v12224, 16
      %v12282 = vor.u32 %v12279, %v12280
      %v12284 = vshrl.u32 %v12225, 16
      %v12286 = vrot.slane %v12284, 7
      %v12287 = vshll.u32 %v12225, 16
      %v12289 = vor.u32 %v12286, %v12287
      %v12291 = vshrl.u32 %v12226, 16
      %v12293 = vrot.slane %v12291, 7
      %v12294 = vshll.u32 %v12226, 16
      %v12296 = vor.u32 %v12293, %v12294
      %v12298 = vshrl.u32 %v12227, 16
      %v12300 = vrot.slane %v12298, 7
      %v12301 = vshll.u32 %v12227, 16
      %v12303 = vor.u32 %v12300, %v12301
      %v12305 = vshrl.u32 %v12228, 16
      %v12307 = vrot.slane %v12305, 7
      %v12308 = vshll.u32 %v12228, 16
      %v12310 = vor.u32 %v12307, %v12308
      %v12312 = vshrl.u32 %v12229, 16
      %v12314 = vrot.slane %v12312, 7
      %v12315 = vshll.u32 %v12229, 16
      %v12317 = vor.u32 %v12314, %v12315
      %v12319 = vshrl.u32 %v12230, 16
      %v12321 = vrot.slane %v12319, 7
      %v12322 = vshll.u32 %v12230, 16
      %v12324 = vor.u32 %v12321, %v12322
      %v12326 = vshrl.u32 %v12231, 16
      %v12328 = vrot.slane %v12326, 7
      %v12329 = vshll.u32 %v12231, 16
      %v12331 = vor.u32 %v12328, %v12329
      %v12333 = vshrl.u32 %v12232, 16
      %v12335 = vrot.slane %v12333, 7
      %v12336 = vshll.u32 %v12232, 16
      %v12338 = vor.u32 %v12335, %v12336
      %v12340 = vshrl.u32 %v12233, 16
      %v12342 = vrot.slane %v12340, 7
      %v12343 = vshll.u32 %v12233, 16
      %v12345 = vor.u32 %v12342, %v12343
      %v12378 = vsel %vm1072, 0, %v12240
      %v12379 = vsel %vm1072, 0, %v12247
      %v12380 = vsel %vm1072, 0, %v12254
      %v12381 = vsel %vm1072, 0, %v12261
      %v12382 = vsel %vm1072, 0, %v12268
      %v12383 = vsel %vm1072, 0, %v12275
      %v12384 = vsel %vm1072, 0, %v12282
      %v12385 = vsel %vm1072, 0, %v12289
      %v12386 = vsel %vm1072, 0, %v12296
      %v12387 = vsel %vm1072, 0, %v12303
      %v12388 = vsel %vm1072, 0, %v12310
      %v12389 = vsel %vm1072, 0, %v12317
      %v12390 = vsel %vm1072, 0, %v12324
      %v12391 = vsel %vm1072, 0, %v12331
      %v12392 = vsel %vm1072, 0, %v12338
      %v12393 = vsel %vm1072, 0, %v12345
      %v12394 = vsel %vm1072, %v12237, 0
      %v12395 = vsel %vm1072, %v12244, 0
      %v12396 = vsel %vm1072, %v12251, 0
      %v12397 = vsel %vm1072, %v12258, 0
      %v12398 = vsel %vm1072, %v12265, 0
      %v12399 = vsel %vm1072, %v12272, 0
      %v12400 = vsel %vm1072, %v12279, 0
      %v12401 = vsel %vm1072, %v12286, 0
      %v12402 = vsel %vm1072, %v12293, 0
      %v12403 = vsel %vm1072, %v12300, 0
      %v12404 = vsel %vm1072, %v12307, 0
      %v12405 = vsel %vm1072, %v12314, 0
      %v12406 = vsel %vm1072, %v12321, 0
      %v12407 = vsel %vm1072, %v12328, 0
      %v12408 = vsel %vm1072, %v12335, 0
      %v12409 = vsel %vm1072, %v12342, 0
      %v12411 = vshrl.u32 %v12378, 16
      %v12413 = vshll.u32 %v12378, 16
      %v12415 = vrot.slane %v12413, 1
      %v12416 = vor.u32 %v12411, %v12415
      %v12418 = vshll.u32 %v12394, 16
      %v12420 = vrot.slane %v12418, 1
      %v12421 = vsel %vm1107, %v12416, %v12420
      %v12423 = vshrl.u32 %v12379, 16
      %v12425 = vshll.u32 %v12379, 16
      %v12427 = vrot.slane %v12425, 1
      %v12428 = vor.u32 %v12423, %v12427
      %v12430 = vshll.u32 %v12395, 16
      %v12432 = vrot.slane %v12430, 1
      %v12433 = vsel %vm1107, %v12428, %v12432
      %v12435 = vshrl.u32 %v12380, 16
      %v12437 = vshll.u32 %v12380, 16
      %v12439 = vrot.slane %v12437, 1
      %v12440 = vor.u32 %v12435, %v12439
      %v12442 = vshll.u32 %v12396, 16
      %v12444 = vrot.slane %v12442, 1
      %v12445 = vsel %vm1107, %v12440, %v12444
      %v12447 = vshrl.u32 %v12381, 16
      %v12449 = vshll.u32 %v12381, 16
      %v12451 = vrot.slane %v12449, 1
      %v12452 = vor.u32 %v12447, %v12451
      %v12454 = vshll.u32 %v12397, 16
      %v12456 = vrot.slane %v12454, 1
      %v12457 = vsel %vm1107, %v12452, %v12456
      %v12459 = vshrl.u32 %v12382, 16
      %v12461 = vshll.u32 %v12382, 16
      %v12463 = vrot.slane %v12461, 1
      %v12464 = vor.u32 %v12459, %v12463
      %v12466 = vshll.u32 %v12398, 16
      %v12468 = vrot.slane %v12466, 1
      %v12469 = vsel %vm1107, %v12464, %v12468
      %v12471 = vshrl.u32 %v12383, 16
      %v12473 = vshll.u32 %v12383, 16
      %v12475 = vrot.slane %v12473, 1
      %v12476 = vor.u32 %v12471, %v12475
      %v12478 = vshll.u32 %v12399, 16
      %v12480 = vrot.slane %v12478, 1
      %v12481 = vsel %vm1107, %v12476, %v12480
      %v12483 = vshrl.u32 %v12384, 16
      %v12485 = vshll.u32 %v12384, 16
      %v12487 = vrot.slane %v12485, 1
      %v12488 = vor.u32 %v12483, %v12487
      %v12490 = vshll.u32 %v12400, 16
      %v12492 = vrot.slane %v12490, 1
      %v12493 = vsel %vm1107, %v12488, %v12492
      %v12495 = vshrl.u32 %v12385, 16
      %v12497 = vshll.u32 %v12385, 16
      %v12499 = vrot.slane %v12497, 1
      %v12500 = vor.u32 %v12495, %v12499
      %v12502 = vshll.u32 %v12401, 16
      %v12504 = vrot.slane %v12502, 1
      %v12505 = vsel %vm1107, %v12500, %v12504
      %v12507 = vshrl.u32 %v12386, 16
      %v12509 = vshll.u32 %v12386, 16
      %v12511 = vrot.slane %v12509, 1
      %v12512 = vor.u32 %v12507, %v12511
      %v12514 = vshll.u32 %v12402, 16
      %v12516 = vrot.slane %v12514, 1
      %v12517 = vsel %vm1107, %v12512, %v12516
      %v12519 = vshrl.u32 %v12387, 16
      %v12521 = vshll.u32 %v12387, 16
      %v12523 = vrot.slane %v12521, 1
      %v12524 = vor.u32 %v12519, %v12523
      %v12526 = vshll.u32 %v12403, 16
      %v12528 = vrot.slane %v12526, 1
      %v12529 = vsel %vm1107, %v12524, %v12528
      %v12531 = vshrl.u32 %v12388, 16
      %v12533 = vshll.u32 %v12388, 16
      %v12535 = vrot.slane %v12533, 1
      %v12536 = vor.u32 %v12531, %v12535
      %v12538 = vshll.u32 %v12404, 16
      %v12540 = vrot.slane %v12538, 1
      %v12541 = vsel %vm1107, %v12536, %v12540
      %v12543 = vshrl.u32 %v12389, 16
      %v12545 = vshll.u32 %v12389, 16
      %v12547 = vrot.slane %v12545, 1
      %v12548 = vor.u32 %v12543, %v12547
      %v12550 = vshll.u32 %v12405, 16
      %v12552 = vrot.slane %v12550, 1
      %v12553 = vsel %vm1107, %v12548, %v12552
      %v12555 = vshrl.u32 %v12390, 16
      %v12557 = vshll.u32 %v12390, 16
      %v12559 = vrot.slane %v12557, 1
      %v12560 = vor.u32 %v12555, %v12559
      %v12562 = vshll.u32 %v12406, 16
      %v12564 = vrot.slane %v12562, 1
      %v12565 = vsel %vm1107, %v12560, %v12564
      %v12567 = vshrl.u32 %v12391, 16
      %v12569 = vshll.u32 %v12391, 16
      %v12571 = vrot.slane %v12569, 1
      %v12572 = vor.u32 %v12567, %v12571
      %v12574 = vshll.u32 %v12407, 16
      %v12576 = vrot.slane %v12574, 1
      %v12577 = vsel %vm1107, %v12572, %v12576
      %v12579 = vshrl.u32 %v12392, 16
      %v12581 = vshll.u32 %v12392, 16
      %v12583 = vrot.slane %v12581, 1
      %v12584 = vor.u32 %v12579, %v12583
      %v12586 = vshll.u32 %v12408, 16
      %v12588 = vrot.slane %v12586, 1
      %v12589 = vsel %vm1107, %v12584, %v12588
      %12590 = vrot.lane.b32.xlu0 %v12421, 64
      %v12591 = vpop.permute.xlu0 %12590
      %12592 = vrot.lane.b32.xlu0 %v12433, 64
      %v12593 = vpop.permute.xlu0 %12592
      %12594 = vrot.lane.b32.xlu0 %v12445, 64
      %v12595 = vpop.permute.xlu0 %12594
      %12596 = vrot.lane.b32.xlu0 %v12457, 64
      %v12597 = vpop.permute.xlu0 %12596
      %12598 = vrot.lane.b32.xlu0 %v12469, 64
      %v12599 = vpop.permute.xlu0 %12598
      %12600 = vrot.lane.b32.xlu0 %v12481, 64
      %v12601 = vpop.permute.xlu0 %12600
      %12602 = vrot.lane.b32.xlu0 %v12493, 64
      %v12603 = vpop.permute.xlu0 %12602
      %12604 = vrot.lane.b32.xlu0 %v12505, 64
      %v12605 = vpop.permute.xlu0 %12604
      %12606 = vrot.lane.b32.xlu0 %v12517, 64
      %v12607 = vpop.permute.xlu0 %12606
      %12608 = vrot.lane.b32.xlu0 %v12529, 64
      %v12609 = vpop.permute.xlu0 %12608
      %12610 = vrot.lane.b32.xlu0 %v12541, 64
      %v12611 = vpop.permute.xlu0 %12610
      %12612 = vrot.lane.b32.xlu0 %v12553, 64
      %v12613 = vpop.permute.xlu0 %12612
      %12614 = vrot.lane.b32.xlu0 %v12565, 64
      %v12615 = vpop.permute.xlu0 %12614
      %12616 = vrot.lane.b32.xlu0 %v12577, 64
      %v12617 = vpop.permute.xlu0 %12616
      %12618 = vrot.lane.b32.xlu0 %v12589, 64
      %v12619 = vpop.permute.xlu0 %12618
      %v12650 = vrot.slane %v12378, 1
      %v12651 = vrot.slane %v12394, 1
      %v12652 = vsel %vm1364, %v12650, %v12651
      %v12653 = vrot.slane %v12379, 1
      %v12654 = vrot.slane %v12395, 1
      %v12655 = vsel %vm1364, %v12653, %v12654
      %v12656 = vrot.slane %v12380, 1
      %v12657 = vrot.slane %v12396, 1
      %v12658 = vsel %vm1364, %v12656, %v12657
      %v12659 = vrot.slane %v12381, 1
      %v12660 = vrot.slane %v12397, 1
      %v12661 = vsel %vm1364, %v12659, %v12660
      %v12662 = vrot.slane %v12382, 1
      %v12663 = vrot.slane %v12398, 1
      %v12664 = vsel %vm1364, %v12662, %v12663
      %v12665 = vrot.slane %v12383, 1
      %v12666 = vrot.slane %v12399, 1
      %v12667 = vsel %vm1364, %v12665, %v12666
      %v12668 = vrot.slane %v12384, 1
      %v12669 = vrot.slane %v12400, 1
      %v12670 = vsel %vm1364, %v12668, %v12669
      %v12671 = vrot.slane %v12385, 1
      %v12672 = vrot.slane %v12401, 1
      %v12673 = vsel %vm1364, %v12671, %v12672
      %v12674 = vrot.slane %v12386, 1
      %v12675 = vrot.slane %v12402, 1
      %v12676 = vsel %vm1364, %v12674, %v12675
      %v12677 = vrot.slane %v12387, 1
      %v12678 = vrot.slane %v12403, 1
      %v12679 = vsel %vm1364, %v12677, %v12678
      %v12680 = vrot.slane %v12388, 1
      %v12681 = vrot.slane %v12404, 1
      %v12682 = vsel %vm1364, %v12680, %v12681
      %v12683 = vrot.slane %v12389, 1
      %v12684 = vrot.slane %v12405, 1
      %v12685 = vsel %vm1364, %v12683, %v12684
      %v12686 = vrot.slane %v12390, 1
      %v12687 = vrot.slane %v12406, 1
      %v12688 = vsel %vm1364, %v12686, %v12687
      %v12689 = vrot.slane %v12391, 1
      %v12690 = vrot.slane %v12407, 1
      %v12691 = vsel %vm1364, %v12689, %v12690
      %v12692 = vrot.slane %v12392, 1
      %v12693 = vrot.slane %v12408, 1
      %v12694 = vsel %vm1364, %v12692, %v12693
      %12696 = vrot.lane.b32.xlu0 %v12378, 64
      %v12697 = vpop.permute.xlu0 %12696
      %12698 = vrot.lane.b32.xlu0 %v12379, 64
      %v12699 = vpop.permute.xlu0 %12698
      %12700 = vrot.lane.b32.xlu0 %v12380, 64
      %v12701 = vpop.permute.xlu0 %12700
      %12702 = vrot.lane.b32.xlu0 %v12381, 64
      %v12703 = vpop.permute.xlu0 %12702
      %12704 = vrot.lane.b32.xlu0 %v12382, 64
      %v12705 = vpop.permute.xlu0 %12704
      %12706 = vrot.lane.b32.xlu0 %v12383, 64
      %v12707 = vpop.permute.xlu0 %12706
      %12708 = vrot.lane.b32.xlu0 %v12384, 64
      %v12709 = vpop.permute.xlu0 %12708
      %12710 = vrot.lane.b32.xlu0 %v12385, 64
      %v12711 = vpop.permute.xlu0 %12710
      %12712 = vrot.lane.b32.xlu0 %v12386, 64
      %v12713 = vpop.permute.xlu0 %12712
      %12714 = vrot.lane.b32.xlu0 %v12387, 64
      %v12715 = vpop.permute.xlu0 %12714
      %12716 = vrot.lane.b32.xlu0 %v12388, 64
      %v12717 = vpop.permute.xlu0 %12716
      %12718 = vrot.lane.b32.xlu0 %v12389, 64
      %v12719 = vpop.permute.xlu0 %12718
      %12720 = vrot.lane.b32.xlu0 %v12390, 64
      %v12721 = vpop.permute.xlu0 %12720
      %12722 = vrot.lane.b32.xlu0 %v12391, 64
      %v12723 = vpop.permute.xlu0 %12722
      %12724 = vrot.lane.b32.xlu0 %v12392, 64
      %v12725 = vpop.permute.xlu0 %12724
      %12726 = vrot.lane.b32.xlu0 %v12393, 64
      %v12727 = vpop.permute.xlu0 %12726
      %v12729 = vshrl.u32 %v12393, 16
      %v12731 = vshll.u32 %v12393, 16
      %v12733 = vrot.slane %v12731, 1
      %v12734 = vor.u32 %v12729, %v12733
      %v12736 = vshll.u32 %v12409, 16
      %v12738 = vrot.slane %v12736, 1
      %v12739 = vsel %vm1107, %v12734, %v12738
      %v12741 = vrot.slane %v12393, 1
      %v12742 = vrot.slane %v12409, 1
      %v12743 = vsel %vm1364, %v12741, %v12742
      %12744 = vrot.lane.b32.xlu0 %v12652, 64
      %v12745 = vpop.permute.xlu0 %12744
      %12746 = vrot.lane.b32.xlu0 %v12655, 64
      %v12747 = vpop.permute.xlu0 %12746
      %12748 = vrot.lane.b32.xlu0 %v12658, 64
      %v12749 = vpop.permute.xlu0 %12748
      %12750 = vrot.lane.b32.xlu0 %v12661, 64
      %v12751 = vpop.permute.xlu0 %12750
      %12752 = vrot.lane.b32.xlu0 %v12664, 64
      %v12753 = vpop.permute.xlu0 %12752
      %12754 = vrot.lane.b32.xlu0 %v12667, 64
      %v12755 = vpop.permute.xlu0 %12754
      %12756 = vrot.lane.b32.xlu0 %v12670, 64
      %v12757 = vpop.permute.xlu0 %12756
      %12758 = vrot.lane.b32.xlu0 %v12673, 64
      %v12759 = vpop.permute.xlu0 %12758
      %12760 = vrot.lane.b32.xlu0 %v12676, 64
      %v12761 = vpop.permute.xlu0 %12760
      %12762 = vrot.lane.b32.xlu0 %v12679, 64
      %v12763 = vpop.permute.xlu0 %12762
      %12764 = vrot.lane.b32.xlu0 %v12682, 64
      %v12765 = vpop.permute.xlu0 %12764
      %12766 = vrot.lane.b32.xlu0 %v12685, 64
      %v12767 = vpop.permute.xlu0 %12766
      %12768 = vrot.lane.b32.xlu0 %v12688, 64
      %v12769 = vpop.permute.xlu0 %12768
      %12770 = vrot.lane.b32.xlu0 %v12691, 64
      %v12771 = vpop.permute.xlu0 %12770
      %12772 = vrot.lane.b32.xlu0 %v12694, 64
      %v12773 = vpop.permute.xlu0 %12772
      %12774 = vrot.lane.b32.xlu0 %v12743, 64
      %v12775 = vpop.permute.xlu0 %12774
      %12776 = vrot.lane.b32.xlu0 %v12739, 64
      %v12777 = vpop.permute.xlu0 %12776
      %v12779 = vsel %vm1496, %v12378, %v12591
      %v12782 = vsel %vm1496, %v12379, %v12593
      %v12785 = vsel %vm1496, %v12380, %v12595
      %v12788 = vsel %vm1496, %v12381, %v12597
      %v12791 = vsel %vm1496, %v12382, %v12599
      %v12794 = vsel %vm1496, %v12383, %v12601
      %v12797 = vsel %vm1496, %v12384, %v12603
      %v12800 = vsel %vm1496, %v12385, %v12605
      %v12803 = vsel %vm1496, %v12386, %v12607
      %v12806 = vsel %vm1496, %v12387, %v12609
      %v12809 = vsel %vm1496, %v12388, %v12611
      %v12812 = vsel %vm1496, %v12389, %v12613
      %v12815 = vsel %vm1496, %v12390, %v12615
      %v12818 = vsel %vm1496, %v12391, %v12617
      %v12821 = vsel %vm1496, %v12392, %v12619
      %v12824 = vsel %vm1496, %v1367, %v12697
      %v12828 = vsel %vm1496, %v12652, %v12699
      %v12832 = vsel %vm1496, %v12655, %v12701
      %v12836 = vsel %vm1496, %v12658, %v12703
      %v12840 = vsel %vm1496, %v12661, %v12705
      %v12844 = vsel %vm1496, %v12664, %v12707
      %v12848 = vsel %vm1496, %v12667, %v12709
      %v12852 = vsel %vm1496, %v12670, %v12711
      %v12856 = vsel %vm1496, %v12673, %v12713
      %v12860 = vsel %vm1496, %v12676, %v12715
      %v12864 = vsel %vm1496, %v12679, %v12717
      %v12868 = vsel %vm1496, %v12682, %v12719
      %v12872 = vsel %vm1496, %v12685, %v12721
      %v12876 = vsel %vm1496, %v12688, %v12723
      %v12880 = vsel %vm1496, %v12691, %v12725
      %v12884 = vsel %vm1496, %v12694, %v12727
      %v12888 = vsel %vm1496, %v12421, %v12745
      %v12892 = vsel %vm1496, %v12433, %v12747
      %v12896 = vsel %vm1496, %v12445, %v12749
      %v12900 = vsel %vm1496, %v12457, %v12751
      %v12904 = vsel %vm1496, %v12469, %v12753
      %v12908 = vsel %vm1496, %v12481, %v12755
      %v12912 = vsel %vm1496, %v12493, %v12757
      %v12916 = vsel %vm1496, %v12505, %v12759
      %v12920 = vsel %vm1496, %v12517, %v12761
      %v12924 = vsel %vm1496, %v12529, %v12763
      %v12928 = vsel %vm1496, %v12541, %v12765
      %v12932 = vsel %vm1496, %v12553, %v12767
      %v12936 = vsel %vm1496, %v12565, %v12769
      %v12940 = vsel %vm1496, %v12577, %v12771
      %v12944 = vsel %vm1496, %v12589, %v12773
      %v12948 = vsel %vm1496, %v12739, %v12775
      %v12951 = vsel %vm1496, %v12393, %v12777
      %v12953 = vld [vmem:[%s15] sm:$0xf]
      %v12954 = vld [vmem:[%s15 + $0x4] sm:$0xf]
      %v12955 = vld [vmem:[%s15 + $0x8] sm:$0xf]
      %v12956 = vld [vmem:[%s15 + $0xc] sm:$0xf]
      %v12957 = vld [vmem:[%s15 + $0x10] sm:$0xf]
      %v12958 = vld [vmem:[%s15 + $0x14] sm:$0xf]
      %v12959 = vld [vmem:[%s15 + $0x18] sm:$0xf]
      %v12960 = vld [vmem:[%s15 + $0x1c] sm:$0xf]
      %v12961 = vld [vmem:[%s15 + $0x20] sm:$0xf]
      %v12962 = vld [vmem:[%s15 + $0x24] sm:$0xf]
      %v12963 = vld [vmem:[%s15 + $0x28] sm:$0xf]
      %v12964 = vld [vmem:[%s15 + $0x2c] sm:$0xf]
      %v12965 = vld [vmem:[%s15 + $0x30] sm:$0xf]
      %v12966 = vld [vmem:[%s15 + $0x34] sm:$0xf]
      %v12967 = vld [vmem:[%s15 + $0x38] sm:$0xf]
      %v12968 = vld [vmem:[%s15 + $0x3c] sm:$0xf]
      %v12969 = vld [vmem:[%s15 + $0x40] sm:$0xf]
      %v12970 = vld [vmem:[%s15 + $0x44] sm:$0xf]
      %v12971 = vld [vmem:[%s15 + $0x48] sm:$0xf]
      %v12972 = vld [vmem:[%s15 + $0x4c] sm:$0xf]
      %v12973 = vld [vmem:[%s15 + $0x50] sm:$0xf]
      %v12974 = vld [vmem:[%s15 + $0x54] sm:$0xf]
      %v12975 = vld [vmem:[%s15 + $0x58] sm:$0xf]
      %v12976 = vld [vmem:[%s15 + $0x5c] sm:$0xf]
      %v12977 = vld [vmem:[%s15 + $0x60] sm:$0xf]
      %v12978 = vld [vmem:[%s15 + $0x64] sm:$0xf]
      %v12979 = vld [vmem:[%s15 + $0x68] sm:$0xf]
      %v12980 = vld [vmem:[%s15 + $0x6c] sm:$0xf]
      %v12981 = vld [vmem:[%s15 + $0x70] sm:$0xf]
      %v12982 = vld [vmem:[%s15 + $0x74] sm:$0xf]
      %v12983 = vld [vmem:[%s15 + $0x78] sm:$0xf]
      %v12984 = vld [vmem:[%s15 + $0x7c] sm:$0xf]
      %v12985 = vld [vmem:[%s15 + $0x80] sm:$0xf]
      %v12986 = vld [vmem:[%s15 + $0x84] sm:$0xf]
      %v12987 = vld [vmem:[%s15 + $0x88] sm:$0xf]
      %v12988 = vld [vmem:[%s15 + $0x8c] sm:$0xf]
      %v12989 = vld [vmem:[%s15 + $0x90] sm:$0xf]
      %v12990 = vld [vmem:[%s15 + $0x94] sm:$0xf]
      %v12991 = vld [vmem:[%s15 + $0x98] sm:$0xf]
      %v12992 = vld [vmem:[%s15 + $0x9c] sm:$0xf]
      %v12993 = vld [vmem:[%s15 + $0xa0] sm:$0xf]
      %v12994 = vld [vmem:[%s15 + $0xa4] sm:$0xf]
      %v12995 = vld [vmem:[%s15 + $0xa8] sm:$0xf]
      %v12996 = vld [vmem:[%s15 + $0xac] sm:$0xf]
      %v12997 = vld [vmem:[%s15 + $0xb0] sm:$0xf]
      %v12998 = vld [vmem:[%s15 + $0xb4] sm:$0xf]
      %v12999 = vld [vmem:[%s15 + $0xb8] sm:$0xf]
      %v13000 = vld [vmem:[%s15 + $0xbc] sm:$0xf]
      %v13001 = vld [vmem:[%s15 + $0xc0] sm:$0xf]
      %v13002 = vld [vmem:[%s15 + $0xc4] sm:$0xf]
      %v13003 = vld [vmem:[%s15 + $0xc8] sm:$0xf]
      %v13004 = vld [vmem:[%s15 + $0xcc] sm:$0xf]
      %v13005 = vld [vmem:[%s15 + $0xd0] sm:$0xf]
      %v13006 = vld [vmem:[%s15 + $0xd4] sm:$0xf]
      %v13007 = vld [vmem:[%s15 + $0xd8] sm:$0xf]
      %v13008 = vld [vmem:[%s15 + $0xdc] sm:$0xf]
      %v13009 = vld [vmem:[%s15 + $0xe0] sm:$0xf]
      %v13010 = vld [vmem:[%s15 + $0xe4] sm:$0xf]
      %v13011 = vld [vmem:[%s15 + $0xe8] sm:$0xf]
      %v13012 = vld [vmem:[%s15 + $0xec] sm:$0xf]
      %v13013 = vld [vmem:[%s15 + $0xf0] sm:$0xf]
      %v13014 = vld [vmem:[%s15 + $0xf4] sm:$0xf]
      %v13015 = vld [vmem:[%s15 + $0xf8] sm:$0xf]
      %v13016 = vld [vmem:[%s15 + $0xfc] sm:$0xf]
      %v13017 = vld [vmem:[%s15 + $0x100] sm:$0xf]
      %v13018 = vld [vmem:[%s15 + $0x104] sm:$0xf]
      %v13019 = vld [vmem:[%s15 + $0x108] sm:$0xf]
      %v13020 = vld [vmem:[%s15 + $0x10c] sm:$0xf]
      %v13021 = vld [vmem:[%s15 + $0x110] sm:$0xf]
      %v13022 = vld [vmem:[%s15 + $0x114] sm:$0xf]
      %v13023 = vld [vmem:[%s15 + $0x118] sm:$0xf]
      %v13024 = vld [vmem:[%s15 + $0x11c] sm:$0xf]
      %v13025 = vld [vmem:[%s16] sm:$0x1]
      %v13027 = vlaneseq
      %v13028 = vshrl.u32 %v13027, 7
      %v13029 = vsub.s32 0, %v13028
      %v13030 = vrot.slane %v13025, %v13029
      %v13104 = vunpack.c.l.b16 %v12953
      %v13105 = vunpack.c.l.b16 %v12954
      %v13106 = vunpack.c.l.b16 %v12955
      %v13107 = vunpack.c.l.b16 %v12956
      %v13108 = vunpack.c.l.b16 %v12957
      %v13109 = vunpack.c.l.b16 %v12958
      %v13110 = vunpack.c.l.b16 %v12959
      %v13111 = vunpack.c.l.b16 %v12960
      %v13112 = vunpack.c.l.b16 %v12961
      %v13113 = vunpack.c.l.b16 %v12962
      %v13114 = vunpack.c.l.b16 %v12963
      %v13115 = vunpack.c.l.b16 %v12964
      %v13116 = vunpack.c.l.b16 %v12965
      %v13117 = vunpack.c.l.b16 %v12966
      %v13118 = vunpack.c.l.b16 %v12967
      %v13119 = vunpack.c.l.b16 %v12968
      %v13120 = vunpack.c.l.b16 %v12969
      %v13121 = vunpack.c.l.b16 %v12970
      %v13122 = vunpack.c.l.b16 %v12971
      %v13123 = vunpack.c.l.b16 %v12972
      %v13124 = vunpack.c.l.b16 %v12973
      %v13125 = vunpack.c.l.b16 %v12974
      %v13126 = vunpack.c.l.b16 %v12975
      %v13127 = vunpack.c.l.b16 %v12976
      %v13128 = vunpack.c.l.b16 %v12977
      %v13129 = vunpack.c.l.b16 %v12978
      %v13130 = vunpack.c.l.b16 %v12979
      %v13131 = vunpack.c.l.b16 %v12980
      %v13132 = vunpack.c.l.b16 %v12981
      %v13133 = vunpack.c.l.b16 %v12982
      %v13134 = vunpack.c.l.b16 %v12983
      %v13135 = vunpack.c.l.b16 %v12984
      %v13136 = vunpack.c.l.b16 %v12985
      %v13137 = vunpack.c.l.b16 %v12986
      %v13138 = vunpack.c.l.b16 %v12987
      %v13139 = vunpack.c.l.b16 %v12988
      %v13140 = vunpack.c.l.b16 %v12989
      %v13141 = vunpack.c.l.b16 %v12990
      %v13142 = vunpack.c.l.b16 %v12991
      %v13143 = vunpack.c.l.b16 %v12992
      %v13144 = vunpack.c.l.b16 %v12993
      %v13145 = vunpack.c.l.b16 %v12994
      %v13146 = vunpack.c.l.b16 %v12995
      %v13147 = vunpack.c.l.b16 %v12996
      %v13148 = vunpack.c.l.b16 %v12997
      %v13149 = vunpack.c.l.b16 %v12998
      %v13150 = vunpack.c.l.b16 %v12999
      %v13151 = vunpack.c.l.b16 %v13000
      %v13152 = vunpack.c.l.b16 %v13001
      %v13153 = vunpack.c.l.b16 %v13002
      %v13154 = vunpack.c.l.b16 %v13003
      %v13155 = vunpack.c.l.b16 %v13004
      %v13156 = vunpack.c.l.b16 %v13005
      %v13157 = vunpack.c.l.b16 %v13006
      %v13158 = vunpack.c.l.b16 %v13007
      %v13159 = vunpack.c.l.b16 %v13008
      %v13160 = vunpack.c.l.b16 %v13009
      %v13161 = vunpack.c.l.b16 %v13010
      %v13162 = vunpack.c.l.b16 %v13011
      %v13163 = vunpack.c.l.b16 %v13012
      %v13164 = vunpack.c.l.b16 %v13013
      %v13165 = vunpack.c.l.b16 %v13014
      %v13166 = vunpack.c.l.b16 %v13015
      %v13167 = vunpack.c.l.b16 %v13016
      %v13168 = vunpack.c.l.b16 %v13017
      %v13169 = vunpack.c.l.b16 %v13018
      %v13170 = vunpack.c.l.b16 %v13019
      %v13171 = vunpack.c.l.b16 %v13020
      %v13172 = vunpack.c.l.b16 %v13021
      %v13173 = vunpack.c.l.b16 %v13022
      %v13174 = vunpack.c.l.b16 %v13023
      %v13175 = vunpack.c.l.b16 %v13024
      %v13176 = vpack.c.b16 %v13105, %v13104
      %v13177 = vpack.c.b16 %v13107, %v13106
      %v13178 = vpack.c.b16 %v13109, %v13108
      %v13179 = vpack.c.b16 %v13111, %v13110
      %v13180 = vpack.c.b16 %v13113, %v13112
      %v13181 = vpack.c.b16 %v13115, %v13114
      %v13182 = vpack.c.b16 %v13117, %v13116
      %v13183 = vpack.c.b16 %v13119, %v13118
      %v13184 = vpack.c.b16 %v13121, %v13120
      %v13185 = vpack.c.b16 %v13123, %v13122
      %v13186 = vpack.c.b16 %v13125, %v13124
      %v13187 = vpack.c.b16 %v13127, %v13126
      %v13188 = vpack.c.b16 %v13129, %v13128
      %v13189 = vpack.c.b16 %v13131, %v13130
      %v13190 = vpack.c.b16 %v13133, %v13132
      %v13191 = vpack.c.b16 %v13135, %v13134
      %v13192 = vpack.c.b16 %v13137, %v13136
      %v13193 = vpack.c.b16 %v13139, %v13138
      %v13194 = vpack.c.b16 %v13141, %v13140
      %v13195 = vpack.c.b16 %v13143, %v13142
      %v13196 = vpack.c.b16 %v13145, %v13144
      %v13197 = vpack.c.b16 %v13147, %v13146
      %v13198 = vpack.c.b16 %v13149, %v13148
      %v13199 = vpack.c.b16 %v13151, %v13150
      %v13200 = vpack.c.b16 %v13153, %v13152
      %v13201 = vpack.c.b16 %v13155, %v13154
      %v13202 = vpack.c.b16 %v13157, %v13156
      %v13203 = vpack.c.b16 %v13159, %v13158
      %v13204 = vpack.c.b16 %v13161, %v13160
      %v13205 = vpack.c.b16 %v13163, %v13162
      %v13206 = vpack.c.b16 %v13165, %v13164
      %v13207 = vpack.c.b16 %v13167, %v13166
      %v13208 = vpack.c.b16 %v13169, %v13168
      %v13209 = vpack.c.b16 %v13171, %v13170
      %v13210 = vpack.c.b16 %v13173, %v13172
      %v13211 = vpack.c.b16 %v13175, %v13174
      %v13248 = vsel %vm1496, %v12655, 0
      %v13250 = vsel %vm1496, %v12658, 0
      %v13252 = vsel %vm1496, %v12661, 0
      %v13254 = vsel %vm1496, %v12664, 0
      %v13256 = vsel %vm1496, %v12667, 0
      %v13258 = vsel %vm1496, %v12670, 0
      %v13260 = vsel %vm1496, %v12673, 0
      %v13262 = vsel %vm1496, %v12676, 0
      %v13264 = vsel %vm1496, %v12679, 0
      %v13266 = vsel %vm1496, %v12682, 0
      %v13268 = vsel %vm1496, %v12685, 0
      %v13270 = vsel %vm1496, %v12688, 0
      %v13272 = vsel %vm1496, %v12691, 0
      %v13274 = vsel %vm1496, %v12694, 0
      %v13277 = vsel %vm1496, %v12743, 0
      %13279 = vmatprep.subr.bf16.mxu0 0
      %13280 = vmatpush1.bf16.msra.mxu0 %v13176
      %13281 = vmatprep.subr.bf16.mxu0 0
      %13282 = vmatpush1.bf16.msra.mxu0 %v13177
      %13283 = vmatprep.subr.bf16.mxu0 0
      %13284 = vmatpush1.bf16.msra.mxu0 %v13178
      %13285 = vmatprep.subr.bf16.mxu0 0
      %13286 = vmatpush1.bf16.msra.mxu0 %v13179
      %13287 = vmatprep.subr.bf16.mxu0 0
      %13288 = vmatpush1.bf16.msra.mxu0 %v13180
      %13289 = vmatprep.subr.bf16.mxu0 0
      %13290 = vmatpush1.bf16.msra.mxu0 %v13181
      %13291 = vmatprep.subr.bf16.mxu0 0
      %13292 = vmatpush1.bf16.msra.mxu0 %v13182
      %13293 = vmatprep.subr.bf16.mxu0 0
      %13294 = vmatpush1.bf16.msra.mxu0 %v13183
      %13295 = vmatprep.subr.bf16.mxu0 0
      %13296 = vmatpush1.bf16.msra.mxu0 %v13184
      %13297 = vmatprep.subr.bf16.mxu0 0
      %13298 = vmatpush1.bf16.msra.mxu0 %v13185
      %13299 = vmatprep.subr.bf16.mxu0 0
      %13300 = vmatpush1.bf16.msra.mxu0 %v13186
      %13301 = vmatprep.subr.bf16.mxu0 0
      %13302 = vmatpush1.bf16.msra.mxu0 %v13187
      %13303 = vmatprep.subr.bf16.mxu0 0
      %13304 = vmatpush1.bf16.msra.mxu0 %v13188
      %13305 = vmatprep.subr.bf16.mxu0 0
      %13306 = vmatpush1.bf16.msra.mxu0 %v13189
      %13307 = vmatprep.subr.bf16.mxu0 0
      %13308 = vmatpush1.bf16.msra.mxu0 %v13190
      %13309 = vmatprep.subr.bf16.mxu0 0
      %13310 = vmatpush1.bf16.msra.mxu0 %v13191
      %13311 = vmatprep.mubr.bf16.mxu0 %v12824
      %13312 = vmatmul.mubr.bf16.gmra.mrb[0].mxu0 %v1498
      %v13313 = vpop.f32.mrb[0].mxu0
      %v13314 = vadd.f32 %v13030, %v13313
      %v13315 = vpop.f32.mrb[0].mxu0
      %v13316 = vpop.f32.mrb[0].mxu0
      %v13317 = vadd.f32 %v13030, %v13316
      %v13318 = vpop.f32.mrb[0].mxu0
      %13319 = vmatprep.mubr.bf16.mxu0 %v12828
      %13320 = vmatmul.mubr.bf16.gmra.mrb[0].mxu0 %v12779
      %v13321 = vpop.f32.mrb[0].mxu0
      %v13322 = vadd.f32 %v13030, %v13321
      %v13323 = vpop.f32.mrb[0].mxu0
      %v13324 = vpop.f32.mrb[0].mxu0
      %v13325 = vadd.f32 %v13030, %v13324
      %v13326 = vpop.f32.mrb[0].mxu0
      %13327 = vmatprep.mubr.bf16.mxu0 %v12832
      %13328 = vmatmul.mubr.bf16.gmra.mrb[0].mxu0 %v12782
      %v13329 = vpop.f32.mrb[0].mxu0
      %v13330 = vadd.f32 %v13030, %v13329
      %v13331 = vpop.f32.mrb[0].mxu0
      %v13332 = vpop.f32.mrb[0].mxu0
      %v13333 = vadd.f32 %v13030, %v13332
      %v13334 = vpop.f32.mrb[0].mxu0
      %13335 = vmatprep.mubr.bf16.mxu0 %v12836
      %13336 = vmatmul.mubr.bf16.gmra.mrb[0].mxu0 %v12785
      %v13337 = vpop.f32.mrb[0].mxu0
      %v13338 = vadd.f32 %v13030, %v13337
      %v13339 = vpop.f32.mrb[0].mxu0
      %v13340 = vpop.f32.mrb[0].mxu0
      %v13341 = vadd.f32 %v13030, %v13340
      %v13342 = vpop.f32.mrb[0].mxu0
      %13343 = vmatprep.mubr.bf16.mxu0 %v12840
      %13344 = vmatmul.mubr.bf16.gmra.mrb[0].mxu0 %v12788
      %v13345 = vpop.f32.mrb[0].mxu0
      %v13346 = vadd.f32 %v13030, %v13345
      %v13347 = vpop.f32.mrb[0].mxu0
      %v13348 = vpop.f32.mrb[0].mxu0
      %v13349 = vadd.f32 %v13030, %v13348
      %v13350 = vpop.f32.mrb[0].mxu0
      %13351 = vmatprep.mubr.bf16.mxu0 %v12844
      %13352 = vmatmul.mubr.bf16.gmra.mrb[0].mxu0 %v12791
      %v13353 = vpop.f32.mrb[0].mxu0
      %v13354 = vadd.f32 %v13030, %v13353
      %v13355 = vpop.f32.mrb[0].mxu0
      %v13356 = vpop.f32.mrb[0].mxu0
      %v13357 = vadd.f32 %v13030, %v13356
      %v13358 = vpop.f32.mrb[0].mxu0
      %13359 = vmatprep.mubr.bf16.mxu0 %v12848
      %13360 = vmatmul.mubr.bf16.gmra.mrb[0].mxu0 %v12794
      %v13361 = vpop.f32.mrb[0].mxu0
      %v13362 = vadd.f32 %v13030, %v13361
      %v13363 = vpop.f32.mrb[0].mxu0
      %v13364 = vpop.f32.mrb[0].mxu0
      %v13365 = vadd.f32 %v13030, %v13364
      %v13366 = vpop.f32.mrb[0].mxu0
      %13367 = vmatprep.mubr.bf16.mxu0 %v12852
      %13368 = vmatmul.mubr.bf16.gmra.mrb[0].mxu0 %v12797
      %v13369 = vpop.f32.mrb[0].mxu0
      %v13370 = vadd.f32 %v13030, %v13369
      %v13371 = vpop.f32.mrb[0].mxu0
      %v13372 = vpop.f32.mrb[0].mxu0
      %v13373 = vadd.f32 %v13030, %v13372
      %v13374 = vpop.f32.mrb[0].mxu0
      %13375 = vmatprep.mubr.bf16.mxu0 %v12856
      %13376 = vmatmul.mubr.bf16.gmra.mrb[0].mxu0 %v12800
      %v13377 = vpop.f32.mrb[0].mxu0
      %v13378 = vadd.f32 %v13030, %v13377
      %v13379 = vpop.f32.mrb[0].mxu0
      %v13380 = vpop.f32.mrb[0].mxu0
      %v13381 = vadd.f32 %v13030, %v13380
      %v13382 = vpop.f32.mrb[0].mxu0
      %13383 = vmatprep.mubr.bf16.mxu0 %v12860
      %13384 = vmatmul.mubr.bf16.gmra.mrb[0].mxu0 %v12803
      %v13385 = vpop.f32.mrb[0].mxu0
      %v13386 = vadd.f32 %v13030, %v13385
      %v13387 = vpop.f32.mrb[0].mxu0
      %v13388 = vpop.f32.mrb[0].mxu0
      %v13389 = vadd.f32 %v13030, %v13388
      %v13390 = vpop.f32.mrb[0].mxu0
      %13391 = vmatprep.mubr.bf16.mxu0 %v12864
      %13392 = vmatmul.mubr.bf16.gmra.mrb[0].mxu0 %v12806
      %v13393 = vpop.f32.mrb[0].mxu0
      %v13394 = vadd.f32 %v13030, %v13393
      %v13395 = vpop.f32.mrb[0].mxu0
      %v13396 = vpop.f32.mrb[0].mxu0
      %v13397 = vadd.f32 %v13030, %v13396
      %v13398 = vpop.f32.mrb[0].mxu0
      %13399 = vmatprep.mubr.bf16.mxu0 %v12868
      %13400 = vmatmul.mubr.bf16.gmra.mrb[0].mxu0 %v12809
      %v13401 = vpop.f32.mrb[0].mxu0
      %v13402 = vadd.f32 %v13030, %v13401
      %v13403 = vpop.f32.mrb[0].mxu0
      %v13404 = vpop.f32.mrb[0].mxu0
      %v13405 = vadd.f32 %v13030, %v13404
      %v13406 = vpop.f32.mrb[0].mxu0
      %13407 = vmatprep.mubr.bf16.mxu0 %v12872
      %13408 = vmatmul.mubr.bf16.gmra.mrb[0].mxu0 %v12812
      %v13409 = vpop.f32.mrb[0].mxu0
      %v13410 = vadd.f32 %v13030, %v13409
      %v13411 = vpop.f32.mrb[0].mxu0
      %v13412 = vpop.f32.mrb[0].mxu0
      %v13413 = vadd.f32 %v13030, %v13412
      %v13414 = vpop.f32.mrb[0].mxu0
      %13415 = vmatprep.mubr.bf16.mxu0 %v12876
      %13416 = vmatmul.mubr.bf16.gmra.mrb[0].mxu0 %v12815
      %v13417 = vpop.f32.mrb[0].mxu0
      %v13418 = vadd.f32 %v13030, %v13417
      %v13419 = vpop.f32.mrb[0].mxu0
      %v13420 = vpop.f32.mrb[0].mxu0
      %v13421 = vadd.f32 %v13030, %v13420
      %v13422 = vpop.f32.mrb[0].mxu0
      %13423 = vmatprep.mubr.bf16.mxu0 %v12880
      %13424 = vmatmul.mubr.bf16.gmra.mrb[0].mxu0 %v12818
      %v13425 = vpop.f32.mrb[0].mxu0
      %v13426 = vadd.f32 %v13030, %v13425
      %v13427 = vpop.f32.mrb[0].mxu0
      %v13428 = vpop.f32.mrb[0].mxu0
      %v13429 = vadd.f32 %v13030, %v13428
      %v13430 = vpop.f32.mrb[0].mxu0
      %13431 = vmatprep.mubr.bf16.mxu0 %v12884
      %13432 = vmatmul.mubr.bf16.gmra.mrb[0].mxu0 %v12821
      %v13433 = vpop.f32.mrb[0].mxu0
      %v13434 = vadd.f32 %v13030, %v13433
      %v13435 = vpop.f32.mrb[0].mxu0
      %v13436 = vpop.f32.mrb[0].mxu0
      %v13437 = vadd.f32 %v13030, %v13436
      %v13438 = vpop.f32.mrb[0].mxu0
      %13439 = vdwg.mxu0
      %13440 = vmatprep.subr.bf16.mxu0 0
      %13441 = vmatpush1.bf16.msra.mxu0 %v13192
      %13442 = vmatprep.subr.bf16.mxu0 0
      %13443 = vmatpush1.bf16.msra.mxu0 %v13193
      %13444 = vmatprep.subr.bf16.mxu0 0
      %13445 = vmatpush1.bf16.msra.mxu0 %v13194
      %13446 = vmatprep.subr.bf16.mxu0 0
      %13447 = vmatpush1.bf16.msra.mxu0 %v13195
      %13448 = vmatprep.subr.bf16.mxu0 0
      %13449 = vmatpush1.bf16.msra.mxu0 %v13196
      %13450 = vmatprep.subr.bf16.mxu0 0
      %13451 = vmatpush1.bf16.msra.mxu0 %v13197
      %13452 = vmatprep.subr.bf16.mxu0 0
      %13453 = vmatpush1.bf16.msra.mxu0 %v13198
      %13454 = vmatprep.subr.bf16.mxu0 0
      %13455 = vmatpush1.bf16.msra.mxu0 %v13199
      %13456 = vmatprep.subr.bf16.mxu0 0
      %13457 = vmatpush1.bf16.msra.mxu0 %v13200
      %13458 = vmatprep.subr.bf16.mxu0 0
      %13459 = vmatpush1.bf16.msra.mxu0 %v13201
      %13460 = vmatprep.subr.bf16.mxu0 0
      %13461 = vmatpush1.bf16.msra.mxu0 %v13202
      %13462 = vmatprep.subr.bf16.mxu0 0
      %13463 = vmatpush1.bf16.msra.mxu0 %v13203
      %13464 = vmatprep.subr.bf16.mxu0 0
      %13465 = vmatpush1.bf16.msra.mxu0 %v13204
      %13466 = vmatprep.subr.bf16.mxu0 0
      %13467 = vmatpush1.bf16.msra.mxu0 %v13205
      %13468 = vmatprep.subr.bf16.mxu0 0
      %13469 = vmatpush1.bf16.msra.mxu0 %v13206
      %13470 = vmatprep.subr.bf16.mxu0 0
      %13471 = vmatpush1.bf16.msra.mxu0 %v13207
      %13472 = vmatprep.mubr.bf16.mxu0 %v12782
      %13473 = vmatmul.mubr.bf16.gmra.mrb[0].mxu0 %v12888
      %v13474 = vpop.f32.mrb[0].mxu0
      %v13475 = vadd.f32 %v13314, %v13474
      %v13476 = vpop.f32.mrb[0].mxu0
      %v13477 = vpop.f32.mrb[0].mxu0
      %v13478 = vadd.f32 %v13317, %v13477
      %v13479 = vpop.f32.mrb[0].mxu0
      %13480 = vmatprep.mubr.bf16.mxu0 %v12785
      %13481 = vmatmul.mubr.bf16.gmra.mrb[0].mxu0 %v12892
      %v13482 = vpop.f32.mrb[0].mxu0
      %v13483 = vadd.f32 %v13322, %v13482
      %v13484 = vpop.f32.mrb[0].mxu0
      %v13485 = vpop.f32.mrb[0].mxu0
      %v13486 = vadd.f32 %v13325, %v13485
      %v13487 = vpop.f32.mrb[0].mxu0
      %13488 = vmatprep.mubr.bf16.mxu0 %v12788
      %13489 = vmatmul.mubr.bf16.gmra.mrb[0].mxu0 %v12896
      %v13490 = vpop.f32.mrb[0].mxu0
      %v13491 = vadd.f32 %v13330, %v13490
      %v13492 = vpop.f32.mrb[0].mxu0
      %v13493 = vpop.f32.mrb[0].mxu0
      %v13494 = vadd.f32 %v13333, %v13493
      %v13495 = vpop.f32.mrb[0].mxu0
      %13496 = vmatprep.mubr.bf16.mxu0 %v12791
      %13497 = vmatmul.mubr.bf16.gmra.mrb[0].mxu0 %v12900
      %v13498 = vpop.f32.mrb[0].mxu0
      %v13499 = vadd.f32 %v13338, %v13498
      %v13500 = vpop.f32.mrb[0].mxu0
      %v13501 = vpop.f32.mrb[0].mxu0
      %v13502 = vadd.f32 %v13341, %v13501
      %v13503 = vpop.f32.mrb[0].mxu0
      %13504 = vmatprep.mubr.bf16.mxu0 %v12794
      %13505 = vmatmul.mubr.bf16.gmra.mrb[0].mxu0 %v12904
      %v13506 = vpop.f32.mrb[0].mxu0
      %v13507 = vadd.f32 %v13346, %v13506
      %v13508 = vpop.f32.mrb[0].mxu0
      %v13509 = vpop.f32.mrb[0].mxu0
      %v13510 = vadd.f32 %v13349, %v13509
      %v13511 = vpop.f32.mrb[0].mxu0
      %13512 = vmatprep.mubr.bf16.mxu0 %v12797
      %13513 = vmatmul.mubr.bf16.gmra.mrb[0].mxu0 %v12908
      %v13514 = vpop.f32.mrb[0].mxu0
      %v13515 = vadd.f32 %v13354, %v13514
      %v13516 = vpop.f32.mrb[0].mxu0
      %v13517 = vpop.f32.mrb[0].mxu0
      %v13518 = vadd.f32 %v13357, %v13517
      %v13519 = vpop.f32.mrb[0].mxu0
      %13520 = vmatprep.mubr.bf16.mxu0 %v12800
      %13521 = vmatmul.mubr.bf16.gmra.mrb[0].mxu0 %v12912
      %v13522 = vpop.f32.mrb[0].mxu0
      %v13523 = vadd.f32 %v13362, %v13522
      %v13524 = vpop.f32.mrb[0].mxu0
      %v13525 = vpop.f32.mrb[0].mxu0
      %v13526 = vadd.f32 %v13365, %v13525
      %v13527 = vpop.f32.mrb[0].mxu0
      %13528 = vmatprep.mubr.bf16.mxu0 %v12803
      %13529 = vmatmul.mubr.bf16.gmra.mrb[0].mxu0 %v12916
      %v13530 = vpop.f32.mrb[0].mxu0
      %v13531 = vadd.f32 %v13370, %v13530
      %v13532 = vpop.f32.mrb[0].mxu0
      %v13533 = vpop.f32.mrb[0].mxu0
      %v13534 = vadd.f32 %v13373, %v13533
      %v13535 = vpop.f32.mrb[0].mxu0
      %13536 = vmatprep.mubr.bf16.mxu0 %v12806
      %13537 = vmatmul.mubr.bf16.gmra.mrb[0].mxu0 %v12920
      %v13538 = vpop.f32.mrb[0].mxu0
      %v13539 = vadd.f32 %v13378, %v13538
      %v13540 = vpop.f32.mrb[0].mxu0
      %v13541 = vpop.f32.mrb[0].mxu0
      %v13542 = vadd.f32 %v13381, %v13541
      %v13543 = vpop.f32.mrb[0].mxu0
      %13544 = vmatprep.mubr.bf16.mxu0 %v12809
      %13545 = vmatmul.mubr.bf16.gmra.mrb[0].mxu0 %v12924
      %v13546 = vpop.f32.mrb[0].mxu0
      %v13547 = vadd.f32 %v13386, %v13546
      %v13548 = vpop.f32.mrb[0].mxu0
      %v13549 = vpop.f32.mrb[0].mxu0
      %v13550 = vadd.f32 %v13389, %v13549
      %v13551 = vpop.f32.mrb[0].mxu0
      %13552 = vmatprep.mubr.bf16.mxu0 %v12812
      %13553 = vmatmul.mubr.bf16.gmra.mrb[0].mxu0 %v12928
      %v13554 = vpop.f32.mrb[0].mxu0
      %v13555 = vadd.f32 %v13394, %v13554
      %v13556 = vpop.f32.mrb[0].mxu0
      %v13557 = vpop.f32.mrb[0].mxu0
      %v13558 = vadd.f32 %v13397, %v13557
      %v13559 = vpop.f32.mrb[0].mxu0
      %13560 = vmatprep.mubr.bf16.mxu0 %v12815
      %13561 = vmatmul.mubr.bf16.gmra.mrb[0].mxu0 %v12932
      %v13562 = vpop.f32.mrb[0].mxu0
      %v13563 = vadd.f32 %v13402, %v13562
      %v13564 = vpop.f32.mrb[0].mxu0
      %v13565 = vpop.f32.mrb[0].mxu0
      %v13566 = vadd.f32 %v13405, %v13565
      %v13567 = vpop.f32.mrb[0].mxu0
      %13568 = vmatprep.mubr.bf16.mxu0 %v12818
      %13569 = vmatmul.mubr.bf16.gmra.mrb[0].mxu0 %v12936
      %v13570 = vpop.f32.mrb[0].mxu0
      %v13571 = vadd.f32 %v13410, %v13570
      %v13572 = vpop.f32.mrb[0].mxu0
      %v13573 = vpop.f32.mrb[0].mxu0
      %v13574 = vadd.f32 %v13413, %v13573
      %v13575 = vpop.f32.mrb[0].mxu0
      %13576 = vmatprep.mubr.bf16.mxu0 %v12821
      %13577 = vmatmul.mubr.bf16.gmra.mrb[0].mxu0 %v12940
      %v13578 = vpop.f32.mrb[0].mxu0
      %v13579 = vadd.f32 %v13418, %v13578
      %v13580 = vpop.f32.mrb[0].mxu0
      %v13581 = vpop.f32.mrb[0].mxu0
      %v13582 = vadd.f32 %v13421, %v13581
      %v13583 = vpop.f32.mrb[0].mxu0
      %13584 = vmatprep.mubr.bf16.mxu0 %v12951
      %13585 = vmatmul.mubr.bf16.gmra.mrb[0].mxu0 %v12944
      %v13586 = vpop.f32.mrb[0].mxu0
      %v13587 = vadd.f32 %v13426, %v13586
      %v13588 = vpop.f32.mrb[0].mxu0
      %v13589 = vpop.f32.mrb[0].mxu0
      %v13590 = vadd.f32 %v13429, %v13589
      %v13591 = vpop.f32.mrb[0].mxu0
      %13592 = vmatprep.mubr.bf16.mxu0 %v1498
      %13593 = vmatmul.mubr.bf16.gmra.mrb[0].mxu0 %v12948
      %v13594 = vpop.f32.mrb[0].mxu0
      %v13595 = vadd.f32 %v13434, %v13594
      %v13596 = vpop.f32.mrb[0].mxu0
      %v13597 = vpop.f32.mrb[0].mxu0
      %v13598 = vadd.f32 %v13437, %v13597
      %v13599 = vpop.f32.mrb[0].mxu0
      %13600 = vdwg.mxu0
      %13601 = vmatprep.subr.bf16.mxu0 0
      %13602 = vmatpush1.bf16.msra.mxu0 %v13208
      %13603 = vmatprep.subr.bf16.mxu0 0
      %13604 = vmatpush1.bf16.msra.mxu0 %v13209
      %13605 = vmatprep.subr.bf16.mxu0 0
      %13606 = vmatpush1.bf16.msra.mxu0 %v13210
      %13607 = vmatprep.subr.bf16.mxu0 0
      %13608 = vmatpush1.bf16.msra.mxu0 %v13211
      %13609 = vmatprep.subr.bf16.mxu0 0
      %13610 = vmatpush1.bf16.msra.mxu0 0
      %13611 = vmatprep.subr.bf16.mxu0 0
      %13612 = vmatpush1.bf16.msra.mxu0 0
      %13613 = vmatprep.subr.bf16.mxu0 0
      %13614 = vmatpush1.bf16.msra.mxu0 0
      %13615 = vmatprep.subr.bf16.mxu0 0
      %13616 = vmatpush1.bf16.msra.mxu0 0
      %13617 = vmatprep.subr.bf16.mxu0 0
      %13618 = vmatpush1.bf16.msra.mxu0 0
      %13619 = vmatprep.subr.bf16.mxu0 0
      %13620 = vmatpush1.bf16.msra.mxu0 0
      %13621 = vmatprep.subr.bf16.mxu0 0
      %13622 = vmatpush1.bf16.msra.mxu0 0
      %13623 = vmatprep.subr.bf16.mxu0 0
      %13624 = vmatpush1.bf16.msra.mxu0 0
      %13625 = vmatprep.subr.bf16.mxu0 0
      %13626 = vmatpush1.bf16.msra.mxu0 0
      %13627 = vmatprep.subr.bf16.mxu0 0
      %13628 = vmatpush1.bf16.msra.mxu0 0
      %13629 = vmatprep.subr.bf16.mxu0 0
      %13630 = vmatpush1.bf16.msra.mxu0 0
      %13631 = vmatprep.subr.bf16.mxu0 0
      %13632 = vmatpush1.bf16.msra.mxu0 0
      %13633 = vmatprep.mubr.bf16.mxu0 0
      %13634 = vmatmul.mubr.bf16.gmra.mrb[0].mxu0 %v13248
      %v13635 = vpop.f32.mrb[0].mxu0
      %v13636 = vadd.f32 %v13475, %v13635
      %v13637 = vpop.f32.mrb[0].mxu0
      %v13638 = vpop.f32.mrb[0].mxu0
      %v13639 = vadd.f32 %v13478, %v13638
      %v13640 = vpop.f32.mrb[0].mxu0
      %13641 = vmatprep.mubr.bf16.mxu0 0
      %13642 = vmatmul.mubr.bf16.gmra.mrb[0].mxu0 %v13250
      %v13643 = vpop.f32.mrb[0].mxu0
      %v13644 = vadd.f32 %v13483, %v13643
      %v13645 = vpop.f32.mrb[0].mxu0
      %v13646 = vpop.f32.mrb[0].mxu0
      %v13647 = vadd.f32 %v13486, %v13646
      %v13648 = vpop.f32.mrb[0].mxu0
      %13649 = vmatprep.mubr.bf16.mxu0 0
      %13650 = vmatmul.mubr.bf16.gmra.mrb[0].mxu0 %v13252
      %v13651 = vpop.f32.mrb[0].mxu0
      %v13652 = vadd.f32 %v13491, %v13651
      %v13653 = vpop.f32.mrb[0].mxu0
      %v13654 = vpop.f32.mrb[0].mxu0
      %v13655 = vadd.f32 %v13494, %v13654
      %v13656 = vpop.f32.mrb[0].mxu0
      %13657 = vmatprep.mubr.bf16.mxu0 0
      %13658 = vmatmul.mubr.bf16.gmra.mrb[0].mxu0 %v13254
      %v13659 = vpop.f32.mrb[0].mxu0
      %v13660 = vadd.f32 %v13499, %v13659
      %v13661 = vpop.f32.mrb[0].mxu0
      %v13662 = vpop.f32.mrb[0].mxu0
      %v13663 = vadd.f32 %v13502, %v13662
      %v13664 = vpop.f32.mrb[0].mxu0
      %13665 = vmatprep.mubr.bf16.mxu0 0
      %13666 = vmatmul.mubr.bf16.gmra.mrb[0].mxu0 %v13256
      %v13667 = vpop.f32.mrb[0].mxu0
      %v13668 = vadd.f32 %v13507, %v13667
      %v13669 = vpop.f32.mrb[0].mxu0
      %v13670 = vpop.f32.mrb[0].mxu0
      %v13671 = vadd.f32 %v13510, %v13670
      %v13672 = vpop.f32.mrb[0].mxu0
      %13673 = vmatprep.mubr.bf16.mxu0 0
      %13674 = vmatmul.mubr.bf16.gmra.mrb[0].mxu0 %v13258
      %v13675 = vpop.f32.mrb[0].mxu0
      %v13676 = vadd.f32 %v13515, %v13675
      %v13677 = vpop.f32.mrb[0].mxu0
      %v13678 = vpop.f32.mrb[0].mxu0
      %v13679 = vadd.f32 %v13518, %v13678
      %v13680 = vpop.f32.mrb[0].mxu0
      %13681 = vmatprep.mubr.bf16.mxu0 0
      %13682 = vmatmul.mubr.bf16.gmra.mrb[0].mxu0 %v13260
      %v13683 = vpop.f32.mrb[0].mxu0
      %v13684 = vadd.f32 %v13523, %v13683
      %v13685 = vpop.f32.mrb[0].mxu0
      %v13686 = vpop.f32.mrb[0].mxu0
      %v13687 = vadd.f32 %v13526, %v13686
      %v13688 = vpop.f32.mrb[0].mxu0
      %13689 = vmatprep.mubr.bf16.mxu0 0
      %13690 = vmatmul.mubr.bf16.gmra.mrb[0].mxu0 %v13262
      %v13691 = vpop.f32.mrb[0].mxu0
      %v13692 = vadd.f32 %v13531, %v13691
      %v13693 = vpop.f32.mrb[0].mxu0
      %v13694 = vpop.f32.mrb[0].mxu0
      %v13695 = vadd.f32 %v13534, %v13694
      %v13696 = vpop.f32.mrb[0].mxu0
      %13697 = vmatprep.mubr.bf16.mxu0 0
      %13698 = vmatmul.mubr.bf16.gmra.mrb[0].mxu0 %v13264
      %v13699 = vpop.f32.mrb[0].mxu0
      %v13700 = vadd.f32 %v13539, %v13699
      %v13701 = vpop.f32.mrb[0].mxu0
      %v13702 = vpop.f32.mrb[0].mxu0
      %v13703 = vadd.f32 %v13542, %v13702
      %v13704 = vpop.f32.mrb[0].mxu0
      %13705 = vmatprep.mubr.bf16.mxu0 0
      %13706 = vmatmul.mubr.bf16.gmra.mrb[0].mxu0 %v13266
      %v13707 = vpop.f32.mrb[0].mxu0
      %v13708 = vadd.f32 %v13547, %v13707
      %v13709 = vpop.f32.mrb[0].mxu0
      %v13710 = vpop.f32.mrb[0].mxu0
      %v13711 = vadd.f32 %v13550, %v13710
      %v13712 = vpop.f32.mrb[0].mxu0
      %13713 = vmatprep.mubr.bf16.mxu0 0
      %13714 = vmatmul.mubr.bf16.gmra.mrb[0].mxu0 %v13268
      %v13715 = vpop.f32.mrb[0].mxu0
      %v13716 = vadd.f32 %v13555, %v13715
      %v13717 = vpop.f32.mrb[0].mxu0
      %v13718 = vpop.f32.mrb[0].mxu0
      %v13719 = vadd.f32 %v13558, %v13718
      %v13720 = vpop.f32.mrb[0].mxu0
      %13721 = vmatprep.mubr.bf16.mxu0 0
      %13722 = vmatmul.mubr.bf16.gmra.mrb[0].mxu0 %v13270
      %v13723 = vpop.f32.mrb[0].mxu0
      %v13724 = vadd.f32 %v13563, %v13723
      %v13725 = vpop.f32.mrb[0].mxu0
      %v13726 = vpop.f32.mrb[0].mxu0
      %v13727 = vadd.f32 %v13566, %v13726
      %v13728 = vpop.f32.mrb[0].mxu0
      %13729 = vmatprep.mubr.bf16.mxu0 0
      %13730 = vmatmul.mubr.bf16.gmra.mrb[0].mxu0 %v13272
      %v13731 = vpop.f32.mrb[0].mxu0
      %v13732 = vadd.f32 %v13571, %v13731
      %v13733 = vpop.f32.mrb[0].mxu0
      %v13734 = vpop.f32.mrb[0].mxu0
      %v13735 = vadd.f32 %v13574, %v13734
      %v13736 = vpop.f32.mrb[0].mxu0
      %13737 = vmatprep.mubr.bf16.mxu0 0
      %13738 = vmatmul.mubr.bf16.gmra.mrb[0].mxu0 %v13274
      %v13739 = vpop.f32.mrb[0].mxu0
      %v13740 = vadd.f32 %v13579, %v13739
      %v13741 = vpop.f32.mrb[0].mxu0
      %v13742 = vpop.f32.mrb[0].mxu0
      %v13743 = vadd.f32 %v13582, %v13742
      %v13744 = vpop.f32.mrb[0].mxu0
      %13745 = vmatprep.mubr.bf16.mxu0 0
      %13746 = vmatmul.mubr.bf16.gmra.mrb[0].mxu0 %v13277
      %v13747 = vpop.f32.mrb[0].mxu0
      %v13748 = vadd.f32 %v13587, %v13747
      %v13749 = vpop.f32.mrb[0].mxu0
      %v13750 = vpop.f32.mrb[0].mxu0
      %v13751 = vadd.f32 %v13590, %v13750
      %v13752 = vpop.f32.mrb[0].mxu0
      %13753 = vmatprep.mubr.bf16.mxu0 0
      %13754 = vmatmul.mubr.bf16.gmra.mrb[0].mxu0 %v2002
      %v13755 = vpop.f32.mrb[0].mxu0
      %v13756 = vadd.f32 %v13595, %v13755
      %v13757 = vpop.f32.mrb[0].mxu0
      %v13758 = vpop.f32.mrb[0].mxu0
      %v13759 = vadd.f32 %v13598, %v13758
      %v13760 = vpop.f32.mrb[0].mxu0
      %13761 = vdwg.mxu0
      %13762 = vxpose.xlu0.b32.start [1/16] %v13636, 128
      %13763 = vxpose.xlu0.b32.cont [2/16] %v13639, 128
      %13764 = vxpose.xlu0.b32.cont [3/16] %v13644, 128
      %13765 = vxpose.xlu0.b32.cont [4/16] %v13647, 128
      %13766 = vxpose.xlu0.b32.cont [5/16] %v13652, 128
      %13767 = vxpose.xlu0.b32.cont [6/16] %v13655, 128
      %13768 = vxpose.xlu0.b32.cont [7/16] %v13660, 128
      %13769 = vxpose.xlu0.b32.cont [8/16] %v13663, 128
      %13770 = vxpose.xlu0.b32.cont [9/16] %v13668, 128
      %13771 = vxpose.xlu0.b32.cont [10/16] %v13671, 128
      %13772 = vxpose.xlu0.b32.cont [11/16] %v13676, 128
      %13773 = vxpose.xlu0.b32.cont [12/16] %v13679, 128
      %13774 = vxpose.xlu0.b32.cont [13/16] %v13684, 128
      %13775 = vxpose.xlu0.b32.cont [14/16] %v13687, 128
      %13776 = vxpose.xlu0.b32.cont [15/16] %v13692, 128
      %13777 = vxpose.xlu0.b32.end [16/16] %v13695, 128
      %v13778 = vpop.trf.xlu0
      %v13779 = vpop.trf.xlu0
      %v13780 = vpop.trf.xlu0
      %v13781 = vpop.trf.xlu0
      %v13782 = vpop.trf.xlu0
      %v13783 = vpop.trf.xlu0
      %v13784 = vpop.trf.xlu0
      %v13785 = vpop.trf.xlu0
      %v13786 = vpop.trf.xlu0
      %v13787 = vpop.trf.xlu0
      %v13788 = vpop.trf.xlu0
      %v13789 = vpop.trf.xlu0
      %v13790 = vpop.trf.xlu0
      %v13791 = vpop.trf.xlu0
      %v13792 = vpop.trf.xlu0
      %v13793 = vpop.trf.xlu0
      %13794 = vxpose.xlu0.b32.start [1/16] %v13700, 128
      %13795 = vxpose.xlu0.b32.cont [2/16] %v13703, 128
      %13796 = vxpose.xlu0.b32.cont [3/16] %v13708, 128
      %13797 = vxpose.xlu0.b32.cont [4/16] %v13711, 128
      %13798 = vxpose.xlu0.b32.cont [5/16] %v13716, 128
      %13799 = vxpose.xlu0.b32.cont [6/16] %v13719, 128
      %13800 = vxpose.xlu0.b32.cont [7/16] %v13724, 128
      %13801 = vxpose.xlu0.b32.cont [8/16] %v13727, 128
      %13802 = vxpose.xlu0.b32.cont [9/16] %v13732, 128
      %13803 = vxpose.xlu0.b32.cont [10/16] %v13735, 128
      %13804 = vxpose.xlu0.b32.cont [11/16] %v13740, 128
      %13805 = vxpose.xlu0.b32.cont [12/16] %v13743, 128
      %13806 = vxpose.xlu0.b32.cont [13/16] %v13748, 128
      %13807 = vxpose.xlu0.b32.cont [14/16] %v13751, 128
      %13808 = vxpose.xlu0.b32.cont [15/16] %v13756, 128
      %13809 = vxpose.xlu0.b32.end [16/16] %v13759, 128
      %v13810 = vpop.trf.xlu0
      %v13811 = vpop.trf.xlu0
      %v13812 = vpop.trf.xlu0
      %v13813 = vpop.trf.xlu0
      %v13814 = vpop.trf.xlu0
      %v13815 = vpop.trf.xlu0
      %v13816 = vpop.trf.xlu0
      %v13817 = vpop.trf.xlu0
      %v13818 = vpop.trf.xlu0
      %v13819 = vpop.trf.xlu0
      %v13820 = vpop.trf.xlu0
      %v13821 = vpop.trf.xlu0
      %v13822 = vpop.trf.xlu0
      %v13823 = vpop.trf.xlu0
      %v13824 = vpop.trf.xlu0
      %v13825 = vpop.trf.xlu0
      %v13828 = vcombine.low %v13778, %v13810
      %13830 = vst [vmem:[%s548] sm:$0x77] %v13828
      %p13831 = scmp.lt.s32.totalorder %s28, 1
      %s13832 = scalar_select %p13831, %s28, 1
      %s13833 = smul.addr %s13832, 2
      %s13834 = smul.addr %s13833, 4
      %s13835 = scalar_lea.vmem %s17, %s13834
      // Predicated region
      $region89: #{autoencoder_forward.1} parent=87 // pred_check
        %p13836 = pneg %p408
      $region90: #{autoencoder_forward.1} parent=87 // pred_check_branch
        %13838 = sbr.rel (%p13836) target = $region92
      $region91: #{autoencoder_forward.1} parent=87 // pred_region
        _
      $region92: #{autoencoder_forward.1} parent=87 // pred_fallthru
        _
    $region88: #{autoencoder_forward.1} parent=5 // pred_fallthru
      _
    %p13839 = scmp.le.s32.totalorder 2, %s23
    // Predicated region
    $region93: #{autoencoder_forward.1} parent=5 // pred_check
      %p13840 = pneg %p13839
    $region94: #{autoencoder_forward.1} parent=5 // pred_check_branch
      %13842 = sbr.rel (%p13840) target = $region96
    $region95: #{autoencoder_forward.1} parent=5 // pred_region
      %s13843 = ssub.s32 %s23, 2
      // Predicated region
      $region97: #{autoencoder_forward.1} parent=95 // pred_check
        %p13844 = pneg %p414
      $region98: #{autoencoder_forward.1} parent=95 // pred_check_branch
        %13846 = sbr.rel (%p13844) target = $region100
      $region99: #{autoencoder_forward.1} parent=95 // pred_region
        %p13847 = scmp.lt.s32.totalorder %s29, 1
        %s13848 = scalar_select %p13847, %s29, 1
        %s13849 = smul.addr %s13848, 2
        %s13850 = smul.addr %s13849, 4
        %s13851 = scalar_lea.vmem %s17, %s13850
      $region100: #{autoencoder_forward.1} parent=95 // pred_fallthru
        _
    $region96: #{autoencoder_forward.1} parent=5 // pred_fallthru
      _
  $region6: #{autoencoder_forward.1} parent=0 // loop_footer
    %s27 = sadd.s32 1, %s23
  $region7: #{autoencoder_forward.1} parent=0 // loop_footer_branch
    %22 = sbr.rel target = $region3
  $region8: #{autoencoder_forward.1} parent=0 // loop_exit
    _

</llo_original>
